<compile_context>
chip_gen: v7x
topology: tpu7x:2x2x1
jax: 0.10.0
libtpu: 0.0.40
codegen_flags: <defaults>
</compile_context>

<pallas_src>
import jax
import jax.numpy as jnp
from jax.experimental import pallas as pl
from jax.experimental.pallas import tpu as pltpu


def _convlstm_kernel(x_ref, w_ref, b_ref, out_ref, comb_scr, c_scr):
    """One N-tile, Tb timesteps.

    x_ref    : (Tb, C_pad, tn)        bf16
    w_ref    : (4*hd, C_pad + hd)     bf16   fused [W_x | W_h] weight
    b_ref    : (4*hd, 1)              f32
    out_ref  : (Tb, hd, tn)           f32
    comb_scr : (C_pad + hd, tn)       bf16   persistent [x_t ; h] matmul operand
    c_scr    : (hd, tn)               f32    persistent cell state
    """
    hd = c_scr.shape[0]
    c_pad = comb_scr.shape[0] - hd
    n_steps = x_ref.shape[0]  # static -> Python loop fully unrolled

    @pl.when(pl.program_id(1) == 0)
    def _():
        comb_scr[...] = jnp.zeros_like(comb_scr)   # h part starts at 0
        c_scr[...] = jnp.zeros_like(c_scr)

    for t in range(n_steps):
        # Stage x_t into the combined operand (h part already holds h_{t-1}).
        comb_scr[:c_pad, :] = x_ref[t]

        # Single fused MXU dot: (4*hd, C_pad+hd) @ (C_pad+hd, tn) -> f32.
        gates = (
            jnp.dot(w_ref[...], comb_scr[...],
                    preferred_element_type=jnp.float32)
            + b_ref[...]
        )                                           # (4*hd, tn)

        # PyTorch gate order is i, f, o, g: one wide sigmoid over the
        # contiguous i|f|o slab, one tanh over g (fewer EUP dispatches).
        ifo = jax.nn.sigmoid(gates[: 3 * hd, :])
        g = jnp.tanh(gates[3 * hd:, :])
        i_g = ifo[:hd, :]
        f_g = ifo[hd: 2 * hd, :]
        o_g = ifo[2 * hd:, :]

        c_next = f_g * c_scr[...] + i_g * g
        h_next = o_g * jnp.tanh(c_next)

        c_scr[...] = c_next
        comb_scr[c_pad:, :] = h_next.astype(comb_scr.dtype)  # h for next step
        out_ref[t] = h_next.astype(out_ref.dtype)


def convlstm_pallas(x_seq, w_fused, bias, *, tn, tb):
    """x_seq: (T, C_pad, N_pad) bf16 -> (T, hidden, N_pad) f32."""
    T, c_pad, n_pad = x_seq.shape
    four_h, k_dim = w_fused.shape
    hidden = k_dim - c_pad

    grid = (n_pad // tn, T // tb)

    # VMEM budget (double-buffered pipeline blocks + persistent scratch).
    block_bytes = (
        2 * tb * c_pad * tn * 2          # x blocks (bf16)
        + 2 * tb * hidden * tn * 4       # out blocks (f32)
        + 2 * four_h * k_dim * 2         # fused weight (bf16)
        + 2 * four_h * 4                 # bias
        + (c_pad + hidden) * tn * 2      # combined [x ; h] scratch (bf16)
        + hidden * tn * 4                # c state scratch (f32)
    )
    vmem_limit = int(min(max(2 * block_bytes, 16 << 20), 48 << 20))

    return pl.pallas_call(
        _convlstm_kernel,
        out_shape=jax.ShapeDtypeStruct((T, hidden, n_pad), jnp.float32),
        grid_spec=pltpu.PrefetchScalarGridSpec(
            num_scalar_prefetch=0,
            grid=grid,
            in_specs=[
                pl.BlockSpec((tb, c_pad, tn), lambda n, t: (t, 0, n)),
                pl.BlockSpec((four_h, k_dim), lambda n, t: (0, 0)),
                pl.BlockSpec((four_h, 1), lambda n, t: (0, 0)),
            ],
            out_specs=pl.BlockSpec((tb, hidden, tn), lambda n, t: (t, 0, n)),
            scratch_shapes=[
                pltpu.VMEM((c_pad + hidden, tn), jnp.bfloat16),  # [x ; h]
                pltpu.VMEM((hidden, tn), jnp.float32),           # c state
            ],
        ),
        compiler_params=pltpu.CompilerParams(
            dimension_semantics=("parallel", "arbitrary"),
            vmem_limit_bytes=vmem_limit,
        ),
    )(x_seq, w_fused, bias)


def _round_up(x, m):
    return -(-x // m) * m


def _largest_divisor(n, candidates):
    for c in candidates:
        if n % c == 0:
            return c
    return 1


def convlstm_forward(x_bt_chw, w_conv, b_conv, hidden_dim):
    """Mirror of ConvLSTM.forward (kernel_size=(1,1)).

    x_bt_chw : (B, T, C, H, W)        PyTorch layout
    w_conv   : (4*hidden, C+hidden)   1x1 conv weight (squeezed)
    b_conv   : (4*hidden,)
    returns  : (B, T, hidden, H, W)   float32
    """
    B, T, C, H, W = x_bt_chw.shape
    hd = hidden_dim
    N = B * H * W

    # Feature-major layout: (B,T,C,H,W) -> (T, C, B, H, W) -> (T, C, N).
    x_seq = jnp.transpose(x_bt_chw, (1, 2, 0, 3, 4)).reshape(T, C, N)

    # Pad channels to the bf16 sublane tile (16) so the [x ; h] slab in VMEM is
    # tile-aligned; pad N to a lane-tile multiple and pick lane-dense tn.
    c_pad = _round_up(C, 16)
    n_pad = _round_up(N, 128)
    tn = _largest_divisor(n_pad, (1024, 512, 256, 128))
    tb = _largest_divisor(T, (8, 4, 2))

    x_seq = jnp.pad(x_seq, ((0, 0), (0, c_pad - C), (0, n_pad - N)))
    x_seq = x_seq.astype(jnp.bfloat16)

    # Fused weight (4*hd, c_pad + hd): x columns, zero pad columns, h columns.
    w_fused = jnp.zeros((4 * hd, c_pad + hd), jnp.float32)
    w_fused = w_fused.at[:, :C].set(w_conv[:, :C])
    w_fused = w_fused.at[:, c_pad:].set(w_conv[:, C:])
    w_fused = w_fused.astype(jnp.bfloat16)

    bias = b_conv.reshape(4 * hd, 1).astype(jnp.float32)

    out = convlstm_pallas(x_seq, w_fused, bias, tn=tn, tb=tb)  # (T, hd, n_pad)

    out = out[:, :, :N].reshape(T, hd, B, H, W)
    return jnp.transpose(out, (2, 0, 1, 3, 4))


def _reference_forward(x_bt_chw, w_conv, b_conv, hidden_dim):
    """Pure-JAX f32 reference matching the PyTorch semantics (1x1 conv)."""
    B, T, C, H, W = x_bt_chw.shape
    h = jnp.zeros((B, hidden_dim, H, W), jnp.float32)
    c = jnp.zeros((B, hidden_dim, H, W), jnp.float32)
    outs = []
    for t in range(T):
        x_t = x_bt_chw[:, t]                                  # (B, C, H, W)
        combined = jnp.concatenate([x_t, h], axis=1)          # (B, C+hd, H, W)
        conv = jnp.einsum("bchw,oc->bohw", combined, w_conv) + b_conv[None, :, None, None]
        cc_i, cc_f, cc_o, cc_g = jnp.split(conv, 4, axis=1)
        i = jax.nn.sigmoid(cc_i)
        f = jax.nn.sigmoid(cc_f)
        o = jax.nn.sigmoid(cc_o)
        g = jnp.tanh(cc_g)
        c = f * c + i * g
        h = o * jnp.tanh(c)
        outs.append(h[:, None])
    return jnp.concatenate(outs, axis=1)


if __name__ == "__main__":
    # Small shapes consistent with the module: batch=2, channels=4, spatial=16,
    # seq=8, hidden=32.
    B, T, C, H, W = 2, 8, 4, 16, 16
    HIDDEN = 32

    key = jax.random.PRNGKey(0)
    kx, kw, kb = jax.random.split(key, 3)

    x = jax.random.normal(kx, (B, T, C, H, W), dtype=jnp.float32)

    # Deterministic parameter init (Conv2d weight (4*hd, C+hd, 1, 1) squeezed).
    fan_in = C + HIDDEN
    bound = float(fan_in) ** -0.5
    w_conv = jax.random.uniform(kw, (4 * HIDDEN, C + HIDDEN), jnp.float32, -bound, bound)
    b_conv = jax.random.uniform(kb, (4 * HIDDEN,), jnp.float32, -bound, bound)

    out = convlstm_forward(x, w_conv, b_conv, HIDDEN)
    out = jax.block_until_ready(out)

    ref = _reference_forward(x, w_conv, b_conv, HIDDEN)
    assert out.shape == (B, T, HIDDEN, H, W)
    # bf16 matmul inputs -> small drift vs the pure-f32 reference.
    max_err = float(jnp.max(jnp.abs(out - ref)))
    assert jnp.allclose(out, ref, atol=5e-2, rtol=5e-2), (
        f"mismatch vs reference, max abs err = {max_err}"
    )

    print("KERNEL_OK")
</pallas_src>

<mosaic_0001>
module attributes {stable_mosaic.version = 11 : i64} {
  func.func @_convlstm_kernel(%arg0: i32, %arg1: i32, %arg2: memref<8x16x512xbf16, #tpu.memory_space<vmem>>, %arg3: memref<128x48xbf16, #tpu.memory_space<vmem>>, %arg4: memref<128x1xf32, #tpu.memory_space<vmem>>, %arg5: memref<8x32x512xf32, #tpu.memory_space<vmem>>, %arg6: memref<48x512xbf16, #tpu.memory_space<vmem>>, %arg7: memref<32x512xf32, #tpu.memory_space<vmem>>) attributes {dimension_semantics = [#tpu.dimension_semantics<parallel>, #tpu.dimension_semantics<arbitrary>], iteration_bounds = array<i64: 1, 1>, scalar_prefetch = 0 : i64, scratch_operands = 2 : i64, tpu.core_type = #tpu.core_type<tc>, window_params = [{transform_indices = @transform_0, window_bounds = array<i64: 8, 16, 512>}, {pipeline_mode = #tpu.pipeline_mode<synchronous>, transform_indices = @transform_1, window_bounds = array<i64: 128, 48>}, {pipeline_mode = #tpu.pipeline_mode<synchronous>, transform_indices = @transform_2, window_bounds = array<i64: 128, 1>}, {transform_indices = @transform_3, window_bounds = array<i64: 8, 32, 512>}]} {
    %c0_i32 = arith.constant 0 : i32
    %0 = arith.cmpi eq, %arg1, %c0_i32 : i32
    %1 = arith.extui %0 : i1 to i32
    %c0_i32_0 = arith.constant 0 : i32
    %2 = arith.cmpi ne, %1, %c0_i32_0 : i32
    scf.if %2 {
      %cst_167 = arith.constant 0.000000e+00 : bf16
      %259 = vector.broadcast %cst_167 : bf16 to vector<48x512xbf16>
      %c0_168 = arith.constant 0 : index
      %c0_169 = arith.constant 0 : index
      %260 = vector.load %arg6[%c0_168, %c0_169] : memref<48x512xbf16, #tpu.memory_space<vmem>>, vector<48x512xbf16>
      tpu.vector_store %arg6[%c0_168, %c0_169], %259 {strides = array<i32>} : memref<48x512xbf16, #tpu.memory_space<vmem>>, vector<48x512xbf16>,
      %cst_170 = arith.constant 0.000000e+00 : f32
      %261 = vector.broadcast %cst_170 : f32 to vector<32x512xf32>
      %c0_171 = arith.constant 0 : index
      %c0_172 = arith.constant 0 : index
      %262 = vector.load %arg7[%c0_171, %c0_172] : memref<32x512xf32, #tpu.memory_space<vmem>>, vector<32x512xf32>
      tpu.vector_store %arg7[%c0_171, %c0_172], %261 {strides = array<i32>} : memref<32x512xf32, #tpu.memory_space<vmem>>, vector<32x512xf32>,
    } else {
    }
    %c0 = arith.constant 0 : index
    %c0_1 = arith.constant 0 : index
    %c0_2 = arith.constant 0 : index
    %3 = vector.load %arg2[%c0, %c0_1, %c0_2] : memref<8x16x512xbf16, #tpu.memory_space<vmem>>, vector<1x16x512xbf16>
    %4 = vector.shape_cast %3 : vector<1x16x512xbf16> to vector<16x512xbf16>
    %c0_3 = arith.constant 0 : index
    %c0_4 = arith.constant 0 : index
    %5 = vector.load %arg6[%c0_3, %c0_4] : memref<48x512xbf16, #tpu.memory_space<vmem>>, vector<16x512xbf16>
    tpu.vector_store %arg6[%c0_3, %c0_4], %4 {strides = array<i32>} : memref<48x512xbf16, #tpu.memory_space<vmem>>, vector<16x512xbf16>,
    %c0_5 = arith.constant 0 : index
    %c0_6 = arith.constant 0 : index
    %6 = vector.load %arg3[%c0_5, %c0_6] : memref<128x48xbf16, #tpu.memory_space<vmem>>, vector<128x48xbf16>
    %c0_7 = arith.constant 0 : index
    %c0_8 = arith.constant 0 : index
    %7 = vector.load %arg6[%c0_7, %c0_8] : memref<48x512xbf16, #tpu.memory_space<vmem>>, vector<48x512xbf16>
    %cst = arith.constant dense<0.000000e+00> : vector<128x512xf32>
    %8 = tpu.matmul %6, %7, %cst {dimension_numbers = #tpu.dot_dimension_numbers<[1], [0], [0], [1], [0, 0, 1, 1], [], []>} : vector<128x48xbf16>, vector<48x512xbf16>, vector<128x512xf32> -> vector<128x512xf32>
    %c0_9 = arith.constant 0 : index
    %c0_10 = arith.constant 0 : index
    %9 = vector.load %arg4[%c0_9, %c0_10] : memref<128x1xf32, #tpu.memory_space<vmem>>, vector<128x1xf32>
    %10 = vector.broadcast %9 : vector<128x1xf32> to vector<128x512xf32>
    %11 = arith.addf %8, %10 : vector<128x512xf32>
    %12 = vector.extract_strided_slice %11 {offsets = [0, 0], sizes = [96, 512], strides = [1, 1]} : vector<128x512xf32> to vector<96x512xf32>
    %13 = arith.negf %12 : vector<96x512xf32>
    %14 = math.exp %13 : vector<96x512xf32>
    %cst_11 = arith.constant 1.000000e+00 : f32
    %15 = vector.broadcast %cst_11 : f32 to vector<96x512xf32>
    %16 = arith.addf %15, %14 : vector<96x512xf32>
    %17 = arith.divf %15, %16 : vector<96x512xf32>
    %18 = vector.extract_strided_slice %11 {offsets = [96, 0], sizes = [32, 512], strides = [1, 1]} : vector<128x512xf32> to vector<32x512xf32>
    %19 = math.tanh %18 : vector<32x512xf32>
    %20 = vector.extract_strided_slice %17 {offsets = [0, 0], sizes = [32, 512], strides = [1, 1]} : vector<96x512xf32> to vector<32x512xf32>
    %21 = vector.extract_strided_slice %17 {offsets = [32, 0], sizes = [32, 512], strides = [1, 1]} : vector<96x512xf32> to vector<32x512xf32>
    %22 = vector.extract_strided_slice %17 {offsets = [64, 0], sizes = [32, 512], strides = [1, 1]} : vector<96x512xf32> to vector<32x512xf32>
    %c0_12 = arith.constant 0 : index
    %c0_13 = arith.constant 0 : index
    %23 = vector.load %arg7[%c0_12, %c0_13] : memref<32x512xf32, #tpu.memory_space<vmem>>, vector<32x512xf32>
    %24 = arith.mulf %21, %23 : vector<32x512xf32>
    %25 = arith.mulf %20, %19 : vector<32x512xf32>
    %26 = arith.addf %24, %25 : vector<32x512xf32>
    %27 = math.tanh %26 : vector<32x512xf32>
    %28 = arith.mulf %22, %27 : vector<32x512xf32>
    %c0_14 = arith.constant 0 : index
    %c0_15 = arith.constant 0 : index
    %29 = vector.load %arg7[%c0_14, %c0_15] : memref<32x512xf32, #tpu.memory_space<vmem>>, vector<32x512xf32>
    tpu.vector_store %arg7[%c0_14, %c0_15], %26 {strides = array<i32>} : memref<32x512xf32, #tpu.memory_space<vmem>>, vector<32x512xf32>,
    %30 = arith.truncf %28 : vector<32x512xf32> to vector<32x512xbf16>
    %c16 = arith.constant 16 : index
    %c0_16 = arith.constant 0 : index
    %31 = vector.load %arg6[%c16, %c0_16] : memref<48x512xbf16, #tpu.memory_space<vmem>>, vector<32x512xbf16>
    tpu.vector_store %arg6[%c16, %c0_16], %30 {strides = array<i32>} : memref<48x512xbf16, #tpu.memory_space<vmem>>, vector<32x512xbf16>,
    %c0_17 = arith.constant 0 : index
    %c0_18 = arith.constant 0 : index
    %c0_19 = arith.constant 0 : index
    %32 = vector.load %arg5[%c0_17, %c0_18, %c0_19] : memref<8x32x512xf32, #tpu.memory_space<vmem>>, vector<1x32x512xf32>
    %33 = vector.shape_cast %32 : vector<1x32x512xf32> to vector<32x512xf32>
    %34 = vector.shape_cast %28 : vector<32x512xf32> to vector<1x32x512xf32>
    tpu.vector_store %arg5[%c0_17, %c0_18, %c0_19], %34 {strides = array<i32>} : memref<8x32x512xf32, #tpu.memory_space<vmem>>, vector<1x32x512xf32>,
    %c1 = arith.constant 1 : index
    %c0_20 = arith.constant 0 : index
    %c0_21 = arith.constant 0 : index
    %35 = vector.load %arg2[%c1, %c0_20, %c0_21] : memref<8x16x512xbf16, #tpu.memory_space<vmem>>, vector<1x16x512xbf16>
    %36 = vector.shape_cast %35 : vector<1x16x512xbf16> to vector<16x512xbf16>
    %c0_22 = arith.constant 0 : index
    %c0_23 = arith.constant 0 : index
    %37 = vector.load %arg6[%c0_22, %c0_23] : memref<48x512xbf16, #tpu.memory_space<vmem>>, vector<16x512xbf16>
    tpu.vector_store %arg6[%c0_22, %c0_23], %36 {strides = array<i32>} : memref<48x512xbf16, #tpu.memory_space<vmem>>, vector<16x512xbf16>,
    %c0_24 = arith.constant 0 : index
    %c0_25 = arith.constant 0 : index
    %38 = vector.load %arg3[%c0_24, %c0_25] : memref<128x48xbf16, #tpu.memory_space<vmem>>, vector<128x48xbf16>
    %c0_26 = arith.constant 0 : index
    %c0_27 = arith.constant 0 : index
    %39 = vector.load %arg6[%c0_26, %c0_27] : memref<48x512xbf16, #tpu.memory_space<vmem>>, vector<48x512xbf16>
    %cst_28 = arith.constant dense<0.000000e+00> : vector<128x512xf32>
    %40 = tpu.matmul %38, %39, %cst_28 {dimension_numbers = #tpu.dot_dimension_numbers<[1], [0], [0], [1], [0, 0, 1, 1], [], []>} : vector<128x48xbf16>, vector<48x512xbf16>, vector<128x512xf32> -> vector<128x512xf32>
    %c0_29 = arith.constant 0 : index
    %c0_30 = arith.constant 0 : index
    %41 = vector.load %arg4[%c0_29, %c0_30] : memref<128x1xf32, #tpu.memory_space<vmem>>, vector<128x1xf32>
    %42 = vector.broadcast %41 : vector<128x1xf32> to vector<128x512xf32>
    %43 = arith.addf %40, %42 : vector<128x512xf32>
    %44 = vector.extract_strided_slice %43 {offsets = [0, 0], sizes = [96, 512], strides = [1, 1]} : vector<128x512xf32> to vector<96x512xf32>
    %45 = arith.negf %44 : vector<96x512xf32>
    %46 = math.exp %45 : vector<96x512xf32>
    %cst_31 = arith.constant 1.000000e+00 : f32
    %47 = vector.broadcast %cst_31 : f32 to vector<96x512xf32>
    %48 = arith.addf %47, %46 : vector<96x512xf32>
    %49 = arith.divf %47, %48 : vector<96x512xf32>
    %50 = vector.extract_strided_slice %43 {offsets = [96, 0], sizes = [32, 512], strides = [1, 1]} : vector<128x512xf32> to vector<32x512xf32>
    %51 = math.tanh %50 : vector<32x512xf32>
    %52 = vector.extract_strided_slice %49 {offsets = [0, 0], sizes = [32, 512], strides = [1, 1]} : vector<96x512xf32> to vector<32x512xf32>
    %53 = vector.extract_strided_slice %49 {offsets = [32, 0], sizes = [32, 512], strides = [1, 1]} : vector<96x512xf32> to vector<32x512xf32>
    %54 = vector.extract_strided_slice %49 {offsets = [64, 0], sizes = [32, 512], strides = [1, 1]} : vector<96x512xf32> to vector<32x512xf32>
    %c0_32 = arith.constant 0 : index
    %c0_33 = arith.constant 0 : index
    %55 = vector.load %arg7[%c0_32, %c0_33] : memref<32x512xf32, #tpu.memory_space<vmem>>, vector<32x512xf32>
    %56 = arith.mulf %53, %55 : vector<32x512xf32>
    %57 = arith.mulf %52, %51 : vector<32x512xf32>
    %58 = arith.addf %56, %57 : vector<32x512xf32>
    %59 = math.tanh %58 : vector<32x512xf32>
    %60 = arith.mulf %54, %59 : vector<32x512xf32>
    %c0_34 = arith.constant 0 : index
    %c0_35 = arith.constant 0 : index
    %61 = vector.load %arg7[%c0_34, %c0_35] : memref<32x512xf32, #tpu.memory_space<vmem>>, vector<32x512xf32>
    tpu.vector_store %arg7[%c0_34, %c0_35], %58 {strides = array<i32>} : memref<32x512xf32, #tpu.memory_space<vmem>>, vector<32x512xf32>,
    %62 = arith.truncf %60 : vector<32x512xf32> to vector<32x512xbf16>
    %c16_36 = arith.constant 16 : index
    %c0_37 = arith.constant 0 : index
    %63 = vector.load %arg6[%c16_36, %c0_37] : memref<48x512xbf16, #tpu.memory_space<vmem>>, vector<32x512xbf16>
    tpu.vector_store %arg6[%c16_36, %c0_37], %62 {strides = array<i32>} : memref<48x512xbf16, #tpu.memory_space<vmem>>, vector<32x512xbf16>,
    %c1_38 = arith.constant 1 : index
    %c0_39 = arith.constant 0 : index
    %c0_40 = arith.constant 0 : index
    %64 = vector.load %arg5[%c1_38, %c0_39, %c0_40] : memref<8x32x512xf32, #tpu.memory_space<vmem>>, vector<1x32x512xf32>
    %65 = vector.shape_cast %64 : vector<1x32x512xf32> to vector<32x512xf32>
    %66 = vector.shape_cast %60 : vector<32x512xf32> to vector<1x32x512xf32>
    tpu.vector_store %arg5[%c1_38, %c0_39, %c0_40], %66 {strides = array<i32>} : memref<8x32x512xf32, #tpu.memory_space<vmem>>, vector<1x32x512xf32>,
    %c2 = arith.constant 2 : index
    %c0_41 = arith.constant 0 : index
    %c0_42 = arith.constant 0 : index
    %67 = vector.load %arg2[%c2, %c0_41, %c0_42] : memref<8x16x512xbf16, #tpu.memory_space<vmem>>, vector<1x16x512xbf16>
    %68 = vector.shape_cast %67 : vector<1x16x512xbf16> to vector<16x512xbf16>
    %c0_43 = arith.constant 0 : index
    %c0_44 = arith.constant 0 : index
    %69 = vector.load %arg6[%c0_43, %c0_44] : memref<48x512xbf16, #tpu.memory_space<vmem>>, vector<16x512xbf16>
    tpu.vector_store %arg6[%c0_43, %c0_44], %68 {strides = array<i32>} : memref<48x512xbf16, #tpu.memory_space<vmem>>, vector<16x512xbf16>,
    %c0_45 = arith.constant 0 : index
    %c0_46 = arith.constant 0 : index
    %70 = vector.load %arg3[%c0_45, %c0_46] : memref<128x48xbf16, #tpu.memory_space<vmem>>, vector<128x48xbf16>
    %c0_47 = arith.constant 0 : index
    %c0_48 = arith.constant 0 : index
    %71 = vector.load %arg6[%c0_47, %c0_48] : memref<48x512xbf16, #tpu.memory_space<vmem>>, vector<48x512xbf16>
    %cst_49 = arith.constant dense<0.000000e+00> : vector<128x512xf32>
    %72 = tpu.matmul %70, %71, %cst_49 {dimension_numbers = #tpu.dot_dimension_numbers<[1], [0], [0], [1], [0, 0, 1, 1], [], []>} : vector<128x48xbf16>, vector<48x512xbf16>, vector<128x512xf32> -> vector<128x512xf32>
    %c0_50 = arith.constant 0 : index
    %c0_51 = arith.constant 0 : index
    %73 = vector.load %arg4[%c0_50, %c0_51] : memref<128x1xf32, #tpu.memory_space<vmem>>, vector<128x1xf32>
    %74 = vector.broadcast %73 : vector<128x1xf32> to vector<128x512xf32>
    %75 = arith.addf %72, %74 : vector<128x512xf32>
    %76 = vector.extract_strided_slice %75 {offsets = [0, 0], sizes = [96, 512], strides = [1, 1]} : vector<128x512xf32> to vector<96x512xf32>
    %77 = arith.negf %76 : vector<96x512xf32>
    %78 = math.exp %77 : vector<96x512xf32>
    %cst_52 = arith.constant 1.000000e+00 : f32
    %79 = vector.broadcast %cst_52 : f32 to vector<96x512xf32>
    %80 = arith.addf %79, %78 : vector<96x512xf32>
    %81 = arith.divf %79, %80 : vector<96x512xf32>
    %82 = vector.extract_strided_slice %75 {offsets = [96, 0], sizes = [32, 512], strides = [1, 1]} : vector<128x512xf32> to vector<32x512xf32>
    %83 = math.tanh %82 : vector<32x512xf32>
    %84 = vector.extract_strided_slice %81 {offsets = [0, 0], sizes = [32, 512], strides = [1, 1]} : vector<96x512xf32> to vector<32x512xf32>
    %85 = vector.extract_strided_slice %81 {offsets = [32, 0], sizes = [32, 512], strides = [1, 1]} : vector<96x512xf32> to vector<32x512xf32>
    %86 = vector.extract_strided_slice %81 {offsets = [64, 0], sizes = [32, 512], strides = [1, 1]} : vector<96x512xf32> to vector<32x512xf32>
    %c0_53 = arith.constant 0 : index
    %c0_54 = arith.constant 0 : index
    %87 = vector.load %arg7[%c0_53, %c0_54] : memref<32x512xf32, #tpu.memory_space<vmem>>, vector<32x512xf32>
    %88 = arith.mulf %85, %87 : vector<32x512xf32>
    %89 = arith.mulf %84, %83 : vector<32x512xf32>
    %90 = arith.addf %88, %89 : vector<32x512xf32>
    %91 = math.tanh %90 : vector<32x512xf32>
    %92 = arith.mulf %86, %91 : vector<32x512xf32>
    %c0_55 = arith.constant 0 : index
    %c0_56 = arith.constant 0 : index
    %93 = vector.load %arg7[%c0_55, %c0_56] : memref<32x512xf32, #tpu.memory_space<vmem>>, vector<32x512xf32>
    tpu.vector_store %arg7[%c0_55, %c0_56], %90 {strides = array<i32>} : memref<32x512xf32, #tpu.memory_space<vmem>>, vector<32x512xf32>,
    %94 = arith.truncf %92 : vector<32x512xf32> to vector<32x512xbf16>
    %c16_57 = arith.constant 16 : index
    %c0_58 = arith.constant 0 : index
    %95 = vector.load %arg6[%c16_57, %c0_58] : memref<48x512xbf16, #tpu.memory_space<vmem>>, vector<32x512xbf16>
    tpu.vector_store %arg6[%c16_57, %c0_58], %94 {strides = array<i32>} : memref<48x512xbf16, #tpu.memory_space<vmem>>, vector<32x512xbf16>,
    %c2_59 = arith.constant 2 : index
    %c0_60 = arith.constant 0 : index
    %c0_61 = arith.constant 0 : index
    %96 = vector.load %arg5[%c2_59, %c0_60, %c0_61] : memref<8x32x512xf32, #tpu.memory_space<vmem>>, vector<1x32x512xf32>
    %97 = vector.shape_cast %96 : vector<1x32x512xf32> to vector<32x512xf32>
    %98 = vector.shape_cast %92 : vector<32x512xf32> to vector<1x32x512xf32>
    tpu.vector_store %arg5[%c2_59, %c0_60, %c0_61], %98 {strides = array<i32>} : memref<8x32x512xf32, #tpu.memory_space<vmem>>, vector<1x32x512xf32>,
    %c3 = arith.constant 3 : index
    %c0_62 = arith.constant 0 : index
    %c0_63 = arith.constant 0 : index
    %99 = vector.load %arg2[%c3, %c0_62, %c0_63] : memref<8x16x512xbf16, #tpu.memory_space<vmem>>, vector<1x16x512xbf16>
    %100 = vector.shape_cast %99 : vector<1x16x512xbf16> to vector<16x512xbf16>
    %c0_64 = arith.constant 0 : index
    %c0_65 = arith.constant 0 : index
    %101 = vector.load %arg6[%c0_64, %c0_65] : memref<48x512xbf16, #tpu.memory_space<vmem>>, vector<16x512xbf16>
    tpu.vector_store %arg6[%c0_64, %c0_65], %100 {strides = array<i32>} : memref<48x512xbf16, #tpu.memory_space<vmem>>, vector<16x512xbf16>,
    %c0_66 = arith.constant 0 : index
    %c0_67 = arith.constant 0 : index
    %102 = vector.load %arg3[%c0_66, %c0_67] : memref<128x48xbf16, #tpu.memory_space<vmem>>, vector<128x48xbf16>
    %c0_68 = arith.constant 0 : index
    %c0_69 = arith.constant 0 : index
    %103 = vector.load %arg6[%c0_68, %c0_69] : memref<48x512xbf16, #tpu.memory_space<vmem>>, vector<48x512xbf16>
    %cst_70 = arith.constant dense<0.000000e+00> : vector<128x512xf32>
    %104 = tpu.matmul %102, %103, %cst_70 {dimension_numbers = #tpu.dot_dimension_numbers<[1], [0], [0], [1], [0, 0, 1, 1], [], []>} : vector<128x48xbf16>, vector<48x512xbf16>, vector<128x512xf32> -> vector<128x512xf32>
    %c0_71 = arith.constant 0 : index
    %c0_72 = arith.constant 0 : index
    %105 = vector.load %arg4[%c0_71, %c0_72] : memref<128x1xf32, #tpu.memory_space<vmem>>, vector<128x1xf32>
    %106 = vector.broadcast %105 : vector<128x1xf32> to vector<128x512xf32>
    %107 = arith.addf %104, %106 : vector<128x512xf32>
    %108 = vector.extract_strided_slice %107 {offsets = [0, 0], sizes = [96, 512], strides = [1, 1]} : vector<128x512xf32> to vector<96x512xf32>
    %109 = arith.negf %108 : vector<96x512xf32>
    %110 = math.exp %109 : vector<96x512xf32>
    %cst_73 = arith.constant 1.000000e+00 : f32
    %111 = vector.broadcast %cst_73 : f32 to vector<96x512xf32>
    %112 = arith.addf %111, %110 : vector<96x512xf32>
    %113 = arith.divf %111, %112 : vector<96x512xf32>
    %114 = vector.extract_strided_slice %107 {offsets = [96, 0], sizes = [32, 512], strides = [1, 1]} : vector<128x512xf32> to vector<32x512xf32>
    %115 = math.tanh %114 : vector<32x512xf32>
    %116 = vector.extract_strided_slice %113 {offsets = [0, 0], sizes = [32, 512], strides = [1, 1]} : vector<96x512xf32> to vector<32x512xf32>
    %117 = vector.extract_strided_slice %113 {offsets = [32, 0], sizes = [32, 512], strides = [1, 1]} : vector<96x512xf32> to vector<32x512xf32>
    %118 = vector.extract_strided_slice %113 {offsets = [64, 0], sizes = [32, 512], strides = [1, 1]} : vector<96x512xf32> to vector<32x512xf32>
    %c0_74 = arith.constant 0 : index
    %c0_75 = arith.constant 0 : index
    %119 = vector.load %arg7[%c0_74, %c0_75] : memref<32x512xf32, #tpu.memory_space<vmem>>, vector<32x512xf32>
    %120 = arith.mulf %117, %119 : vector<32x512xf32>
    %121 = arith.mulf %116, %115 : vector<32x512xf32>
    %122 = arith.addf %120, %121 : vector<32x512xf32>
    %123 = math.tanh %122 : vector<32x512xf32>
    %124 = arith.mulf %118, %123 : vector<32x512xf32>
    %c0_76 = arith.constant 0 : index
    %c0_77 = arith.constant 0 : index
    %125 = vector.load %arg7[%c0_76, %c0_77] : memref<32x512xf32, #tpu.memory_space<vmem>>, vector<32x512xf32>
    tpu.vector_store %arg7[%c0_76, %c0_77], %122 {strides = array<i32>} : memref<32x512xf32, #tpu.memory_space<vmem>>, vector<32x512xf32>,
    %126 = arith.truncf %124 : vector<32x512xf32> to vector<32x512xbf16>
    %c16_78 = arith.constant 16 : index
    %c0_79 = arith.constant 0 : index
    %127 = vector.load %arg6[%c16_78, %c0_79] : memref<48x512xbf16, #tpu.memory_space<vmem>>, vector<32x512xbf16>
    tpu.vector_store %arg6[%c16_78, %c0_79], %126 {strides = array<i32>} : memref<48x512xbf16, #tpu.memory_space<vmem>>, vector<32x512xbf16>,
    %c3_80 = arith.constant 3 : index
    %c0_81 = arith.constant 0 : index
    %c0_82 = arith.constant 0 : index
    %128 = vector.load %arg5[%c3_80, %c0_81, %c0_82] : memref<8x32x512xf32, #tpu.memory_space<vmem>>, vector<1x32x512xf32>
    %129 = vector.shape_cast %128 : vector<1x32x512xf32> to vector<32x512xf32>
    %130 = vector.shape_cast %124 : vector<32x512xf32> to vector<1x32x512xf32>
    tpu.vector_store %arg5[%c3_80, %c0_81, %c0_82], %130 {strides = array<i32>} : memref<8x32x512xf32, #tpu.memory_space<vmem>>, vector<1x32x512xf32>,
    %c4 = arith.constant 4 : index
    %c0_83 = arith.constant 0 : index
    %c0_84 = arith.constant 0 : index
    %131 = vector.load %arg2[%c4, %c0_83, %c0_84] : memref<8x16x512xbf16, #tpu.memory_space<vmem>>, vector<1x16x512xbf16>
    %132 = vector.shape_cast %131 : vector<1x16x512xbf16> to vector<16x512xbf16>
    %c0_85 = arith.constant 0 : index
    %c0_86 = arith.constant 0 : index
    %133 = vector.load %arg6[%c0_85, %c0_86] : memref<48x512xbf16, #tpu.memory_space<vmem>>, vector<16x512xbf16>
    tpu.vector_store %arg6[%c0_85, %c0_86], %132 {strides = array<i32>} : memref<48x512xbf16, #tpu.memory_space<vmem>>, vector<16x512xbf16>,
    %c0_87 = arith.constant 0 : index
    %c0_88 = arith.constant 0 : index
    %134 = vector.load %arg3[%c0_87, %c0_88] : memref<128x48xbf16, #tpu.memory_space<vmem>>, vector<128x48xbf16>
    %c0_89 = arith.constant 0 : index
    %c0_90 = arith.constant 0 : index
    %135 = vector.load %arg6[%c0_89, %c0_90] : memref<48x512xbf16, #tpu.memory_space<vmem>>, vector<48x512xbf16>
    %cst_91 = arith.constant dense<0.000000e+00> : vector<128x512xf32>
    %136 = tpu.matmul %134, %135, %cst_91 {dimension_numbers = #tpu.dot_dimension_numbers<[1], [0], [0], [1], [0, 0, 1, 1], [], []>} : vector<128x48xbf16>, vector<48x512xbf16>, vector<128x512xf32> -> vector<128x512xf32>
    %c0_92 = arith.constant 0 : index
    %c0_93 = arith.constant 0 : index
    %137 = vector.load %arg4[%c0_92, %c0_93] : memref<128x1xf32, #tpu.memory_space<vmem>>, vector<128x1xf32>
    %138 = vector.broadcast %137 : vector<128x1xf32> to vector<128x512xf32>
    %139 = arith.addf %136, %138 : vector<128x512xf32>
    %140 = vector.extract_strided_slice %139 {offsets = [0, 0], sizes = [96, 512], strides = [1, 1]} : vector<128x512xf32> to vector<96x512xf32>
    %141 = arith.negf %140 : vector<96x512xf32>
    %142 = math.exp %141 : vector<96x512xf32>
    %cst_94 = arith.constant 1.000000e+00 : f32
    %143 = vector.broadcast %cst_94 : f32 to vector<96x512xf32>
    %144 = arith.addf %143, %142 : vector<96x512xf32>
    %145 = arith.divf %143, %144 : vector<96x512xf32>
    %146 = vector.extract_strided_slice %139 {offsets = [96, 0], sizes = [32, 512], strides = [1, 1]} : vector<128x512xf32> to vector<32x512xf32>
    %147 = math.tanh %146 : vector<32x512xf32>
    %148 = vector.extract_strided_slice %145 {offsets = [0, 0], sizes = [32, 512], strides = [1, 1]} : vector<96x512xf32> to vector<32x512xf32>
    %149 = vector.extract_strided_slice %145 {offsets = [32, 0], sizes = [32, 512], strides = [1, 1]} : vector<96x512xf32> to vector<32x512xf32>
    %150 = vector.extract_strided_slice %145 {offsets = [64, 0], sizes = [32, 512], strides = [1, 1]} : vector<96x512xf32> to vector<32x512xf32>
    %c0_95 = arith.constant 0 : index
    %c0_96 = arith.constant 0 : index
    %151 = vector.load %arg7[%c0_95, %c0_96] : memref<32x512xf32, #tpu.memory_space<vmem>>, vector<32x512xf32>
    %152 = arith.mulf %149, %151 : vector<32x512xf32>
    %153 = arith.mulf %148, %147 : vector<32x512xf32>
    %154 = arith.addf %152, %153 : vector<32x512xf32>
    %155 = math.tanh %154 : vector<32x512xf32>
    %156 = arith.mulf %150, %155 : vector<32x512xf32>
    %c0_97 = arith.constant 0 : index
    %c0_98 = arith.constant 0 : index
    %157 = vector.load %arg7[%c0_97, %c0_98] : memref<32x512xf32, #tpu.memory_space<vmem>>, vector<32x512xf32>
    tpu.vector_store %arg7[%c0_97, %c0_98], %154 {strides = array<i32>} : memref<32x512xf32, #tpu.memory_space<vmem>>, vector<32x512xf32>,
    %158 = arith.truncf %156 : vector<32x512xf32> to vector<32x512xbf16>
    %c16_99 = arith.constant 16 : index
    %c0_100 = arith.constant 0 : index
    %159 = vector.load %arg6[%c16_99, %c0_100] : memref<48x512xbf16, #tpu.memory_space<vmem>>, vector<32x512xbf16>
    tpu.vector_store %arg6[%c16_99, %c0_100], %158 {strides = array<i32>} : memref<48x512xbf16, #tpu.memory_space<vmem>>, vector<32x512xbf16>,
    %c4_101 = arith.constant 4 : index
    %c0_102 = arith.constant 0 : index
    %c0_103 = arith.constant 0 : index
    %160 = vector.load %arg5[%c4_101, %c0_102, %c0_103] : memref<8x32x512xf32, #tpu.memory_space<vmem>>, vector<1x32x512xf32>
    %161 = vector.shape_cast %160 : vector<1x32x512xf32> to vector<32x512xf32>
    %162 = vector.shape_cast %156 : vector<32x512xf32> to vector<1x32x512xf32>
    tpu.vector_store %arg5[%c4_101, %c0_102, %c0_103], %162 {strides = array<i32>} : memref<8x32x512xf32, #tpu.memory_space<vmem>>, vector<1x32x512xf32>,
    %c5 = arith.constant 5 : index
    %c0_104 = arith.constant 0 : index
    %c0_105 = arith.constant 0 : index
    %163 = vector.load %arg2[%c5, %c0_104, %c0_105] : memref<8x16x512xbf16, #tpu.memory_space<vmem>>, vector<1x16x512xbf16>
    %164 = vector.shape_cast %163 : vector<1x16x512xbf16> to vector<16x512xbf16>
    %c0_106 = arith.constant 0 : index
    %c0_107 = arith.constant 0 : index
    %165 = vector.load %arg6[%c0_106, %c0_107] : memref<48x512xbf16, #tpu.memory_space<vmem>>, vector<16x512xbf16>
    tpu.vector_store %arg6[%c0_106, %c0_107], %164 {strides = array<i32>} : memref<48x512xbf16, #tpu.memory_space<vmem>>, vector<16x512xbf16>,
    %c0_108 = arith.constant 0 : index
    %c0_109 = arith.constant 0 : index
    %166 = vector.load %arg3[%c0_108, %c0_109] : memref<128x48xbf16, #tpu.memory_space<vmem>>, vector<128x48xbf16>
    %c0_110 = arith.constant 0 : index
    %c0_111 = arith.constant 0 : index
    %167 = vector.load %arg6[%c0_110, %c0_111] : memref<48x512xbf16, #tpu.memory_space<vmem>>, vector<48x512xbf16>
    %cst_112 = arith.constant dense<0.000000e+00> : vector<128x512xf32>
    %168 = tpu.matmul %166, %167, %cst_112 {dimension_numbers = #tpu.dot_dimension_numbers<[1], [0], [0], [1], [0, 0, 1, 1], [], []>} : vector<128x48xbf16>, vector<48x512xbf16>, vector<128x512xf32> -> vector<128x512xf32>
    %c0_113 = arith.constant 0 : index
    %c0_114 = arith.constant 0 : index
    %169 = vector.load %arg4[%c0_113, %c0_114] : memref<128x1xf32, #tpu.memory_space<vmem>>, vector<128x1xf32>
    %170 = vector.broadcast %169 : vector<128x1xf32> to vector<128x512xf32>
    %171 = arith.addf %168, %170 : vector<128x512xf32>
    %172 = vector.extract_strided_slice %171 {offsets = [0, 0], sizes = [96, 512], strides = [1, 1]} : vector<128x512xf32> to vector<96x512xf32>
    %173 = arith.negf %172 : vector<96x512xf32>
    %174 = math.exp %173 : vector<96x512xf32>
    %cst_115 = arith.constant 1.000000e+00 : f32
    %175 = vector.broadcast %cst_115 : f32 to vector<96x512xf32>
    %176 = arith.addf %175, %174 : vector<96x512xf32>
    %177 = arith.divf %175, %176 : vector<96x512xf32>
    %178 = vector.extract_strided_slice %171 {offsets = [96, 0], sizes = [32, 512], strides = [1, 1]} : vector<128x512xf32> to vector<32x512xf32>
    %179 = math.tanh %178 : vector<32x512xf32>
    %180 = vector.extract_strided_slice %177 {offsets = [0, 0], sizes = [32, 512], strides = [1, 1]} : vector<96x512xf32> to vector<32x512xf32>
    %181 = vector.extract_strided_slice %177 {offsets = [32, 0], sizes = [32, 512], strides = [1, 1]} : vector<96x512xf32> to vector<32x512xf32>
    %182 = vector.extract_strided_slice %177 {offsets = [64, 0], sizes = [32, 512], strides = [1, 1]} : vector<96x512xf32> to vector<32x512xf32>
    %c0_116 = arith.constant 0 : index
    %c0_117 = arith.constant 0 : index
    %183 = vector.load %arg7[%c0_116, %c0_117] : memref<32x512xf32, #tpu.memory_space<vmem>>, vector<32x512xf32>
    %184 = arith.mulf %181, %183 : vector<32x512xf32>
    %185 = arith.mulf %180, %179 : vector<32x512xf32>
    %186 = arith.addf %184, %185 : vector<32x512xf32>
    %187 = math.tanh %186 : vector<32x512xf32>
    %188 = arith.mulf %182, %187 : vector<32x512xf32>
    %c0_118 = arith.constant 0 : index
    %c0_119 = arith.constant 0 : index
    %189 = vector.load %arg7[%c0_118, %c0_119] : memref<32x512xf32, #tpu.memory_space<vmem>>, vector<32x512xf32>
    tpu.vector_store %arg7[%c0_118, %c0_119], %186 {strides = array<i32>} : memref<32x512xf32, #tpu.memory_space<vmem>>, vector<32x512xf32>,
    %190 = arith.truncf %188 : vector<32x512xf32> to vector<32x512xbf16>
    %c16_120 = arith.constant 16 : index
    %c0_121 = arith.constant 0 : index
    %191 = vector.load %arg6[%c16_120, %c0_121] : memref<48x512xbf16, #tpu.memory_space<vmem>>, vector<32x512xbf16>
    tpu.vector_store %arg6[%c16_120, %c0_121], %190 {strides = array<i32>} : memref<48x512xbf16, #tpu.memory_space<vmem>>, vector<32x512xbf16>,
    %c5_122 = arith.constant 5 : index
    %c0_123 = arith.constant 0 : index
    %c0_124 = arith.constant 0 : index
    %192 = vector.load %arg5[%c5_122, %c0_123, %c0_124] : memref<8x32x512xf32, #tpu.memory_space<vmem>>, vector<1x32x512xf32>
    %193 = vector.shape_cast %192 : vector<1x32x512xf32> to vector<32x512xf32>
    %194 = vector.shape_cast %188 : vector<32x512xf32> to vector<1x32x512xf32>
    tpu.vector_store %arg5[%c5_122, %c0_123, %c0_124], %194 {strides = array<i32>} : memref<8x32x512xf32, #tpu.memory_space<vmem>>, vector<1x32x512xf32>,
    %c6 = arith.constant 6 : index
    %c0_125 = arith.constant 0 : index
    %c0_126 = arith.constant 0 : index
    %195 = vector.load %arg2[%c6, %c0_125, %c0_126] : memref<8x16x512xbf16, #tpu.memory_space<vmem>>, vector<1x16x512xbf16>
    %196 = vector.shape_cast %195 : vector<1x16x512xbf16> to vector<16x512xbf16>
    %c0_127 = arith.constant 0 : index
    %c0_128 = arith.constant 0 : index
    %197 = vector.load %arg6[%c0_127, %c0_128] : memref<48x512xbf16, #tpu.memory_space<vmem>>, vector<16x512xbf16>
    tpu.vector_store %arg6[%c0_127, %c0_128], %196 {strides = array<i32>} : memref<48x512xbf16, #tpu.memory_space<vmem>>, vector<16x512xbf16>,
    %c0_129 = arith.constant 0 : index
    %c0_130 = arith.constant 0 : index
    %198 = vector.load %arg3[%c0_129, %c0_130] : memref<128x48xbf16, #tpu.memory_space<vmem>>, vector<128x48xbf16>
    %c0_131 = arith.constant 0 : index
    %c0_132 = arith.constant 0 : index
    %199 = vector.load %arg6[%c0_131, %c0_132] : memref<48x512xbf16, #tpu.memory_space<vmem>>, vector<48x512xbf16>
    %cst_133 = arith.constant dense<0.000000e+00> : vector<128x512xf32>
    %200 = tpu.matmul %198, %199, %cst_133 {dimension_numbers = #tpu.dot_dimension_numbers<[1], [0], [0], [1], [0, 0, 1, 1], [], []>} : vector<128x48xbf16>, vector<48x512xbf16>, vector<128x512xf32> -> vector<128x512xf32>
    %c0_134 = arith.constant 0 : index
    %c0_135 = arith.constant 0 : index
    %201 = vector.load %arg4[%c0_134, %c0_135] : memref<128x1xf32, #tpu.memory_space<vmem>>, vector<128x1xf32>
    %202 = vector.broadcast %201 : vector<128x1xf32> to vector<128x512xf32>
    %203 = arith.addf %200, %202 : vector<128x512xf32>
    %204 = vector.extract_strided_slice %203 {offsets = [0, 0], sizes = [96, 512], strides = [1, 1]} : vector<128x512xf32> to vector<96x512xf32>
    %205 = arith.negf %204 : vector<96x512xf32>
    %206 = math.exp %205 : vector<96x512xf32>
    %cst_136 = arith.constant 1.000000e+00 : f32
    %207 = vector.broadcast %cst_136 : f32 to vector<96x512xf32>
    %208 = arith.addf %207, %206 : vector<96x512xf32>
    %209 = arith.divf %207, %208 : vector<96x512xf32>
    %210 = vector.extract_strided_slice %203 {offsets = [96, 0], sizes = [32, 512], strides = [1, 1]} : vector<128x512xf32> to vector<32x512xf32>
    %211 = math.tanh %210 : vector<32x512xf32>
    %212 = vector.extract_strided_slice %209 {offsets = [0, 0], sizes = [32, 512], strides = [1, 1]} : vector<96x512xf32> to vector<32x512xf32>
    %213 = vector.extract_strided_slice %209 {offsets = [32, 0], sizes = [32, 512], strides = [1, 1]} : vector<96x512xf32> to vector<32x512xf32>
    %214 = vector.extract_strided_slice %209 {offsets = [64, 0], sizes = [32, 512], strides = [1, 1]} : vector<96x512xf32> to vector<32x512xf32>
    %c0_137 = arith.constant 0 : index
    %c0_138 = arith.constant 0 : index
    %215 = vector.load %arg7[%c0_137, %c0_138] : memref<32x512xf32, #tpu.memory_space<vmem>>, vector<32x512xf32>
    %216 = arith.mulf %213, %215 : vector<32x512xf32>
    %217 = arith.mulf %212, %211 : vector<32x512xf32>
    %218 = arith.addf %216, %217 : vector<32x512xf32>
    %219 = math.tanh %218 : vector<32x512xf32>
    %220 = arith.mulf %214, %219 : vector<32x512xf32>
    %c0_139 = arith.constant 0 : index
    %c0_140 = arith.constant 0 : index
    %221 = vector.load %arg7[%c0_139, %c0_140] : memref<32x512xf32, #tpu.memory_space<vmem>>, vector<32x512xf32>
    tpu.vector_store %arg7[%c0_139, %c0_140], %218 {strides = array<i32>} : memref<32x512xf32, #tpu.memory_space<vmem>>, vector<32x512xf32>,
    %222 = arith.truncf %220 : vector<32x512xf32> to vector<32x512xbf16>
    %c16_141 = arith.constant 16 : index
    %c0_142 = arith.constant 0 : index
    %223 = vector.load %arg6[%c16_141, %c0_142] : memref<48x512xbf16, #tpu.memory_space<vmem>>, vector<32x512xbf16>
    tpu.vector_store %arg6[%c16_141, %c0_142], %222 {strides = array<i32>} : memref<48x512xbf16, #tpu.memory_space<vmem>>, vector<32x512xbf16>,
    %c6_143 = arith.constant 6 : index
    %c0_144 = arith.constant 0 : index
    %c0_145 = arith.constant 0 : index
    %224 = vector.load %arg5[%c6_143, %c0_144, %c0_145] : memref<8x32x512xf32, #tpu.memory_space<vmem>>, vector<1x32x512xf32>
    %225 = vector.shape_cast %224 : vector<1x32x512xf32> to vector<32x512xf32>
    %226 = vector.shape_cast %220 : vector<32x512xf32> to vector<1x32x512xf32>
    tpu.vector_store %arg5[%c6_143, %c0_144, %c0_145], %226 {strides = array<i32>} : memref<8x32x512xf32, #tpu.memory_space<vmem>>, vector<1x32x512xf32>,
    %c7 = arith.constant 7 : index
    %c0_146 = arith.constant 0 : index
    %c0_147 = arith.constant 0 : index
    %227 = vector.load %arg2[%c7, %c0_146, %c0_147] : memref<8x16x512xbf16, #tpu.memory_space<vmem>>, vector<1x16x512xbf16>
    %228 = vector.shape_cast %227 : vector<1x16x512xbf16> to vector<16x512xbf16>
    %c0_148 = arith.constant 0 : index
    %c0_149 = arith.constant 0 : index
    %229 = vector.load %arg6[%c0_148, %c0_149] : memref<48x512xbf16, #tpu.memory_space<vmem>>, vector<16x512xbf16>
    tpu.vector_store %arg6[%c0_148, %c0_149], %228 {strides = array<i32>} : memref<48x512xbf16, #tpu.memory_space<vmem>>, vector<16x512xbf16>,
    %c0_150 = arith.constant 0 : index
    %c0_151 = arith.constant 0 : index
    %230 = vector.load %arg3[%c0_150, %c0_151] : memref<128x48xbf16, #tpu.memory_space<vmem>>, vector<128x48xbf16>
    %c0_152 = arith.constant 0 : index
    %c0_153 = arith.constant 0 : index
    %231 = vector.load %arg6[%c0_152, %c0_153] : memref<48x512xbf16, #tpu.memory_space<vmem>>, vector<48x512xbf16>
    %cst_154 = arith.constant dense<0.000000e+00> : vector<128x512xf32>
    %232 = tpu.matmul %230, %231, %cst_154 {dimension_numbers = #tpu.dot_dimension_numbers<[1], [0], [0], [1], [0, 0, 1, 1], [], []>} : vector<128x48xbf16>, vector<48x512xbf16>, vector<128x512xf32> -> vector<128x512xf32>
    %c0_155 = arith.constant 0 : index
    %c0_156 = arith.constant 0 : index
    %233 = vector.load %arg4[%c0_155, %c0_156] : memref<128x1xf32, #tpu.memory_space<vmem>>, vector<128x1xf32>
    %234 = vector.broadcast %233 : vector<128x1xf32> to vector<128x512xf32>
    %235 = arith.addf %232, %234 : vector<128x512xf32>
    %236 = vector.extract_strided_slice %235 {offsets = [0, 0], sizes = [96, 512], strides = [1, 1]} : vector<128x512xf32> to vector<96x512xf32>
    %237 = arith.negf %236 : vector<96x512xf32>
    %238 = math.exp %237 : vector<96x512xf32>
    %cst_157 = arith.constant 1.000000e+00 : f32
    %239 = vector.broadcast %cst_157 : f32 to vector<96x512xf32>
    %240 = arith.addf %239, %238 : vector<96x512xf32>
    %241 = arith.divf %239, %240 : vector<96x512xf32>
    %242 = vector.extract_strided_slice %235 {offsets = [96, 0], sizes = [32, 512], strides = [1, 1]} : vector<128x512xf32> to vector<32x512xf32>
    %243 = math.tanh %242 : vector<32x512xf32>
    %244 = vector.extract_strided_slice %241 {offsets = [0, 0], sizes = [32, 512], strides = [1, 1]} : vector<96x512xf32> to vector<32x512xf32>
    %245 = vector.extract_strided_slice %241 {offsets = [32, 0], sizes = [32, 512], strides = [1, 1]} : vector<96x512xf32> to vector<32x512xf32>
    %246 = vector.extract_strided_slice %241 {offsets = [64, 0], sizes = [32, 512], strides = [1, 1]} : vector<96x512xf32> to vector<32x512xf32>
    %c0_158 = arith.constant 0 : index
    %c0_159 = arith.constant 0 : index
    %247 = vector.load %arg7[%c0_158, %c0_159] : memref<32x512xf32, #tpu.memory_space<vmem>>, vector<32x512xf32>
    %248 = arith.mulf %245, %247 : vector<32x512xf32>
    %249 = arith.mulf %244, %243 : vector<32x512xf32>
    %250 = arith.addf %248, %249 : vector<32x512xf32>
    %251 = math.tanh %250 : vector<32x512xf32>
    %252 = arith.mulf %246, %251 : vector<32x512xf32>
    %c0_160 = arith.constant 0 : index
    %c0_161 = arith.constant 0 : index
    %253 = vector.load %arg7[%c0_160, %c0_161] : memref<32x512xf32, #tpu.memory_space<vmem>>, vector<32x512xf32>
    tpu.vector_store %arg7[%c0_160, %c0_161], %250 {strides = array<i32>} : memref<32x512xf32, #tpu.memory_space<vmem>>, vector<32x512xf32>,
    %254 = arith.truncf %252 : vector<32x512xf32> to vector<32x512xbf16>
    %c16_162 = arith.constant 16 : index
    %c0_163 = arith.constant 0 : index
    %255 = vector.load %arg6[%c16_162, %c0_163] : memref<48x512xbf16, #tpu.memory_space<vmem>>, vector<32x512xbf16>
    tpu.vector_store %arg6[%c16_162, %c0_163], %254 {strides = array<i32>} : memref<48x512xbf16, #tpu.memory_space<vmem>>, vector<32x512xbf16>,
    %c7_164 = arith.constant 7 : index
    %c0_165 = arith.constant 0 : index
    %c0_166 = arith.constant 0 : index
    %256 = vector.load %arg5[%c7_164, %c0_165, %c0_166] : memref<8x32x512xf32, #tpu.memory_space<vmem>>, vector<1x32x512xf32>
    %257 = vector.shape_cast %256 : vector<1x32x512xf32> to vector<32x512xf32>
    %258 = vector.shape_cast %252 : vector<32x512xf32> to vector<1x32x512xf32>
    tpu.vector_store %arg5[%c7_164, %c0_165, %c0_166], %258 {strides = array<i32>} : memref<8x32x512xf32, #tpu.memory_space<vmem>>, vector<1x32x512xf32>,
    return
  }
  func.func @transform_0(%arg0: i32, %arg1: i32) -> (i32, i32, i32) {
    %c0_i32 = arith.constant 0 : i32
    %c0_i32_0 = arith.constant 0 : i32
    return %arg1, %c0_i32, %arg0 : i32, i32, i32
  }
  func.func @transform_1(%arg0: i32, %arg1: i32) -> (i32, i32) {
    %c0_i32 = arith.constant 0 : i32
    %c0_i32_0 = arith.constant 0 : i32
    %c0_i32_1 = arith.constant 0 : i32
    return %c0_i32, %c0_i32_0 : i32, i32
  }
  func.func @transform_2(%arg0: i32, %arg1: i32) -> (i32, i32) {
    %c0_i32 = arith.constant 0 : i32
    %c0_i32_0 = arith.constant 0 : i32
    %c0_i32_1 = arith.constant 0 : i32
    return %c0_i32, %c0_i32_0 : i32, i32
  }
  func.func @transform_3(%arg0: i32, %arg1: i32) -> (i32, i32, i32) {
    %c0_i32 = arith.constant 0 : i32
    %c0_i32_0 = arith.constant 0 : i32
    return %arg1, %c0_i32, %arg0 : i32, i32, i32
  }
}

</mosaic_0001>

<llo_original>
// kernel: tpu_custom_call.1
$region0: #{tpu_custom_call.1}
  #allocation0 [shape = 'u32[]', space=smem, size = 0x4, offset = 0x4, fixed_abs, tag = 'smem constant byte address 0x4 - core index']
  #allocation1 [shape = 'u32[144,128]{1,0:T(1,128)}', space=vmem, size = 0x12000, scoped, tag = 'internal scratch']
  #allocation2 [shape = 'bf16[48,512]{1,0:T(16,128)(2,1)}', space=vmem, size = 0xc000, scoped, tag = 'scratch operand']
  #allocation3 [shape = 'f32[32,512]{1,0:T(8,128)}', space=vmem, size = 0x10000, scoped, tag = 'scratch operand']
  %s0 = inlined_call_operand.hbm [shape: bf16[8,16,512], index: 0, kind: input, shape index: {}]
  %s1 = inlined_call_operand.vmem [shape: bf16[128,48], index: 1, kind: input, shape index: {}]
  %s2 = inlined_call_operand.vmem [shape: f32[128,1], index: 2, kind: input, shape index: {}]
  %s3 = inlined_call_operand.hbm [shape: f32[8,32,512], index: 3, kind: output, shape index: {}]
  %s4 = sld [smem:[#allocation0]]
  $region30: #{tpu_custom_call.1} parent=0
    _
  %s6 = ssub.s32 1, %s4
  %s7 = scalar_select 0, %s6, %s4
  $region1: #{tpu_custom_call.1} parent=0
    #allocation4 [shape = 'u8[131072]{0}', space=vmem, size = 0x20000, scoped, tag = 'input window, operand 0, single buffered']
    #allocation5 [shape = 's32[1]{0}', space=sflag, size = 0x4, scoped, tag = 'scoped memory for tpu_custom_call.1']
    #allocation6 [shape = 's32[1]{0}', space=sflag, size = 0x4, scoped, tag = 'scoped memory for tpu_custom_call.1']
    #allocation7 [shape = 'u8[524288]{0}', space=vmem, size = 0x80000, scoped, tag = 'output window, operand 0, single buffered']
    %8 = vsyncpa [#allocation5], 0
    %9 = vsyncpa [#allocation6], 0
    // Predicated region
    $region2: #{tpu_custom_call.1} parent=1 // pred_check
      _
    $region3: #{tpu_custom_call.1} parent=1 // pred_check_branch
      %11 = sbr.rel (0) target = $region5
    $region4: #{tpu_custom_call.1} parent=1 // pred_region
      %s13 = ssub.s32 4096, 4096
      %14 = vsyncadd [#allocation5], %s13
      %s15 = sshll.u32 [#allocation4], 4
      %s16 = int_to_ptr.vmem [resolvable:$true] %s15
      %21 = dma.hbm_to_vmem [thread:$0]  %s0, 4096, %s16, [#allocation5], 256, 256, 16
    $region5: #{tpu_custom_call.1} parent=1 // pred_fallthru
      _
    // Predicated region
    $region6: #{tpu_custom_call.1} parent=1 // pred_check
      _
    $region7: #{tpu_custom_call.1} parent=1 // pred_check_branch
      %23 = sbr.rel (0) target = $region9
    $region8: #{tpu_custom_call.1} parent=1 // pred_region
      _
    $region9: #{tpu_custom_call.1} parent=1 // pred_fallthru
      _
    // Predicated region
    $region10: #{tpu_custom_call.1} parent=1 // pred_check
      _
    $region11: #{tpu_custom_call.1} parent=1 // pred_check_branch
      %25 = sbr.rel (0) target = $region13
    $region12: #{tpu_custom_call.1} parent=1 // pred_region
      _
    $region13: #{tpu_custom_call.1} parent=1 // pred_fallthru
      _
    // Predicated region
    $region14: #{tpu_custom_call.1} parent=1 // pred_check
      _
    $region15: #{tpu_custom_call.1} parent=1 // pred_check_branch
      %27 = sbr.rel (0) target = $region17
    $region16: #{tpu_custom_call.1} parent=1 // pred_region
      %28 = dma.done [#allocation5], 4096
    $region17: #{tpu_custom_call.1} parent=1 // pred_fallthru
      _
    %p30 = scmp.eq.s32.totalorder 0, 0
    // Predicated region
    $region18: #{tpu_custom_call.1} parent=1 // pred_check
      %p31 = pneg %p30
    $region19: #{tpu_custom_call.1} parent=1 // pred_check_branch
      %33 = sbr.rel (%p31) target = $region21
    $region20: #{tpu_custom_call.1} parent=1 // pred_region
      %34 = vst [vmem:[#allocation2] sm:$0xff] 0
      %35 = vst [vmem:[#allocation2 + $0x8] sm:$0xff] 0
      %36 = vst [vmem:[#allocation2 + $0x10] sm:$0xff] 0
      %37 = vst [vmem:[#allocation2 + $0x18] sm:$0xff] 0
      %38 = vst [vmem:[#allocation2 + $0x20] sm:$0xff] 0
      %39 = vst [vmem:[#allocation2 + $0x28] sm:$0xff] 0
      %40 = vst [vmem:[#allocation2 + $0x30] sm:$0xff] 0
      %41 = vst [vmem:[#allocation2 + $0x38] sm:$0xff] 0
      %42 = vst [vmem:[#allocation2 + $0x40] sm:$0xff] 0
      %43 = vst [vmem:[#allocation2 + $0x48] sm:$0xff] 0
      %44 = vst [vmem:[#allocation2 + $0x50] sm:$0xff] 0
      %45 = vst [vmem:[#allocation2 + $0x58] sm:$0xff] 0
      %46 = vst [vmem:[#allocation3] sm:$0xff] 0.0
      %47 = vst [vmem:[#allocation3 + $0x8] sm:$0xff] 0.0
      %48 = vst [vmem:[#allocation3 + $0x10] sm:$0xff] 0.0
      %49 = vst [vmem:[#allocation3 + $0x18] sm:$0xff] 0.0
      %50 = vst [vmem:[#allocation3 + $0x20] sm:$0xff] 0.0
      %51 = vst [vmem:[#allocation3 + $0x28] sm:$0xff] 0.0
      %52 = vst [vmem:[#allocation3 + $0x30] sm:$0xff] 0.0
      %53 = vst [vmem:[#allocation3 + $0x38] sm:$0xff] 0.0
      %54 = vst [vmem:[#allocation3 + $0x40] sm:$0xff] 0.0
      %55 = vst [vmem:[#allocation3 + $0x48] sm:$0xff] 0.0
      %56 = vst [vmem:[#allocation3 + $0x50] sm:$0xff] 0.0
      %57 = vst [vmem:[#allocation3 + $0x58] sm:$0xff] 0.0
      %58 = vst [vmem:[#allocation3 + $0x60] sm:$0xff] 0.0
      %59 = vst [vmem:[#allocation3 + $0x68] sm:$0xff] 0.0
      %60 = vst [vmem:[#allocation3 + $0x70] sm:$0xff] 0.0
      %61 = vst [vmem:[#allocation3 + $0x78] sm:$0xff] 0.0
    $region21: #{tpu_custom_call.1} parent=1 // pred_fallthru
      _
    %v62 = vld [vmem:[#allocation4] sm:$0xff]
    %v63 = vld [vmem:[#allocation4 + $0x8] sm:$0xff]
    %v64 = vld [vmem:[#allocation4 + $0x10] sm:$0xff]
    %v65 = vld [vmem:[#allocation4 + $0x18] sm:$0xff]
    %v70 = vunpack.c.l.b16 %v62
    %v71 = vunpack.c.h.b16 %v62
    %v72 = vunpack.c.l.b16 %v63
    %v73 = vunpack.c.h.b16 %v63
    %v74 = vunpack.c.l.b16 %v64
    %v75 = vunpack.c.h.b16 %v64
    %v76 = vunpack.c.l.b16 %v65
    %v77 = vunpack.c.h.b16 %v65
    %v78 = vpack.c.b16 %v74, %v70
    %v79 = vpack.c.b16 %v75, %v71
    %v80 = vpack.c.b16 %v76, %v72
    %v81 = vpack.c.b16 %v77, %v73
    %86 = vst [vmem:[#allocation2] sm:$0xff] %v78
    %87 = vst [vmem:[#allocation2 + $0x8] sm:$0xff] %v79
    %88 = vst [vmem:[#allocation2 + $0x10] sm:$0xff] %v80
    %89 = vst [vmem:[#allocation2 + $0x18] sm:$0xff] %v81
    %v90 = vld [vmem:[%s1] sm:$0xf]
    %v91 = vld [vmem:[%s1 + $0x4] sm:$0xf]
    %v92 = vld [vmem:[%s1 + $0x8] sm:$0xf]
    %v93 = vld [vmem:[%s1 + $0xc] sm:$0xf]
    %v94 = vld [vmem:[%s1 + $0x10] sm:$0xf]
    %v95 = vld [vmem:[%s1 + $0x14] sm:$0xf]
    %v96 = vld [vmem:[%s1 + $0x18] sm:$0xf]
    %v97 = vld [vmem:[%s1 + $0x1c] sm:$0xf]
    %v98 = vld [vmem:[%s1 + $0x20] sm:$0xf]
    %v99 = vld [vmem:[%s1 + $0x24] sm:$0xf]
    %v100 = vld [vmem:[%s1 + $0x28] sm:$0xf]
    %v101 = vld [vmem:[%s1 + $0x2c] sm:$0xf]
    %v102 = vld [vmem:[%s1 + $0x30] sm:$0xf]
    %v103 = vld [vmem:[%s1 + $0x34] sm:$0xf]
    %v104 = vld [vmem:[%s1 + $0x38] sm:$0xf]
    %v105 = vld [vmem:[%s1 + $0x3c] sm:$0xf]
    %v106 = vld [vmem:[#allocation2] sm:$0xff]
    %v107 = vld [vmem:[#allocation2 + $0x8] sm:$0xff]
    %v108 = vld [vmem:[#allocation2 + $0x10] sm:$0xff]
    %v109 = vld [vmem:[#allocation2 + $0x18] sm:$0xff]
    %v110 = vld [vmem:[#allocation2 + $0x20] sm:$0xff]
    %v111 = vld [vmem:[#allocation2 + $0x28] sm:$0xff]
    %v112 = vld [vmem:[#allocation2 + $0x30] sm:$0xff]
    %v113 = vld [vmem:[#allocation2 + $0x38] sm:$0xff]
    %v114 = vld [vmem:[#allocation2 + $0x40] sm:$0xff]
    %v115 = vld [vmem:[#allocation2 + $0x48] sm:$0xff]
    %v116 = vld [vmem:[#allocation2 + $0x50] sm:$0xff]
    %v117 = vld [vmem:[#allocation2 + $0x58] sm:$0xff]
    %v118 = vld [vmem:[%s2] sm:$0xff]
    %v119 = vld [vmem:[%s2 + $0x8] sm:$0xff]
    %v120 = vld [vmem:[%s2 + $0x10] sm:$0xff]
    %v121 = vld [vmem:[%s2 + $0x18] sm:$0xff]
    %v122 = vld [vmem:[%s2 + $0x20] sm:$0xff]
    %v123 = vld [vmem:[%s2 + $0x28] sm:$0xff]
    %v124 = vld [vmem:[%s2 + $0x30] sm:$0xff]
    %v125 = vld [vmem:[%s2 + $0x38] sm:$0xff]
    %v126 = vld [vmem:[%s2 + $0x40] sm:$0xff]
    %v127 = vld [vmem:[%s2 + $0x48] sm:$0xff]
    %v128 = vld [vmem:[%s2 + $0x50] sm:$0xff]
    %v129 = vld [vmem:[%s2 + $0x58] sm:$0xff]
    %v130 = vld [vmem:[%s2 + $0x60] sm:$0xff]
    %v131 = vld [vmem:[%s2 + $0x68] sm:$0xff]
    %v132 = vld [vmem:[%s2 + $0x70] sm:$0xff]
    %v133 = vld [vmem:[%s2 + $0x78] sm:$0xff]
    %135 = vset.pattern.permute.xlu0 0
    %136 = vperm.xlu0 %135, %v118
    %v137 = vpop.permute.xlu0 %136
    %140 = vset.pattern.permute.xlu0 0
    %141 = vperm.xlu0 %140, %v119
    %v142 = vpop.permute.xlu0 %141
    %145 = vset.pattern.permute.xlu0 0
    %146 = vperm.xlu0 %145, %v120
    %v147 = vpop.permute.xlu0 %146
    %150 = vset.pattern.permute.xlu0 0
    %151 = vperm.xlu0 %150, %v121
    %v152 = vpop.permute.xlu0 %151
    %155 = vset.pattern.permute.xlu0 0
    %156 = vperm.xlu0 %155, %v122
    %v157 = vpop.permute.xlu0 %156
    %160 = vset.pattern.permute.xlu0 0
    %161 = vperm.xlu0 %160, %v123
    %v162 = vpop.permute.xlu0 %161
    %165 = vset.pattern.permute.xlu0 0
    %166 = vperm.xlu0 %165, %v124
    %v167 = vpop.permute.xlu0 %166
    %170 = vset.pattern.permute.xlu0 0
    %171 = vperm.xlu0 %170, %v125
    %v172 = vpop.permute.xlu0 %171
    %175 = vset.pattern.permute.xlu0 0
    %176 = vperm.xlu0 %175, %v126
    %v177 = vpop.permute.xlu0 %176
    %180 = vset.pattern.permute.xlu0 0
    %181 = vperm.xlu0 %180, %v127
    %v182 = vpop.permute.xlu0 %181
    %185 = vset.pattern.permute.xlu0 0
    %186 = vperm.xlu0 %185, %v128
    %v187 = vpop.permute.xlu0 %186
    %190 = vset.pattern.permute.xlu0 0
    %191 = vperm.xlu0 %190, %v129
    %v192 = vpop.permute.xlu0 %191
    %195 = vset.pattern.permute.xlu0 0
    %196 = vperm.xlu0 %195, %v130
    %v197 = vpop.permute.xlu0 %196
    %200 = vset.pattern.permute.xlu0 0
    %201 = vperm.xlu0 %200, %v131
    %v202 = vpop.permute.xlu0 %201
    %205 = vset.pattern.permute.xlu0 0
    %206 = vperm.xlu0 %205, %v132
    %v207 = vpop.permute.xlu0 %206
    %210 = vset.pattern.permute.xlu0 0
    %211 = vperm.xlu0 %210, %v133
    %v212 = vpop.permute.xlu0 %211
    %v230 = vunpack.c.l.b16 %v90
    %v231 = vunpack.c.l.b16 %v91
    %v232 = vunpack.c.l.b16 %v92
    %v233 = vunpack.c.l.b16 %v93
    %v234 = vunpack.c.l.b16 %v94
    %v235 = vunpack.c.l.b16 %v95
    %v236 = vunpack.c.l.b16 %v96
    %v237 = vunpack.c.l.b16 %v97
    %v238 = vunpack.c.l.b16 %v98
    %v239 = vunpack.c.l.b16 %v99
    %v240 = vunpack.c.l.b16 %v100
    %v241 = vunpack.c.l.b16 %v101
    %v242 = vunpack.c.l.b16 %v102
    %v243 = vunpack.c.l.b16 %v103
    %v244 = vunpack.c.l.b16 %v104
    %v245 = vunpack.c.l.b16 %v105
    %v246 = vpack.c.b16 %v231, %v230
    %v247 = vpack.c.b16 %v233, %v232
    %v248 = vpack.c.b16 %v235, %v234
    %v249 = vpack.c.b16 %v237, %v236
    %v250 = vpack.c.b16 %v239, %v238
    %v251 = vpack.c.b16 %v241, %v240
    %v252 = vpack.c.b16 %v243, %v242
    %v253 = vpack.c.b16 %v245, %v244
    %vm254 = vcmask 392192
    %v256 = vsel %vm254, %v246, 0
    %v259 = vsel %vm254, %v247, 0
    %v262 = vsel %vm254, %v248, 0
    %v265 = vsel %vm254, %v249, 0
    %v268 = vsel %vm254, %v250, 0
    %v271 = vsel %vm254, %v251, 0
    %v274 = vsel %vm254, %v252, 0
    %v277 = vsel %vm254, %v253, 0
    %279 = vmatprep.subr.bf16.mxu0 %v107
    %280 = vmatpush1.bf16.msra.mxu0 %v106
    %281 = vmatprep.subr.bf16.mxu0 %v111
    %282 = vmatpush1.bf16.msra.mxu0 %v110
    %283 = vmatprep.subr.bf16.mxu0 %v115
    %284 = vmatpush1.bf16.msra.mxu0 %v114
    %285 = vmatprep.subr.bf16.mxu0 0
    %286 = vmatpush1.bf16.msra.mxu0 0
    %287 = vmatprep.subr.bf16.mxu0 0
    %288 = vmatpush1.bf16.msra.mxu0 0
    %289 = vmatprep.subr.bf16.mxu0 0
    %290 = vmatpush1.bf16.msra.mxu0 0
    %291 = vmatprep.subr.bf16.mxu0 0
    %292 = vmatpush1.bf16.msra.mxu0 0
    %293 = vmatprep.subr.bf16.mxu0 0
    %294 = vmatpush1.bf16.msra.mxu0 0
    %295 = vmatprep.subr.bf16.mxu0 0
    %296 = vmatpush1.bf16.msra.mxu0 0
    %297 = vmatprep.subr.bf16.mxu0 0
    %298 = vmatpush1.bf16.msra.mxu0 0
    %299 = vmatprep.subr.bf16.mxu0 0
    %300 = vmatpush1.bf16.msra.mxu0 0
    %301 = vmatprep.subr.bf16.mxu0 0
    %302 = vmatpush1.bf16.msra.mxu0 0
    %303 = vmatprep.subr.bf16.mxu0 0
    %304 = vmatpush1.bf16.msra.mxu0 0
    %305 = vmatprep.subr.bf16.mxu0 0
    %306 = vmatpush1.bf16.msra.mxu0 0
    %307 = vmatprep.subr.bf16.mxu0 0
    %308 = vmatpush1.bf16.msra.mxu0 0
    %309 = vmatprep.subr.bf16.mxu0 0
    %310 = vmatpush1.bf16.msra.mxu0 0
    %311 = vmatprep.mubr.bf16.mxu0 0
    %312 = vmatmul.mubr.bf16.gmra.mrb[0].mxu0 %v256
    %v313 = vpop.f32.mrb[0].mxu0
    %v314 = vadd.f32 %v137, %v313
    %v315 = vpop.f32.mrb[0].mxu0
    %v316 = vadd.f32 %v137, %v315
    %v317 = vpop.f32.mrb[0].mxu0
    %v318 = vadd.f32 %v142, %v317
    %v319 = vpop.f32.mrb[0].mxu0
    %v320 = vadd.f32 %v142, %v319
    %321 = vmatprep.mubr.bf16.mxu0 0
    %322 = vmatmul.mubr.bf16.gmra.mrb[0].mxu0 %v259
    %v323 = vpop.f32.mrb[0].mxu0
    %v324 = vadd.f32 %v147, %v323
    %v325 = vpop.f32.mrb[0].mxu0
    %v326 = vadd.f32 %v147, %v325
    %v327 = vpop.f32.mrb[0].mxu0
    %v328 = vadd.f32 %v152, %v327
    %v329 = vpop.f32.mrb[0].mxu0
    %v330 = vadd.f32 %v152, %v329
    %331 = vmatprep.mubr.bf16.mxu0 0
    %332 = vmatmul.mubr.bf16.gmra.mrb[0].mxu0 %v262
    %v333 = vpop.f32.mrb[0].mxu0
    %v334 = vadd.f32 %v157, %v333
    %v335 = vpop.f32.mrb[0].mxu0
    %v336 = vadd.f32 %v157, %v335
    %v337 = vpop.f32.mrb[0].mxu0
    %v338 = vadd.f32 %v162, %v337
    %v339 = vpop.f32.mrb[0].mxu0
    %v340 = vadd.f32 %v162, %v339
    %341 = vmatprep.mubr.bf16.mxu0 0
    %342 = vmatmul.mubr.bf16.gmra.mrb[0].mxu0 %v265
    %v343 = vpop.f32.mrb[0].mxu0
    %v344 = vadd.f32 %v167, %v343
    %v345 = vpop.f32.mrb[0].mxu0
    %v346 = vadd.f32 %v167, %v345
    %v347 = vpop.f32.mrb[0].mxu0
    %v348 = vadd.f32 %v172, %v347
    %v349 = vpop.f32.mrb[0].mxu0
    %v350 = vadd.f32 %v172, %v349
    %351 = vmatprep.mubr.bf16.mxu0 0
    %352 = vmatmul.mubr.bf16.gmra.mrb[0].mxu0 %v268
    %v353 = vpop.f32.mrb[0].mxu0
    %v354 = vadd.f32 %v177, %v353
    %v355 = vpop.f32.mrb[0].mxu0
    %v356 = vadd.f32 %v177, %v355
    %v357 = vpop.f32.mrb[0].mxu0
    %v358 = vadd.f32 %v182, %v357
    %v359 = vpop.f32.mrb[0].mxu0
    %v360 = vadd.f32 %v182, %v359
    %361 = vmatprep.mubr.bf16.mxu0 0
    %362 = vmatmul.mubr.bf16.gmra.mrb[0].mxu0 %v271
    %v363 = vpop.f32.mrb[0].mxu0
    %v364 = vadd.f32 %v187, %v363
    %v365 = vpop.f32.mrb[0].mxu0
    %v366 = vadd.f32 %v187, %v365
    %v367 = vpop.f32.mrb[0].mxu0
    %v368 = vadd.f32 %v192, %v367
    %v369 = vpop.f32.mrb[0].mxu0
    %v370 = vadd.f32 %v192, %v369
    %371 = vmatprep.mubr.bf16.mxu0 0
    %372 = vmatmul.mubr.bf16.gmra.mrb[0].mxu0 %v274
    %v373 = vpop.f32.mrb[0].mxu0
    %v374 = vadd.f32 %v197, %v373
    %v375 = vpop.f32.mrb[0].mxu0
    %v376 = vadd.f32 %v197, %v375
    %v377 = vpop.f32.mrb[0].mxu0
    %v378 = vadd.f32 %v202, %v377
    %v379 = vpop.f32.mrb[0].mxu0
    %v380 = vadd.f32 %v202, %v379
    %381 = vmatprep.mubr.bf16.mxu0 0
    %382 = vmatmul.mubr.bf16.gmra.mrb[0].mxu0 %v277
    %v383 = vpop.f32.mrb[0].mxu0
    %v384 = vadd.f32 %v207, %v383
    %v385 = vpop.f32.mrb[0].mxu0
    %v386 = vadd.f32 %v207, %v385
    %v387 = vpop.f32.mrb[0].mxu0
    %v388 = vadd.f32 %v212, %v387
    %v389 = vpop.f32.mrb[0].mxu0
    %v390 = vadd.f32 %v212, %v389
    %391 = vdwg.mxu0
    %392 = vmatprep.subr.bf16.mxu0 %v109
    %393 = vmatpush1.bf16.msra.mxu0 %v108
    %394 = vmatprep.subr.bf16.mxu0 %v113
    %395 = vmatpush1.bf16.msra.mxu0 %v112
    %396 = vmatprep.subr.bf16.mxu0 %v117
    %397 = vmatpush1.bf16.msra.mxu0 %v116
    %398 = vmatprep.subr.bf16.mxu0 0
    %399 = vmatpush1.bf16.msra.mxu0 0
    %400 = vmatprep.subr.bf16.mxu0 0
    %401 = vmatpush1.bf16.msra.mxu0 0
    %402 = vmatprep.subr.bf16.mxu0 0
    %403 = vmatpush1.bf16.msra.mxu0 0
    %404 = vmatprep.subr.bf16.mxu0 0
    %405 = vmatpush1.bf16.msra.mxu0 0
    %406 = vmatprep.subr.bf16.mxu0 0
    %407 = vmatpush1.bf16.msra.mxu0 0
    %408 = vmatprep.subr.bf16.mxu0 0
    %409 = vmatpush1.bf16.msra.mxu0 0
    %410 = vmatprep.subr.bf16.mxu0 0
    %411 = vmatpush1.bf16.msra.mxu0 0
    %412 = vmatprep.subr.bf16.mxu0 0
    %413 = vmatpush1.bf16.msra.mxu0 0
    %414 = vmatprep.subr.bf16.mxu0 0
    %415 = vmatpush1.bf16.msra.mxu0 0
    %416 = vmatprep.subr.bf16.mxu0 0
    %417 = vmatpush1.bf16.msra.mxu0 0
    %418 = vmatprep.subr.bf16.mxu0 0
    %419 = vmatpush1.bf16.msra.mxu0 0
    %420 = vmatprep.subr.bf16.mxu0 0
    %421 = vmatpush1.bf16.msra.mxu0 0
    %422 = vmatprep.subr.bf16.mxu0 0
    %423 = vmatpush1.bf16.msra.mxu0 0
    %424 = vmatprep.mubr.bf16.mxu0 0
    %425 = vmatmul.mubr.bf16.gmra.mrb[0].mxu0 %v256
    %v426 = vpop.f32.mrb[0].mxu0
    %v427 = vadd.f32 %v137, %v426
    %v428 = vpop.f32.mrb[0].mxu0
    %v429 = vadd.f32 %v137, %v428
    %v430 = vpop.f32.mrb[0].mxu0
    %v431 = vadd.f32 %v142, %v430
    %v432 = vpop.f32.mrb[0].mxu0
    %v433 = vadd.f32 %v142, %v432
    %434 = vmatprep.mubr.bf16.mxu0 0
    %435 = vmatmul.mubr.bf16.gmra.mrb[0].mxu0 %v259
    %v436 = vpop.f32.mrb[0].mxu0
    %v437 = vadd.f32 %v147, %v436
    %v438 = vpop.f32.mrb[0].mxu0
    %v439 = vadd.f32 %v147, %v438
    %v440 = vpop.f32.mrb[0].mxu0
    %v441 = vadd.f32 %v152, %v440
    %v442 = vpop.f32.mrb[0].mxu0
    %v443 = vadd.f32 %v152, %v442
    %444 = vmatprep.mubr.bf16.mxu0 0
    %445 = vmatmul.mubr.bf16.gmra.mrb[0].mxu0 %v262
    %v446 = vpop.f32.mrb[0].mxu0
    %v447 = vadd.f32 %v157, %v446
    %v448 = vpop.f32.mrb[0].mxu0
    %v449 = vadd.f32 %v157, %v448
    %v450 = vpop.f32.mrb[0].mxu0
    %v451 = vadd.f32 %v162, %v450
    %v452 = vpop.f32.mrb[0].mxu0
    %v453 = vadd.f32 %v162, %v452
    %454 = vmatprep.mubr.bf16.mxu0 0
    %455 = vmatmul.mubr.bf16.gmra.mrb[0].mxu0 %v265
    %v456 = vpop.f32.mrb[0].mxu0
    %v457 = vadd.f32 %v167, %v456
    %v458 = vpop.f32.mrb[0].mxu0
    %v459 = vadd.f32 %v167, %v458
    %v460 = vpop.f32.mrb[0].mxu0
    %v461 = vadd.f32 %v172, %v460
    %v462 = vpop.f32.mrb[0].mxu0
    %v463 = vadd.f32 %v172, %v462
    %464 = vmatprep.mubr.bf16.mxu0 0
    %465 = vmatmul.mubr.bf16.gmra.mrb[0].mxu0 %v268
    %v466 = vpop.f32.mrb[0].mxu0
    %v467 = vadd.f32 %v177, %v466
    %v468 = vpop.f32.mrb[0].mxu0
    %v469 = vadd.f32 %v177, %v468
    %v470 = vpop.f32.mrb[0].mxu0
    %v471 = vadd.f32 %v182, %v470
    %v472 = vpop.f32.mrb[0].mxu0
    %v473 = vadd.f32 %v182, %v472
    %474 = vmatprep.mubr.bf16.mxu0 0
    %475 = vmatmul.mubr.bf16.gmra.mrb[0].mxu0 %v271
    %v476 = vpop.f32.mrb[0].mxu0
    %v477 = vadd.f32 %v187, %v476
    %v478 = vpop.f32.mrb[0].mxu0
    %v479 = vadd.f32 %v187, %v478
    %v480 = vpop.f32.mrb[0].mxu0
    %v481 = vadd.f32 %v192, %v480
    %v482 = vpop.f32.mrb[0].mxu0
    %v483 = vadd.f32 %v192, %v482
    %484 = vmatprep.mubr.bf16.mxu0 0
    %485 = vmatmul.mubr.bf16.gmra.mrb[0].mxu0 %v274
    %v486 = vpop.f32.mrb[0].mxu0
    %v487 = vadd.f32 %v197, %v486
    %v488 = vpop.f32.mrb[0].mxu0
    %v489 = vadd.f32 %v197, %v488
    %v490 = vpop.f32.mrb[0].mxu0
    %v491 = vadd.f32 %v202, %v490
    %v492 = vpop.f32.mrb[0].mxu0
    %v493 = vadd.f32 %v202, %v492
    %494 = vmatprep.mubr.bf16.mxu0 0
    %495 = vmatmul.mubr.bf16.gmra.mrb[0].mxu0 %v277
    %v496 = vpop.f32.mrb[0].mxu0
    %v497 = vadd.f32 %v207, %v496
    %v498 = vpop.f32.mrb[0].mxu0
    %v499 = vadd.f32 %v207, %v498
    %v500 = vpop.f32.mrb[0].mxu0
    %v501 = vadd.f32 %v212, %v500
    %v502 = vpop.f32.mrb[0].mxu0
    %v503 = vadd.f32 %v212, %v502
    %504 = vdwg.mxu0
    %v505 = vxor.u32 %v314, 2147483648
    %v506 = vxor.u32 %v316, 2147483648
    %v507 = vxor.u32 %v427, 2147483648
    %v508 = vxor.u32 %v429, 2147483648
    %v509 = vxor.u32 %v318, 2147483648
    %v510 = vxor.u32 %v320, 2147483648
    %v511 = vxor.u32 %v431, 2147483648
    %v512 = vxor.u32 %v433, 2147483648
    %v513 = vxor.u32 %v324, 2147483648
    %v514 = vxor.u32 %v326, 2147483648
    %v515 = vxor.u32 %v437, 2147483648
    %v516 = vxor.u32 %v439, 2147483648
    %v517 = vxor.u32 %v328, 2147483648
    %v518 = vxor.u32 %v330, 2147483648
    %v519 = vxor.u32 %v441, 2147483648
    %v520 = vxor.u32 %v443, 2147483648
    %v521 = vxor.u32 %v334, 2147483648
    %v522 = vxor.u32 %v336, 2147483648
    %v523 = vxor.u32 %v447, 2147483648
    %v524 = vxor.u32 %v449, 2147483648
    %v525 = vxor.u32 %v338, 2147483648
    %v526 = vxor.u32 %v340, 2147483648
    %v527 = vxor.u32 %v451, 2147483648
    %v528 = vxor.u32 %v453, 2147483648
    %v529 = vxor.u32 %v344, 2147483648
    %v530 = vxor.u32 %v346, 2147483648
    %v531 = vxor.u32 %v457, 2147483648
    %v532 = vxor.u32 %v459, 2147483648
    %v533 = vxor.u32 %v348, 2147483648
    %v534 = vxor.u32 %v350, 2147483648
    %v535 = vxor.u32 %v461, 2147483648
    %v536 = vxor.u32 %v463, 2147483648
    %v537 = vxor.u32 %v354, 2147483648
    %v538 = vxor.u32 %v356, 2147483648
    %v539 = vxor.u32 %v467, 2147483648
    %v540 = vxor.u32 %v469, 2147483648
    %v541 = vxor.u32 %v358, 2147483648
    %v542 = vxor.u32 %v360, 2147483648
    %v543 = vxor.u32 %v471, 2147483648
    %v544 = vxor.u32 %v473, 2147483648
    %v545 = vxor.u32 %v364, 2147483648
    %v546 = vxor.u32 %v366, 2147483648
    %v547 = vxor.u32 %v477, 2147483648
    %v548 = vxor.u32 %v479, 2147483648
    %v549 = vxor.u32 %v368, 2147483648
    %v550 = vxor.u32 %v370, 2147483648
    %v551 = vxor.u32 %v481, 2147483648
    %v552 = vxor.u32 %v483, 2147483648
    %v553 = vmul.f32 %v505, 1.442695
    %v554 = vpow.pop %v553
    %v555 = vmul.f32 %v506, 1.442695
    %v556 = vpow.pop %v555
    %v557 = vmul.f32 %v507, 1.442695
    %v558 = vpow.pop %v557
    %v559 = vmul.f32 %v508, 1.442695
    %v560 = vpow.pop %v559
    %v561 = vmul.f32 %v509, 1.442695
    %v562 = vpow.pop %v561
    %v563 = vmul.f32 %v510, 1.442695
    %v564 = vpow.pop %v563
    %v565 = vmul.f32 %v511, 1.442695
    %v566 = vpow.pop %v565
    %v567 = vmul.f32 %v512, 1.442695
    %v568 = vpow.pop %v567
    %v569 = vmul.f32 %v513, 1.442695
    %v570 = vpow.pop %v569
    %v571 = vmul.f32 %v514, 1.442695
    %v572 = vpow.pop %v571
    %v573 = vmul.f32 %v515, 1.442695
    %v574 = vpow.pop %v573
    %v575 = vmul.f32 %v516, 1.442695
    %v576 = vpow.pop %v575
    %v577 = vmul.f32 %v517, 1.442695
    %v578 = vpow.pop %v577
    %v579 = vmul.f32 %v518, 1.442695
    %v580 = vpow.pop %v579
    %v581 = vmul.f32 %v519, 1.442695
    %v582 = vpow.pop %v581
    %v583 = vmul.f32 %v520, 1.442695
    %v584 = vpow.pop %v583
    %v585 = vmul.f32 %v521, 1.442695
    %v586 = vpow.pop %v585
    %v587 = vmul.f32 %v522, 1.442695
    %v588 = vpow.pop %v587
    %v589 = vmul.f32 %v523, 1.442695
    %v590 = vpow.pop %v589
    %v591 = vmul.f32 %v524, 1.442695
    %v592 = vpow.pop %v591
    %v593 = vmul.f32 %v525, 1.442695
    %v594 = vpow.pop %v593
    %v595 = vmul.f32 %v526, 1.442695
    %v596 = vpow.pop %v595
    %v597 = vmul.f32 %v527, 1.442695
    %v598 = vpow.pop %v597
    %v599 = vmul.f32 %v528, 1.442695
    %v600 = vpow.pop %v599
    %v601 = vmul.f32 %v529, 1.442695
    %v602 = vpow.pop %v601
    %v603 = vmul.f32 %v530, 1.442695
    %v604 = vpow.pop %v603
    %v605 = vmul.f32 %v531, 1.442695
    %v606 = vpow.pop %v605
    %v607 = vmul.f32 %v532, 1.442695
    %v608 = vpow.pop %v607
    %v609 = vmul.f32 %v533, 1.442695
    %v610 = vpow.pop %v609
    %v611 = vmul.f32 %v534, 1.442695
    %v612 = vpow.pop %v611
    %v613 = vmul.f32 %v535, 1.442695
    %v614 = vpow.pop %v613
    %v615 = vmul.f32 %v536, 1.442695
    %v616 = vpow.pop %v615
    %v617 = vmul.f32 %v537, 1.442695
    %v618 = vpow.pop %v617
    %v619 = vmul.f32 %v538, 1.442695
    %v620 = vpow.pop %v619
    %v621 = vmul.f32 %v539, 1.442695
    %v622 = vpow.pop %v621
    %v623 = vmul.f32 %v540, 1.442695
    %v624 = vpow.pop %v623
    %v625 = vmul.f32 %v541, 1.442695
    %v626 = vpow.pop %v625
    %v627 = vmul.f32 %v542, 1.442695
    %v628 = vpow.pop %v627
    %v629 = vmul.f32 %v543, 1.442695
    %v630 = vpow.pop %v629
    %v631 = vmul.f32 %v544, 1.442695
    %v632 = vpow.pop %v631
    %v633 = vmul.f32 %v545, 1.442695
    %v634 = vpow.pop %v633
    %v635 = vmul.f32 %v546, 1.442695
    %v636 = vpow.pop %v635
    %v637 = vmul.f32 %v547, 1.442695
    %v638 = vpow.pop %v637
    %v639 = vmul.f32 %v548, 1.442695
    %v640 = vpow.pop %v639
    %v641 = vmul.f32 %v549, 1.442695
    %v642 = vpow.pop %v641
    %v643 = vmul.f32 %v550, 1.442695
    %v644 = vpow.pop %v643
    %v645 = vmul.f32 %v551, 1.442695
    %v646 = vpow.pop %v645
    %v647 = vmul.f32 %v552, 1.442695
    %v648 = vpow.pop %v647
    %v649 = vadd.f32 %v554, 1.0
    %v650 = vadd.f32 %v556, 1.0
    %v651 = vadd.f32 %v558, 1.0
    %v652 = vadd.f32 %v560, 1.0
    %v653 = vadd.f32 %v562, 1.0
    %v654 = vadd.f32 %v564, 1.0
    %v655 = vadd.f32 %v566, 1.0
    %v656 = vadd.f32 %v568, 1.0
    %v657 = vadd.f32 %v570, 1.0
    %v658 = vadd.f32 %v572, 1.0
    %v659 = vadd.f32 %v574, 1.0
    %v660 = vadd.f32 %v576, 1.0
    %v661 = vadd.f32 %v578, 1.0
    %v662 = vadd.f32 %v580, 1.0
    %v663 = vadd.f32 %v582, 1.0
    %v664 = vadd.f32 %v584, 1.0
    %v665 = vadd.f32 %v586, 1.0
    %v666 = vadd.f32 %v588, 1.0
    %v667 = vadd.f32 %v590, 1.0
    %v668 = vadd.f32 %v592, 1.0
    %v669 = vadd.f32 %v594, 1.0
    %v670 = vadd.f32 %v596, 1.0
    %v671 = vadd.f32 %v598, 1.0
    %v672 = vadd.f32 %v600, 1.0
    %v673 = vadd.f32 %v602, 1.0
    %v674 = vadd.f32 %v604, 1.0
    %v675 = vadd.f32 %v606, 1.0
    %v676 = vadd.f32 %v608, 1.0
    %v677 = vadd.f32 %v610, 1.0
    %v678 = vadd.f32 %v612, 1.0
    %v679 = vadd.f32 %v614, 1.0
    %v680 = vadd.f32 %v616, 1.0
    %v681 = vadd.f32 %v618, 1.0
    %v682 = vadd.f32 %v620, 1.0
    %v683 = vadd.f32 %v622, 1.0
    %v684 = vadd.f32 %v624, 1.0
    %v685 = vadd.f32 %v626, 1.0
    %v686 = vadd.f32 %v628, 1.0
    %v687 = vadd.f32 %v630, 1.0
    %v688 = vadd.f32 %v632, 1.0
    %v689 = vadd.f32 %v634, 1.0
    %v690 = vadd.f32 %v636, 1.0
    %v691 = vadd.f32 %v638, 1.0
    %v692 = vadd.f32 %v640, 1.0
    %v693 = vadd.f32 %v642, 1.0
    %v694 = vadd.f32 %v644, 1.0
    %v695 = vadd.f32 %v646, 1.0
    %v696 = vadd.f32 %v648, 1.0
    %v697 = vrcp.pop %v649
    %v698 = vmul.f32 1.0, %v697
    %v699 = vrcp.pop %v650
    %v700 = vmul.f32 1.0, %v699
    %v701 = vrcp.pop %v651
    %v702 = vmul.f32 1.0, %v701
    %v703 = vrcp.pop %v652
    %v704 = vmul.f32 1.0, %v703
    %v705 = vrcp.pop %v653
    %v706 = vmul.f32 1.0, %v705
    %v707 = vrcp.pop %v654
    %v708 = vmul.f32 1.0, %v707
    %v709 = vrcp.pop %v655
    %v710 = vmul.f32 1.0, %v709
    %v711 = vrcp.pop %v656
    %v712 = vmul.f32 1.0, %v711
    %v713 = vrcp.pop %v657
    %v714 = vmul.f32 1.0, %v713
    %v715 = vrcp.pop %v658
    %v716 = vmul.f32 1.0, %v715
    %v717 = vrcp.pop %v659
    %v718 = vmul.f32 1.0, %v717
    %v719 = vrcp.pop %v660
    %v720 = vmul.f32 1.0, %v719
    %v721 = vrcp.pop %v661
    %v722 = vmul.f32 1.0, %v721
    %v723 = vrcp.pop %v662
    %v724 = vmul.f32 1.0, %v723
    %v725 = vrcp.pop %v663
    %v726 = vmul.f32 1.0, %v725
    %v727 = vrcp.pop %v664
    %v728 = vmul.f32 1.0, %v727
    %v729 = vrcp.pop %v665
    %v730 = vmul.f32 1.0, %v729
    %v731 = vrcp.pop %v666
    %v732 = vmul.f32 1.0, %v731
    %v733 = vrcp.pop %v667
    %v734 = vmul.f32 1.0, %v733
    %v735 = vrcp.pop %v668
    %v736 = vmul.f32 1.0, %v735
    %v737 = vrcp.pop %v669
    %v738 = vmul.f32 1.0, %v737
    %v739 = vrcp.pop %v670
    %v740 = vmul.f32 1.0, %v739
    %v741 = vrcp.pop %v671
    %v742 = vmul.f32 1.0, %v741
    %v743 = vrcp.pop %v672
    %v744 = vmul.f32 1.0, %v743
    %v745 = vrcp.pop %v673
    %v746 = vmul.f32 1.0, %v745
    %v747 = vrcp.pop %v674
    %v748 = vmul.f32 1.0, %v747
    %v749 = vrcp.pop %v675
    %v750 = vmul.f32 1.0, %v749
    %v751 = vrcp.pop %v676
    %v752 = vmul.f32 1.0, %v751
    %v753 = vrcp.pop %v677
    %v754 = vmul.f32 1.0, %v753
    %v755 = vrcp.pop %v678
    %v756 = vmul.f32 1.0, %v755
    %v757 = vrcp.pop %v679
    %v758 = vmul.f32 1.0, %v757
    %v759 = vrcp.pop %v680
    %v760 = vmul.f32 1.0, %v759
    %v761 = vrcp.pop %v681
    %v762 = vmul.f32 1.0, %v761
    %v763 = vrcp.pop %v682
    %v764 = vmul.f32 1.0, %v763
    %v765 = vrcp.pop %v683
    %v766 = vmul.f32 1.0, %v765
    %v767 = vrcp.pop %v684
    %v768 = vmul.f32 1.0, %v767
    %v769 = vrcp.pop %v685
    %v770 = vmul.f32 1.0, %v769
    %v771 = vrcp.pop %v686
    %v772 = vmul.f32 1.0, %v771
    %v773 = vrcp.pop %v687
    %v774 = vmul.f32 1.0, %v773
    %v775 = vrcp.pop %v688
    %v776 = vmul.f32 1.0, %v775
    %v777 = vrcp.pop %v689
    %v778 = vmul.f32 1.0, %v777
    %v779 = vrcp.pop %v690
    %v780 = vmul.f32 1.0, %v779
    %v781 = vrcp.pop %v691
    %v782 = vmul.f32 1.0, %v781
    %v783 = vrcp.pop %v692
    %v784 = vmul.f32 1.0, %v783
    %v785 = vrcp.pop %v693
    %v786 = vmul.f32 1.0, %v785
    %v787 = vrcp.pop %v694
    %v788 = vmul.f32 1.0, %v787
    %v789 = vrcp.pop %v695
    %v790 = vmul.f32 1.0, %v789
    %v791 = vrcp.pop %v696
    %v792 = vmul.f32 1.0, %v791
    %v793 = vtanh.pop %v374
    %v794 = vtanh.pop %v376
    %v795 = vtanh.pop %v487
    %v796 = vtanh.pop %v489
    %v797 = vtanh.pop %v378
    %v798 = vtanh.pop %v380
    %v799 = vtanh.pop %v491
    %v800 = vtanh.pop %v493
    %v801 = vtanh.pop %v384
    %v802 = vtanh.pop %v386
    %v803 = vtanh.pop %v497
    %v804 = vtanh.pop %v499
    %v805 = vtanh.pop %v388
    %v806 = vtanh.pop %v390
    %v807 = vtanh.pop %v501
    %v808 = vtanh.pop %v503
    %v809 = vld [vmem:[#allocation3] sm:$0xff]
    %v810 = vld [vmem:[#allocation3 + $0x8] sm:$0xff]
    %v811 = vld [vmem:[#allocation3 + $0x10] sm:$0xff]
    %v812 = vld [vmem:[#allocation3 + $0x18] sm:$0xff]
    %v813 = vld [vmem:[#allocation3 + $0x20] sm:$0xff]
    %v814 = vld [vmem:[#allocation3 + $0x28] sm:$0xff]
    %v815 = vld [vmem:[#allocation3 + $0x30] sm:$0xff]
    %v816 = vld [vmem:[#allocation3 + $0x38] sm:$0xff]
    %v817 = vld [vmem:[#allocation3 + $0x40] sm:$0xff]
    %v818 = vld [vmem:[#allocation3 + $0x48] sm:$0xff]
    %v819 = vld [vmem:[#allocation3 + $0x50] sm:$0xff]
    %v820 = vld [vmem:[#allocation3 + $0x58] sm:$0xff]
    %v821 = vld [vmem:[#allocation3 + $0x60] sm:$0xff]
    %v822 = vld [vmem:[#allocation3 + $0x68] sm:$0xff]
    %v823 = vld [vmem:[#allocation3 + $0x70] sm:$0xff]
    %v824 = vld [vmem:[#allocation3 + $0x78] sm:$0xff]
    %v825 = vmul.f32 %v730, %v809
    %v826 = vmul.f32 %v732, %v810
    %v827 = vmul.f32 %v734, %v811
    %v828 = vmul.f32 %v736, %v812
    %v829 = vmul.f32 %v738, %v813
    %v830 = vmul.f32 %v740, %v814
    %v831 = vmul.f32 %v742, %v815
    %v832 = vmul.f32 %v744, %v816
    %v833 = vmul.f32 %v746, %v817
    %v834 = vmul.f32 %v748, %v818
    %v835 = vmul.f32 %v750, %v819
    %v836 = vmul.f32 %v752, %v820
    %v837 = vmul.f32 %v754, %v821
    %v838 = vmul.f32 %v756, %v822
    %v839 = vmul.f32 %v758, %v823
    %v840 = vmul.f32 %v760, %v824
    %v841 = vmul.f32 %v698, %v793
    %v842 = vmul.f32 %v700, %v794
    %v843 = vmul.f32 %v702, %v795
    %v844 = vmul.f32 %v704, %v796
    %v845 = vmul.f32 %v706, %v797
    %v846 = vmul.f32 %v708, %v798
    %v847 = vmul.f32 %v710, %v799
    %v848 = vmul.f32 %v712, %v800
    %v849 = vmul.f32 %v714, %v801
    %v850 = vmul.f32 %v716, %v802
    %v851 = vmul.f32 %v718, %v803
    %v852 = vmul.f32 %v720, %v804
    %v853 = vmul.f32 %v722, %v805
    %v854 = vmul.f32 %v724, %v806
    %v855 = vmul.f32 %v726, %v807
    %v856 = vmul.f32 %v728, %v808
    %v857 = vadd.f32 %v825, %v841
    %v858 = vadd.f32 %v826, %v842
    %v859 = vadd.f32 %v827, %v843
    %v860 = vadd.f32 %v828, %v844
    %v861 = vadd.f32 %v829, %v845
    %v862 = vadd.f32 %v830, %v846
    %v863 = vadd.f32 %v831, %v847
    %v864 = vadd.f32 %v832, %v848
    %v865 = vadd.f32 %v833, %v849
    %v866 = vadd.f32 %v834, %v850
    %v867 = vadd.f32 %v835, %v851
    %v868 = vadd.f32 %v836, %v852
    %v869 = vadd.f32 %v837, %v853
    %v870 = vadd.f32 %v838, %v854
    %v871 = vadd.f32 %v839, %v855
    %v872 = vadd.f32 %v840, %v856
    %v873 = vtanh.pop %v857
    %v874 = vtanh.pop %v858
    %v875 = vtanh.pop %v859
    %v876 = vtanh.pop %v860
    %v877 = vtanh.pop %v861
    %v878 = vtanh.pop %v862
    %v879 = vtanh.pop %v863
    %v880 = vtanh.pop %v864
    %v881 = vtanh.pop %v865
    %v882 = vtanh.pop %v866
    %v883 = vtanh.pop %v867
    %v884 = vtanh.pop %v868
    %v885 = vtanh.pop %v869
    %v886 = vtanh.pop %v870
    %v887 = vtanh.pop %v871
    %v888 = vtanh.pop %v872
    %v889 = vmul.f32 %v762, %v873
    %v890 = vmul.f32 %v764, %v874
    %v891 = vmul.f32 %v766, %v875
    %v892 = vmul.f32 %v768, %v876
    %v893 = vmul.f32 %v770, %v877
    %v894 = vmul.f32 %v772, %v878
    %v895 = vmul.f32 %v774, %v879
    %v896 = vmul.f32 %v776, %v880
    %v897 = vmul.f32 %v778, %v881
    %v898 = vmul.f32 %v780, %v882
    %v899 = vmul.f32 %v782, %v883
    %v900 = vmul.f32 %v784, %v884
    %v901 = vmul.f32 %v786, %v885
    %v902 = vmul.f32 %v788, %v886
    %v903 = vmul.f32 %v790, %v887
    %v904 = vmul.f32 %v792, %v888
    %905 = vst [vmem:[#allocation3] sm:$0xff] %v857
    %906 = vst [vmem:[#allocation3 + $0x8] sm:$0xff] %v858
    %907 = vst [vmem:[#allocation3 + $0x10] sm:$0xff] %v859
    %908 = vst [vmem:[#allocation3 + $0x18] sm:$0xff] %v860
    %909 = vst [vmem:[#allocation3 + $0x20] sm:$0xff] %v861
    %910 = vst [vmem:[#allocation3 + $0x28] sm:$0xff] %v862
    %911 = vst [vmem:[#allocation3 + $0x30] sm:$0xff] %v863
    %912 = vst [vmem:[#allocation3 + $0x38] sm:$0xff] %v864
    %913 = vst [vmem:[#allocation3 + $0x40] sm:$0xff] %v865
    %914 = vst [vmem:[#allocation3 + $0x48] sm:$0xff] %v866
    %915 = vst [vmem:[#allocation3 + $0x50] sm:$0xff] %v867
    %916 = vst [vmem:[#allocation3 + $0x58] sm:$0xff] %v868
    %917 = vst [vmem:[#allocation3 + $0x60] sm:$0xff] %v869
    %918 = vst [vmem:[#allocation3 + $0x68] sm:$0xff] %v870
    %919 = vst [vmem:[#allocation3 + $0x70] sm:$0xff] %v871
    %920 = vst [vmem:[#allocation3 + $0x78] sm:$0xff] %v872
    %v921 = vpack.c.bf16 %v893, %v889
    %v922 = vpack.c.bf16 %v894, %v890
    %v923 = vpack.c.bf16 %v895, %v891
    %v924 = vpack.c.bf16 %v896, %v892
    %v925 = vpack.c.bf16 %v901, %v897
    %v926 = vpack.c.bf16 %v902, %v898
    %v927 = vpack.c.bf16 %v903, %v899
    %v928 = vpack.c.bf16 %v904, %v900
    %929 = vst [vmem:[#allocation2 + $0x20] sm:$0xff] %v921
    %930 = vst [vmem:[#allocation2 + $0x28] sm:$0xff] %v922
    %931 = vst [vmem:[#allocation2 + $0x30] sm:$0xff] %v923
    %932 = vst [vmem:[#allocation2 + $0x38] sm:$0xff] %v924
    %933 = vst [vmem:[#allocation2 + $0x40] sm:$0xff] %v925
    %934 = vst [vmem:[#allocation2 + $0x48] sm:$0xff] %v926
    %935 = vst [vmem:[#allocation2 + $0x50] sm:$0xff] %v927
    %936 = vst [vmem:[#allocation2 + $0x58] sm:$0xff] %v928
    %937 = vst [vmem:[#allocation7] sm:$0xff] %v889
    %938 = vst [vmem:[#allocation7 + $0x8] sm:$0xff] %v890
    %939 = vst [vmem:[#allocation7 + $0x10] sm:$0xff] %v891
    %940 = vst [vmem:[#allocation7 + $0x18] sm:$0xff] %v892
    %941 = vst [vmem:[#allocation7 + $0x20] sm:$0xff] %v893
    %942 = vst [vmem:[#allocation7 + $0x28] sm:$0xff] %v894
    %943 = vst [vmem:[#allocation7 + $0x30] sm:$0xff] %v895
    %944 = vst [vmem:[#allocation7 + $0x38] sm:$0xff] %v896
    %945 = vst [vmem:[#allocation7 + $0x40] sm:$0xff] %v897
    %946 = vst [vmem:[#allocation7 + $0x48] sm:$0xff] %v898
    %947 = vst [vmem:[#allocation7 + $0x50] sm:$0xff] %v899
    %948 = vst [vmem:[#allocation7 + $0x58] sm:$0xff] %v900
    %949 = vst [vmem:[#allocation7 + $0x60] sm:$0xff] %v901
    %950 = vst [vmem:[#allocation7 + $0x68] sm:$0xff] %v902
    %951 = vst [vmem:[#allocation7 + $0x70] sm:$0xff] %v903
    %952 = vst [vmem:[#allocation7 + $0x78] sm:$0xff] %v904
    %s953 = scalar_lea.vmem [#allocation4], 32
    %v954 = vld [vmem:[%s953] sm:$0xff]
    %v955 = vld [vmem:[%s953 + $0x8] sm:$0xff]
    %v956 = vld [vmem:[%s953 + $0x10] sm:$0xff]
    %v957 = vld [vmem:[%s953 + $0x18] sm:$0xff]
    %v962 = vunpack.c.l.b16 %v954
    %v963 = vunpack.c.h.b16 %v954
    %v964 = vunpack.c.l.b16 %v955
    %v965 = vunpack.c.h.b16 %v955
    %v966 = vunpack.c.l.b16 %v956
    %v967 = vunpack.c.h.b16 %v956
    %v968 = vunpack.c.l.b16 %v957
    %v969 = vunpack.c.h.b16 %v957
    %v970 = vpack.c.b16 %v966, %v962
    %v971 = vpack.c.b16 %v967, %v963
    %v972 = vpack.c.b16 %v968, %v964
    %v973 = vpack.c.b16 %v969, %v965
    %978 = vst [vmem:[#allocation2] sm:$0xff] %v970
    %979 = vst [vmem:[#allocation2 + $0x8] sm:$0xff] %v971
    %980 = vst [vmem:[#allocation2 + $0x10] sm:$0xff] %v972
    %981 = vst [vmem:[#allocation2 + $0x18] sm:$0xff] %v973
    %v982 = vld [vmem:[%s1] sm:$0xf]
    %v983 = vld [vmem:[%s1 + $0x4] sm:$0xf]
    %v984 = vld [vmem:[%s1 + $0x8] sm:$0xf]
    %v985 = vld [vmem:[%s1 + $0xc] sm:$0xf]
    %v986 = vld [vmem:[%s1 + $0x10] sm:$0xf]
    %v987 = vld [vmem:[%s1 + $0x14] sm:$0xf]
    %v988 = vld [vmem:[%s1 + $0x18] sm:$0xf]
    %v989 = vld [vmem:[%s1 + $0x1c] sm:$0xf]
    %v990 = vld [vmem:[%s1 + $0x20] sm:$0xf]
    %v991 = vld [vmem:[%s1 + $0x24] sm:$0xf]
    %v992 = vld [vmem:[%s1 + $0x28] sm:$0xf]
    %v993 = vld [vmem:[%s1 + $0x2c] sm:$0xf]
    %v994 = vld [vmem:[%s1 + $0x30] sm:$0xf]
    %v995 = vld [vmem:[%s1 + $0x34] sm:$0xf]
    %v996 = vld [vmem:[%s1 + $0x38] sm:$0xf]
    %v997 = vld [vmem:[%s1 + $0x3c] sm:$0xf]
    %v998 = vld [vmem:[#allocation2] sm:$0xff]
    %v999 = vld [vmem:[#allocation2 + $0x8] sm:$0xff]
    %v1000 = vld [vmem:[#allocation2 + $0x10] sm:$0xff]
    %v1001 = vld [vmem:[#allocation2 + $0x18] sm:$0xff]
    %v1002 = vld [vmem:[#allocation2 + $0x20] sm:$0xff]
    %v1003 = vld [vmem:[#allocation2 + $0x28] sm:$0xff]
    %v1004 = vld [vmem:[#allocation2 + $0x30] sm:$0xff]
    %v1005 = vld [vmem:[#allocation2 + $0x38] sm:$0xff]
    %v1006 = vld [vmem:[#allocation2 + $0x40] sm:$0xff]
    %v1007 = vld [vmem:[#allocation2 + $0x48] sm:$0xff]
    %v1008 = vld [vmem:[#allocation2 + $0x50] sm:$0xff]
    %v1009 = vld [vmem:[#allocation2 + $0x58] sm:$0xff]
    %v1010 = vld [vmem:[%s2] sm:$0xff]
    %v1011 = vld [vmem:[%s2 + $0x8] sm:$0xff]
    %v1012 = vld [vmem:[%s2 + $0x10] sm:$0xff]
    %v1013 = vld [vmem:[%s2 + $0x18] sm:$0xff]
    %v1014 = vld [vmem:[%s2 + $0x20] sm:$0xff]
    %v1015 = vld [vmem:[%s2 + $0x28] sm:$0xff]
    %v1016 = vld [vmem:[%s2 + $0x30] sm:$0xff]
    %v1017 = vld [vmem:[%s2 + $0x38] sm:$0xff]
    %v1018 = vld [vmem:[%s2 + $0x40] sm:$0xff]
    %v1019 = vld [vmem:[%s2 + $0x48] sm:$0xff]
    %v1020 = vld [vmem:[%s2 + $0x50] sm:$0xff]
    %v1021 = vld [vmem:[%s2 + $0x58] sm:$0xff]
    %v1022 = vld [vmem:[%s2 + $0x60] sm:$0xff]
    %v1023 = vld [vmem:[%s2 + $0x68] sm:$0xff]
    %v1024 = vld [vmem:[%s2 + $0x70] sm:$0xff]
    %v1025 = vld [vmem:[%s2 + $0x78] sm:$0xff]
    %1027 = vset.pattern.permute.xlu0 0
    %1028 = vperm.xlu0 %1027, %v1010
    %v1029 = vpop.permute.xlu0 %1028
    %1032 = vset.pattern.permute.xlu0 0
    %1033 = vperm.xlu0 %1032, %v1011
    %v1034 = vpop.permute.xlu0 %1033
    %1037 = vset.pattern.permute.xlu0 0
    %1038 = vperm.xlu0 %1037, %v1012
    %v1039 = vpop.permute.xlu0 %1038
    %1042 = vset.pattern.permute.xlu0 0
    %1043 = vperm.xlu0 %1042, %v1013
    %v1044 = vpop.permute.xlu0 %1043
    %1047 = vset.pattern.permute.xlu0 0
    %1048 = vperm.xlu0 %1047, %v1014
    %v1049 = vpop.permute.xlu0 %1048
    %1052 = vset.pattern.permute.xlu0 0
    %1053 = vperm.xlu0 %1052, %v1015
    %v1054 = vpop.permute.xlu0 %1053
    %1057 = vset.pattern.permute.xlu0 0
    %1058 = vperm.xlu0 %1057, %v1016
    %v1059 = vpop.permute.xlu0 %1058
    %1062 = vset.pattern.permute.xlu0 0
    %1063 = vperm.xlu0 %1062, %v1017
    %v1064 = vpop.permute.xlu0 %1063
    %1067 = vset.pattern.permute.xlu0 0
    %1068 = vperm.xlu0 %1067, %v1018
    %v1069 = vpop.permute.xlu0 %1068
    %1072 = vset.pattern.permute.xlu0 0
    %1073 = vperm.xlu0 %1072, %v1019
    %v1074 = vpop.permute.xlu0 %1073
    %1077 = vset.pattern.permute.xlu0 0
    %1078 = vperm.xlu0 %1077, %v1020
    %v1079 = vpop.permute.xlu0 %1078
    %1082 = vset.pattern.permute.xlu0 0
    %1083 = vperm.xlu0 %1082, %v1021
    %v1084 = vpop.permute.xlu0 %1083
    %1087 = vset.pattern.permute.xlu0 0
    %1088 = vperm.xlu0 %1087, %v1022
    %v1089 = vpop.permute.xlu0 %1088
    %1092 = vset.pattern.permute.xlu0 0
    %1093 = vperm.xlu0 %1092, %v1023
    %v1094 = vpop.permute.xlu0 %1093
    %1097 = vset.pattern.permute.xlu0 0
    %1098 = vperm.xlu0 %1097, %v1024
    %v1099 = vpop.permute.xlu0 %1098
    %1102 = vset.pattern.permute.xlu0 0
    %1103 = vperm.xlu0 %1102, %v1025
    %v1104 = vpop.permute.xlu0 %1103
    %v1122 = vunpack.c.l.b16 %v982
    %v1123 = vunpack.c.l.b16 %v983
    %v1124 = vunpack.c.l.b16 %v984
    %v1125 = vunpack.c.l.b16 %v985
    %v1126 = vunpack.c.l.b16 %v986
    %v1127 = vunpack.c.l.b16 %v987
    %v1128 = vunpack.c.l.b16 %v988
    %v1129 = vunpack.c.l.b16 %v989
    %v1130 = vunpack.c.l.b16 %v990
    %v1131 = vunpack.c.l.b16 %v991
    %v1132 = vunpack.c.l.b16 %v992
    %v1133 = vunpack.c.l.b16 %v993
    %v1134 = vunpack.c.l.b16 %v994
    %v1135 = vunpack.c.l.b16 %v995
    %v1136 = vunpack.c.l.b16 %v996
    %v1137 = vunpack.c.l.b16 %v997
    %v1138 = vpack.c.b16 %v1123, %v1122
    %v1139 = vpack.c.b16 %v1125, %v1124
    %v1140 = vpack.c.b16 %v1127, %v1126
    %v1141 = vpack.c.b16 %v1129, %v1128
    %v1142 = vpack.c.b16 %v1131, %v1130
    %v1143 = vpack.c.b16 %v1133, %v1132
    %v1144 = vpack.c.b16 %v1135, %v1134
    %v1145 = vpack.c.b16 %v1137, %v1136
    %v1147 = vsel %vm254, %v1138, 0
    %v1150 = vsel %vm254, %v1139, 0
    %v1153 = vsel %vm254, %v1140, 0
    %v1156 = vsel %vm254, %v1141, 0
    %v1159 = vsel %vm254, %v1142, 0
    %v1162 = vsel %vm254, %v1143, 0
    %v1165 = vsel %vm254, %v1144, 0
    %v1168 = vsel %vm254, %v1145, 0
    %1170 = vmatprep.subr.bf16.mxu0 %v999
    %1171 = vmatpush1.bf16.msra.mxu0 %v998
    %1172 = vmatprep.subr.bf16.mxu0 %v1003
    %1173 = vmatpush1.bf16.msra.mxu0 %v1002
    %1174 = vmatprep.subr.bf16.mxu0 %v1007
    %1175 = vmatpush1.bf16.msra.mxu0 %v1006
    %1176 = vmatprep.subr.bf16.mxu0 0
    %1177 = vmatpush1.bf16.msra.mxu0 0
    %1178 = vmatprep.subr.bf16.mxu0 0
    %1179 = vmatpush1.bf16.msra.mxu0 0
    %1180 = vmatprep.subr.bf16.mxu0 0
    %1181 = vmatpush1.bf16.msra.mxu0 0
    %1182 = vmatprep.subr.bf16.mxu0 0
    %1183 = vmatpush1.bf16.msra.mxu0 0
    %1184 = vmatprep.subr.bf16.mxu0 0
    %1185 = vmatpush1.bf16.msra.mxu0 0
    %1186 = vmatprep.subr.bf16.mxu0 0
    %1187 = vmatpush1.bf16.msra.mxu0 0
    %1188 = vmatprep.subr.bf16.mxu0 0
    %1189 = vmatpush1.bf16.msra.mxu0 0
    %1190 = vmatprep.subr.bf16.mxu0 0
    %1191 = vmatpush1.bf16.msra.mxu0 0
    %1192 = vmatprep.subr.bf16.mxu0 0
    %1193 = vmatpush1.bf16.msra.mxu0 0
    %1194 = vmatprep.subr.bf16.mxu0 0
    %1195 = vmatpush1.bf16.msra.mxu0 0
    %1196 = vmatprep.subr.bf16.mxu0 0
    %1197 = vmatpush1.bf16.msra.mxu0 0
    %1198 = vmatprep.subr.bf16.mxu0 0
    %1199 = vmatpush1.bf16.msra.mxu0 0
    %1200 = vmatprep.subr.bf16.mxu0 0
    %1201 = vmatpush1.bf16.msra.mxu0 0
    %1202 = vmatprep.mubr.bf16.mxu0 0
    %1203 = vmatmul.mubr.bf16.gmra.mrb[0].mxu0 %v1147
    %v1204 = vpop.f32.mrb[0].mxu0
    %v1205 = vadd.f32 %v1029, %v1204
    %v1206 = vpop.f32.mrb[0].mxu0
    %v1207 = vadd.f32 %v1029, %v1206
    %v1208 = vpop.f32.mrb[0].mxu0
    %v1209 = vadd.f32 %v1034, %v1208
    %v1210 = vpop.f32.mrb[0].mxu0
    %v1211 = vadd.f32 %v1034, %v1210
    %1212 = vmatprep.mubr.bf16.mxu0 0
    %1213 = vmatmul.mubr.bf16.gmra.mrb[0].mxu0 %v1150
    %v1214 = vpop.f32.mrb[0].mxu0
    %v1215 = vadd.f32 %v1039, %v1214
    %v1216 = vpop.f32.mrb[0].mxu0
    %v1217 = vadd.f32 %v1039, %v1216
    %v1218 = vpop.f32.mrb[0].mxu0
    %v1219 = vadd.f32 %v1044, %v1218
    %v1220 = vpop.f32.mrb[0].mxu0
    %v1221 = vadd.f32 %v1044, %v1220
    %1222 = vmatprep.mubr.bf16.mxu0 0
    %1223 = vmatmul.mubr.bf16.gmra.mrb[0].mxu0 %v1153
    %v1224 = vpop.f32.mrb[0].mxu0
    %v1225 = vadd.f32 %v1049, %v1224
    %v1226 = vpop.f32.mrb[0].mxu0
    %v1227 = vadd.f32 %v1049, %v1226
    %v1228 = vpop.f32.mrb[0].mxu0
    %v1229 = vadd.f32 %v1054, %v1228
    %v1230 = vpop.f32.mrb[0].mxu0
    %v1231 = vadd.f32 %v1054, %v1230
    %1232 = vmatprep.mubr.bf16.mxu0 0
    %1233 = vmatmul.mubr.bf16.gmra.mrb[0].mxu0 %v1156
    %v1234 = vpop.f32.mrb[0].mxu0
    %v1235 = vadd.f32 %v1059, %v1234
    %v1236 = vpop.f32.mrb[0].mxu0
    %v1237 = vadd.f32 %v1059, %v1236
    %v1238 = vpop.f32.mrb[0].mxu0
    %v1239 = vadd.f32 %v1064, %v1238
    %v1240 = vpop.f32.mrb[0].mxu0
    %v1241 = vadd.f32 %v1064, %v1240
    %1242 = vmatprep.mubr.bf16.mxu0 0
    %1243 = vmatmul.mubr.bf16.gmra.mrb[0].mxu0 %v1159
    %v1244 = vpop.f32.mrb[0].mxu0
    %v1245 = vadd.f32 %v1069, %v1244
    %v1246 = vpop.f32.mrb[0].mxu0
    %v1247 = vadd.f32 %v1069, %v1246
    %v1248 = vpop.f32.mrb[0].mxu0
    %v1249 = vadd.f32 %v1074, %v1248
    %v1250 = vpop.f32.mrb[0].mxu0
    %v1251 = vadd.f32 %v1074, %v1250
    %1252 = vmatprep.mubr.bf16.mxu0 0
    %1253 = vmatmul.mubr.bf16.gmra.mrb[0].mxu0 %v1162
    %v1254 = vpop.f32.mrb[0].mxu0
    %v1255 = vadd.f32 %v1079, %v1254
    %v1256 = vpop.f32.mrb[0].mxu0
    %v1257 = vadd.f32 %v1079, %v1256
    %v1258 = vpop.f32.mrb[0].mxu0
    %v1259 = vadd.f32 %v1084, %v1258
    %v1260 = vpop.f32.mrb[0].mxu0
    %v1261 = vadd.f32 %v1084, %v1260
    %1262 = vmatprep.mubr.bf16.mxu0 0
    %1263 = vmatmul.mubr.bf16.gmra.mrb[0].mxu0 %v1165
    %v1264 = vpop.f32.mrb[0].mxu0
    %v1265 = vadd.f32 %v1089, %v1264
    %v1266 = vpop.f32.mrb[0].mxu0
    %v1267 = vadd.f32 %v1089, %v1266
    %v1268 = vpop.f32.mrb[0].mxu0
    %v1269 = vadd.f32 %v1094, %v1268
    %v1270 = vpop.f32.mrb[0].mxu0
    %v1271 = vadd.f32 %v1094, %v1270
    %1272 = vmatprep.mubr.bf16.mxu0 0
    %1273 = vmatmul.mubr.bf16.gmra.mrb[0].mxu0 %v1168
    %v1274 = vpop.f32.mrb[0].mxu0
    %v1275 = vadd.f32 %v1099, %v1274
    %v1276 = vpop.f32.mrb[0].mxu0
    %v1277 = vadd.f32 %v1099, %v1276
    %v1278 = vpop.f32.mrb[0].mxu0
    %v1279 = vadd.f32 %v1104, %v1278
    %v1280 = vpop.f32.mrb[0].mxu0
    %v1281 = vadd.f32 %v1104, %v1280
    %1282 = vdwg.mxu0
    %1283 = vmatprep.subr.bf16.mxu0 %v1001
    %1284 = vmatpush1.bf16.msra.mxu0 %v1000
    %1285 = vmatprep.subr.bf16.mxu0 %v1005
    %1286 = vmatpush1.bf16.msra.mxu0 %v1004
    %1287 = vmatprep.subr.bf16.mxu0 %v1009
    %1288 = vmatpush1.bf16.msra.mxu0 %v1008
    %1289 = vmatprep.subr.bf16.mxu0 0
    %1290 = vmatpush1.bf16.msra.mxu0 0
    %1291 = vmatprep.subr.bf16.mxu0 0
    %1292 = vmatpush1.bf16.msra.mxu0 0
    %1293 = vmatprep.subr.bf16.mxu0 0
    %1294 = vmatpush1.bf16.msra.mxu0 0
    %1295 = vmatprep.subr.bf16.mxu0 0
    %1296 = vmatpush1.bf16.msra.mxu0 0
    %1297 = vmatprep.subr.bf16.mxu0 0
    %1298 = vmatpush1.bf16.msra.mxu0 0
    %1299 = vmatprep.subr.bf16.mxu0 0
    %1300 = vmatpush1.bf16.msra.mxu0 0
    %1301 = vmatprep.subr.bf16.mxu0 0
    %1302 = vmatpush1.bf16.msra.mxu0 0
    %1303 = vmatprep.subr.bf16.mxu0 0
    %1304 = vmatpush1.bf16.msra.mxu0 0
    %1305 = vmatprep.subr.bf16.mxu0 0
    %1306 = vmatpush1.bf16.msra.mxu0 0
    %1307 = vmatprep.subr.bf16.mxu0 0
    %1308 = vmatpush1.bf16.msra.mxu0 0
    %1309 = vmatprep.subr.bf16.mxu0 0
    %1310 = vmatpush1.bf16.msra.mxu0 0
    %1311 = vmatprep.subr.bf16.mxu0 0
    %1312 = vmatpush1.bf16.msra.mxu0 0
    %1313 = vmatprep.subr.bf16.mxu0 0
    %1314 = vmatpush1.bf16.msra.mxu0 0
    %1315 = vmatprep.mubr.bf16.mxu0 0
    %1316 = vmatmul.mubr.bf16.gmra.mrb[0].mxu0 %v1147
    %v1317 = vpop.f32.mrb[0].mxu0
    %v1318 = vadd.f32 %v1029, %v1317
    %v1319 = vpop.f32.mrb[0].mxu0
    %v1320 = vadd.f32 %v1029, %v1319
    %v1321 = vpop.f32.mrb[0].mxu0
    %v1322 = vadd.f32 %v1034, %v1321
    %v1323 = vpop.f32.mrb[0].mxu0
    %v1324 = vadd.f32 %v1034, %v1323
    %1325 = vmatprep.mubr.bf16.mxu0 0
    %1326 = vmatmul.mubr.bf16.gmra.mrb[0].mxu0 %v1150
    %v1327 = vpop.f32.mrb[0].mxu0
    %v1328 = vadd.f32 %v1039, %v1327
    %v1329 = vpop.f32.mrb[0].mxu0
    %v1330 = vadd.f32 %v1039, %v1329
    %v1331 = vpop.f32.mrb[0].mxu0
    %v1332 = vadd.f32 %v1044, %v1331
    %v1333 = vpop.f32.mrb[0].mxu0
    %v1334 = vadd.f32 %v1044, %v1333
    %1335 = vmatprep.mubr.bf16.mxu0 0
    %1336 = vmatmul.mubr.bf16.gmra.mrb[0].mxu0 %v1153
    %v1337 = vpop.f32.mrb[0].mxu0
    %v1338 = vadd.f32 %v1049, %v1337
    %v1339 = vpop.f32.mrb[0].mxu0
    %v1340 = vadd.f32 %v1049, %v1339
    %v1341 = vpop.f32.mrb[0].mxu0
    %v1342 = vadd.f32 %v1054, %v1341
    %v1343 = vpop.f32.mrb[0].mxu0
    %v1344 = vadd.f32 %v1054, %v1343
    %1345 = vmatprep.mubr.bf16.mxu0 0
    %1346 = vmatmul.mubr.bf16.gmra.mrb[0].mxu0 %v1156
    %v1347 = vpop.f32.mrb[0].mxu0
    %v1348 = vadd.f32 %v1059, %v1347
    %v1349 = vpop.f32.mrb[0].mxu0
    %v1350 = vadd.f32 %v1059, %v1349
    %v1351 = vpop.f32.mrb[0].mxu0
    %v1352 = vadd.f32 %v1064, %v1351
    %v1353 = vpop.f32.mrb[0].mxu0
    %v1354 = vadd.f32 %v1064, %v1353
    %1355 = vmatprep.mubr.bf16.mxu0 0
    %1356 = vmatmul.mubr.bf16.gmra.mrb[0].mxu0 %v1159
    %v1357 = vpop.f32.mrb[0].mxu0
    %v1358 = vadd.f32 %v1069, %v1357
    %v1359 = vpop.f32.mrb[0].mxu0
    %v1360 = vadd.f32 %v1069, %v1359
    %v1361 = vpop.f32.mrb[0].mxu0
    %v1362 = vadd.f32 %v1074, %v1361
    %v1363 = vpop.f32.mrb[0].mxu0
    %v1364 = vadd.f32 %v1074, %v1363
    %1365 = vmatprep.mubr.bf16.mxu0 0
    %1366 = vmatmul.mubr.bf16.gmra.mrb[0].mxu0 %v1162
    %v1367 = vpop.f32.mrb[0].mxu0
    %v1368 = vadd.f32 %v1079, %v1367
    %v1369 = vpop.f32.mrb[0].mxu0
    %v1370 = vadd.f32 %v1079, %v1369
    %v1371 = vpop.f32.mrb[0].mxu0
    %v1372 = vadd.f32 %v1084, %v1371
    %v1373 = vpop.f32.mrb[0].mxu0
    %v1374 = vadd.f32 %v1084, %v1373
    %1375 = vmatprep.mubr.bf16.mxu0 0
    %1376 = vmatmul.mubr.bf16.gmra.mrb[0].mxu0 %v1165
    %v1377 = vpop.f32.mrb[0].mxu0
    %v1378 = vadd.f32 %v1089, %v1377
    %v1379 = vpop.f32.mrb[0].mxu0
    %v1380 = vadd.f32 %v1089, %v1379
    %v1381 = vpop.f32.mrb[0].mxu0
    %v1382 = vadd.f32 %v1094, %v1381
    %v1383 = vpop.f32.mrb[0].mxu0
    %v1384 = vadd.f32 %v1094, %v1383
    %1385 = vmatprep.mubr.bf16.mxu0 0
    %1386 = vmatmul.mubr.bf16.gmra.mrb[0].mxu0 %v1168
    %v1387 = vpop.f32.mrb[0].mxu0
    %v1388 = vadd.f32 %v1099, %v1387
    %v1389 = vpop.f32.mrb[0].mxu0
    %v1390 = vadd.f32 %v1099, %v1389
    %v1391 = vpop.f32.mrb[0].mxu0
    %v1392 = vadd.f32 %v1104, %v1391
    %v1393 = vpop.f32.mrb[0].mxu0
    %v1394 = vadd.f32 %v1104, %v1393
    %1395 = vdwg.mxu0
    %v1396 = vxor.u32 %v1205, 2147483648
    %v1397 = vxor.u32 %v1207, 2147483648
    %v1398 = vxor.u32 %v1318, 2147483648
    %v1399 = vxor.u32 %v1320, 2147483648
    %v1400 = vxor.u32 %v1209, 2147483648
    %v1401 = vxor.u32 %v1211, 2147483648
    %v1402 = vxor.u32 %v1322, 2147483648
    %v1403 = vxor.u32 %v1324, 2147483648
    %v1404 = vxor.u32 %v1215, 2147483648
    %v1405 = vxor.u32 %v1217, 2147483648
    %v1406 = vxor.u32 %v1328, 2147483648
    %v1407 = vxor.u32 %v1330, 2147483648
    %v1408 = vxor.u32 %v1219, 2147483648
    %v1409 = vxor.u32 %v1221, 2147483648
    %v1410 = vxor.u32 %v1332, 2147483648
    %v1411 = vxor.u32 %v1334, 2147483648
    %v1412 = vxor.u32 %v1225, 2147483648
    %v1413 = vxor.u32 %v1227, 2147483648
    %v1414 = vxor.u32 %v1338, 2147483648
    %v1415 = vxor.u32 %v1340, 2147483648
    %v1416 = vxor.u32 %v1229, 2147483648
    %v1417 = vxor.u32 %v1231, 2147483648
    %v1418 = vxor.u32 %v1342, 2147483648
    %v1419 = vxor.u32 %v1344, 2147483648
    %v1420 = vxor.u32 %v1235, 2147483648
    %v1421 = vxor.u32 %v1237, 2147483648
    %v1422 = vxor.u32 %v1348, 2147483648
    %v1423 = vxor.u32 %v1350, 2147483648
    %v1424 = vxor.u32 %v1239, 2147483648
    %v1425 = vxor.u32 %v1241, 2147483648
    %v1426 = vxor.u32 %v1352, 2147483648
    %v1427 = vxor.u32 %v1354, 2147483648
    %v1428 = vxor.u32 %v1245, 2147483648
    %v1429 = vxor.u32 %v1247, 2147483648
    %v1430 = vxor.u32 %v1358, 2147483648
    %v1431 = vxor.u32 %v1360, 2147483648
    %v1432 = vxor.u32 %v1249, 2147483648
    %v1433 = vxor.u32 %v1251, 2147483648
    %v1434 = vxor.u32 %v1362, 2147483648
    %v1435 = vxor.u32 %v1364, 2147483648
    %v1436 = vxor.u32 %v1255, 2147483648
    %v1437 = vxor.u32 %v1257, 2147483648
    %v1438 = vxor.u32 %v1368, 2147483648
    %v1439 = vxor.u32 %v1370, 2147483648
    %v1440 = vxor.u32 %v1259, 2147483648
    %v1441 = vxor.u32 %v1261, 2147483648
    %v1442 = vxor.u32 %v1372, 2147483648
    %v1443 = vxor.u32 %v1374, 2147483648
    %v1444 = vmul.f32 %v1396, 1.442695
    %v1445 = vpow.pop %v1444
    %v1446 = vmul.f32 %v1397, 1.442695
    %v1447 = vpow.pop %v1446
    %v1448 = vmul.f32 %v1398, 1.442695
    %v1449 = vpow.pop %v1448
    %v1450 = vmul.f32 %v1399, 1.442695
    %v1451 = vpow.pop %v1450
    %v1452 = vmul.f32 %v1400, 1.442695
    %v1453 = vpow.pop %v1452
    %v1454 = vmul.f32 %v1401, 1.442695
    %v1455 = vpow.pop %v1454
    %v1456 = vmul.f32 %v1402, 1.442695
    %v1457 = vpow.pop %v1456
    %v1458 = vmul.f32 %v1403, 1.442695
    %v1459 = vpow.pop %v1458
    %v1460 = vmul.f32 %v1404, 1.442695
    %v1461 = vpow.pop %v1460
    %v1462 = vmul.f32 %v1405, 1.442695
    %v1463 = vpow.pop %v1462
    %v1464 = vmul.f32 %v1406, 1.442695
    %v1465 = vpow.pop %v1464
    %v1466 = vmul.f32 %v1407, 1.442695
    %v1467 = vpow.pop %v1466
    %v1468 = vmul.f32 %v1408, 1.442695
    %v1469 = vpow.pop %v1468
    %v1470 = vmul.f32 %v1409, 1.442695
    %v1471 = vpow.pop %v1470
    %v1472 = vmul.f32 %v1410, 1.442695
    %v1473 = vpow.pop %v1472
    %v1474 = vmul.f32 %v1411, 1.442695
    %v1475 = vpow.pop %v1474
    %v1476 = vmul.f32 %v1412, 1.442695
    %v1477 = vpow.pop %v1476
    %v1478 = vmul.f32 %v1413, 1.442695
    %v1479 = vpow.pop %v1478
    %v1480 = vmul.f32 %v1414, 1.442695
    %v1481 = vpow.pop %v1480
    %v1482 = vmul.f32 %v1415, 1.442695
    %v1483 = vpow.pop %v1482
    %v1484 = vmul.f32 %v1416, 1.442695
    %v1485 = vpow.pop %v1484
    %v1486 = vmul.f32 %v1417, 1.442695
    %v1487 = vpow.pop %v1486
    %v1488 = vmul.f32 %v1418, 1.442695
    %v1489 = vpow.pop %v1488
    %v1490 = vmul.f32 %v1419, 1.442695
    %v1491 = vpow.pop %v1490
    %v1492 = vmul.f32 %v1420, 1.442695
    %v1493 = vpow.pop %v1492
    %v1494 = vmul.f32 %v1421, 1.442695
    %v1495 = vpow.pop %v1494
    %v1496 = vmul.f32 %v1422, 1.442695
    %v1497 = vpow.pop %v1496
    %v1498 = vmul.f32 %v1423, 1.442695
    %v1499 = vpow.pop %v1498
    %v1500 = vmul.f32 %v1424, 1.442695
    %v1501 = vpow.pop %v1500
    %v1502 = vmul.f32 %v1425, 1.442695
    %v1503 = vpow.pop %v1502
    %v1504 = vmul.f32 %v1426, 1.442695
    %v1505 = vpow.pop %v1504
    %v1506 = vmul.f32 %v1427, 1.442695
    %v1507 = vpow.pop %v1506
    %v1508 = vmul.f32 %v1428, 1.442695
    %v1509 = vpow.pop %v1508
    %v1510 = vmul.f32 %v1429, 1.442695
    %v1511 = vpow.pop %v1510
    %v1512 = vmul.f32 %v1430, 1.442695
    %v1513 = vpow.pop %v1512
    %v1514 = vmul.f32 %v1431, 1.442695
    %v1515 = vpow.pop %v1514
    %v1516 = vmul.f32 %v1432, 1.442695
    %v1517 = vpow.pop %v1516
    %v1518 = vmul.f32 %v1433, 1.442695
    %v1519 = vpow.pop %v1518
    %v1520 = vmul.f32 %v1434, 1.442695
    %v1521 = vpow.pop %v1520
    %v1522 = vmul.f32 %v1435, 1.442695
    %v1523 = vpow.pop %v1522
    %v1524 = vmul.f32 %v1436, 1.442695
    %v1525 = vpow.pop %v1524
    %v1526 = vmul.f32 %v1437, 1.442695
    %v1527 = vpow.pop %v1526
    %v1528 = vmul.f32 %v1438, 1.442695
    %v1529 = vpow.pop %v1528
    %v1530 = vmul.f32 %v1439, 1.442695
    %v1531 = vpow.pop %v1530
    %v1532 = vmul.f32 %v1440, 1.442695
    %v1533 = vpow.pop %v1532
    %v1534 = vmul.f32 %v1441, 1.442695
    %v1535 = vpow.pop %v1534
    %v1536 = vmul.f32 %v1442, 1.442695
    %v1537 = vpow.pop %v1536
    %v1538 = vmul.f32 %v1443, 1.442695
    %v1539 = vpow.pop %v1538
    %v1540 = vadd.f32 %v1445, 1.0
    %v1541 = vadd.f32 %v1447, 1.0
    %v1542 = vadd.f32 %v1449, 1.0
    %v1543 = vadd.f32 %v1451, 1.0
    %v1544 = vadd.f32 %v1453, 1.0
    %v1545 = vadd.f32 %v1455, 1.0
    %v1546 = vadd.f32 %v1457, 1.0
    %v1547 = vadd.f32 %v1459, 1.0
    %v1548 = vadd.f32 %v1461, 1.0
    %v1549 = vadd.f32 %v1463, 1.0
    %v1550 = vadd.f32 %v1465, 1.0
    %v1551 = vadd.f32 %v1467, 1.0
    %v1552 = vadd.f32 %v1469, 1.0
    %v1553 = vadd.f32 %v1471, 1.0
    %v1554 = vadd.f32 %v1473, 1.0
    %v1555 = vadd.f32 %v1475, 1.0
    %v1556 = vadd.f32 %v1477, 1.0
    %v1557 = vadd.f32 %v1479, 1.0
    %v1558 = vadd.f32 %v1481, 1.0
    %v1559 = vadd.f32 %v1483, 1.0
    %v1560 = vadd.f32 %v1485, 1.0
    %v1561 = vadd.f32 %v1487, 1.0
    %v1562 = vadd.f32 %v1489, 1.0
    %v1563 = vadd.f32 %v1491, 1.0
    %v1564 = vadd.f32 %v1493, 1.0
    %v1565 = vadd.f32 %v1495, 1.0
    %v1566 = vadd.f32 %v1497, 1.0
    %v1567 = vadd.f32 %v1499, 1.0
    %v1568 = vadd.f32 %v1501, 1.0
    %v1569 = vadd.f32 %v1503, 1.0
    %v1570 = vadd.f32 %v1505, 1.0
    %v1571 = vadd.f32 %v1507, 1.0
    %v1572 = vadd.f32 %v1509, 1.0
    %v1573 = vadd.f32 %v1511, 1.0
    %v1574 = vadd.f32 %v1513, 1.0
    %v1575 = vadd.f32 %v1515, 1.0
    %v1576 = vadd.f32 %v1517, 1.0
    %v1577 = vadd.f32 %v1519, 1.0
    %v1578 = vadd.f32 %v1521, 1.0
    %v1579 = vadd.f32 %v1523, 1.0
    %v1580 = vadd.f32 %v1525, 1.0
    %v1581 = vadd.f32 %v1527, 1.0
    %v1582 = vadd.f32 %v1529, 1.0
    %v1583 = vadd.f32 %v1531, 1.0
    %v1584 = vadd.f32 %v1533, 1.0
    %v1585 = vadd.f32 %v1535, 1.0
    %v1586 = vadd.f32 %v1537, 1.0
    %v1587 = vadd.f32 %v1539, 1.0
    %v1588 = vrcp.pop %v1540
    %v1589 = vmul.f32 1.0, %v1588
    %v1590 = vrcp.pop %v1541
    %v1591 = vmul.f32 1.0, %v1590
    %v1592 = vrcp.pop %v1542
    %v1593 = vmul.f32 1.0, %v1592
    %v1594 = vrcp.pop %v1543
    %v1595 = vmul.f32 1.0, %v1594
    %v1596 = vrcp.pop %v1544
    %v1597 = vmul.f32 1.0, %v1596
    %v1598 = vrcp.pop %v1545
    %v1599 = vmul.f32 1.0, %v1598
    %v1600 = vrcp.pop %v1546
    %v1601 = vmul.f32 1.0, %v1600
    %v1602 = vrcp.pop %v1547
    %v1603 = vmul.f32 1.0, %v1602
    %v1604 = vrcp.pop %v1548
    %v1605 = vmul.f32 1.0, %v1604
    %v1606 = vrcp.pop %v1549
    %v1607 = vmul.f32 1.0, %v1606
    %v1608 = vrcp.pop %v1550
    %v1609 = vmul.f32 1.0, %v1608
    %v1610 = vrcp.pop %v1551
    %v1611 = vmul.f32 1.0, %v1610
    %v1612 = vrcp.pop %v1552
    %v1613 = vmul.f32 1.0, %v1612
    %v1614 = vrcp.pop %v1553
    %v1615 = vmul.f32 1.0, %v1614
    %v1616 = vrcp.pop %v1554
    %v1617 = vmul.f32 1.0, %v1616
    %v1618 = vrcp.pop %v1555
    %v1619 = vmul.f32 1.0, %v1618
    %v1620 = vrcp.pop %v1556
    %v1621 = vmul.f32 1.0, %v1620
    %v1622 = vrcp.pop %v1557
    %v1623 = vmul.f32 1.0, %v1622
    %v1624 = vrcp.pop %v1558
    %v1625 = vmul.f32 1.0, %v1624
    %v1626 = vrcp.pop %v1559
    %v1627 = vmul.f32 1.0, %v1626
    %v1628 = vrcp.pop %v1560
    %v1629 = vmul.f32 1.0, %v1628
    %v1630 = vrcp.pop %v1561
    %v1631 = vmul.f32 1.0, %v1630
    %v1632 = vrcp.pop %v1562
    %v1633 = vmul.f32 1.0, %v1632
    %v1634 = vrcp.pop %v1563
    %v1635 = vmul.f32 1.0, %v1634
    %v1636 = vrcp.pop %v1564
    %v1637 = vmul.f32 1.0, %v1636
    %v1638 = vrcp.pop %v1565
    %v1639 = vmul.f32 1.0, %v1638
    %v1640 = vrcp.pop %v1566
    %v1641 = vmul.f32 1.0, %v1640
    %v1642 = vrcp.pop %v1567
    %v1643 = vmul.f32 1.0, %v1642
    %v1644 = vrcp.pop %v1568
    %v1645 = vmul.f32 1.0, %v1644
    %v1646 = vrcp.pop %v1569
    %v1647 = vmul.f32 1.0, %v1646
    %v1648 = vrcp.pop %v1570
    %v1649 = vmul.f32 1.0, %v1648
    %v1650 = vrcp.pop %v1571
    %v1651 = vmul.f32 1.0, %v1650
    %v1652 = vrcp.pop %v1572
    %v1653 = vmul.f32 1.0, %v1652
    %v1654 = vrcp.pop %v1573
    %v1655 = vmul.f32 1.0, %v1654
    %v1656 = vrcp.pop %v1574
    %v1657 = vmul.f32 1.0, %v1656
    %v1658 = vrcp.pop %v1575
    %v1659 = vmul.f32 1.0, %v1658
    %v1660 = vrcp.pop %v1576
    %v1661 = vmul.f32 1.0, %v1660
    %v1662 = vrcp.pop %v1577
    %v1663 = vmul.f32 1.0, %v1662
    %v1664 = vrcp.pop %v1578
    %v1665 = vmul.f32 1.0, %v1664
    %v1666 = vrcp.pop %v1579
    %v1667 = vmul.f32 1.0, %v1666
    %v1668 = vrcp.pop %v1580
    %v1669 = vmul.f32 1.0, %v1668
    %v1670 = vrcp.pop %v1581
    %v1671 = vmul.f32 1.0, %v1670
    %v1672 = vrcp.pop %v1582
    %v1673 = vmul.f32 1.0, %v1672
    %v1674 = vrcp.pop %v1583
    %v1675 = vmul.f32 1.0, %v1674
    %v1676 = vrcp.pop %v1584
    %v1677 = vmul.f32 1.0, %v1676
    %v1678 = vrcp.pop %v1585
    %v1679 = vmul.f32 1.0, %v1678
    %v1680 = vrcp.pop %v1586
    %v1681 = vmul.f32 1.0, %v1680
    %v1682 = vrcp.pop %v1587
    %v1683 = vmul.f32 1.0, %v1682
    %v1684 = vtanh.pop %v1265
    %v1685 = vtanh.pop %v1267
    %v1686 = vtanh.pop %v1378
    %v1687 = vtanh.pop %v1380
    %v1688 = vtanh.pop %v1269
    %v1689 = vtanh.pop %v1271
    %v1690 = vtanh.pop %v1382
    %v1691 = vtanh.pop %v1384
    %v1692 = vtanh.pop %v1275
    %v1693 = vtanh.pop %v1277
    %v1694 = vtanh.pop %v1388
    %v1695 = vtanh.pop %v1390
    %v1696 = vtanh.pop %v1279
    %v1697 = vtanh.pop %v1281
    %v1698 = vtanh.pop %v1392
    %v1699 = vtanh.pop %v1394
    %v1700 = vld [vmem:[#allocation3] sm:$0xff]
    %v1701 = vld [vmem:[#allocation3 + $0x8] sm:$0xff]
    %v1702 = vld [vmem:[#allocation3 + $0x10] sm:$0xff]
    %v1703 = vld [vmem:[#allocation3 + $0x18] sm:$0xff]
    %v1704 = vld [vmem:[#allocation3 + $0x20] sm:$0xff]
    %v1705 = vld [vmem:[#allocation3 + $0x28] sm:$0xff]
    %v1706 = vld [vmem:[#allocation3 + $0x30] sm:$0xff]
    %v1707 = vld [vmem:[#allocation3 + $0x38] sm:$0xff]
    %v1708 = vld [vmem:[#allocation3 + $0x40] sm:$0xff]
    %v1709 = vld [vmem:[#allocation3 + $0x48] sm:$0xff]
    %v1710 = vld [vmem:[#allocation3 + $0x50] sm:$0xff]
    %v1711 = vld [vmem:[#allocation3 + $0x58] sm:$0xff]
    %v1712 = vld [vmem:[#allocation3 + $0x60] sm:$0xff]
    %v1713 = vld [vmem:[#allocation3 + $0x68] sm:$0xff]
    %v1714 = vld [vmem:[#allocation3 + $0x70] sm:$0xff]
    %v1715 = vld [vmem:[#allocation3 + $0x78] sm:$0xff]
    %v1716 = vmul.f32 %v1621, %v1700
    %v1717 = vmul.f32 %v1623, %v1701
    %v1718 = vmul.f32 %v1625, %v1702
    %v1719 = vmul.f32 %v1627, %v1703
    %v1720 = vmul.f32 %v1629, %v1704
    %v1721 = vmul.f32 %v1631, %v1705
    %v1722 = vmul.f32 %v1633, %v1706
    %v1723 = vmul.f32 %v1635, %v1707
    %v1724 = vmul.f32 %v1637, %v1708
    %v1725 = vmul.f32 %v1639, %v1709
    %v1726 = vmul.f32 %v1641, %v1710
    %v1727 = vmul.f32 %v1643, %v1711
    %v1728 = vmul.f32 %v1645, %v1712
    %v1729 = vmul.f32 %v1647, %v1713
    %v1730 = vmul.f32 %v1649, %v1714
    %v1731 = vmul.f32 %v1651, %v1715
    %v1732 = vmul.f32 %v1589, %v1684
    %v1733 = vmul.f32 %v1591, %v1685
    %v1734 = vmul.f32 %v1593, %v1686
    %v1735 = vmul.f32 %v1595, %v1687
    %v1736 = vmul.f32 %v1597, %v1688
    %v1737 = vmul.f32 %v1599, %v1689
    %v1738 = vmul.f32 %v1601, %v1690
    %v1739 = vmul.f32 %v1603, %v1691
    %v1740 = vmul.f32 %v1605, %v1692
    %v1741 = vmul.f32 %v1607, %v1693
    %v1742 = vmul.f32 %v1609, %v1694
    %v1743 = vmul.f32 %v1611, %v1695
    %v1744 = vmul.f32 %v1613, %v1696
    %v1745 = vmul.f32 %v1615, %v1697
    %v1746 = vmul.f32 %v1617, %v1698
    %v1747 = vmul.f32 %v1619, %v1699
    %v1748 = vadd.f32 %v1716, %v1732
    %v1749 = vadd.f32 %v1717, %v1733
    %v1750 = vadd.f32 %v1718, %v1734
    %v1751 = vadd.f32 %v1719, %v1735
    %v1752 = vadd.f32 %v1720, %v1736
    %v1753 = vadd.f32 %v1721, %v1737
    %v1754 = vadd.f32 %v1722, %v1738
    %v1755 = vadd.f32 %v1723, %v1739
    %v1756 = vadd.f32 %v1724, %v1740
    %v1757 = vadd.f32 %v1725, %v1741
    %v1758 = vadd.f32 %v1726, %v1742
    %v1759 = vadd.f32 %v1727, %v1743
    %v1760 = vadd.f32 %v1728, %v1744
    %v1761 = vadd.f32 %v1729, %v1745
    %v1762 = vadd.f32 %v1730, %v1746
    %v1763 = vadd.f32 %v1731, %v1747
    %v1764 = vtanh.pop %v1748
    %v1765 = vtanh.pop %v1749
    %v1766 = vtanh.pop %v1750
    %v1767 = vtanh.pop %v1751
    %v1768 = vtanh.pop %v1752
    %v1769 = vtanh.pop %v1753
    %v1770 = vtanh.pop %v1754
    %v1771 = vtanh.pop %v1755
    %v1772 = vtanh.pop %v1756
    %v1773 = vtanh.pop %v1757
    %v1774 = vtanh.pop %v1758
    %v1775 = vtanh.pop %v1759
    %v1776 = vtanh.pop %v1760
    %v1777 = vtanh.pop %v1761
    %v1778 = vtanh.pop %v1762
    %v1779 = vtanh.pop %v1763
    %v1780 = vmul.f32 %v1653, %v1764
    %v1781 = vmul.f32 %v1655, %v1765
    %v1782 = vmul.f32 %v1657, %v1766
    %v1783 = vmul.f32 %v1659, %v1767
    %v1784 = vmul.f32 %v1661, %v1768
    %v1785 = vmul.f32 %v1663, %v1769
    %v1786 = vmul.f32 %v1665, %v1770
    %v1787 = vmul.f32 %v1667, %v1771
    %v1788 = vmul.f32 %v1669, %v1772
    %v1789 = vmul.f32 %v1671, %v1773
    %v1790 = vmul.f32 %v1673, %v1774
    %v1791 = vmul.f32 %v1675, %v1775
    %v1792 = vmul.f32 %v1677, %v1776
    %v1793 = vmul.f32 %v1679, %v1777
    %v1794 = vmul.f32 %v1681, %v1778
    %v1795 = vmul.f32 %v1683, %v1779
    %1796 = vst [vmem:[#allocation3] sm:$0xff] %v1748
    %1797 = vst [vmem:[#allocation3 + $0x8] sm:$0xff] %v1749
    %1798 = vst [vmem:[#allocation3 + $0x10] sm:$0xff] %v1750
    %1799 = vst [vmem:[#allocation3 + $0x18] sm:$0xff] %v1751
    %1800 = vst [vmem:[#allocation3 + $0x20] sm:$0xff] %v1752
    %1801 = vst [vmem:[#allocation3 + $0x28] sm:$0xff] %v1753
    %1802 = vst [vmem:[#allocation3 + $0x30] sm:$0xff] %v1754
    %1803 = vst [vmem:[#allocation3 + $0x38] sm:$0xff] %v1755
    %1804 = vst [vmem:[#allocation3 + $0x40] sm:$0xff] %v1756
    %1805 = vst [vmem:[#allocation3 + $0x48] sm:$0xff] %v1757
    %1806 = vst [vmem:[#allocation3 + $0x50] sm:$0xff] %v1758
    %1807 = vst [vmem:[#allocation3 + $0x58] sm:$0xff] %v1759
    %1808 = vst [vmem:[#allocation3 + $0x60] sm:$0xff] %v1760
    %1809 = vst [vmem:[#allocation3 + $0x68] sm:$0xff] %v1761
    %1810 = vst [vmem:[#allocation3 + $0x70] sm:$0xff] %v1762
    %1811 = vst [vmem:[#allocation3 + $0x78] sm:$0xff] %v1763
    %v1812 = vpack.c.bf16 %v1784, %v1780
    %v1813 = vpack.c.bf16 %v1785, %v1781
    %v1814 = vpack.c.bf16 %v1786, %v1782
    %v1815 = vpack.c.bf16 %v1787, %v1783
    %v1816 = vpack.c.bf16 %v1792, %v1788
    %v1817 = vpack.c.bf16 %v1793, %v1789
    %v1818 = vpack.c.bf16 %v1794, %v1790
    %v1819 = vpack.c.bf16 %v1795, %v1791
    %1820 = vst [vmem:[#allocation2 + $0x20] sm:$0xff] %v1812
    %1821 = vst [vmem:[#allocation2 + $0x28] sm:$0xff] %v1813
    %1822 = vst [vmem:[#allocation2 + $0x30] sm:$0xff] %v1814
    %1823 = vst [vmem:[#allocation2 + $0x38] sm:$0xff] %v1815
    %1824 = vst [vmem:[#allocation2 + $0x40] sm:$0xff] %v1816
    %1825 = vst [vmem:[#allocation2 + $0x48] sm:$0xff] %v1817
    %1826 = vst [vmem:[#allocation2 + $0x50] sm:$0xff] %v1818
    %1827 = vst [vmem:[#allocation2 + $0x58] sm:$0xff] %v1819
    %s1828 = scalar_lea.vmem [#allocation7], 128
    %1829 = vst [vmem:[%s1828] sm:$0xff] %v1780
    %1830 = vst [vmem:[%s1828 + $0x8] sm:$0xff] %v1781
    %1831 = vst [vmem:[%s1828 + $0x10] sm:$0xff] %v1782
    %1832 = vst [vmem:[%s1828 + $0x18] sm:$0xff] %v1783
    %1833 = vst [vmem:[%s1828 + $0x20] sm:$0xff] %v1784
    %1834 = vst [vmem:[%s1828 + $0x28] sm:$0xff] %v1785
    %1835 = vst [vmem:[%s1828 + $0x30] sm:$0xff] %v1786
    %1836 = vst [vmem:[%s1828 + $0x38] sm:$0xff] %v1787
    %1837 = vst [vmem:[%s1828 + $0x40] sm:$0xff] %v1788
    %1838 = vst [vmem:[%s1828 + $0x48] sm:$0xff] %v1789
    %1839 = vst [vmem:[%s1828 + $0x50] sm:$0xff] %v1790
    %1840 = vst [vmem:[%s1828 + $0x58] sm:$0xff] %v1791
    %1841 = vst [vmem:[%s1828 + $0x60] sm:$0xff] %v1792
    %1842 = vst [vmem:[%s1828 + $0x68] sm:$0xff] %v1793
    %1843 = vst [vmem:[%s1828 + $0x70] sm:$0xff] %v1794
    %1844 = vst [vmem:[%s1828 + $0x78] sm:$0xff] %v1795
    %s1845 = scalar_lea.vmem [#allocation4], 64
    %v1846 = vld [vmem:[%s1845] sm:$0xff]
    %v1847 = vld [vmem:[%s1845 + $0x8] sm:$0xff]
    %v1848 = vld [vmem:[%s1845 + $0x10] sm:$0xff]
    %v1849 = vld [vmem:[%s1845 + $0x18] sm:$0xff]
    %v1854 = vunpack.c.l.b16 %v1846
    %v1855 = vunpack.c.h.b16 %v1846
    %v1856 = vunpack.c.l.b16 %v1847
    %v1857 = vunpack.c.h.b16 %v1847
    %v1858 = vunpack.c.l.b16 %v1848
    %v1859 = vunpack.c.h.b16 %v1848
    %v1860 = vunpack.c.l.b16 %v1849
    %v1861 = vunpack.c.h.b16 %v1849
    %v1862 = vpack.c.b16 %v1858, %v1854
    %v1863 = vpack.c.b16 %v1859, %v1855
    %v1864 = vpack.c.b16 %v1860, %v1856
    %v1865 = vpack.c.b16 %v1861, %v1857
    %1870 = vst [vmem:[#allocation2] sm:$0xff] %v1862
    %1871 = vst [vmem:[#allocation2 + $0x8] sm:$0xff] %v1863
    %1872 = vst [vmem:[#allocation2 + $0x10] sm:$0xff] %v1864
    %1873 = vst [vmem:[#allocation2 + $0x18] sm:$0xff] %v1865
    %v1874 = vld [vmem:[%s1] sm:$0xf]
    %v1875 = vld [vmem:[%s1 + $0x4] sm:$0xf]
    %v1876 = vld [vmem:[%s1 + $0x8] sm:$0xf]
    %v1877 = vld [vmem:[%s1 + $0xc] sm:$0xf]
    %v1878 = vld [vmem:[%s1 + $0x10] sm:$0xf]
    %v1879 = vld [vmem:[%s1 + $0x14] sm:$0xf]
    %v1880 = vld [vmem:[%s1 + $0x18] sm:$0xf]
    %v1881 = vld [vmem:[%s1 + $0x1c] sm:$0xf]
    %v1882 = vld [vmem:[%s1 + $0x20] sm:$0xf]
    %v1883 = vld [vmem:[%s1 + $0x24] sm:$0xf]
    %v1884 = vld [vmem:[%s1 + $0x28] sm:$0xf]
    %v1885 = vld [vmem:[%s1 + $0x2c] sm:$0xf]
    %v1886 = vld [vmem:[%s1 + $0x30] sm:$0xf]
    %v1887 = vld [vmem:[%s1 + $0x34] sm:$0xf]
    %v1888 = vld [vmem:[%s1 + $0x38] sm:$0xf]
    %v1889 = vld [vmem:[%s1 + $0x3c] sm:$0xf]
    %v1890 = vld [vmem:[#allocation2] sm:$0xff]
    %v1891 = vld [vmem:[#allocation2 + $0x8] sm:$0xff]
    %v1892 = vld [vmem:[#allocation2 + $0x10] sm:$0xff]
    %v1893 = vld [vmem:[#allocation2 + $0x18] sm:$0xff]
    %v1894 = vld [vmem:[#allocation2 + $0x20] sm:$0xff]
    %v1895 = vld [vmem:[#allocation2 + $0x28] sm:$0xff]
    %v1896 = vld [vmem:[#allocation2 + $0x30] sm:$0xff]
    %v1897 = vld [vmem:[#allocation2 + $0x38] sm:$0xff]
    %v1898 = vld [vmem:[#allocation2 + $0x40] sm:$0xff]
    %v1899 = vld [vmem:[#allocation2 + $0x48] sm:$0xff]
    %v1900 = vld [vmem:[#allocation2 + $0x50] sm:$0xff]
    %v1901 = vld [vmem:[#allocation2 + $0x58] sm:$0xff]
    %v1902 = vld [vmem:[%s2] sm:$0xff]
    %v1903 = vld [vmem:[%s2 + $0x8] sm:$0xff]
    %v1904 = vld [vmem:[%s2 + $0x10] sm:$0xff]
    %v1905 = vld [vmem:[%s2 + $0x18] sm:$0xff]
    %v1906 = vld [vmem:[%s2 + $0x20] sm:$0xff]
    %v1907 = vld [vmem:[%s2 + $0x28] sm:$0xff]
    %v1908 = vld [vmem:[%s2 + $0x30] sm:$0xff]
    %v1909 = vld [vmem:[%s2 + $0x38] sm:$0xff]
    %v1910 = vld [vmem:[%s2 + $0x40] sm:$0xff]
    %v1911 = vld [vmem:[%s2 + $0x48] sm:$0xff]
    %v1912 = vld [vmem:[%s2 + $0x50] sm:$0xff]
    %v1913 = vld [vmem:[%s2 + $0x58] sm:$0xff]
    %v1914 = vld [vmem:[%s2 + $0x60] sm:$0xff]
    %v1915 = vld [vmem:[%s2 + $0x68] sm:$0xff]
    %v1916 = vld [vmem:[%s2 + $0x70] sm:$0xff]
    %v1917 = vld [vmem:[%s2 + $0x78] sm:$0xff]
    %1919 = vset.pattern.permute.xlu0 0
    %1920 = vperm.xlu0 %1919, %v1902
    %v1921 = vpop.permute.xlu0 %1920
    %1924 = vset.pattern.permute.xlu0 0
    %1925 = vperm.xlu0 %1924, %v1903
    %v1926 = vpop.permute.xlu0 %1925
    %1929 = vset.pattern.permute.xlu0 0
    %1930 = vperm.xlu0 %1929, %v1904
    %v1931 = vpop.permute.xlu0 %1930
    %1934 = vset.pattern.permute.xlu0 0
    %1935 = vperm.xlu0 %1934, %v1905
    %v1936 = vpop.permute.xlu0 %1935
    %1939 = vset.pattern.permute.xlu0 0
    %1940 = vperm.xlu0 %1939, %v1906
    %v1941 = vpop.permute.xlu0 %1940
    %1944 = vset.pattern.permute.xlu0 0
    %1945 = vperm.xlu0 %1944, %v1907
    %v1946 = vpop.permute.xlu0 %1945
    %1949 = vset.pattern.permute.xlu0 0
    %1950 = vperm.xlu0 %1949, %v1908
    %v1951 = vpop.permute.xlu0 %1950
    %1954 = vset.pattern.permute.xlu0 0
    %1955 = vperm.xlu0 %1954, %v1909
    %v1956 = vpop.permute.xlu0 %1955
    %1959 = vset.pattern.permute.xlu0 0
    %1960 = vperm.xlu0 %1959, %v1910
    %v1961 = vpop.permute.xlu0 %1960
    %1964 = vset.pattern.permute.xlu0 0
    %1965 = vperm.xlu0 %1964, %v1911
    %v1966 = vpop.permute.xlu0 %1965
    %1969 = vset.pattern.permute.xlu0 0
    %1970 = vperm.xlu0 %1969, %v1912
    %v1971 = vpop.permute.xlu0 %1970
    %1974 = vset.pattern.permute.xlu0 0
    %1975 = vperm.xlu0 %1974, %v1913
    %v1976 = vpop.permute.xlu0 %1975
    %1979 = vset.pattern.permute.xlu0 0
    %1980 = vperm.xlu0 %1979, %v1914
    %v1981 = vpop.permute.xlu0 %1980
    %1984 = vset.pattern.permute.xlu0 0
    %1985 = vperm.xlu0 %1984, %v1915
    %v1986 = vpop.permute.xlu0 %1985
    %1989 = vset.pattern.permute.xlu0 0
    %1990 = vperm.xlu0 %1989, %v1916
    %v1991 = vpop.permute.xlu0 %1990
    %1994 = vset.pattern.permute.xlu0 0
    %1995 = vperm.xlu0 %1994, %v1917
    %v1996 = vpop.permute.xlu0 %1995
    %v2014 = vunpack.c.l.b16 %v1874
    %v2015 = vunpack.c.l.b16 %v1875
    %v2016 = vunpack.c.l.b16 %v1876
    %v2017 = vunpack.c.l.b16 %v1877
    %v2018 = vunpack.c.l.b16 %v1878
    %v2019 = vunpack.c.l.b16 %v1879
    %v2020 = vunpack.c.l.b16 %v1880
    %v2021 = vunpack.c.l.b16 %v1881
    %v2022 = vunpack.c.l.b16 %v1882
    %v2023 = vunpack.c.l.b16 %v1883
    %v2024 = vunpack.c.l.b16 %v1884
    %v2025 = vunpack.c.l.b16 %v1885
    %v2026 = vunpack.c.l.b16 %v1886
    %v2027 = vunpack.c.l.b16 %v1887
    %v2028 = vunpack.c.l.b16 %v1888
    %v2029 = vunpack.c.l.b16 %v1889
    %v2030 = vpack.c.b16 %v2015, %v2014
    %v2031 = vpack.c.b16 %v2017, %v2016
    %v2032 = vpack.c.b16 %v2019, %v2018
    %v2033 = vpack.c.b16 %v2021, %v2020
    %v2034 = vpack.c.b16 %v2023, %v2022
    %v2035 = vpack.c.b16 %v2025, %v2024
    %v2036 = vpack.c.b16 %v2027, %v2026
    %v2037 = vpack.c.b16 %v2029, %v2028
    %v2039 = vsel %vm254, %v2030, 0
    %v2042 = vsel %vm254, %v2031, 0
    %v2045 = vsel %vm254, %v2032, 0
    %v2048 = vsel %vm254, %v2033, 0
    %v2051 = vsel %vm254, %v2034, 0
    %v2054 = vsel %vm254, %v2035, 0
    %v2057 = vsel %vm254, %v2036, 0
    %v2060 = vsel %vm254, %v2037, 0
    %2062 = vmatprep.subr.bf16.mxu0 %v1891
    %2063 = vmatpush1.bf16.msra.mxu0 %v1890
    %2064 = vmatprep.subr.bf16.mxu0 %v1895
    %2065 = vmatpush1.bf16.msra.mxu0 %v1894
    %2066 = vmatprep.subr.bf16.mxu0 %v1899
    %2067 = vmatpush1.bf16.msra.mxu0 %v1898
    %2068 = vmatprep.subr.bf16.mxu0 0
    %2069 = vmatpush1.bf16.msra.mxu0 0
    %2070 = vmatprep.subr.bf16.mxu0 0
    %2071 = vmatpush1.bf16.msra.mxu0 0
    %2072 = vmatprep.subr.bf16.mxu0 0
    %2073 = vmatpush1.bf16.msra.mxu0 0
    %2074 = vmatprep.subr.bf16.mxu0 0
    %2075 = vmatpush1.bf16.msra.mxu0 0
    %2076 = vmatprep.subr.bf16.mxu0 0
    %2077 = vmatpush1.bf16.msra.mxu0 0
    %2078 = vmatprep.subr.bf16.mxu0 0
    %2079 = vmatpush1.bf16.msra.mxu0 0
    %2080 = vmatprep.subr.bf16.mxu0 0
    %2081 = vmatpush1.bf16.msra.mxu0 0
    %2082 = vmatprep.subr.bf16.mxu0 0
    %2083 = vmatpush1.bf16.msra.mxu0 0
    %2084 = vmatprep.subr.bf16.mxu0 0
    %2085 = vmatpush1.bf16.msra.mxu0 0
    %2086 = vmatprep.subr.bf16.mxu0 0
    %2087 = vmatpush1.bf16.msra.mxu0 0
    %2088 = vmatprep.subr.bf16.mxu0 0
    %2089 = vmatpush1.bf16.msra.mxu0 0
    %2090 = vmatprep.subr.bf16.mxu0 0
    %2091 = vmatpush1.bf16.msra.mxu0 0
    %2092 = vmatprep.subr.bf16.mxu0 0
    %2093 = vmatpush1.bf16.msra.mxu0 0
    %2094 = vmatprep.mubr.bf16.mxu0 0
    %2095 = vmatmul.mubr.bf16.gmra.mrb[0].mxu0 %v2039
    %v2096 = vpop.f32.mrb[0].mxu0
    %v2097 = vadd.f32 %v1921, %v2096
    %v2098 = vpop.f32.mrb[0].mxu0
    %v2099 = vadd.f32 %v1921, %v2098
    %v2100 = vpop.f32.mrb[0].mxu0
    %v2101 = vadd.f32 %v1926, %v2100
    %v2102 = vpop.f32.mrb[0].mxu0
    %v2103 = vadd.f32 %v1926, %v2102
    %2104 = vmatprep.mubr.bf16.mxu0 0
    %2105 = vmatmul.mubr.bf16.gmra.mrb[0].mxu0 %v2042
    %v2106 = vpop.f32.mrb[0].mxu0
    %v2107 = vadd.f32 %v1931, %v2106
    %v2108 = vpop.f32.mrb[0].mxu0
    %v2109 = vadd.f32 %v1931, %v2108
    %v2110 = vpop.f32.mrb[0].mxu0
    %v2111 = vadd.f32 %v1936, %v2110
    %v2112 = vpop.f32.mrb[0].mxu0
    %v2113 = vadd.f32 %v1936, %v2112
    %2114 = vmatprep.mubr.bf16.mxu0 0
    %2115 = vmatmul.mubr.bf16.gmra.mrb[0].mxu0 %v2045
    %v2116 = vpop.f32.mrb[0].mxu0
    %v2117 = vadd.f32 %v1941, %v2116
    %v2118 = vpop.f32.mrb[0].mxu0
    %v2119 = vadd.f32 %v1941, %v2118
    %v2120 = vpop.f32.mrb[0].mxu0
    %v2121 = vadd.f32 %v1946, %v2120
    %v2122 = vpop.f32.mrb[0].mxu0
    %v2123 = vadd.f32 %v1946, %v2122
    %2124 = vmatprep.mubr.bf16.mxu0 0
    %2125 = vmatmul.mubr.bf16.gmra.mrb[0].mxu0 %v2048
    %v2126 = vpop.f32.mrb[0].mxu0
    %v2127 = vadd.f32 %v1951, %v2126
    %v2128 = vpop.f32.mrb[0].mxu0
    %v2129 = vadd.f32 %v1951, %v2128
    %v2130 = vpop.f32.mrb[0].mxu0
    %v2131 = vadd.f32 %v1956, %v2130
    %v2132 = vpop.f32.mrb[0].mxu0
    %v2133 = vadd.f32 %v1956, %v2132
    %2134 = vmatprep.mubr.bf16.mxu0 0
    %2135 = vmatmul.mubr.bf16.gmra.mrb[0].mxu0 %v2051
    %v2136 = vpop.f32.mrb[0].mxu0
    %v2137 = vadd.f32 %v1961, %v2136
    %v2138 = vpop.f32.mrb[0].mxu0
    %v2139 = vadd.f32 %v1961, %v2138
    %v2140 = vpop.f32.mrb[0].mxu0
    %v2141 = vadd.f32 %v1966, %v2140
    %v2142 = vpop.f32.mrb[0].mxu0
    %v2143 = vadd.f32 %v1966, %v2142
    %2144 = vmatprep.mubr.bf16.mxu0 0
    %2145 = vmatmul.mubr.bf16.gmra.mrb[0].mxu0 %v2054
    %v2146 = vpop.f32.mrb[0].mxu0
    %v2147 = vadd.f32 %v1971, %v2146
    %v2148 = vpop.f32.mrb[0].mxu0
    %v2149 = vadd.f32 %v1971, %v2148
    %v2150 = vpop.f32.mrb[0].mxu0
    %v2151 = vadd.f32 %v1976, %v2150
    %v2152 = vpop.f32.mrb[0].mxu0
    %v2153 = vadd.f32 %v1976, %v2152
    %2154 = vmatprep.mubr.bf16.mxu0 0
    %2155 = vmatmul.mubr.bf16.gmra.mrb[0].mxu0 %v2057
    %v2156 = vpop.f32.mrb[0].mxu0
    %v2157 = vadd.f32 %v1981, %v2156
    %v2158 = vpop.f32.mrb[0].mxu0
    %v2159 = vadd.f32 %v1981, %v2158
    %v2160 = vpop.f32.mrb[0].mxu0
    %v2161 = vadd.f32 %v1986, %v2160
    %v2162 = vpop.f32.mrb[0].mxu0
    %v2163 = vadd.f32 %v1986, %v2162
    %2164 = vmatprep.mubr.bf16.mxu0 0
    %2165 = vmatmul.mubr.bf16.gmra.mrb[0].mxu0 %v2060
    %v2166 = vpop.f32.mrb[0].mxu0
    %v2167 = vadd.f32 %v1991, %v2166
    %v2168 = vpop.f32.mrb[0].mxu0
    %v2169 = vadd.f32 %v1991, %v2168
    %v2170 = vpop.f32.mrb[0].mxu0
    %v2171 = vadd.f32 %v1996, %v2170
    %v2172 = vpop.f32.mrb[0].mxu0
    %v2173 = vadd.f32 %v1996, %v2172
    %2174 = vdwg.mxu0
    %2175 = vmatprep.subr.bf16.mxu0 %v1893
    %2176 = vmatpush1.bf16.msra.mxu0 %v1892
    %2177 = vmatprep.subr.bf16.mxu0 %v1897
    %2178 = vmatpush1.bf16.msra.mxu0 %v1896
    %2179 = vmatprep.subr.bf16.mxu0 %v1901
    %2180 = vmatpush1.bf16.msra.mxu0 %v1900
    %2181 = vmatprep.subr.bf16.mxu0 0
    %2182 = vmatpush1.bf16.msra.mxu0 0
    %2183 = vmatprep.subr.bf16.mxu0 0
    %2184 = vmatpush1.bf16.msra.mxu0 0
    %2185 = vmatprep.subr.bf16.mxu0 0
    %2186 = vmatpush1.bf16.msra.mxu0 0
    %2187 = vmatprep.subr.bf16.mxu0 0
    %2188 = vmatpush1.bf16.msra.mxu0 0
    %2189 = vmatprep.subr.bf16.mxu0 0
    %2190 = vmatpush1.bf16.msra.mxu0 0
    %2191 = vmatprep.subr.bf16.mxu0 0
    %2192 = vmatpush1.bf16.msra.mxu0 0
    %2193 = vmatprep.subr.bf16.mxu0 0
    %2194 = vmatpush1.bf16.msra.mxu0 0
    %2195 = vmatprep.subr.bf16.mxu0 0
    %2196 = vmatpush1.bf16.msra.mxu0 0
    %2197 = vmatprep.subr.bf16.mxu0 0
    %2198 = vmatpush1.bf16.msra.mxu0 0
    %2199 = vmatprep.subr.bf16.mxu0 0
    %2200 = vmatpush1.bf16.msra.mxu0 0
    %2201 = vmatprep.subr.bf16.mxu0 0
    %2202 = vmatpush1.bf16.msra.mxu0 0
    %2203 = vmatprep.subr.bf16.mxu0 0
    %2204 = vmatpush1.bf16.msra.mxu0 0
    %2205 = vmatprep.subr.bf16.mxu0 0
    %2206 = vmatpush1.bf16.msra.mxu0 0
    %2207 = vmatprep.mubr.bf16.mxu0 0
    %2208 = vmatmul.mubr.bf16.gmra.mrb[0].mxu0 %v2039
    %v2209 = vpop.f32.mrb[0].mxu0
    %v2210 = vadd.f32 %v1921, %v2209
    %v2211 = vpop.f32.mrb[0].mxu0
    %v2212 = vadd.f32 %v1921, %v2211
    %v2213 = vpop.f32.mrb[0].mxu0
    %v2214 = vadd.f32 %v1926, %v2213
    %v2215 = vpop.f32.mrb[0].mxu0
    %v2216 = vadd.f32 %v1926, %v2215
    %2217 = vmatprep.mubr.bf16.mxu0 0
    %2218 = vmatmul.mubr.bf16.gmra.mrb[0].mxu0 %v2042
    %v2219 = vpop.f32.mrb[0].mxu0
    %v2220 = vadd.f32 %v1931, %v2219
    %v2221 = vpop.f32.mrb[0].mxu0
    %v2222 = vadd.f32 %v1931, %v2221
    %v2223 = vpop.f32.mrb[0].mxu0
    %v2224 = vadd.f32 %v1936, %v2223
    %v2225 = vpop.f32.mrb[0].mxu0
    %v2226 = vadd.f32 %v1936, %v2225
    %2227 = vmatprep.mubr.bf16.mxu0 0
    %2228 = vmatmul.mubr.bf16.gmra.mrb[0].mxu0 %v2045
    %v2229 = vpop.f32.mrb[0].mxu0
    %v2230 = vadd.f32 %v1941, %v2229
    %v2231 = vpop.f32.mrb[0].mxu0
    %v2232 = vadd.f32 %v1941, %v2231
    %v2233 = vpop.f32.mrb[0].mxu0
    %v2234 = vadd.f32 %v1946, %v2233
    %v2235 = vpop.f32.mrb[0].mxu0
    %v2236 = vadd.f32 %v1946, %v2235
    %2237 = vmatprep.mubr.bf16.mxu0 0
    %2238 = vmatmul.mubr.bf16.gmra.mrb[0].mxu0 %v2048
    %v2239 = vpop.f32.mrb[0].mxu0
    %v2240 = vadd.f32 %v1951, %v2239
    %v2241 = vpop.f32.mrb[0].mxu0
    %v2242 = vadd.f32 %v1951, %v2241
    %v2243 = vpop.f32.mrb[0].mxu0
    %v2244 = vadd.f32 %v1956, %v2243
    %v2245 = vpop.f32.mrb[0].mxu0
    %v2246 = vadd.f32 %v1956, %v2245
    %2247 = vmatprep.mubr.bf16.mxu0 0
    %2248 = vmatmul.mubr.bf16.gmra.mrb[0].mxu0 %v2051
    %v2249 = vpop.f32.mrb[0].mxu0
    %v2250 = vadd.f32 %v1961, %v2249
    %v2251 = vpop.f32.mrb[0].mxu0
    %v2252 = vadd.f32 %v1961, %v2251
    %v2253 = vpop.f32.mrb[0].mxu0
    %v2254 = vadd.f32 %v1966, %v2253
    %v2255 = vpop.f32.mrb[0].mxu0
    %v2256 = vadd.f32 %v1966, %v2255
    %2257 = vmatprep.mubr.bf16.mxu0 0
    %2258 = vmatmul.mubr.bf16.gmra.mrb[0].mxu0 %v2054
    %v2259 = vpop.f32.mrb[0].mxu0
    %v2260 = vadd.f32 %v1971, %v2259
    %v2261 = vpop.f32.mrb[0].mxu0
    %v2262 = vadd.f32 %v1971, %v2261
    %v2263 = vpop.f32.mrb[0].mxu0
    %v2264 = vadd.f32 %v1976, %v2263
    %v2265 = vpop.f32.mrb[0].mxu0
    %v2266 = vadd.f32 %v1976, %v2265
    %2267 = vmatprep.mubr.bf16.mxu0 0
    %2268 = vmatmul.mubr.bf16.gmra.mrb[0].mxu0 %v2057
    %v2269 = vpop.f32.mrb[0].mxu0
    %v2270 = vadd.f32 %v1981, %v2269
    %v2271 = vpop.f32.mrb[0].mxu0
    %v2272 = vadd.f32 %v1981, %v2271
    %v2273 = vpop.f32.mrb[0].mxu0
    %v2274 = vadd.f32 %v1986, %v2273
    %v2275 = vpop.f32.mrb[0].mxu0
    %v2276 = vadd.f32 %v1986, %v2275
    %2277 = vmatprep.mubr.bf16.mxu0 0
    %2278 = vmatmul.mubr.bf16.gmra.mrb[0].mxu0 %v2060
    %v2279 = vpop.f32.mrb[0].mxu0
    %v2280 = vadd.f32 %v1991, %v2279
    %v2281 = vpop.f32.mrb[0].mxu0
    %v2282 = vadd.f32 %v1991, %v2281
    %v2283 = vpop.f32.mrb[0].mxu0
    %v2284 = vadd.f32 %v1996, %v2283
    %v2285 = vpop.f32.mrb[0].mxu0
    %v2286 = vadd.f32 %v1996, %v2285
    %2287 = vdwg.mxu0
    %v2288 = vxor.u32 %v2097, 2147483648
    %v2289 = vxor.u32 %v2099, 2147483648
    %v2290 = vxor.u32 %v2210, 2147483648
    %v2291 = vxor.u32 %v2212, 2147483648
    %v2292 = vxor.u32 %v2101, 2147483648
    %v2293 = vxor.u32 %v2103, 2147483648
    %v2294 = vxor.u32 %v2214, 2147483648
    %v2295 = vxor.u32 %v2216, 2147483648
    %v2296 = vxor.u32 %v2107, 2147483648
    %v2297 = vxor.u32 %v2109, 2147483648
    %v2298 = vxor.u32 %v2220, 2147483648
    %v2299 = vxor.u32 %v2222, 2147483648
    %v2300 = vxor.u32 %v2111, 2147483648
    %v2301 = vxor.u32 %v2113, 2147483648
    %v2302 = vxor.u32 %v2224, 2147483648
    %v2303 = vxor.u32 %v2226, 2147483648
    %v2304 = vxor.u32 %v2117, 2147483648
    %v2305 = vxor.u32 %v2119, 2147483648
    %v2306 = vxor.u32 %v2230, 2147483648
    %v2307 = vxor.u32 %v2232, 2147483648
    %v2308 = vxor.u32 %v2121, 2147483648
    %v2309 = vxor.u32 %v2123, 2147483648
    %v2310 = vxor.u32 %v2234, 2147483648
    %v2311 = vxor.u32 %v2236, 2147483648
    %v2312 = vxor.u32 %v2127, 2147483648
    %v2313 = vxor.u32 %v2129, 2147483648
    %v2314 = vxor.u32 %v2240, 2147483648
    %v2315 = vxor.u32 %v2242, 2147483648
    %v2316 = vxor.u32 %v2131, 2147483648
    %v2317 = vxor.u32 %v2133, 2147483648
    %v2318 = vxor.u32 %v2244, 2147483648
    %v2319 = vxor.u32 %v2246, 2147483648
    %v2320 = vxor.u32 %v2137, 2147483648
    %v2321 = vxor.u32 %v2139, 2147483648
    %v2322 = vxor.u32 %v2250, 2147483648
    %v2323 = vxor.u32 %v2252, 2147483648
    %v2324 = vxor.u32 %v2141, 2147483648
    %v2325 = vxor.u32 %v2143, 2147483648
    %v2326 = vxor.u32 %v2254, 2147483648
    %v2327 = vxor.u32 %v2256, 2147483648
    %v2328 = vxor.u32 %v2147, 2147483648
    %v2329 = vxor.u32 %v2149, 2147483648
    %v2330 = vxor.u32 %v2260, 2147483648
    %v2331 = vxor.u32 %v2262, 2147483648
    %v2332 = vxor.u32 %v2151, 2147483648
    %v2333 = vxor.u32 %v2153, 2147483648
    %v2334 = vxor.u32 %v2264, 2147483648
    %v2335 = vxor.u32 %v2266, 2147483648
    %v2336 = vmul.f32 %v2288, 1.442695
    %v2337 = vpow.pop %v2336
    %v2338 = vmul.f32 %v2289, 1.442695
    %v2339 = vpow.pop %v2338
    %v2340 = vmul.f32 %v2290, 1.442695
    %v2341 = vpow.pop %v2340
    %v2342 = vmul.f32 %v2291, 1.442695
    %v2343 = vpow.pop %v2342
    %v2344 = vmul.f32 %v2292, 1.442695
    %v2345 = vpow.pop %v2344
    %v2346 = vmul.f32 %v2293, 1.442695
    %v2347 = vpow.pop %v2346
    %v2348 = vmul.f32 %v2294, 1.442695
    %v2349 = vpow.pop %v2348
    %v2350 = vmul.f32 %v2295, 1.442695
    %v2351 = vpow.pop %v2350
    %v2352 = vmul.f32 %v2296, 1.442695
    %v2353 = vpow.pop %v2352
    %v2354 = vmul.f32 %v2297, 1.442695
    %v2355 = vpow.pop %v2354
    %v2356 = vmul.f32 %v2298, 1.442695
    %v2357 = vpow.pop %v2356
    %v2358 = vmul.f32 %v2299, 1.442695
    %v2359 = vpow.pop %v2358
    %v2360 = vmul.f32 %v2300, 1.442695
    %v2361 = vpow.pop %v2360
    %v2362 = vmul.f32 %v2301, 1.442695
    %v2363 = vpow.pop %v2362
    %v2364 = vmul.f32 %v2302, 1.442695
    %v2365 = vpow.pop %v2364
    %v2366 = vmul.f32 %v2303, 1.442695
    %v2367 = vpow.pop %v2366
    %v2368 = vmul.f32 %v2304, 1.442695
    %v2369 = vpow.pop %v2368
    %v2370 = vmul.f32 %v2305, 1.442695
    %v2371 = vpow.pop %v2370
    %v2372 = vmul.f32 %v2306, 1.442695
    %v2373 = vpow.pop %v2372
    %v2374 = vmul.f32 %v2307, 1.442695
    %v2375 = vpow.pop %v2374
    %v2376 = vmul.f32 %v2308, 1.442695
    %v2377 = vpow.pop %v2376
    %v2378 = vmul.f32 %v2309, 1.442695
    %v2379 = vpow.pop %v2378
    %v2380 = vmul.f32 %v2310, 1.442695
    %v2381 = vpow.pop %v2380
    %v2382 = vmul.f32 %v2311, 1.442695
    %v2383 = vpow.pop %v2382
    %v2384 = vmul.f32 %v2312, 1.442695
    %v2385 = vpow.pop %v2384
    %v2386 = vmul.f32 %v2313, 1.442695
    %v2387 = vpow.pop %v2386
    %v2388 = vmul.f32 %v2314, 1.442695
    %v2389 = vpow.pop %v2388
    %v2390 = vmul.f32 %v2315, 1.442695
    %v2391 = vpow.pop %v2390
    %v2392 = vmul.f32 %v2316, 1.442695
    %v2393 = vpow.pop %v2392
    %v2394 = vmul.f32 %v2317, 1.442695
    %v2395 = vpow.pop %v2394
    %v2396 = vmul.f32 %v2318, 1.442695
    %v2397 = vpow.pop %v2396
    %v2398 = vmul.f32 %v2319, 1.442695
    %v2399 = vpow.pop %v2398
    %v2400 = vmul.f32 %v2320, 1.442695
    %v2401 = vpow.pop %v2400
    %v2402 = vmul.f32 %v2321, 1.442695
    %v2403 = vpow.pop %v2402
    %v2404 = vmul.f32 %v2322, 1.442695
    %v2405 = vpow.pop %v2404
    %v2406 = vmul.f32 %v2323, 1.442695
    %v2407 = vpow.pop %v2406
    %v2408 = vmul.f32 %v2324, 1.442695
    %v2409 = vpow.pop %v2408
    %v2410 = vmul.f32 %v2325, 1.442695
    %v2411 = vpow.pop %v2410
    %v2412 = vmul.f32 %v2326, 1.442695
    %v2413 = vpow.pop %v2412
    %v2414 = vmul.f32 %v2327, 1.442695
    %v2415 = vpow.pop %v2414
    %v2416 = vmul.f32 %v2328, 1.442695
    %v2417 = vpow.pop %v2416
    %v2418 = vmul.f32 %v2329, 1.442695
    %v2419 = vpow.pop %v2418
    %v2420 = vmul.f32 %v2330, 1.442695
    %v2421 = vpow.pop %v2420
    %v2422 = vmul.f32 %v2331, 1.442695
    %v2423 = vpow.pop %v2422
    %v2424 = vmul.f32 %v2332, 1.442695
    %v2425 = vpow.pop %v2424
    %v2426 = vmul.f32 %v2333, 1.442695
    %v2427 = vpow.pop %v2426
    %v2428 = vmul.f32 %v2334, 1.442695
    %v2429 = vpow.pop %v2428
    %v2430 = vmul.f32 %v2335, 1.442695
    %v2431 = vpow.pop %v2430
    %v2432 = vadd.f32 %v2337, 1.0
    %v2433 = vadd.f32 %v2339, 1.0
    %v2434 = vadd.f32 %v2341, 1.0
    %v2435 = vadd.f32 %v2343, 1.0
    %v2436 = vadd.f32 %v2345, 1.0
    %v2437 = vadd.f32 %v2347, 1.0
    %v2438 = vadd.f32 %v2349, 1.0
    %v2439 = vadd.f32 %v2351, 1.0
    %v2440 = vadd.f32 %v2353, 1.0
    %v2441 = vadd.f32 %v2355, 1.0
    %v2442 = vadd.f32 %v2357, 1.0
    %v2443 = vadd.f32 %v2359, 1.0
    %v2444 = vadd.f32 %v2361, 1.0
    %v2445 = vadd.f32 %v2363, 1.0
    %v2446 = vadd.f32 %v2365, 1.0
    %v2447 = vadd.f32 %v2367, 1.0
    %v2448 = vadd.f32 %v2369, 1.0
    %v2449 = vadd.f32 %v2371, 1.0
    %v2450 = vadd.f32 %v2373, 1.0
    %v2451 = vadd.f32 %v2375, 1.0
    %v2452 = vadd.f32 %v2377, 1.0
    %v2453 = vadd.f32 %v2379, 1.0
    %v2454 = vadd.f32 %v2381, 1.0
    %v2455 = vadd.f32 %v2383, 1.0
    %v2456 = vadd.f32 %v2385, 1.0
    %v2457 = vadd.f32 %v2387, 1.0
    %v2458 = vadd.f32 %v2389, 1.0
    %v2459 = vadd.f32 %v2391, 1.0
    %v2460 = vadd.f32 %v2393, 1.0
    %v2461 = vadd.f32 %v2395, 1.0
    %v2462 = vadd.f32 %v2397, 1.0
    %v2463 = vadd.f32 %v2399, 1.0
    %v2464 = vadd.f32 %v2401, 1.0
    %v2465 = vadd.f32 %v2403, 1.0
    %v2466 = vadd.f32 %v2405, 1.0
    %v2467 = vadd.f32 %v2407, 1.0
    %v2468 = vadd.f32 %v2409, 1.0
    %v2469 = vadd.f32 %v2411, 1.0
    %v2470 = vadd.f32 %v2413, 1.0
    %v2471 = vadd.f32 %v2415, 1.0
    %v2472 = vadd.f32 %v2417, 1.0
    %v2473 = vadd.f32 %v2419, 1.0
    %v2474 = vadd.f32 %v2421, 1.0
    %v2475 = vadd.f32 %v2423, 1.0
    %v2476 = vadd.f32 %v2425, 1.0
    %v2477 = vadd.f32 %v2427, 1.0
    %v2478 = vadd.f32 %v2429, 1.0
    %v2479 = vadd.f32 %v2431, 1.0
    %v2480 = vrcp.pop %v2432
    %v2481 = vmul.f32 1.0, %v2480
    %v2482 = vrcp.pop %v2433
    %v2483 = vmul.f32 1.0, %v2482
    %v2484 = vrcp.pop %v2434
    %v2485 = vmul.f32 1.0, %v2484
    %v2486 = vrcp.pop %v2435
    %v2487 = vmul.f32 1.0, %v2486
    %v2488 = vrcp.pop %v2436
    %v2489 = vmul.f32 1.0, %v2488
    %v2490 = vrcp.pop %v2437
    %v2491 = vmul.f32 1.0, %v2490
    %v2492 = vrcp.pop %v2438
    %v2493 = vmul.f32 1.0, %v2492
    %v2494 = vrcp.pop %v2439
    %v2495 = vmul.f32 1.0, %v2494
    %v2496 = vrcp.pop %v2440
    %v2497 = vmul.f32 1.0, %v2496
    %v2498 = vrcp.pop %v2441
    %v2499 = vmul.f32 1.0, %v2498
    %v2500 = vrcp.pop %v2442
    %v2501 = vmul.f32 1.0, %v2500
    %v2502 = vrcp.pop %v2443
    %v2503 = vmul.f32 1.0, %v2502
    %v2504 = vrcp.pop %v2444
    %v2505 = vmul.f32 1.0, %v2504
    %v2506 = vrcp.pop %v2445
    %v2507 = vmul.f32 1.0, %v2506
    %v2508 = vrcp.pop %v2446
    %v2509 = vmul.f32 1.0, %v2508
    %v2510 = vrcp.pop %v2447
    %v2511 = vmul.f32 1.0, %v2510
    %v2512 = vrcp.pop %v2448
    %v2513 = vmul.f32 1.0, %v2512
    %v2514 = vrcp.pop %v2449
    %v2515 = vmul.f32 1.0, %v2514
    %v2516 = vrcp.pop %v2450
    %v2517 = vmul.f32 1.0, %v2516
    %v2518 = vrcp.pop %v2451
    %v2519 = vmul.f32 1.0, %v2518
    %v2520 = vrcp.pop %v2452
    %v2521 = vmul.f32 1.0, %v2520
    %v2522 = vrcp.pop %v2453
    %v2523 = vmul.f32 1.0, %v2522
    %v2524 = vrcp.pop %v2454
    %v2525 = vmul.f32 1.0, %v2524
    %v2526 = vrcp.pop %v2455
    %v2527 = vmul.f32 1.0, %v2526
    %v2528 = vrcp.pop %v2456
    %v2529 = vmul.f32 1.0, %v2528
    %v2530 = vrcp.pop %v2457
    %v2531 = vmul.f32 1.0, %v2530
    %v2532 = vrcp.pop %v2458
    %v2533 = vmul.f32 1.0, %v2532
    %v2534 = vrcp.pop %v2459
    %v2535 = vmul.f32 1.0, %v2534
    %v2536 = vrcp.pop %v2460
    %v2537 = vmul.f32 1.0, %v2536
    %v2538 = vrcp.pop %v2461
    %v2539 = vmul.f32 1.0, %v2538
    %v2540 = vrcp.pop %v2462
    %v2541 = vmul.f32 1.0, %v2540
    %v2542 = vrcp.pop %v2463
    %v2543 = vmul.f32 1.0, %v2542
    %v2544 = vrcp.pop %v2464
    %v2545 = vmul.f32 1.0, %v2544
    %v2546 = vrcp.pop %v2465
    %v2547 = vmul.f32 1.0, %v2546
    %v2548 = vrcp.pop %v2466
    %v2549 = vmul.f32 1.0, %v2548
    %v2550 = vrcp.pop %v2467
    %v2551 = vmul.f32 1.0, %v2550
    %v2552 = vrcp.pop %v2468
    %v2553 = vmul.f32 1.0, %v2552
    %v2554 = vrcp.pop %v2469
    %v2555 = vmul.f32 1.0, %v2554
    %v2556 = vrcp.pop %v2470
    %v2557 = vmul.f32 1.0, %v2556
    %v2558 = vrcp.pop %v2471
    %v2559 = vmul.f32 1.0, %v2558
    %v2560 = vrcp.pop %v2472
    %v2561 = vmul.f32 1.0, %v2560
    %v2562 = vrcp.pop %v2473
    %v2563 = vmul.f32 1.0, %v2562
    %v2564 = vrcp.pop %v2474
    %v2565 = vmul.f32 1.0, %v2564
    %v2566 = vrcp.pop %v2475
    %v2567 = vmul.f32 1.0, %v2566
    %v2568 = vrcp.pop %v2476
    %v2569 = vmul.f32 1.0, %v2568
    %v2570 = vrcp.pop %v2477
    %v2571 = vmul.f32 1.0, %v2570
    %v2572 = vrcp.pop %v2478
    %v2573 = vmul.f32 1.0, %v2572
    %v2574 = vrcp.pop %v2479
    %v2575 = vmul.f32 1.0, %v2574
    %v2576 = vtanh.pop %v2157
    %v2577 = vtanh.pop %v2159
    %v2578 = vtanh.pop %v2270
    %v2579 = vtanh.pop %v2272
    %v2580 = vtanh.pop %v2161
    %v2581 = vtanh.pop %v2163
    %v2582 = vtanh.pop %v2274
    %v2583 = vtanh.pop %v2276
    %v2584 = vtanh.pop %v2167
    %v2585 = vtanh.pop %v2169
    %v2586 = vtanh.pop %v2280
    %v2587 = vtanh.pop %v2282
    %v2588 = vtanh.pop %v2171
    %v2589 = vtanh.pop %v2173
    %v2590 = vtanh.pop %v2284
    %v2591 = vtanh.pop %v2286
    %v2592 = vld [vmem:[#allocation3] sm:$0xff]
    %v2593 = vld [vmem:[#allocation3 + $0x8] sm:$0xff]
    %v2594 = vld [vmem:[#allocation3 + $0x10] sm:$0xff]
    %v2595 = vld [vmem:[#allocation3 + $0x18] sm:$0xff]
    %v2596 = vld [vmem:[#allocation3 + $0x20] sm:$0xff]
    %v2597 = vld [vmem:[#allocation3 + $0x28] sm:$0xff]
    %v2598 = vld [vmem:[#allocation3 + $0x30] sm:$0xff]
    %v2599 = vld [vmem:[#allocation3 + $0x38] sm:$0xff]
    %v2600 = vld [vmem:[#allocation3 + $0x40] sm:$0xff]
    %v2601 = vld [vmem:[#allocation3 + $0x48] sm:$0xff]
    %v2602 = vld [vmem:[#allocation3 + $0x50] sm:$0xff]
    %v2603 = vld [vmem:[#allocation3 + $0x58] sm:$0xff]
    %v2604 = vld [vmem:[#allocation3 + $0x60] sm:$0xff]
    %v2605 = vld [vmem:[#allocation3 + $0x68] sm:$0xff]
    %v2606 = vld [vmem:[#allocation3 + $0x70] sm:$0xff]
    %v2607 = vld [vmem:[#allocation3 + $0x78] sm:$0xff]
    %v2608 = vmul.f32 %v2513, %v2592
    %v2609 = vmul.f32 %v2515, %v2593
    %v2610 = vmul.f32 %v2517, %v2594
    %v2611 = vmul.f32 %v2519, %v2595
    %v2612 = vmul.f32 %v2521, %v2596
    %v2613 = vmul.f32 %v2523, %v2597
    %v2614 = vmul.f32 %v2525, %v2598
    %v2615 = vmul.f32 %v2527, %v2599
    %v2616 = vmul.f32 %v2529, %v2600
    %v2617 = vmul.f32 %v2531, %v2601
    %v2618 = vmul.f32 %v2533, %v2602
    %v2619 = vmul.f32 %v2535, %v2603
    %v2620 = vmul.f32 %v2537, %v2604
    %v2621 = vmul.f32 %v2539, %v2605
    %v2622 = vmul.f32 %v2541, %v2606
    %v2623 = vmul.f32 %v2543, %v2607
    %v2624 = vmul.f32 %v2481, %v2576
    %v2625 = vmul.f32 %v2483, %v2577
    %v2626 = vmul.f32 %v2485, %v2578
    %v2627 = vmul.f32 %v2487, %v2579
    %v2628 = vmul.f32 %v2489, %v2580
    %v2629 = vmul.f32 %v2491, %v2581
    %v2630 = vmul.f32 %v2493, %v2582
    %v2631 = vmul.f32 %v2495, %v2583
    %v2632 = vmul.f32 %v2497, %v2584
    %v2633 = vmul.f32 %v2499, %v2585
    %v2634 = vmul.f32 %v2501, %v2586
    %v2635 = vmul.f32 %v2503, %v2587
    %v2636 = vmul.f32 %v2505, %v2588
    %v2637 = vmul.f32 %v2507, %v2589
    %v2638 = vmul.f32 %v2509, %v2590
    %v2639 = vmul.f32 %v2511, %v2591
    %v2640 = vadd.f32 %v2608, %v2624
    %v2641 = vadd.f32 %v2609, %v2625
    %v2642 = vadd.f32 %v2610, %v2626
    %v2643 = vadd.f32 %v2611, %v2627
    %v2644 = vadd.f32 %v2612, %v2628
    %v2645 = vadd.f32 %v2613, %v2629
    %v2646 = vadd.f32 %v2614, %v2630
    %v2647 = vadd.f32 %v2615, %v2631
    %v2648 = vadd.f32 %v2616, %v2632
    %v2649 = vadd.f32 %v2617, %v2633
    %v2650 = vadd.f32 %v2618, %v2634
    %v2651 = vadd.f32 %v2619, %v2635
    %v2652 = vadd.f32 %v2620, %v2636
    %v2653 = vadd.f32 %v2621, %v2637
    %v2654 = vadd.f32 %v2622, %v2638
    %v2655 = vadd.f32 %v2623, %v2639
    %v2656 = vtanh.pop %v2640
    %v2657 = vtanh.pop %v2641
    %v2658 = vtanh.pop %v2642
    %v2659 = vtanh.pop %v2643
    %v2660 = vtanh.pop %v2644
    %v2661 = vtanh.pop %v2645
    %v2662 = vtanh.pop %v2646
    %v2663 = vtanh.pop %v2647
    %v2664 = vtanh.pop %v2648
    %v2665 = vtanh.pop %v2649
    %v2666 = vtanh.pop %v2650
    %v2667 = vtanh.pop %v2651
    %v2668 = vtanh.pop %v2652
    %v2669 = vtanh.pop %v2653
    %v2670 = vtanh.pop %v2654
    %v2671 = vtanh.pop %v2655
    %v2672 = vmul.f32 %v2545, %v2656
    %v2673 = vmul.f32 %v2547, %v2657
    %v2674 = vmul.f32 %v2549, %v2658
    %v2675 = vmul.f32 %v2551, %v2659
    %v2676 = vmul.f32 %v2553, %v2660
    %v2677 = vmul.f32 %v2555, %v2661
    %v2678 = vmul.f32 %v2557, %v2662
    %v2679 = vmul.f32 %v2559, %v2663
    %v2680 = vmul.f32 %v2561, %v2664
    %v2681 = vmul.f32 %v2563, %v2665
    %v2682 = vmul.f32 %v2565, %v2666
    %v2683 = vmul.f32 %v2567, %v2667
    %v2684 = vmul.f32 %v2569, %v2668
    %v2685 = vmul.f32 %v2571, %v2669
    %v2686 = vmul.f32 %v2573, %v2670
    %v2687 = vmul.f32 %v2575, %v2671
    %2688 = vst [vmem:[#allocation3] sm:$0xff] %v2640
    %2689 = vst [vmem:[#allocation3 + $0x8] sm:$0xff] %v2641
    %2690 = vst [vmem:[#allocation3 + $0x10] sm:$0xff] %v2642
    %2691 = vst [vmem:[#allocation3 + $0x18] sm:$0xff] %v2643
    %2692 = vst [vmem:[#allocation3 + $0x20] sm:$0xff] %v2644
    %2693 = vst [vmem:[#allocation3 + $0x28] sm:$0xff] %v2645
    %2694 = vst [vmem:[#allocation3 + $0x30] sm:$0xff] %v2646
    %2695 = vst [vmem:[#allocation3 + $0x38] sm:$0xff] %v2647
    %2696 = vst [vmem:[#allocation3 + $0x40] sm:$0xff] %v2648
    %2697 = vst [vmem:[#allocation3 + $0x48] sm:$0xff] %v2649
    %2698 = vst [vmem:[#allocation3 + $0x50] sm:$0xff] %v2650
    %2699 = vst [vmem:[#allocation3 + $0x58] sm:$0xff] %v2651
    %2700 = vst [vmem:[#allocation3 + $0x60] sm:$0xff] %v2652
    %2701 = vst [vmem:[#allocation3 + $0x68] sm:$0xff] %v2653
    %2702 = vst [vmem:[#allocation3 + $0x70] sm:$0xff] %v2654
    %2703 = vst [vmem:[#allocation3 + $0x78] sm:$0xff] %v2655
    %v2704 = vpack.c.bf16 %v2676, %v2672
    %v2705 = vpack.c.bf16 %v2677, %v2673
    %v2706 = vpack.c.bf16 %v2678, %v2674
    %v2707 = vpack.c.bf16 %v2679, %v2675
    %v2708 = vpack.c.bf16 %v2684, %v2680
    %v2709 = vpack.c.bf16 %v2685, %v2681
    %v2710 = vpack.c.bf16 %v2686, %v2682
    %v2711 = vpack.c.bf16 %v2687, %v2683
    %2712 = vst [vmem:[#allocation2 + $0x20] sm:$0xff] %v2704
    %2713 = vst [vmem:[#allocation2 + $0x28] sm:$0xff] %v2705
    %2714 = vst [vmem:[#allocation2 + $0x30] sm:$0xff] %v2706
    %2715 = vst [vmem:[#allocation2 + $0x38] sm:$0xff] %v2707
    %2716 = vst [vmem:[#allocation2 + $0x40] sm:$0xff] %v2708
    %2717 = vst [vmem:[#allocation2 + $0x48] sm:$0xff] %v2709
    %2718 = vst [vmem:[#allocation2 + $0x50] sm:$0xff] %v2710
    %2719 = vst [vmem:[#allocation2 + $0x58] sm:$0xff] %v2711
    %s2720 = scalar_lea.vmem [#allocation7], 256
    %2721 = vst [vmem:[%s2720] sm:$0xff] %v2672
    %2722 = vst [vmem:[%s2720 + $0x8] sm:$0xff] %v2673
    %2723 = vst [vmem:[%s2720 + $0x10] sm:$0xff] %v2674
    %2724 = vst [vmem:[%s2720 + $0x18] sm:$0xff] %v2675
    %2725 = vst [vmem:[%s2720 + $0x20] sm:$0xff] %v2676
    %2726 = vst [vmem:[%s2720 + $0x28] sm:$0xff] %v2677
    %2727 = vst [vmem:[%s2720 + $0x30] sm:$0xff] %v2678
    %2728 = vst [vmem:[%s2720 + $0x38] sm:$0xff] %v2679
    %2729 = vst [vmem:[%s2720 + $0x40] sm:$0xff] %v2680
    %2730 = vst [vmem:[%s2720 + $0x48] sm:$0xff] %v2681
    %2731 = vst [vmem:[%s2720 + $0x50] sm:$0xff] %v2682
    %2732 = vst [vmem:[%s2720 + $0x58] sm:$0xff] %v2683
    %2733 = vst [vmem:[%s2720 + $0x60] sm:$0xff] %v2684
    %2734 = vst [vmem:[%s2720 + $0x68] sm:$0xff] %v2685
    %2735 = vst [vmem:[%s2720 + $0x70] sm:$0xff] %v2686
    %2736 = vst [vmem:[%s2720 + $0x78] sm:$0xff] %v2687
    %s2737 = scalar_lea.vmem [#allocation4], 96
    %v2738 = vld [vmem:[%s2737] sm:$0xff]
    %v2739 = vld [vmem:[%s2737 + $0x8] sm:$0xff]
    %v2740 = vld [vmem:[%s2737 + $0x10] sm:$0xff]
    %v2741 = vld [vmem:[%s2737 + $0x18] sm:$0xff]
    %v2746 = vunpack.c.l.b16 %v2738
    %v2747 = vunpack.c.h.b16 %v2738
    %v2748 = vunpack.c.l.b16 %v2739
    %v2749 = vunpack.c.h.b16 %v2739
    %v2750 = vunpack.c.l.b16 %v2740
    %v2751 = vunpack.c.h.b16 %v2740
    %v2752 = vunpack.c.l.b16 %v2741
    %v2753 = vunpack.c.h.b16 %v2741
    %v2754 = vpack.c.b16 %v2750, %v2746
    %v2755 = vpack.c.b16 %v2751, %v2747
    %v2756 = vpack.c.b16 %v2752, %v2748
    %v2757 = vpack.c.b16 %v2753, %v2749
    %2762 = vst [vmem:[#allocation2] sm:$0xff] %v2754
    %2763 = vst [vmem:[#allocation2 + $0x8] sm:$0xff] %v2755
    %2764 = vst [vmem:[#allocation2 + $0x10] sm:$0xff] %v2756
    %2765 = vst [vmem:[#allocation2 + $0x18] sm:$0xff] %v2757
    %v2766 = vld [vmem:[%s1] sm:$0xf]
    %v2767 = vld [vmem:[%s1 + $0x4] sm:$0xf]
    %v2768 = vld [vmem:[%s1 + $0x8] sm:$0xf]
    %v2769 = vld [vmem:[%s1 + $0xc] sm:$0xf]
    %v2770 = vld [vmem:[%s1 + $0x10] sm:$0xf]
    %v2771 = vld [vmem:[%s1 + $0x14] sm:$0xf]
    %v2772 = vld [vmem:[%s1 + $0x18] sm:$0xf]
    %v2773 = vld [vmem:[%s1 + $0x1c] sm:$0xf]
    %v2774 = vld [vmem:[%s1 + $0x20] sm:$0xf]
    %v2775 = vld [vmem:[%s1 + $0x24] sm:$0xf]
    %v2776 = vld [vmem:[%s1 + $0x28] sm:$0xf]
    %v2777 = vld [vmem:[%s1 + $0x2c] sm:$0xf]
    %v2778 = vld [vmem:[%s1 + $0x30] sm:$0xf]
    %v2779 = vld [vmem:[%s1 + $0x34] sm:$0xf]
    %v2780 = vld [vmem:[%s1 + $0x38] sm:$0xf]
    %v2781 = vld [vmem:[%s1 + $0x3c] sm:$0xf]
    %v2782 = vld [vmem:[#allocation2] sm:$0xff]
    %v2783 = vld [vmem:[#allocation2 + $0x8] sm:$0xff]
    %v2784 = vld [vmem:[#allocation2 + $0x10] sm:$0xff]
    %v2785 = vld [vmem:[#allocation2 + $0x18] sm:$0xff]
    %v2786 = vld [vmem:[#allocation2 + $0x20] sm:$0xff]
    %v2787 = vld [vmem:[#allocation2 + $0x28] sm:$0xff]
    %v2788 = vld [vmem:[#allocation2 + $0x30] sm:$0xff]
    %v2789 = vld [vmem:[#allocation2 + $0x38] sm:$0xff]
    %v2790 = vld [vmem:[#allocation2 + $0x40] sm:$0xff]
    %v2791 = vld [vmem:[#allocation2 + $0x48] sm:$0xff]
    %v2792 = vld [vmem:[#allocation2 + $0x50] sm:$0xff]
    %v2793 = vld [vmem:[#allocation2 + $0x58] sm:$0xff]
    %v2794 = vld [vmem:[%s2] sm:$0xff]
    %v2795 = vld [vmem:[%s2 + $0x8] sm:$0xff]
    %v2796 = vld [vmem:[%s2 + $0x10] sm:$0xff]
    %v2797 = vld [vmem:[%s2 + $0x18] sm:$0xff]
    %v2798 = vld [vmem:[%s2 + $0x20] sm:$0xff]
    %v2799 = vld [vmem:[%s2 + $0x28] sm:$0xff]
    %v2800 = vld [vmem:[%s2 + $0x30] sm:$0xff]
    %v2801 = vld [vmem:[%s2 + $0x38] sm:$0xff]
    %v2802 = vld [vmem:[%s2 + $0x40] sm:$0xff]
    %v2803 = vld [vmem:[%s2 + $0x48] sm:$0xff]
    %v2804 = vld [vmem:[%s2 + $0x50] sm:$0xff]
    %v2805 = vld [vmem:[%s2 + $0x58] sm:$0xff]
    %v2806 = vld [vmem:[%s2 + $0x60] sm:$0xff]
    %v2807 = vld [vmem:[%s2 + $0x68] sm:$0xff]
    %v2808 = vld [vmem:[%s2 + $0x70] sm:$0xff]
    %v2809 = vld [vmem:[%s2 + $0x78] sm:$0xff]
    %2811 = vset.pattern.permute.xlu0 0
    %2812 = vperm.xlu0 %2811, %v2794
    %v2813 = vpop.permute.xlu0 %2812
    %2816 = vset.pattern.permute.xlu0 0
    %2817 = vperm.xlu0 %2816, %v2795
    %v2818 = vpop.permute.xlu0 %2817
    %2821 = vset.pattern.permute.xlu0 0
    %2822 = vperm.xlu0 %2821, %v2796
    %v2823 = vpop.permute.xlu0 %2822
    %2826 = vset.pattern.permute.xlu0 0
    %2827 = vperm.xlu0 %2826, %v2797
    %v2828 = vpop.permute.xlu0 %2827
    %2831 = vset.pattern.permute.xlu0 0
    %2832 = vperm.xlu0 %2831, %v2798
    %v2833 = vpop.permute.xlu0 %2832
    %2836 = vset.pattern.permute.xlu0 0
    %2837 = vperm.xlu0 %2836, %v2799
    %v2838 = vpop.permute.xlu0 %2837
    %2841 = vset.pattern.permute.xlu0 0
    %2842 = vperm.xlu0 %2841, %v2800
    %v2843 = vpop.permute.xlu0 %2842
    %2846 = vset.pattern.permute.xlu0 0
    %2847 = vperm.xlu0 %2846, %v2801
    %v2848 = vpop.permute.xlu0 %2847
    %2851 = vset.pattern.permute.xlu0 0
    %2852 = vperm.xlu0 %2851, %v2802
    %v2853 = vpop.permute.xlu0 %2852
    %2856 = vset.pattern.permute.xlu0 0
    %2857 = vperm.xlu0 %2856, %v2803
    %v2858 = vpop.permute.xlu0 %2857
    %2861 = vset.pattern.permute.xlu0 0
    %2862 = vperm.xlu0 %2861, %v2804
    %v2863 = vpop.permute.xlu0 %2862
    %2866 = vset.pattern.permute.xlu0 0
    %2867 = vperm.xlu0 %2866, %v2805
    %v2868 = vpop.permute.xlu0 %2867
    %2871 = vset.pattern.permute.xlu0 0
    %2872 = vperm.xlu0 %2871, %v2806
    %v2873 = vpop.permute.xlu0 %2872
    %2876 = vset.pattern.permute.xlu0 0
    %2877 = vperm.xlu0 %2876, %v2807
    %v2878 = vpop.permute.xlu0 %2877
    %2881 = vset.pattern.permute.xlu0 0
    %2882 = vperm.xlu0 %2881, %v2808
    %v2883 = vpop.permute.xlu0 %2882
    %2886 = vset.pattern.permute.xlu0 0
    %2887 = vperm.xlu0 %2886, %v2809
    %v2888 = vpop.permute.xlu0 %2887
    %v2906 = vunpack.c.l.b16 %v2766
    %v2907 = vunpack.c.l.b16 %v2767
    %v2908 = vunpack.c.l.b16 %v2768
    %v2909 = vunpack.c.l.b16 %v2769
    %v2910 = vunpack.c.l.b16 %v2770
    %v2911 = vunpack.c.l.b16 %v2771
    %v2912 = vunpack.c.l.b16 %v2772
    %v2913 = vunpack.c.l.b16 %v2773
    %v2914 = vunpack.c.l.b16 %v2774
    %v2915 = vunpack.c.l.b16 %v2775
    %v2916 = vunpack.c.l.b16 %v2776
    %v2917 = vunpack.c.l.b16 %v2777
    %v2918 = vunpack.c.l.b16 %v2778
    %v2919 = vunpack.c.l.b16 %v2779
    %v2920 = vunpack.c.l.b16 %v2780
    %v2921 = vunpack.c.l.b16 %v2781
    %v2922 = vpack.c.b16 %v2907, %v2906
    %v2923 = vpack.c.b16 %v2909, %v2908
    %v2924 = vpack.c.b16 %v2911, %v2910
    %v2925 = vpack.c.b16 %v2913, %v2912
    %v2926 = vpack.c.b16 %v2915, %v2914
    %v2927 = vpack.c.b16 %v2917, %v2916
    %v2928 = vpack.c.b16 %v2919, %v2918
    %v2929 = vpack.c.b16 %v2921, %v2920
    %v2931 = vsel %vm254, %v2922, 0
    %v2934 = vsel %vm254, %v2923, 0
    %v2937 = vsel %vm254, %v2924, 0
    %v2940 = vsel %vm254, %v2925, 0
    %v2943 = vsel %vm254, %v2926, 0
    %v2946 = vsel %vm254, %v2927, 0
    %v2949 = vsel %vm254, %v2928, 0
    %v2952 = vsel %vm254, %v2929, 0
    %2954 = vmatprep.subr.bf16.mxu0 %v2783
    %2955 = vmatpush1.bf16.msra.mxu0 %v2782
    %2956 = vmatprep.subr.bf16.mxu0 %v2787
    %2957 = vmatpush1.bf16.msra.mxu0 %v2786
    %2958 = vmatprep.subr.bf16.mxu0 %v2791
    %2959 = vmatpush1.bf16.msra.mxu0 %v2790
    %2960 = vmatprep.subr.bf16.mxu0 0
    %2961 = vmatpush1.bf16.msra.mxu0 0
    %2962 = vmatprep.subr.bf16.mxu0 0
    %2963 = vmatpush1.bf16.msra.mxu0 0
    %2964 = vmatprep.subr.bf16.mxu0 0
    %2965 = vmatpush1.bf16.msra.mxu0 0
    %2966 = vmatprep.subr.bf16.mxu0 0
    %2967 = vmatpush1.bf16.msra.mxu0 0
    %2968 = vmatprep.subr.bf16.mxu0 0
    %2969 = vmatpush1.bf16.msra.mxu0 0
    %2970 = vmatprep.subr.bf16.mxu0 0
    %2971 = vmatpush1.bf16.msra.mxu0 0
    %2972 = vmatprep.subr.bf16.mxu0 0
    %2973 = vmatpush1.bf16.msra.mxu0 0
    %2974 = vmatprep.subr.bf16.mxu0 0
    %2975 = vmatpush1.bf16.msra.mxu0 0
    %2976 = vmatprep.subr.bf16.mxu0 0
    %2977 = vmatpush1.bf16.msra.mxu0 0
    %2978 = vmatprep.subr.bf16.mxu0 0
    %2979 = vmatpush1.bf16.msra.mxu0 0
    %2980 = vmatprep.subr.bf16.mxu0 0
    %2981 = vmatpush1.bf16.msra.mxu0 0
    %2982 = vmatprep.subr.bf16.mxu0 0
    %2983 = vmatpush1.bf16.msra.mxu0 0
    %2984 = vmatprep.subr.bf16.mxu0 0
    %2985 = vmatpush1.bf16.msra.mxu0 0
    %2986 = vmatprep.mubr.bf16.mxu0 0
    %2987 = vmatmul.mubr.bf16.gmra.mrb[0].mxu0 %v2931
    %v2988 = vpop.f32.mrb[0].mxu0
    %v2989 = vadd.f32 %v2813, %v2988
    %v2990 = vpop.f32.mrb[0].mxu0
    %v2991 = vadd.f32 %v2813, %v2990
    %v2992 = vpop.f32.mrb[0].mxu0
    %v2993 = vadd.f32 %v2818, %v2992
    %v2994 = vpop.f32.mrb[0].mxu0
    %v2995 = vadd.f32 %v2818, %v2994
    %2996 = vmatprep.mubr.bf16.mxu0 0
    %2997 = vmatmul.mubr.bf16.gmra.mrb[0].mxu0 %v2934
    %v2998 = vpop.f32.mrb[0].mxu0
    %v2999 = vadd.f32 %v2823, %v2998
    %v3000 = vpop.f32.mrb[0].mxu0
    %v3001 = vadd.f32 %v2823, %v3000
    %v3002 = vpop.f32.mrb[0].mxu0
    %v3003 = vadd.f32 %v2828, %v3002
    %v3004 = vpop.f32.mrb[0].mxu0
    %v3005 = vadd.f32 %v2828, %v3004
    %3006 = vmatprep.mubr.bf16.mxu0 0
    %3007 = vmatmul.mubr.bf16.gmra.mrb[0].mxu0 %v2937
    %v3008 = vpop.f32.mrb[0].mxu0
    %v3009 = vadd.f32 %v2833, %v3008
    %v3010 = vpop.f32.mrb[0].mxu0
    %v3011 = vadd.f32 %v2833, %v3010
    %v3012 = vpop.f32.mrb[0].mxu0
    %v3013 = vadd.f32 %v2838, %v3012
    %v3014 = vpop.f32.mrb[0].mxu0
    %v3015 = vadd.f32 %v2838, %v3014
    %3016 = vmatprep.mubr.bf16.mxu0 0
    %3017 = vmatmul.mubr.bf16.gmra.mrb[0].mxu0 %v2940
    %v3018 = vpop.f32.mrb[0].mxu0
    %v3019 = vadd.f32 %v2843, %v3018
    %v3020 = vpop.f32.mrb[0].mxu0
    %v3021 = vadd.f32 %v2843, %v3020
    %v3022 = vpop.f32.mrb[0].mxu0
    %v3023 = vadd.f32 %v2848, %v3022
    %v3024 = vpop.f32.mrb[0].mxu0
    %v3025 = vadd.f32 %v2848, %v3024
    %3026 = vmatprep.mubr.bf16.mxu0 0
    %3027 = vmatmul.mubr.bf16.gmra.mrb[0].mxu0 %v2943
    %v3028 = vpop.f32.mrb[0].mxu0
    %v3029 = vadd.f32 %v2853, %v3028
    %v3030 = vpop.f32.mrb[0].mxu0
    %v3031 = vadd.f32 %v2853, %v3030
    %v3032 = vpop.f32.mrb[0].mxu0
    %v3033 = vadd.f32 %v2858, %v3032
    %v3034 = vpop.f32.mrb[0].mxu0
    %v3035 = vadd.f32 %v2858, %v3034
    %3036 = vmatprep.mubr.bf16.mxu0 0
    %3037 = vmatmul.mubr.bf16.gmra.mrb[0].mxu0 %v2946
    %v3038 = vpop.f32.mrb[0].mxu0
    %v3039 = vadd.f32 %v2863, %v3038
    %v3040 = vpop.f32.mrb[0].mxu0
    %v3041 = vadd.f32 %v2863, %v3040
    %v3042 = vpop.f32.mrb[0].mxu0
    %v3043 = vadd.f32 %v2868, %v3042
    %v3044 = vpop.f32.mrb[0].mxu0
    %v3045 = vadd.f32 %v2868, %v3044
    %3046 = vmatprep.mubr.bf16.mxu0 0
    %3047 = vmatmul.mubr.bf16.gmra.mrb[0].mxu0 %v2949
    %v3048 = vpop.f32.mrb[0].mxu0
    %v3049 = vadd.f32 %v2873, %v3048
    %v3050 = vpop.f32.mrb[0].mxu0
    %v3051 = vadd.f32 %v2873, %v3050
    %v3052 = vpop.f32.mrb[0].mxu0
    %v3053 = vadd.f32 %v2878, %v3052
    %v3054 = vpop.f32.mrb[0].mxu0
    %v3055 = vadd.f32 %v2878, %v3054
    %3056 = vmatprep.mubr.bf16.mxu0 0
    %3057 = vmatmul.mubr.bf16.gmra.mrb[0].mxu0 %v2952
    %v3058 = vpop.f32.mrb[0].mxu0
    %v3059 = vadd.f32 %v2883, %v3058
    %v3060 = vpop.f32.mrb[0].mxu0
    %v3061 = vadd.f32 %v2883, %v3060
    %v3062 = vpop.f32.mrb[0].mxu0
    %v3063 = vadd.f32 %v2888, %v3062
    %v3064 = vpop.f32.mrb[0].mxu0
    %v3065 = vadd.f32 %v2888, %v3064
    %3066 = vdwg.mxu0
    %3067 = vmatprep.subr.bf16.mxu0 %v2785
    %3068 = vmatpush1.bf16.msra.mxu0 %v2784
    %3069 = vmatprep.subr.bf16.mxu0 %v2789
    %3070 = vmatpush1.bf16.msra.mxu0 %v2788
    %3071 = vmatprep.subr.bf16.mxu0 %v2793
    %3072 = vmatpush1.bf16.msra.mxu0 %v2792
    %3073 = vmatprep.subr.bf16.mxu0 0
    %3074 = vmatpush1.bf16.msra.mxu0 0
    %3075 = vmatprep.subr.bf16.mxu0 0
    %3076 = vmatpush1.bf16.msra.mxu0 0
    %3077 = vmatprep.subr.bf16.mxu0 0
    %3078 = vmatpush1.bf16.msra.mxu0 0
    %3079 = vmatprep.subr.bf16.mxu0 0
    %3080 = vmatpush1.bf16.msra.mxu0 0
    %3081 = vmatprep.subr.bf16.mxu0 0
    %3082 = vmatpush1.bf16.msra.mxu0 0
    %3083 = vmatprep.subr.bf16.mxu0 0
    %3084 = vmatpush1.bf16.msra.mxu0 0
    %3085 = vmatprep.subr.bf16.mxu0 0
    %3086 = vmatpush1.bf16.msra.mxu0 0
    %3087 = vmatprep.subr.bf16.mxu0 0
    %3088 = vmatpush1.bf16.msra.mxu0 0
    %3089 = vmatprep.subr.bf16.mxu0 0
    %3090 = vmatpush1.bf16.msra.mxu0 0
    %3091 = vmatprep.subr.bf16.mxu0 0
    %3092 = vmatpush1.bf16.msra.mxu0 0
    %3093 = vmatprep.subr.bf16.mxu0 0
    %3094 = vmatpush1.bf16.msra.mxu0 0
    %3095 = vmatprep.subr.bf16.mxu0 0
    %3096 = vmatpush1.bf16.msra.mxu0 0
    %3097 = vmatprep.subr.bf16.mxu0 0
    %3098 = vmatpush1.bf16.msra.mxu0 0
    %3099 = vmatprep.mubr.bf16.mxu0 0
    %3100 = vmatmul.mubr.bf16.gmra.mrb[0].mxu0 %v2931
    %v3101 = vpop.f32.mrb[0].mxu0
    %v3102 = vadd.f32 %v2813, %v3101
    %v3103 = vpop.f32.mrb[0].mxu0
    %v3104 = vadd.f32 %v2813, %v3103
    %v3105 = vpop.f32.mrb[0].mxu0
    %v3106 = vadd.f32 %v2818, %v3105
    %v3107 = vpop.f32.mrb[0].mxu0
    %v3108 = vadd.f32 %v2818, %v3107
    %3109 = vmatprep.mubr.bf16.mxu0 0
    %3110 = vmatmul.mubr.bf16.gmra.mrb[0].mxu0 %v2934
    %v3111 = vpop.f32.mrb[0].mxu0
    %v3112 = vadd.f32 %v2823, %v3111
    %v3113 = vpop.f32.mrb[0].mxu0
    %v3114 = vadd.f32 %v2823, %v3113
    %v3115 = vpop.f32.mrb[0].mxu0
    %v3116 = vadd.f32 %v2828, %v3115
    %v3117 = vpop.f32.mrb[0].mxu0
    %v3118 = vadd.f32 %v2828, %v3117
    %3119 = vmatprep.mubr.bf16.mxu0 0
    %3120 = vmatmul.mubr.bf16.gmra.mrb[0].mxu0 %v2937
    %v3121 = vpop.f32.mrb[0].mxu0
    %v3122 = vadd.f32 %v2833, %v3121
    %v3123 = vpop.f32.mrb[0].mxu0
    %v3124 = vadd.f32 %v2833, %v3123
    %v3125 = vpop.f32.mrb[0].mxu0
    %v3126 = vadd.f32 %v2838, %v3125
    %v3127 = vpop.f32.mrb[0].mxu0
    %v3128 = vadd.f32 %v2838, %v3127
    %3129 = vmatprep.mubr.bf16.mxu0 0
    %3130 = vmatmul.mubr.bf16.gmra.mrb[0].mxu0 %v2940
    %v3131 = vpop.f32.mrb[0].mxu0
    %v3132 = vadd.f32 %v2843, %v3131
    %v3133 = vpop.f32.mrb[0].mxu0
    %v3134 = vadd.f32 %v2843, %v3133
    %v3135 = vpop.f32.mrb[0].mxu0
    %v3136 = vadd.f32 %v2848, %v3135
    %v3137 = vpop.f32.mrb[0].mxu0
    %v3138 = vadd.f32 %v2848, %v3137
    %3139 = vmatprep.mubr.bf16.mxu0 0
    %3140 = vmatmul.mubr.bf16.gmra.mrb[0].mxu0 %v2943
    %v3141 = vpop.f32.mrb[0].mxu0
    %v3142 = vadd.f32 %v2853, %v3141
    %v3143 = vpop.f32.mrb[0].mxu0
    %v3144 = vadd.f32 %v2853, %v3143
    %v3145 = vpop.f32.mrb[0].mxu0
    %v3146 = vadd.f32 %v2858, %v3145
    %v3147 = vpop.f32.mrb[0].mxu0
    %v3148 = vadd.f32 %v2858, %v3147
    %3149 = vmatprep.mubr.bf16.mxu0 0
    %3150 = vmatmul.mubr.bf16.gmra.mrb[0].mxu0 %v2946
    %v3151 = vpop.f32.mrb[0].mxu0
    %v3152 = vadd.f32 %v2863, %v3151
    %v3153 = vpop.f32.mrb[0].mxu0
    %v3154 = vadd.f32 %v2863, %v3153
    %v3155 = vpop.f32.mrb[0].mxu0
    %v3156 = vadd.f32 %v2868, %v3155
    %v3157 = vpop.f32.mrb[0].mxu0
    %v3158 = vadd.f32 %v2868, %v3157
    %3159 = vmatprep.mubr.bf16.mxu0 0
    %3160 = vmatmul.mubr.bf16.gmra.mrb[0].mxu0 %v2949
    %v3161 = vpop.f32.mrb[0].mxu0
    %v3162 = vadd.f32 %v2873, %v3161
    %v3163 = vpop.f32.mrb[0].mxu0
    %v3164 = vadd.f32 %v2873, %v3163
    %v3165 = vpop.f32.mrb[0].mxu0
    %v3166 = vadd.f32 %v2878, %v3165
    %v3167 = vpop.f32.mrb[0].mxu0
    %v3168 = vadd.f32 %v2878, %v3167
    %3169 = vmatprep.mubr.bf16.mxu0 0
    %3170 = vmatmul.mubr.bf16.gmra.mrb[0].mxu0 %v2952
    %v3171 = vpop.f32.mrb[0].mxu0
    %v3172 = vadd.f32 %v2883, %v3171
    %v3173 = vpop.f32.mrb[0].mxu0
    %v3174 = vadd.f32 %v2883, %v3173
    %v3175 = vpop.f32.mrb[0].mxu0
    %v3176 = vadd.f32 %v2888, %v3175
    %v3177 = vpop.f32.mrb[0].mxu0
    %v3178 = vadd.f32 %v2888, %v3177
    %3179 = vdwg.mxu0
    %v3180 = vxor.u32 %v2989, 2147483648
    %v3181 = vxor.u32 %v2991, 2147483648
    %v3182 = vxor.u32 %v3102, 2147483648
    %v3183 = vxor.u32 %v3104, 2147483648
    %v3184 = vxor.u32 %v2993, 2147483648
    %v3185 = vxor.u32 %v2995, 2147483648
    %v3186 = vxor.u32 %v3106, 2147483648
    %v3187 = vxor.u32 %v3108, 2147483648
    %v3188 = vxor.u32 %v2999, 2147483648
    %v3189 = vxor.u32 %v3001, 2147483648
    %v3190 = vxor.u32 %v3112, 2147483648
    %v3191 = vxor.u32 %v3114, 2147483648
    %v3192 = vxor.u32 %v3003, 2147483648
    %v3193 = vxor.u32 %v3005, 2147483648
    %v3194 = vxor.u32 %v3116, 2147483648
    %v3195 = vxor.u32 %v3118, 2147483648
    %v3196 = vxor.u32 %v3009, 2147483648
    %v3197 = vxor.u32 %v3011, 2147483648
    %v3198 = vxor.u32 %v3122, 2147483648
    %v3199 = vxor.u32 %v3124, 2147483648
    %v3200 = vxor.u32 %v3013, 2147483648
    %v3201 = vxor.u32 %v3015, 2147483648
    %v3202 = vxor.u32 %v3126, 2147483648
    %v3203 = vxor.u32 %v3128, 2147483648
    %v3204 = vxor.u32 %v3019, 2147483648
    %v3205 = vxor.u32 %v3021, 2147483648
    %v3206 = vxor.u32 %v3132, 2147483648
    %v3207 = vxor.u32 %v3134, 2147483648
    %v3208 = vxor.u32 %v3023, 2147483648
    %v3209 = vxor.u32 %v3025, 2147483648
    %v3210 = vxor.u32 %v3136, 2147483648
    %v3211 = vxor.u32 %v3138, 2147483648
    %v3212 = vxor.u32 %v3029, 2147483648
    %v3213 = vxor.u32 %v3031, 2147483648
    %v3214 = vxor.u32 %v3142, 2147483648
    %v3215 = vxor.u32 %v3144, 2147483648
    %v3216 = vxor.u32 %v3033, 2147483648
    %v3217 = vxor.u32 %v3035, 2147483648
    %v3218 = vxor.u32 %v3146, 2147483648
    %v3219 = vxor.u32 %v3148, 2147483648
    %v3220 = vxor.u32 %v3039, 2147483648
    %v3221 = vxor.u32 %v3041, 2147483648
    %v3222 = vxor.u32 %v3152, 2147483648
    %v3223 = vxor.u32 %v3154, 2147483648
    %v3224 = vxor.u32 %v3043, 2147483648
    %v3225 = vxor.u32 %v3045, 2147483648
    %v3226 = vxor.u32 %v3156, 2147483648
    %v3227 = vxor.u32 %v3158, 2147483648
    %v3228 = vmul.f32 %v3180, 1.442695
    %v3229 = vpow.pop %v3228
    %v3230 = vmul.f32 %v3181, 1.442695
    %v3231 = vpow.pop %v3230
    %v3232 = vmul.f32 %v3182, 1.442695
    %v3233 = vpow.pop %v3232
    %v3234 = vmul.f32 %v3183, 1.442695
    %v3235 = vpow.pop %v3234
    %v3236 = vmul.f32 %v3184, 1.442695
    %v3237 = vpow.pop %v3236
    %v3238 = vmul.f32 %v3185, 1.442695
    %v3239 = vpow.pop %v3238
    %v3240 = vmul.f32 %v3186, 1.442695
    %v3241 = vpow.pop %v3240
    %v3242 = vmul.f32 %v3187, 1.442695
    %v3243 = vpow.pop %v3242
    %v3244 = vmul.f32 %v3188, 1.442695
    %v3245 = vpow.pop %v3244
    %v3246 = vmul.f32 %v3189, 1.442695
    %v3247 = vpow.pop %v3246
    %v3248 = vmul.f32 %v3190, 1.442695
    %v3249 = vpow.pop %v3248
    %v3250 = vmul.f32 %v3191, 1.442695
    %v3251 = vpow.pop %v3250
    %v3252 = vmul.f32 %v3192, 1.442695
    %v3253 = vpow.pop %v3252
    %v3254 = vmul.f32 %v3193, 1.442695
    %v3255 = vpow.pop %v3254
    %v3256 = vmul.f32 %v3194, 1.442695
    %v3257 = vpow.pop %v3256
    %v3258 = vmul.f32 %v3195, 1.442695
    %v3259 = vpow.pop %v3258
    %v3260 = vmul.f32 %v3196, 1.442695
    %v3261 = vpow.pop %v3260
    %v3262 = vmul.f32 %v3197, 1.442695
    %v3263 = vpow.pop %v3262
    %v3264 = vmul.f32 %v3198, 1.442695
    %v3265 = vpow.pop %v3264
    %v3266 = vmul.f32 %v3199, 1.442695
    %v3267 = vpow.pop %v3266
    %v3268 = vmul.f32 %v3200, 1.442695
    %v3269 = vpow.pop %v3268
    %v3270 = vmul.f32 %v3201, 1.442695
    %v3271 = vpow.pop %v3270
    %v3272 = vmul.f32 %v3202, 1.442695
    %v3273 = vpow.pop %v3272
    %v3274 = vmul.f32 %v3203, 1.442695
    %v3275 = vpow.pop %v3274
    %v3276 = vmul.f32 %v3204, 1.442695
    %v3277 = vpow.pop %v3276
    %v3278 = vmul.f32 %v3205, 1.442695
    %v3279 = vpow.pop %v3278
    %v3280 = vmul.f32 %v3206, 1.442695
    %v3281 = vpow.pop %v3280
    %v3282 = vmul.f32 %v3207, 1.442695
    %v3283 = vpow.pop %v3282
    %v3284 = vmul.f32 %v3208, 1.442695
    %v3285 = vpow.pop %v3284
    %v3286 = vmul.f32 %v3209, 1.442695
    %v3287 = vpow.pop %v3286
    %v3288 = vmul.f32 %v3210, 1.442695
    %v3289 = vpow.pop %v3288
    %v3290 = vmul.f32 %v3211, 1.442695
    %v3291 = vpow.pop %v3290
    %v3292 = vmul.f32 %v3212, 1.442695
    %v3293 = vpow.pop %v3292
    %v3294 = vmul.f32 %v3213, 1.442695
    %v3295 = vpow.pop %v3294
    %v3296 = vmul.f32 %v3214, 1.442695
    %v3297 = vpow.pop %v3296
    %v3298 = vmul.f32 %v3215, 1.442695
    %v3299 = vpow.pop %v3298
    %v3300 = vmul.f32 %v3216, 1.442695
    %v3301 = vpow.pop %v3300
    %v3302 = vmul.f32 %v3217, 1.442695
    %v3303 = vpow.pop %v3302
    %v3304 = vmul.f32 %v3218, 1.442695
    %v3305 = vpow.pop %v3304
    %v3306 = vmul.f32 %v3219, 1.442695
    %v3307 = vpow.pop %v3306
    %v3308 = vmul.f32 %v3220, 1.442695
    %v3309 = vpow.pop %v3308
    %v3310 = vmul.f32 %v3221, 1.442695
    %v3311 = vpow.pop %v3310
    %v3312 = vmul.f32 %v3222, 1.442695
    %v3313 = vpow.pop %v3312
    %v3314 = vmul.f32 %v3223, 1.442695
    %v3315 = vpow.pop %v3314
    %v3316 = vmul.f32 %v3224, 1.442695
    %v3317 = vpow.pop %v3316
    %v3318 = vmul.f32 %v3225, 1.442695
    %v3319 = vpow.pop %v3318
    %v3320 = vmul.f32 %v3226, 1.442695
    %v3321 = vpow.pop %v3320
    %v3322 = vmul.f32 %v3227, 1.442695
    %v3323 = vpow.pop %v3322
    %v3324 = vadd.f32 %v3229, 1.0
    %v3325 = vadd.f32 %v3231, 1.0
    %v3326 = vadd.f32 %v3233, 1.0
    %v3327 = vadd.f32 %v3235, 1.0
    %v3328 = vadd.f32 %v3237, 1.0
    %v3329 = vadd.f32 %v3239, 1.0
    %v3330 = vadd.f32 %v3241, 1.0
    %v3331 = vadd.f32 %v3243, 1.0
    %v3332 = vadd.f32 %v3245, 1.0
    %v3333 = vadd.f32 %v3247, 1.0
    %v3334 = vadd.f32 %v3249, 1.0
    %v3335 = vadd.f32 %v3251, 1.0
    %v3336 = vadd.f32 %v3253, 1.0
    %v3337 = vadd.f32 %v3255, 1.0
    %v3338 = vadd.f32 %v3257, 1.0
    %v3339 = vadd.f32 %v3259, 1.0
    %v3340 = vadd.f32 %v3261, 1.0
    %v3341 = vadd.f32 %v3263, 1.0
    %v3342 = vadd.f32 %v3265, 1.0
    %v3343 = vadd.f32 %v3267, 1.0
    %v3344 = vadd.f32 %v3269, 1.0
    %v3345 = vadd.f32 %v3271, 1.0
    %v3346 = vadd.f32 %v3273, 1.0
    %v3347 = vadd.f32 %v3275, 1.0
    %v3348 = vadd.f32 %v3277, 1.0
    %v3349 = vadd.f32 %v3279, 1.0
    %v3350 = vadd.f32 %v3281, 1.0
    %v3351 = vadd.f32 %v3283, 1.0
    %v3352 = vadd.f32 %v3285, 1.0
    %v3353 = vadd.f32 %v3287, 1.0
    %v3354 = vadd.f32 %v3289, 1.0
    %v3355 = vadd.f32 %v3291, 1.0
    %v3356 = vadd.f32 %v3293, 1.0
    %v3357 = vadd.f32 %v3295, 1.0
    %v3358 = vadd.f32 %v3297, 1.0
    %v3359 = vadd.f32 %v3299, 1.0
    %v3360 = vadd.f32 %v3301, 1.0
    %v3361 = vadd.f32 %v3303, 1.0
    %v3362 = vadd.f32 %v3305, 1.0
    %v3363 = vadd.f32 %v3307, 1.0
    %v3364 = vadd.f32 %v3309, 1.0
    %v3365 = vadd.f32 %v3311, 1.0
    %v3366 = vadd.f32 %v3313, 1.0
    %v3367 = vadd.f32 %v3315, 1.0
    %v3368 = vadd.f32 %v3317, 1.0
    %v3369 = vadd.f32 %v3319, 1.0
    %v3370 = vadd.f32 %v3321, 1.0
    %v3371 = vadd.f32 %v3323, 1.0
    %v3372 = vrcp.pop %v3324
    %v3373 = vmul.f32 1.0, %v3372
    %v3374 = vrcp.pop %v3325
    %v3375 = vmul.f32 1.0, %v3374
    %v3376 = vrcp.pop %v3326
    %v3377 = vmul.f32 1.0, %v3376
    %v3378 = vrcp.pop %v3327
    %v3379 = vmul.f32 1.0, %v3378
    %v3380 = vrcp.pop %v3328
    %v3381 = vmul.f32 1.0, %v3380
    %v3382 = vrcp.pop %v3329
    %v3383 = vmul.f32 1.0, %v3382
    %v3384 = vrcp.pop %v3330
    %v3385 = vmul.f32 1.0, %v3384
    %v3386 = vrcp.pop %v3331
    %v3387 = vmul.f32 1.0, %v3386
    %v3388 = vrcp.pop %v3332
    %v3389 = vmul.f32 1.0, %v3388
    %v3390 = vrcp.pop %v3333
    %v3391 = vmul.f32 1.0, %v3390
    %v3392 = vrcp.pop %v3334
    %v3393 = vmul.f32 1.0, %v3392
    %v3394 = vrcp.pop %v3335
    %v3395 = vmul.f32 1.0, %v3394
    %v3396 = vrcp.pop %v3336
    %v3397 = vmul.f32 1.0, %v3396
    %v3398 = vrcp.pop %v3337
    %v3399 = vmul.f32 1.0, %v3398
    %v3400 = vrcp.pop %v3338
    %v3401 = vmul.f32 1.0, %v3400
    %v3402 = vrcp.pop %v3339
    %v3403 = vmul.f32 1.0, %v3402
    %v3404 = vrcp.pop %v3340
    %v3405 = vmul.f32 1.0, %v3404
    %v3406 = vrcp.pop %v3341
    %v3407 = vmul.f32 1.0, %v3406
    %v3408 = vrcp.pop %v3342
    %v3409 = vmul.f32 1.0, %v3408
    %v3410 = vrcp.pop %v3343
    %v3411 = vmul.f32 1.0, %v3410
    %v3412 = vrcp.pop %v3344
    %v3413 = vmul.f32 1.0, %v3412
    %v3414 = vrcp.pop %v3345
    %v3415 = vmul.f32 1.0, %v3414
    %v3416 = vrcp.pop %v3346
    %v3417 = vmul.f32 1.0, %v3416
    %v3418 = vrcp.pop %v3347
    %v3419 = vmul.f32 1.0, %v3418
    %v3420 = vrcp.pop %v3348
    %v3421 = vmul.f32 1.0, %v3420
    %v3422 = vrcp.pop %v3349
    %v3423 = vmul.f32 1.0, %v3422
    %v3424 = vrcp.pop %v3350
    %v3425 = vmul.f32 1.0, %v3424
    %v3426 = vrcp.pop %v3351
    %v3427 = vmul.f32 1.0, %v3426
    %v3428 = vrcp.pop %v3352
    %v3429 = vmul.f32 1.0, %v3428
    %v3430 = vrcp.pop %v3353
    %v3431 = vmul.f32 1.0, %v3430
    %v3432 = vrcp.pop %v3354
    %v3433 = vmul.f32 1.0, %v3432
    %v3434 = vrcp.pop %v3355
    %v3435 = vmul.f32 1.0, %v3434
    %v3436 = vrcp.pop %v3356
    %v3437 = vmul.f32 1.0, %v3436
    %v3438 = vrcp.pop %v3357
    %v3439 = vmul.f32 1.0, %v3438
    %v3440 = vrcp.pop %v3358
    %v3441 = vmul.f32 1.0, %v3440
    %v3442 = vrcp.pop %v3359
    %v3443 = vmul.f32 1.0, %v3442
    %v3444 = vrcp.pop %v3360
    %v3445 = vmul.f32 1.0, %v3444
    %v3446 = vrcp.pop %v3361
    %v3447 = vmul.f32 1.0, %v3446
    %v3448 = vrcp.pop %v3362
    %v3449 = vmul.f32 1.0, %v3448
    %v3450 = vrcp.pop %v3363
    %v3451 = vmul.f32 1.0, %v3450
    %v3452 = vrcp.pop %v3364
    %v3453 = vmul.f32 1.0, %v3452
    %v3454 = vrcp.pop %v3365
    %v3455 = vmul.f32 1.0, %v3454
    %v3456 = vrcp.pop %v3366
    %v3457 = vmul.f32 1.0, %v3456
    %v3458 = vrcp.pop %v3367
    %v3459 = vmul.f32 1.0, %v3458
    %v3460 = vrcp.pop %v3368
    %v3461 = vmul.f32 1.0, %v3460
    %v3462 = vrcp.pop %v3369
    %v3463 = vmul.f32 1.0, %v3462
    %v3464 = vrcp.pop %v3370
    %v3465 = vmul.f32 1.0, %v3464
    %v3466 = vrcp.pop %v3371
    %v3467 = vmul.f32 1.0, %v3466
    %v3468 = vtanh.pop %v3049
    %v3469 = vtanh.pop %v3051
    %v3470 = vtanh.pop %v3162
    %v3471 = vtanh.pop %v3164
    %v3472 = vtanh.pop %v3053
    %v3473 = vtanh.pop %v3055
    %v3474 = vtanh.pop %v3166
    %v3475 = vtanh.pop %v3168
    %v3476 = vtanh.pop %v3059
    %v3477 = vtanh.pop %v3061
    %v3478 = vtanh.pop %v3172
    %v3479 = vtanh.pop %v3174
    %v3480 = vtanh.pop %v3063
    %v3481 = vtanh.pop %v3065
    %v3482 = vtanh.pop %v3176
    %v3483 = vtanh.pop %v3178
    %v3484 = vld [vmem:[#allocation3] sm:$0xff]
    %v3485 = vld [vmem:[#allocation3 + $0x8] sm:$0xff]
    %v3486 = vld [vmem:[#allocation3 + $0x10] sm:$0xff]
    %v3487 = vld [vmem:[#allocation3 + $0x18] sm:$0xff]
    %v3488 = vld [vmem:[#allocation3 + $0x20] sm:$0xff]
    %v3489 = vld [vmem:[#allocation3 + $0x28] sm:$0xff]
    %v3490 = vld [vmem:[#allocation3 + $0x30] sm:$0xff]
    %v3491 = vld [vmem:[#allocation3 + $0x38] sm:$0xff]
    %v3492 = vld [vmem:[#allocation3 + $0x40] sm:$0xff]
    %v3493 = vld [vmem:[#allocation3 + $0x48] sm:$0xff]
    %v3494 = vld [vmem:[#allocation3 + $0x50] sm:$0xff]
    %v3495 = vld [vmem:[#allocation3 + $0x58] sm:$0xff]
    %v3496 = vld [vmem:[#allocation3 + $0x60] sm:$0xff]
    %v3497 = vld [vmem:[#allocation3 + $0x68] sm:$0xff]
    %v3498 = vld [vmem:[#allocation3 + $0x70] sm:$0xff]
    %v3499 = vld [vmem:[#allocation3 + $0x78] sm:$0xff]
    %v3500 = vmul.f32 %v3405, %v3484
    %v3501 = vmul.f32 %v3407, %v3485
    %v3502 = vmul.f32 %v3409, %v3486
    %v3503 = vmul.f32 %v3411, %v3487
    %v3504 = vmul.f32 %v3413, %v3488
    %v3505 = vmul.f32 %v3415, %v3489
    %v3506 = vmul.f32 %v3417, %v3490
    %v3507 = vmul.f32 %v3419, %v3491
    %v3508 = vmul.f32 %v3421, %v3492
    %v3509 = vmul.f32 %v3423, %v3493
    %v3510 = vmul.f32 %v3425, %v3494
    %v3511 = vmul.f32 %v3427, %v3495
    %v3512 = vmul.f32 %v3429, %v3496
    %v3513 = vmul.f32 %v3431, %v3497
    %v3514 = vmul.f32 %v3433, %v3498
    %v3515 = vmul.f32 %v3435, %v3499
    %v3516 = vmul.f32 %v3373, %v3468
    %v3517 = vmul.f32 %v3375, %v3469
    %v3518 = vmul.f32 %v3377, %v3470
    %v3519 = vmul.f32 %v3379, %v3471
    %v3520 = vmul.f32 %v3381, %v3472
    %v3521 = vmul.f32 %v3383, %v3473
    %v3522 = vmul.f32 %v3385, %v3474
    %v3523 = vmul.f32 %v3387, %v3475
    %v3524 = vmul.f32 %v3389, %v3476
    %v3525 = vmul.f32 %v3391, %v3477
    %v3526 = vmul.f32 %v3393, %v3478
    %v3527 = vmul.f32 %v3395, %v3479
    %v3528 = vmul.f32 %v3397, %v3480
    %v3529 = vmul.f32 %v3399, %v3481
    %v3530 = vmul.f32 %v3401, %v3482
    %v3531 = vmul.f32 %v3403, %v3483
    %v3532 = vadd.f32 %v3500, %v3516
    %v3533 = vadd.f32 %v3501, %v3517
    %v3534 = vadd.f32 %v3502, %v3518
    %v3535 = vadd.f32 %v3503, %v3519
    %v3536 = vadd.f32 %v3504, %v3520
    %v3537 = vadd.f32 %v3505, %v3521
    %v3538 = vadd.f32 %v3506, %v3522
    %v3539 = vadd.f32 %v3507, %v3523
    %v3540 = vadd.f32 %v3508, %v3524
    %v3541 = vadd.f32 %v3509, %v3525
    %v3542 = vadd.f32 %v3510, %v3526
    %v3543 = vadd.f32 %v3511, %v3527
    %v3544 = vadd.f32 %v3512, %v3528
    %v3545 = vadd.f32 %v3513, %v3529
    %v3546 = vadd.f32 %v3514, %v3530
    %v3547 = vadd.f32 %v3515, %v3531
    %v3548 = vtanh.pop %v3532
    %v3549 = vtanh.pop %v3533
    %v3550 = vtanh.pop %v3534
    %v3551 = vtanh.pop %v3535
    %v3552 = vtanh.pop %v3536
    %v3553 = vtanh.pop %v3537
    %v3554 = vtanh.pop %v3538
    %v3555 = vtanh.pop %v3539
    %v3556 = vtanh.pop %v3540
    %v3557 = vtanh.pop %v3541
    %v3558 = vtanh.pop %v3542
    %v3559 = vtanh.pop %v3543
    %v3560 = vtanh.pop %v3544
    %v3561 = vtanh.pop %v3545
    %v3562 = vtanh.pop %v3546
    %v3563 = vtanh.pop %v3547
    %v3564 = vmul.f32 %v3437, %v3548
    %v3565 = vmul.f32 %v3439, %v3549
    %v3566 = vmul.f32 %v3441, %v3550
    %v3567 = vmul.f32 %v3443, %v3551
    %v3568 = vmul.f32 %v3445, %v3552
    %v3569 = vmul.f32 %v3447, %v3553
    %v3570 = vmul.f32 %v3449, %v3554
    %v3571 = vmul.f32 %v3451, %v3555
    %v3572 = vmul.f32 %v3453, %v3556
    %v3573 = vmul.f32 %v3455, %v3557
    %v3574 = vmul.f32 %v3457, %v3558
    %v3575 = vmul.f32 %v3459, %v3559
    %v3576 = vmul.f32 %v3461, %v3560
    %v3577 = vmul.f32 %v3463, %v3561
    %v3578 = vmul.f32 %v3465, %v3562
    %v3579 = vmul.f32 %v3467, %v3563
    %3580 = vst [vmem:[#allocation3] sm:$0xff] %v3532
    %3581 = vst [vmem:[#allocation3 + $0x8] sm:$0xff] %v3533
    %3582 = vst [vmem:[#allocation3 + $0x10] sm:$0xff] %v3534
    %3583 = vst [vmem:[#allocation3 + $0x18] sm:$0xff] %v3535
    %3584 = vst [vmem:[#allocation3 + $0x20] sm:$0xff] %v3536
    %3585 = vst [vmem:[#allocation3 + $0x28] sm:$0xff] %v3537
    %3586 = vst [vmem:[#allocation3 + $0x30] sm:$0xff] %v3538
    %3587 = vst [vmem:[#allocation3 + $0x38] sm:$0xff] %v3539
    %3588 = vst [vmem:[#allocation3 + $0x40] sm:$0xff] %v3540
    %3589 = vst [vmem:[#allocation3 + $0x48] sm:$0xff] %v3541
    %3590 = vst [vmem:[#allocation3 + $0x50] sm:$0xff] %v3542
    %3591 = vst [vmem:[#allocation3 + $0x58] sm:$0xff] %v3543
    %3592 = vst [vmem:[#allocation3 + $0x60] sm:$0xff] %v3544
    %3593 = vst [vmem:[#allocation3 + $0x68] sm:$0xff] %v3545
    %3594 = vst [vmem:[#allocation3 + $0x70] sm:$0xff] %v3546
    %3595 = vst [vmem:[#allocation3 + $0x78] sm:$0xff] %v3547
    %v3596 = vpack.c.bf16 %v3568, %v3564
    %v3597 = vpack.c.bf16 %v3569, %v3565
    %v3598 = vpack.c.bf16 %v3570, %v3566
    %v3599 = vpack.c.bf16 %v3571, %v3567
    %v3600 = vpack.c.bf16 %v3576, %v3572
    %v3601 = vpack.c.bf16 %v3577, %v3573
    %v3602 = vpack.c.bf16 %v3578, %v3574
    %v3603 = vpack.c.bf16 %v3579, %v3575
    %3604 = vst [vmem:[#allocation2 + $0x20] sm:$0xff] %v3596
    %3605 = vst [vmem:[#allocation2 + $0x28] sm:$0xff] %v3597
    %3606 = vst [vmem:[#allocation2 + $0x30] sm:$0xff] %v3598
    %3607 = vst [vmem:[#allocation2 + $0x38] sm:$0xff] %v3599
    %3608 = vst [vmem:[#allocation2 + $0x40] sm:$0xff] %v3600
    %3609 = vst [vmem:[#allocation2 + $0x48] sm:$0xff] %v3601
    %3610 = vst [vmem:[#allocation2 + $0x50] sm:$0xff] %v3602
    %3611 = vst [vmem:[#allocation2 + $0x58] sm:$0xff] %v3603
    %s3612 = scalar_lea.vmem [#allocation7], 384
    %3613 = vst [vmem:[%s3612] sm:$0xff] %v3564
    %3614 = vst [vmem:[%s3612 + $0x8] sm:$0xff] %v3565
    %3615 = vst [vmem:[%s3612 + $0x10] sm:$0xff] %v3566
    %3616 = vst [vmem:[%s3612 + $0x18] sm:$0xff] %v3567
    %3617 = vst [vmem:[%s3612 + $0x20] sm:$0xff] %v3568
    %3618 = vst [vmem:[%s3612 + $0x28] sm:$0xff] %v3569
    %3619 = vst [vmem:[%s3612 + $0x30] sm:$0xff] %v3570
    %3620 = vst [vmem:[%s3612 + $0x38] sm:$0xff] %v3571
    %3621 = vst [vmem:[%s3612 + $0x40] sm:$0xff] %v3572
    %3622 = vst [vmem:[%s3612 + $0x48] sm:$0xff] %v3573
    %3623 = vst [vmem:[%s3612 + $0x50] sm:$0xff] %v3574
    %3624 = vst [vmem:[%s3612 + $0x58] sm:$0xff] %v3575
    %3625 = vst [vmem:[%s3612 + $0x60] sm:$0xff] %v3576
    %3626 = vst [vmem:[%s3612 + $0x68] sm:$0xff] %v3577
    %3627 = vst [vmem:[%s3612 + $0x70] sm:$0xff] %v3578
    %3628 = vst [vmem:[%s3612 + $0x78] sm:$0xff] %v3579
    %s3629 = scalar_lea.vmem [#allocation4], 128
    %v3630 = vld [vmem:[%s3629] sm:$0xff]
    %v3631 = vld [vmem:[%s3629 + $0x8] sm:$0xff]
    %v3632 = vld [vmem:[%s3629 + $0x10] sm:$0xff]
    %v3633 = vld [vmem:[%s3629 + $0x18] sm:$0xff]
    %v3638 = vunpack.c.l.b16 %v3630
    %v3639 = vunpack.c.h.b16 %v3630
    %v3640 = vunpack.c.l.b16 %v3631
    %v3641 = vunpack.c.h.b16 %v3631
    %v3642 = vunpack.c.l.b16 %v3632
    %v3643 = vunpack.c.h.b16 %v3632
    %v3644 = vunpack.c.l.b16 %v3633
    %v3645 = vunpack.c.h.b16 %v3633
    %v3646 = vpack.c.b16 %v3642, %v3638
    %v3647 = vpack.c.b16 %v3643, %v3639
    %v3648 = vpack.c.b16 %v3644, %v3640
    %v3649 = vpack.c.b16 %v3645, %v3641
    %3654 = vst [vmem:[#allocation2] sm:$0xff] %v3646
    %3655 = vst [vmem:[#allocation2 + $0x8] sm:$0xff] %v3647
    %3656 = vst [vmem:[#allocation2 + $0x10] sm:$0xff] %v3648
    %3657 = vst [vmem:[#allocation2 + $0x18] sm:$0xff] %v3649
    %v3658 = vld [vmem:[%s1] sm:$0xf]
    %v3659 = vld [vmem:[%s1 + $0x4] sm:$0xf]
    %v3660 = vld [vmem:[%s1 + $0x8] sm:$0xf]
    %v3661 = vld [vmem:[%s1 + $0xc] sm:$0xf]
    %v3662 = vld [vmem:[%s1 + $0x10] sm:$0xf]
    %v3663 = vld [vmem:[%s1 + $0x14] sm:$0xf]
    %v3664 = vld [vmem:[%s1 + $0x18] sm:$0xf]
    %v3665 = vld [vmem:[%s1 + $0x1c] sm:$0xf]
    %v3666 = vld [vmem:[%s1 + $0x20] sm:$0xf]
    %v3667 = vld [vmem:[%s1 + $0x24] sm:$0xf]
    %v3668 = vld [vmem:[%s1 + $0x28] sm:$0xf]
    %v3669 = vld [vmem:[%s1 + $0x2c] sm:$0xf]
    %v3670 = vld [vmem:[%s1 + $0x30] sm:$0xf]
    %v3671 = vld [vmem:[%s1 + $0x34] sm:$0xf]
    %v3672 = vld [vmem:[%s1 + $0x38] sm:$0xf]
    %v3673 = vld [vmem:[%s1 + $0x3c] sm:$0xf]
    %v3674 = vld [vmem:[#allocation2] sm:$0xff]
    %v3675 = vld [vmem:[#allocation2 + $0x8] sm:$0xff]
    %v3676 = vld [vmem:[#allocation2 + $0x10] sm:$0xff]
    %v3677 = vld [vmem:[#allocation2 + $0x18] sm:$0xff]
    %v3678 = vld [vmem:[#allocation2 + $0x20] sm:$0xff]
    %v3679 = vld [vmem:[#allocation2 + $0x28] sm:$0xff]
    %v3680 = vld [vmem:[#allocation2 + $0x30] sm:$0xff]
    %v3681 = vld [vmem:[#allocation2 + $0x38] sm:$0xff]
    %v3682 = vld [vmem:[#allocation2 + $0x40] sm:$0xff]
    %v3683 = vld [vmem:[#allocation2 + $0x48] sm:$0xff]
    %v3684 = vld [vmem:[#allocation2 + $0x50] sm:$0xff]
    %v3685 = vld [vmem:[#allocation2 + $0x58] sm:$0xff]
    %v3686 = vld [vmem:[%s2] sm:$0xff]
    %v3687 = vld [vmem:[%s2 + $0x8] sm:$0xff]
    %v3688 = vld [vmem:[%s2 + $0x10] sm:$0xff]
    %v3689 = vld [vmem:[%s2 + $0x18] sm:$0xff]
    %v3690 = vld [vmem:[%s2 + $0x20] sm:$0xff]
    %v3691 = vld [vmem:[%s2 + $0x28] sm:$0xff]
    %v3692 = vld [vmem:[%s2 + $0x30] sm:$0xff]
    %v3693 = vld [vmem:[%s2 + $0x38] sm:$0xff]
    %v3694 = vld [vmem:[%s2 + $0x40] sm:$0xff]
    %v3695 = vld [vmem:[%s2 + $0x48] sm:$0xff]
    %v3696 = vld [vmem:[%s2 + $0x50] sm:$0xff]
    %v3697 = vld [vmem:[%s2 + $0x58] sm:$0xff]
    %v3698 = vld [vmem:[%s2 + $0x60] sm:$0xff]
    %v3699 = vld [vmem:[%s2 + $0x68] sm:$0xff]
    %v3700 = vld [vmem:[%s2 + $0x70] sm:$0xff]
    %v3701 = vld [vmem:[%s2 + $0x78] sm:$0xff]
    %3703 = vset.pattern.permute.xlu0 0
    %3704 = vperm.xlu0 %3703, %v3686
    %v3705 = vpop.permute.xlu0 %3704
    %3708 = vset.pattern.permute.xlu0 0
    %3709 = vperm.xlu0 %3708, %v3687
    %v3710 = vpop.permute.xlu0 %3709
    %3713 = vset.pattern.permute.xlu0 0
    %3714 = vperm.xlu0 %3713, %v3688
    %v3715 = vpop.permute.xlu0 %3714
    %3718 = vset.pattern.permute.xlu0 0
    %3719 = vperm.xlu0 %3718, %v3689
    %v3720 = vpop.permute.xlu0 %3719
    %3723 = vset.pattern.permute.xlu0 0
    %3724 = vperm.xlu0 %3723, %v3690
    %v3725 = vpop.permute.xlu0 %3724
    %3728 = vset.pattern.permute.xlu0 0
    %3729 = vperm.xlu0 %3728, %v3691
    %v3730 = vpop.permute.xlu0 %3729
    %3733 = vset.pattern.permute.xlu0 0
    %3734 = vperm.xlu0 %3733, %v3692
    %v3735 = vpop.permute.xlu0 %3734
    %3738 = vset.pattern.permute.xlu0 0
    %3739 = vperm.xlu0 %3738, %v3693
    %v3740 = vpop.permute.xlu0 %3739
    %3743 = vset.pattern.permute.xlu0 0
    %3744 = vperm.xlu0 %3743, %v3694
    %v3745 = vpop.permute.xlu0 %3744
    %3748 = vset.pattern.permute.xlu0 0
    %3749 = vperm.xlu0 %3748, %v3695
    %v3750 = vpop.permute.xlu0 %3749
    %3753 = vset.pattern.permute.xlu0 0
    %3754 = vperm.xlu0 %3753, %v3696
    %v3755 = vpop.permute.xlu0 %3754
    %3758 = vset.pattern.permute.xlu0 0
    %3759 = vperm.xlu0 %3758, %v3697
    %v3760 = vpop.permute.xlu0 %3759
    %3763 = vset.pattern.permute.xlu0 0
    %3764 = vperm.xlu0 %3763, %v3698
    %v3765 = vpop.permute.xlu0 %3764
    %3768 = vset.pattern.permute.xlu0 0
    %3769 = vperm.xlu0 %3768, %v3699
    %v3770 = vpop.permute.xlu0 %3769
    %3773 = vset.pattern.permute.xlu0 0
    %3774 = vperm.xlu0 %3773, %v3700
    %v3775 = vpop.permute.xlu0 %3774
    %3778 = vset.pattern.permute.xlu0 0
    %3779 = vperm.xlu0 %3778, %v3701
    %v3780 = vpop.permute.xlu0 %3779
    %v3798 = vunpack.c.l.b16 %v3658
    %v3799 = vunpack.c.l.b16 %v3659
    %v3800 = vunpack.c.l.b16 %v3660
    %v3801 = vunpack.c.l.b16 %v3661
    %v3802 = vunpack.c.l.b16 %v3662
    %v3803 = vunpack.c.l.b16 %v3663
    %v3804 = vunpack.c.l.b16 %v3664
    %v3805 = vunpack.c.l.b16 %v3665
    %v3806 = vunpack.c.l.b16 %v3666
    %v3807 = vunpack.c.l.b16 %v3667
    %v3808 = vunpack.c.l.b16 %v3668
    %v3809 = vunpack.c.l.b16 %v3669
    %v3810 = vunpack.c.l.b16 %v3670
    %v3811 = vunpack.c.l.b16 %v3671
    %v3812 = vunpack.c.l.b16 %v3672
    %v3813 = vunpack.c.l.b16 %v3673
    %v3814 = vpack.c.b16 %v3799, %v3798
    %v3815 = vpack.c.b16 %v3801, %v3800
    %v3816 = vpack.c.b16 %v3803, %v3802
    %v3817 = vpack.c.b16 %v3805, %v3804
    %v3818 = vpack.c.b16 %v3807, %v3806
    %v3819 = vpack.c.b16 %v3809, %v3808
    %v3820 = vpack.c.b16 %v3811, %v3810
    %v3821 = vpack.c.b16 %v3813, %v3812
    %v3823 = vsel %vm254, %v3814, 0
    %v3826 = vsel %vm254, %v3815, 0
    %v3829 = vsel %vm254, %v3816, 0
    %v3832 = vsel %vm254, %v3817, 0
    %v3835 = vsel %vm254, %v3818, 0
    %v3838 = vsel %vm254, %v3819, 0
    %v3841 = vsel %vm254, %v3820, 0
    %v3844 = vsel %vm254, %v3821, 0
    %3846 = vmatprep.subr.bf16.mxu0 %v3675
    %3847 = vmatpush1.bf16.msra.mxu0 %v3674
    %3848 = vmatprep.subr.bf16.mxu0 %v3679
    %3849 = vmatpush1.bf16.msra.mxu0 %v3678
    %3850 = vmatprep.subr.bf16.mxu0 %v3683
    %3851 = vmatpush1.bf16.msra.mxu0 %v3682
    %3852 = vmatprep.subr.bf16.mxu0 0
    %3853 = vmatpush1.bf16.msra.mxu0 0
    %3854 = vmatprep.subr.bf16.mxu0 0
    %3855 = vmatpush1.bf16.msra.mxu0 0
    %3856 = vmatprep.subr.bf16.mxu0 0
    %3857 = vmatpush1.bf16.msra.mxu0 0
    %3858 = vmatprep.subr.bf16.mxu0 0
    %3859 = vmatpush1.bf16.msra.mxu0 0
    %3860 = vmatprep.subr.bf16.mxu0 0
    %3861 = vmatpush1.bf16.msra.mxu0 0
    %3862 = vmatprep.subr.bf16.mxu0 0
    %3863 = vmatpush1.bf16.msra.mxu0 0
    %3864 = vmatprep.subr.bf16.mxu0 0
    %3865 = vmatpush1.bf16.msra.mxu0 0
    %3866 = vmatprep.subr.bf16.mxu0 0
    %3867 = vmatpush1.bf16.msra.mxu0 0
    %3868 = vmatprep.subr.bf16.mxu0 0
    %3869 = vmatpush1.bf16.msra.mxu0 0
    %3870 = vmatprep.subr.bf16.mxu0 0
    %3871 = vmatpush1.bf16.msra.mxu0 0
    %3872 = vmatprep.subr.bf16.mxu0 0
    %3873 = vmatpush1.bf16.msra.mxu0 0
    %3874 = vmatprep.subr.bf16.mxu0 0
    %3875 = vmatpush1.bf16.msra.mxu0 0
    %3876 = vmatprep.subr.bf16.mxu0 0
    %3877 = vmatpush1.bf16.msra.mxu0 0
    %3878 = vmatprep.mubr.bf16.mxu0 0
    %3879 = vmatmul.mubr.bf16.gmra.mrb[0].mxu0 %v3823
    %v3880 = vpop.f32.mrb[0].mxu0
    %v3881 = vadd.f32 %v3705, %v3880
    %v3882 = vpop.f32.mrb[0].mxu0
    %v3883 = vadd.f32 %v3705, %v3882
    %v3884 = vpop.f32.mrb[0].mxu0
    %v3885 = vadd.f32 %v3710, %v3884
    %v3886 = vpop.f32.mrb[0].mxu0
    %v3887 = vadd.f32 %v3710, %v3886
    %3888 = vmatprep.mubr.bf16.mxu0 0
    %3889 = vmatmul.mubr.bf16.gmra.mrb[0].mxu0 %v3826
    %v3890 = vpop.f32.mrb[0].mxu0
    %v3891 = vadd.f32 %v3715, %v3890
    %v3892 = vpop.f32.mrb[0].mxu0
    %v3893 = vadd.f32 %v3715, %v3892
    %v3894 = vpop.f32.mrb[0].mxu0
    %v3895 = vadd.f32 %v3720, %v3894
    %v3896 = vpop.f32.mrb[0].mxu0
    %v3897 = vadd.f32 %v3720, %v3896
    %3898 = vmatprep.mubr.bf16.mxu0 0
    %3899 = vmatmul.mubr.bf16.gmra.mrb[0].mxu0 %v3829
    %v3900 = vpop.f32.mrb[0].mxu0
    %v3901 = vadd.f32 %v3725, %v3900
    %v3902 = vpop.f32.mrb[0].mxu0
    %v3903 = vadd.f32 %v3725, %v3902
    %v3904 = vpop.f32.mrb[0].mxu0
    %v3905 = vadd.f32 %v3730, %v3904
    %v3906 = vpop.f32.mrb[0].mxu0
    %v3907 = vadd.f32 %v3730, %v3906
    %3908 = vmatprep.mubr.bf16.mxu0 0
    %3909 = vmatmul.mubr.bf16.gmra.mrb[0].mxu0 %v3832
    %v3910 = vpop.f32.mrb[0].mxu0
    %v3911 = vadd.f32 %v3735, %v3910
    %v3912 = vpop.f32.mrb[0].mxu0
    %v3913 = vadd.f32 %v3735, %v3912
    %v3914 = vpop.f32.mrb[0].mxu0
    %v3915 = vadd.f32 %v3740, %v3914
    %v3916 = vpop.f32.mrb[0].mxu0
    %v3917 = vadd.f32 %v3740, %v3916
    %3918 = vmatprep.mubr.bf16.mxu0 0
    %3919 = vmatmul.mubr.bf16.gmra.mrb[0].mxu0 %v3835
    %v3920 = vpop.f32.mrb[0].mxu0
    %v3921 = vadd.f32 %v3745, %v3920
    %v3922 = vpop.f32.mrb[0].mxu0
    %v3923 = vadd.f32 %v3745, %v3922
    %v3924 = vpop.f32.mrb[0].mxu0
    %v3925 = vadd.f32 %v3750, %v3924
    %v3926 = vpop.f32.mrb[0].mxu0
    %v3927 = vadd.f32 %v3750, %v3926
    %3928 = vmatprep.mubr.bf16.mxu0 0
    %3929 = vmatmul.mubr.bf16.gmra.mrb[0].mxu0 %v3838
    %v3930 = vpop.f32.mrb[0].mxu0
    %v3931 = vadd.f32 %v3755, %v3930
    %v3932 = vpop.f32.mrb[0].mxu0
    %v3933 = vadd.f32 %v3755, %v3932
    %v3934 = vpop.f32.mrb[0].mxu0
    %v3935 = vadd.f32 %v3760, %v3934
    %v3936 = vpop.f32.mrb[0].mxu0
    %v3937 = vadd.f32 %v3760, %v3936
    %3938 = vmatprep.mubr.bf16.mxu0 0
    %3939 = vmatmul.mubr.bf16.gmra.mrb[0].mxu0 %v3841
    %v3940 = vpop.f32.mrb[0].mxu0
    %v3941 = vadd.f32 %v3765, %v3940
    %v3942 = vpop.f32.mrb[0].mxu0
    %v3943 = vadd.f32 %v3765, %v3942
    %v3944 = vpop.f32.mrb[0].mxu0
    %v3945 = vadd.f32 %v3770, %v3944
    %v3946 = vpop.f32.mrb[0].mxu0
    %v3947 = vadd.f32 %v3770, %v3946
    %3948 = vmatprep.mubr.bf16.mxu0 0
    %3949 = vmatmul.mubr.bf16.gmra.mrb[0].mxu0 %v3844
    %v3950 = vpop.f32.mrb[0].mxu0
    %v3951 = vadd.f32 %v3775, %v3950
    %v3952 = vpop.f32.mrb[0].mxu0
    %v3953 = vadd.f32 %v3775, %v3952
    %v3954 = vpop.f32.mrb[0].mxu0
    %v3955 = vadd.f32 %v3780, %v3954
    %v3956 = vpop.f32.mrb[0].mxu0
    %v3957 = vadd.f32 %v3780, %v3956
    %3958 = vdwg.mxu0
    %3959 = vmatprep.subr.bf16.mxu0 %v3677
    %3960 = vmatpush1.bf16.msra.mxu0 %v3676
    %3961 = vmatprep.subr.bf16.mxu0 %v3681
    %3962 = vmatpush1.bf16.msra.mxu0 %v3680
    %3963 = vmatprep.subr.bf16.mxu0 %v3685
    %3964 = vmatpush1.bf16.msra.mxu0 %v3684
    %3965 = vmatprep.subr.bf16.mxu0 0
    %3966 = vmatpush1.bf16.msra.mxu0 0
    %3967 = vmatprep.subr.bf16.mxu0 0
    %3968 = vmatpush1.bf16.msra.mxu0 0
    %3969 = vmatprep.subr.bf16.mxu0 0
    %3970 = vmatpush1.bf16.msra.mxu0 0
    %3971 = vmatprep.subr.bf16.mxu0 0
    %3972 = vmatpush1.bf16.msra.mxu0 0
    %3973 = vmatprep.subr.bf16.mxu0 0
    %3974 = vmatpush1.bf16.msra.mxu0 0
    %3975 = vmatprep.subr.bf16.mxu0 0
    %3976 = vmatpush1.bf16.msra.mxu0 0
    %3977 = vmatprep.subr.bf16.mxu0 0
    %3978 = vmatpush1.bf16.msra.mxu0 0
    %3979 = vmatprep.subr.bf16.mxu0 0
    %3980 = vmatpush1.bf16.msra.mxu0 0
    %3981 = vmatprep.subr.bf16.mxu0 0
    %3982 = vmatpush1.bf16.msra.mxu0 0
    %3983 = vmatprep.subr.bf16.mxu0 0
    %3984 = vmatpush1.bf16.msra.mxu0 0
    %3985 = vmatprep.subr.bf16.mxu0 0
    %3986 = vmatpush1.bf16.msra.mxu0 0
    %3987 = vmatprep.subr.bf16.mxu0 0
    %3988 = vmatpush1.bf16.msra.mxu0 0
    %3989 = vmatprep.subr.bf16.mxu0 0
    %3990 = vmatpush1.bf16.msra.mxu0 0
    %3991 = vmatprep.mubr.bf16.mxu0 0
    %3992 = vmatmul.mubr.bf16.gmra.mrb[0].mxu0 %v3823
    %v3993 = vpop.f32.mrb[0].mxu0
    %v3994 = vadd.f32 %v3705, %v3993
    %v3995 = vpop.f32.mrb[0].mxu0
    %v3996 = vadd.f32 %v3705, %v3995
    %v3997 = vpop.f32.mrb[0].mxu0
    %v3998 = vadd.f32 %v3710, %v3997
    %v3999 = vpop.f32.mrb[0].mxu0
    %v4000 = vadd.f32 %v3710, %v3999
    %4001 = vmatprep.mubr.bf16.mxu0 0
    %4002 = vmatmul.mubr.bf16.gmra.mrb[0].mxu0 %v3826
    %v4003 = vpop.f32.mrb[0].mxu0
    %v4004 = vadd.f32 %v3715, %v4003
    %v4005 = vpop.f32.mrb[0].mxu0
    %v4006 = vadd.f32 %v3715, %v4005
    %v4007 = vpop.f32.mrb[0].mxu0
    %v4008 = vadd.f32 %v3720, %v4007
    %v4009 = vpop.f32.mrb[0].mxu0
    %v4010 = vadd.f32 %v3720, %v4009
    %4011 = vmatprep.mubr.bf16.mxu0 0
    %4012 = vmatmul.mubr.bf16.gmra.mrb[0].mxu0 %v3829
    %v4013 = vpop.f32.mrb[0].mxu0
    %v4014 = vadd.f32 %v3725, %v4013
    %v4015 = vpop.f32.mrb[0].mxu0
    %v4016 = vadd.f32 %v3725, %v4015
    %v4017 = vpop.f32.mrb[0].mxu0
    %v4018 = vadd.f32 %v3730, %v4017
    %v4019 = vpop.f32.mrb[0].mxu0
    %v4020 = vadd.f32 %v3730, %v4019
    %4021 = vmatprep.mubr.bf16.mxu0 0
    %4022 = vmatmul.mubr.bf16.gmra.mrb[0].mxu0 %v3832
    %v4023 = vpop.f32.mrb[0].mxu0
    %v4024 = vadd.f32 %v3735, %v4023
    %v4025 = vpop.f32.mrb[0].mxu0
    %v4026 = vadd.f32 %v3735, %v4025
    %v4027 = vpop.f32.mrb[0].mxu0
    %v4028 = vadd.f32 %v3740, %v4027
    %v4029 = vpop.f32.mrb[0].mxu0
    %v4030 = vadd.f32 %v3740, %v4029
    %4031 = vmatprep.mubr.bf16.mxu0 0
    %4032 = vmatmul.mubr.bf16.gmra.mrb[0].mxu0 %v3835
    %v4033 = vpop.f32.mrb[0].mxu0
    %v4034 = vadd.f32 %v3745, %v4033
    %v4035 = vpop.f32.mrb[0].mxu0
    %v4036 = vadd.f32 %v3745, %v4035
    %v4037 = vpop.f32.mrb[0].mxu0
    %v4038 = vadd.f32 %v3750, %v4037
    %v4039 = vpop.f32.mrb[0].mxu0
    %v4040 = vadd.f32 %v3750, %v4039
    %4041 = vmatprep.mubr.bf16.mxu0 0
    %4042 = vmatmul.mubr.bf16.gmra.mrb[0].mxu0 %v3838
    %v4043 = vpop.f32.mrb[0].mxu0
    %v4044 = vadd.f32 %v3755, %v4043
    %v4045 = vpop.f32.mrb[0].mxu0
    %v4046 = vadd.f32 %v3755, %v4045
    %v4047 = vpop.f32.mrb[0].mxu0
    %v4048 = vadd.f32 %v3760, %v4047
    %v4049 = vpop.f32.mrb[0].mxu0
    %v4050 = vadd.f32 %v3760, %v4049
    %4051 = vmatprep.mubr.bf16.mxu0 0
    %4052 = vmatmul.mubr.bf16.gmra.mrb[0].mxu0 %v3841
    %v4053 = vpop.f32.mrb[0].mxu0
    %v4054 = vadd.f32 %v3765, %v4053
    %v4055 = vpop.f32.mrb[0].mxu0
    %v4056 = vadd.f32 %v3765, %v4055
    %v4057 = vpop.f32.mrb[0].mxu0
    %v4058 = vadd.f32 %v3770, %v4057
    %v4059 = vpop.f32.mrb[0].mxu0
    %v4060 = vadd.f32 %v3770, %v4059
    %4061 = vmatprep.mubr.bf16.mxu0 0
    %4062 = vmatmul.mubr.bf16.gmra.mrb[0].mxu0 %v3844
    %v4063 = vpop.f32.mrb[0].mxu0
    %v4064 = vadd.f32 %v3775, %v4063
    %v4065 = vpop.f32.mrb[0].mxu0
    %v4066 = vadd.f32 %v3775, %v4065
    %v4067 = vpop.f32.mrb[0].mxu0
    %v4068 = vadd.f32 %v3780, %v4067
    %v4069 = vpop.f32.mrb[0].mxu0
    %v4070 = vadd.f32 %v3780, %v4069
    %4071 = vdwg.mxu0
    %v4072 = vxor.u32 %v3881, 2147483648
    %v4073 = vxor.u32 %v3883, 2147483648
    %v4074 = vxor.u32 %v3994, 2147483648
    %v4075 = vxor.u32 %v3996, 2147483648
    %v4076 = vxor.u32 %v3885, 2147483648
    %v4077 = vxor.u32 %v3887, 2147483648
    %v4078 = vxor.u32 %v3998, 2147483648
    %v4079 = vxor.u32 %v4000, 2147483648
    %v4080 = vxor.u32 %v3891, 2147483648
    %v4081 = vxor.u32 %v3893, 2147483648
    %v4082 = vxor.u32 %v4004, 2147483648
    %v4083 = vxor.u32 %v4006, 2147483648
    %v4084 = vxor.u32 %v3895, 2147483648
    %v4085 = vxor.u32 %v3897, 2147483648
    %v4086 = vxor.u32 %v4008, 2147483648
    %v4087 = vxor.u32 %v4010, 2147483648
    %v4088 = vxor.u32 %v3901, 2147483648
    %v4089 = vxor.u32 %v3903, 2147483648
    %v4090 = vxor.u32 %v4014, 2147483648
    %v4091 = vxor.u32 %v4016, 2147483648
    %v4092 = vxor.u32 %v3905, 2147483648
    %v4093 = vxor.u32 %v3907, 2147483648
    %v4094 = vxor.u32 %v4018, 2147483648
    %v4095 = vxor.u32 %v4020, 2147483648
    %v4096 = vxor.u32 %v3911, 2147483648
    %v4097 = vxor.u32 %v3913, 2147483648
    %v4098 = vxor.u32 %v4024, 2147483648
    %v4099 = vxor.u32 %v4026, 2147483648
    %v4100 = vxor.u32 %v3915, 2147483648
    %v4101 = vxor.u32 %v3917, 2147483648
    %v4102 = vxor.u32 %v4028, 2147483648
    %v4103 = vxor.u32 %v4030, 2147483648
    %v4104 = vxor.u32 %v3921, 2147483648
    %v4105 = vxor.u32 %v3923, 2147483648
    %v4106 = vxor.u32 %v4034, 2147483648
    %v4107 = vxor.u32 %v4036, 2147483648
    %v4108 = vxor.u32 %v3925, 2147483648
    %v4109 = vxor.u32 %v3927, 2147483648
    %v4110 = vxor.u32 %v4038, 2147483648
    %v4111 = vxor.u32 %v4040, 2147483648
    %v4112 = vxor.u32 %v3931, 2147483648
    %v4113 = vxor.u32 %v3933, 2147483648
    %v4114 = vxor.u32 %v4044, 2147483648
    %v4115 = vxor.u32 %v4046, 2147483648
    %v4116 = vxor.u32 %v3935, 2147483648
    %v4117 = vxor.u32 %v3937, 2147483648
    %v4118 = vxor.u32 %v4048, 2147483648
    %v4119 = vxor.u32 %v4050, 2147483648
    %v4120 = vmul.f32 %v4072, 1.442695
    %v4121 = vpow.pop %v4120
    %v4122 = vmul.f32 %v4073, 1.442695
    %v4123 = vpow.pop %v4122
    %v4124 = vmul.f32 %v4074, 1.442695
    %v4125 = vpow.pop %v4124
    %v4126 = vmul.f32 %v4075, 1.442695
    %v4127 = vpow.pop %v4126
    %v4128 = vmul.f32 %v4076, 1.442695
    %v4129 = vpow.pop %v4128
    %v4130 = vmul.f32 %v4077, 1.442695
    %v4131 = vpow.pop %v4130
    %v4132 = vmul.f32 %v4078, 1.442695
    %v4133 = vpow.pop %v4132
    %v4134 = vmul.f32 %v4079, 1.442695
    %v4135 = vpow.pop %v4134
    %v4136 = vmul.f32 %v4080, 1.442695
    %v4137 = vpow.pop %v4136
    %v4138 = vmul.f32 %v4081, 1.442695
    %v4139 = vpow.pop %v4138
    %v4140 = vmul.f32 %v4082, 1.442695
    %v4141 = vpow.pop %v4140
    %v4142 = vmul.f32 %v4083, 1.442695
    %v4143 = vpow.pop %v4142
    %v4144 = vmul.f32 %v4084, 1.442695
    %v4145 = vpow.pop %v4144
    %v4146 = vmul.f32 %v4085, 1.442695
    %v4147 = vpow.pop %v4146
    %v4148 = vmul.f32 %v4086, 1.442695
    %v4149 = vpow.pop %v4148
    %v4150 = vmul.f32 %v4087, 1.442695
    %v4151 = vpow.pop %v4150
    %v4152 = vmul.f32 %v4088, 1.442695
    %v4153 = vpow.pop %v4152
    %v4154 = vmul.f32 %v4089, 1.442695
    %v4155 = vpow.pop %v4154
    %v4156 = vmul.f32 %v4090, 1.442695
    %v4157 = vpow.pop %v4156
    %v4158 = vmul.f32 %v4091, 1.442695
    %v4159 = vpow.pop %v4158
    %v4160 = vmul.f32 %v4092, 1.442695
    %v4161 = vpow.pop %v4160
    %v4162 = vmul.f32 %v4093, 1.442695
    %v4163 = vpow.pop %v4162
    %v4164 = vmul.f32 %v4094, 1.442695
    %v4165 = vpow.pop %v4164
    %v4166 = vmul.f32 %v4095, 1.442695
    %v4167 = vpow.pop %v4166
    %v4168 = vmul.f32 %v4096, 1.442695
    %v4169 = vpow.pop %v4168
    %v4170 = vmul.f32 %v4097, 1.442695
    %v4171 = vpow.pop %v4170
    %v4172 = vmul.f32 %v4098, 1.442695
    %v4173 = vpow.pop %v4172
    %v4174 = vmul.f32 %v4099, 1.442695
    %v4175 = vpow.pop %v4174
    %v4176 = vmul.f32 %v4100, 1.442695
    %v4177 = vpow.pop %v4176
    %v4178 = vmul.f32 %v4101, 1.442695
    %v4179 = vpow.pop %v4178
    %v4180 = vmul.f32 %v4102, 1.442695
    %v4181 = vpow.pop %v4180
    %v4182 = vmul.f32 %v4103, 1.442695
    %v4183 = vpow.pop %v4182
    %v4184 = vmul.f32 %v4104, 1.442695
    %v4185 = vpow.pop %v4184
    %v4186 = vmul.f32 %v4105, 1.442695
    %v4187 = vpow.pop %v4186
    %v4188 = vmul.f32 %v4106, 1.442695
    %v4189 = vpow.pop %v4188
    %v4190 = vmul.f32 %v4107, 1.442695
    %v4191 = vpow.pop %v4190
    %v4192 = vmul.f32 %v4108, 1.442695
    %v4193 = vpow.pop %v4192
    %v4194 = vmul.f32 %v4109, 1.442695
    %v4195 = vpow.pop %v4194
    %v4196 = vmul.f32 %v4110, 1.442695
    %v4197 = vpow.pop %v4196
    %v4198 = vmul.f32 %v4111, 1.442695
    %v4199 = vpow.pop %v4198
    %v4200 = vmul.f32 %v4112, 1.442695
    %v4201 = vpow.pop %v4200
    %v4202 = vmul.f32 %v4113, 1.442695
    %v4203 = vpow.pop %v4202
    %v4204 = vmul.f32 %v4114, 1.442695
    %v4205 = vpow.pop %v4204
    %v4206 = vmul.f32 %v4115, 1.442695
    %v4207 = vpow.pop %v4206
    %v4208 = vmul.f32 %v4116, 1.442695
    %v4209 = vpow.pop %v4208
    %v4210 = vmul.f32 %v4117, 1.442695
    %v4211 = vpow.pop %v4210
    %v4212 = vmul.f32 %v4118, 1.442695
    %v4213 = vpow.pop %v4212
    %v4214 = vmul.f32 %v4119, 1.442695
    %v4215 = vpow.pop %v4214
    %v4216 = vadd.f32 %v4121, 1.0
    %v4217 = vadd.f32 %v4123, 1.0
    %v4218 = vadd.f32 %v4125, 1.0
    %v4219 = vadd.f32 %v4127, 1.0
    %v4220 = vadd.f32 %v4129, 1.0
    %v4221 = vadd.f32 %v4131, 1.0
    %v4222 = vadd.f32 %v4133, 1.0
    %v4223 = vadd.f32 %v4135, 1.0
    %v4224 = vadd.f32 %v4137, 1.0
    %v4225 = vadd.f32 %v4139, 1.0
    %v4226 = vadd.f32 %v4141, 1.0
    %v4227 = vadd.f32 %v4143, 1.0
    %v4228 = vadd.f32 %v4145, 1.0
    %v4229 = vadd.f32 %v4147, 1.0
    %v4230 = vadd.f32 %v4149, 1.0
    %v4231 = vadd.f32 %v4151, 1.0
    %v4232 = vadd.f32 %v4153, 1.0
    %v4233 = vadd.f32 %v4155, 1.0
    %v4234 = vadd.f32 %v4157, 1.0
    %v4235 = vadd.f32 %v4159, 1.0
    %v4236 = vadd.f32 %v4161, 1.0
    %v4237 = vadd.f32 %v4163, 1.0
    %v4238 = vadd.f32 %v4165, 1.0
    %v4239 = vadd.f32 %v4167, 1.0
    %v4240 = vadd.f32 %v4169, 1.0
    %v4241 = vadd.f32 %v4171, 1.0
    %v4242 = vadd.f32 %v4173, 1.0
    %v4243 = vadd.f32 %v4175, 1.0
    %v4244 = vadd.f32 %v4177, 1.0
    %v4245 = vadd.f32 %v4179, 1.0
    %v4246 = vadd.f32 %v4181, 1.0
    %v4247 = vadd.f32 %v4183, 1.0
    %v4248 = vadd.f32 %v4185, 1.0
    %v4249 = vadd.f32 %v4187, 1.0
    %v4250 = vadd.f32 %v4189, 1.0
    %v4251 = vadd.f32 %v4191, 1.0
    %v4252 = vadd.f32 %v4193, 1.0
    %v4253 = vadd.f32 %v4195, 1.0
    %v4254 = vadd.f32 %v4197, 1.0
    %v4255 = vadd.f32 %v4199, 1.0
    %v4256 = vadd.f32 %v4201, 1.0
    %v4257 = vadd.f32 %v4203, 1.0
    %v4258 = vadd.f32 %v4205, 1.0
    %v4259 = vadd.f32 %v4207, 1.0
    %v4260 = vadd.f32 %v4209, 1.0
    %v4261 = vadd.f32 %v4211, 1.0
    %v4262 = vadd.f32 %v4213, 1.0
    %v4263 = vadd.f32 %v4215, 1.0
    %v4264 = vrcp.pop %v4216
    %v4265 = vmul.f32 1.0, %v4264
    %v4266 = vrcp.pop %v4217
    %v4267 = vmul.f32 1.0, %v4266
    %v4268 = vrcp.pop %v4218
    %v4269 = vmul.f32 1.0, %v4268
    %v4270 = vrcp.pop %v4219
    %v4271 = vmul.f32 1.0, %v4270
    %v4272 = vrcp.pop %v4220
    %v4273 = vmul.f32 1.0, %v4272
    %v4274 = vrcp.pop %v4221
    %v4275 = vmul.f32 1.0, %v4274
    %v4276 = vrcp.pop %v4222
    %v4277 = vmul.f32 1.0, %v4276
    %v4278 = vrcp.pop %v4223
    %v4279 = vmul.f32 1.0, %v4278
    %v4280 = vrcp.pop %v4224
    %v4281 = vmul.f32 1.0, %v4280
    %v4282 = vrcp.pop %v4225
    %v4283 = vmul.f32 1.0, %v4282
    %v4284 = vrcp.pop %v4226
    %v4285 = vmul.f32 1.0, %v4284
    %v4286 = vrcp.pop %v4227
    %v4287 = vmul.f32 1.0, %v4286
    %v4288 = vrcp.pop %v4228
    %v4289 = vmul.f32 1.0, %v4288
    %v4290 = vrcp.pop %v4229
    %v4291 = vmul.f32 1.0, %v4290
    %v4292 = vrcp.pop %v4230
    %v4293 = vmul.f32 1.0, %v4292
    %v4294 = vrcp.pop %v4231
    %v4295 = vmul.f32 1.0, %v4294
    %v4296 = vrcp.pop %v4232
    %v4297 = vmul.f32 1.0, %v4296
    %v4298 = vrcp.pop %v4233
    %v4299 = vmul.f32 1.0, %v4298
    %v4300 = vrcp.pop %v4234
    %v4301 = vmul.f32 1.0, %v4300
    %v4302 = vrcp.pop %v4235
    %v4303 = vmul.f32 1.0, %v4302
    %v4304 = vrcp.pop %v4236
    %v4305 = vmul.f32 1.0, %v4304
    %v4306 = vrcp.pop %v4237
    %v4307 = vmul.f32 1.0, %v4306
    %v4308 = vrcp.pop %v4238
    %v4309 = vmul.f32 1.0, %v4308
    %v4310 = vrcp.pop %v4239
    %v4311 = vmul.f32 1.0, %v4310
    %v4312 = vrcp.pop %v4240
    %v4313 = vmul.f32 1.0, %v4312
    %v4314 = vrcp.pop %v4241
    %v4315 = vmul.f32 1.0, %v4314
    %v4316 = vrcp.pop %v4242
    %v4317 = vmul.f32 1.0, %v4316
    %v4318 = vrcp.pop %v4243
    %v4319 = vmul.f32 1.0, %v4318
    %v4320 = vrcp.pop %v4244
    %v4321 = vmul.f32 1.0, %v4320
    %v4322 = vrcp.pop %v4245
    %v4323 = vmul.f32 1.0, %v4322
    %v4324 = vrcp.pop %v4246
    %v4325 = vmul.f32 1.0, %v4324
    %v4326 = vrcp.pop %v4247
    %v4327 = vmul.f32 1.0, %v4326
    %v4328 = vrcp.pop %v4248
    %v4329 = vmul.f32 1.0, %v4328
    %v4330 = vrcp.pop %v4249
    %v4331 = vmul.f32 1.0, %v4330
    %v4332 = vrcp.pop %v4250
    %v4333 = vmul.f32 1.0, %v4332
    %v4334 = vrcp.pop %v4251
    %v4335 = vmul.f32 1.0, %v4334
    %v4336 = vrcp.pop %v4252
    %v4337 = vmul.f32 1.0, %v4336
    %v4338 = vrcp.pop %v4253
    %v4339 = vmul.f32 1.0, %v4338
    %v4340 = vrcp.pop %v4254
    %v4341 = vmul.f32 1.0, %v4340
    %v4342 = vrcp.pop %v4255
    %v4343 = vmul.f32 1.0, %v4342
    %v4344 = vrcp.pop %v4256
    %v4345 = vmul.f32 1.0, %v4344
    %v4346 = vrcp.pop %v4257
    %v4347 = vmul.f32 1.0, %v4346
    %v4348 = vrcp.pop %v4258
    %v4349 = vmul.f32 1.0, %v4348
    %v4350 = vrcp.pop %v4259
    %v4351 = vmul.f32 1.0, %v4350
    %v4352 = vrcp.pop %v4260
    %v4353 = vmul.f32 1.0, %v4352
    %v4354 = vrcp.pop %v4261
    %v4355 = vmul.f32 1.0, %v4354
    %v4356 = vrcp.pop %v4262
    %v4357 = vmul.f32 1.0, %v4356
    %v4358 = vrcp.pop %v4263
    %v4359 = vmul.f32 1.0, %v4358
    %v4360 = vtanh.pop %v3941
    %v4361 = vtanh.pop %v3943
    %v4362 = vtanh.pop %v4054
    %v4363 = vtanh.pop %v4056
    %v4364 = vtanh.pop %v3945
    %v4365 = vtanh.pop %v3947
    %v4366 = vtanh.pop %v4058
    %v4367 = vtanh.pop %v4060
    %v4368 = vtanh.pop %v3951
    %v4369 = vtanh.pop %v3953
    %v4370 = vtanh.pop %v4064
    %v4371 = vtanh.pop %v4066
    %v4372 = vtanh.pop %v3955
    %v4373 = vtanh.pop %v3957
    %v4374 = vtanh.pop %v4068
    %v4375 = vtanh.pop %v4070
    %v4376 = vld [vmem:[#allocation3] sm:$0xff]
    %v4377 = vld [vmem:[#allocation3 + $0x8] sm:$0xff]
    %v4378 = vld [vmem:[#allocation3 + $0x10] sm:$0xff]
    %v4379 = vld [vmem:[#allocation3 + $0x18] sm:$0xff]
    %v4380 = vld [vmem:[#allocation3 + $0x20] sm:$0xff]
    %v4381 = vld [vmem:[#allocation3 + $0x28] sm:$0xff]
    %v4382 = vld [vmem:[#allocation3 + $0x30] sm:$0xff]
    %v4383 = vld [vmem:[#allocation3 + $0x38] sm:$0xff]
    %v4384 = vld [vmem:[#allocation3 + $0x40] sm:$0xff]
    %v4385 = vld [vmem:[#allocation3 + $0x48] sm:$0xff]
    %v4386 = vld [vmem:[#allocation3 + $0x50] sm:$0xff]
    %v4387 = vld [vmem:[#allocation3 + $0x58] sm:$0xff]
    %v4388 = vld [vmem:[#allocation3 + $0x60] sm:$0xff]
    %v4389 = vld [vmem:[#allocation3 + $0x68] sm:$0xff]
    %v4390 = vld [vmem:[#allocation3 + $0x70] sm:$0xff]
    %v4391 = vld [vmem:[#allocation3 + $0x78] sm:$0xff]
    %v4392 = vmul.f32 %v4297, %v4376
    %v4393 = vmul.f32 %v4299, %v4377
    %v4394 = vmul.f32 %v4301, %v4378
    %v4395 = vmul.f32 %v4303, %v4379
    %v4396 = vmul.f32 %v4305, %v4380
    %v4397 = vmul.f32 %v4307, %v4381
    %v4398 = vmul.f32 %v4309, %v4382
    %v4399 = vmul.f32 %v4311, %v4383
    %v4400 = vmul.f32 %v4313, %v4384
    %v4401 = vmul.f32 %v4315, %v4385
    %v4402 = vmul.f32 %v4317, %v4386
    %v4403 = vmul.f32 %v4319, %v4387
    %v4404 = vmul.f32 %v4321, %v4388
    %v4405 = vmul.f32 %v4323, %v4389
    %v4406 = vmul.f32 %v4325, %v4390
    %v4407 = vmul.f32 %v4327, %v4391
    %v4408 = vmul.f32 %v4265, %v4360
    %v4409 = vmul.f32 %v4267, %v4361
    %v4410 = vmul.f32 %v4269, %v4362
    %v4411 = vmul.f32 %v4271, %v4363
    %v4412 = vmul.f32 %v4273, %v4364
    %v4413 = vmul.f32 %v4275, %v4365
    %v4414 = vmul.f32 %v4277, %v4366
    %v4415 = vmul.f32 %v4279, %v4367
    %v4416 = vmul.f32 %v4281, %v4368
    %v4417 = vmul.f32 %v4283, %v4369
    %v4418 = vmul.f32 %v4285, %v4370
    %v4419 = vmul.f32 %v4287, %v4371
    %v4420 = vmul.f32 %v4289, %v4372
    %v4421 = vmul.f32 %v4291, %v4373
    %v4422 = vmul.f32 %v4293, %v4374
    %v4423 = vmul.f32 %v4295, %v4375
    %v4424 = vadd.f32 %v4392, %v4408
    %v4425 = vadd.f32 %v4393, %v4409
    %v4426 = vadd.f32 %v4394, %v4410
    %v4427 = vadd.f32 %v4395, %v4411
    %v4428 = vadd.f32 %v4396, %v4412
    %v4429 = vadd.f32 %v4397, %v4413
    %v4430 = vadd.f32 %v4398, %v4414
    %v4431 = vadd.f32 %v4399, %v4415
    %v4432 = vadd.f32 %v4400, %v4416
    %v4433 = vadd.f32 %v4401, %v4417
    %v4434 = vadd.f32 %v4402, %v4418
    %v4435 = vadd.f32 %v4403, %v4419
    %v4436 = vadd.f32 %v4404, %v4420
    %v4437 = vadd.f32 %v4405, %v4421
    %v4438 = vadd.f32 %v4406, %v4422
    %v4439 = vadd.f32 %v4407, %v4423
    %v4440 = vtanh.pop %v4424
    %v4441 = vtanh.pop %v4425
    %v4442 = vtanh.pop %v4426
    %v4443 = vtanh.pop %v4427
    %v4444 = vtanh.pop %v4428
    %v4445 = vtanh.pop %v4429
    %v4446 = vtanh.pop %v4430
    %v4447 = vtanh.pop %v4431
    %v4448 = vtanh.pop %v4432
    %v4449 = vtanh.pop %v4433
    %v4450 = vtanh.pop %v4434
    %v4451 = vtanh.pop %v4435
    %v4452 = vtanh.pop %v4436
    %v4453 = vtanh.pop %v4437
    %v4454 = vtanh.pop %v4438
    %v4455 = vtanh.pop %v4439
    %v4456 = vmul.f32 %v4329, %v4440
    %v4457 = vmul.f32 %v4331, %v4441
    %v4458 = vmul.f32 %v4333, %v4442
    %v4459 = vmul.f32 %v4335, %v4443
    %v4460 = vmul.f32 %v4337, %v4444
    %v4461 = vmul.f32 %v4339, %v4445
    %v4462 = vmul.f32 %v4341, %v4446
    %v4463 = vmul.f32 %v4343, %v4447
    %v4464 = vmul.f32 %v4345, %v4448
    %v4465 = vmul.f32 %v4347, %v4449
    %v4466 = vmul.f32 %v4349, %v4450
    %v4467 = vmul.f32 %v4351, %v4451
    %v4468 = vmul.f32 %v4353, %v4452
    %v4469 = vmul.f32 %v4355, %v4453
    %v4470 = vmul.f32 %v4357, %v4454
    %v4471 = vmul.f32 %v4359, %v4455
    %4472 = vst [vmem:[#allocation3] sm:$0xff] %v4424
    %4473 = vst [vmem:[#allocation3 + $0x8] sm:$0xff] %v4425
    %4474 = vst [vmem:[#allocation3 + $0x10] sm:$0xff] %v4426
    %4475 = vst [vmem:[#allocation3 + $0x18] sm:$0xff] %v4427
    %4476 = vst [vmem:[#allocation3 + $0x20] sm:$0xff] %v4428
    %4477 = vst [vmem:[#allocation3 + $0x28] sm:$0xff] %v4429
    %4478 = vst [vmem:[#allocation3 + $0x30] sm:$0xff] %v4430
    %4479 = vst [vmem:[#allocation3 + $0x38] sm:$0xff] %v4431
    %4480 = vst [vmem:[#allocation3 + $0x40] sm:$0xff] %v4432
    %4481 = vst [vmem:[#allocation3 + $0x48] sm:$0xff] %v4433
    %4482 = vst [vmem:[#allocation3 + $0x50] sm:$0xff] %v4434
    %4483 = vst [vmem:[#allocation3 + $0x58] sm:$0xff] %v4435
    %4484 = vst [vmem:[#allocation3 + $0x60] sm:$0xff] %v4436
    %4485 = vst [vmem:[#allocation3 + $0x68] sm:$0xff] %v4437
    %4486 = vst [vmem:[#allocation3 + $0x70] sm:$0xff] %v4438
    %4487 = vst [vmem:[#allocation3 + $0x78] sm:$0xff] %v4439
    %v4488 = vpack.c.bf16 %v4460, %v4456
    %v4489 = vpack.c.bf16 %v4461, %v4457
    %v4490 = vpack.c.bf16 %v4462, %v4458
    %v4491 = vpack.c.bf16 %v4463, %v4459
    %v4492 = vpack.c.bf16 %v4468, %v4464
    %v4493 = vpack.c.bf16 %v4469, %v4465
    %v4494 = vpack.c.bf16 %v4470, %v4466
    %v4495 = vpack.c.bf16 %v4471, %v4467
    %4496 = vst [vmem:[#allocation2 + $0x20] sm:$0xff] %v4488
    %4497 = vst [vmem:[#allocation2 + $0x28] sm:$0xff] %v4489
    %4498 = vst [vmem:[#allocation2 + $0x30] sm:$0xff] %v4490
    %4499 = vst [vmem:[#allocation2 + $0x38] sm:$0xff] %v4491
    %4500 = vst [vmem:[#allocation2 + $0x40] sm:$0xff] %v4492
    %4501 = vst [vmem:[#allocation2 + $0x48] sm:$0xff] %v4493
    %4502 = vst [vmem:[#allocation2 + $0x50] sm:$0xff] %v4494
    %4503 = vst [vmem:[#allocation2 + $0x58] sm:$0xff] %v4495
    %s4504 = scalar_lea.vmem [#allocation7], 512
    %4505 = vst [vmem:[%s4504] sm:$0xff] %v4456
    %4506 = vst [vmem:[%s4504 + $0x8] sm:$0xff] %v4457
    %4507 = vst [vmem:[%s4504 + $0x10] sm:$0xff] %v4458
    %4508 = vst [vmem:[%s4504 + $0x18] sm:$0xff] %v4459
    %4509 = vst [vmem:[%s4504 + $0x20] sm:$0xff] %v4460
    %4510 = vst [vmem:[%s4504 + $0x28] sm:$0xff] %v4461
    %4511 = vst [vmem:[%s4504 + $0x30] sm:$0xff] %v4462
    %4512 = vst [vmem:[%s4504 + $0x38] sm:$0xff] %v4463
    %4513 = vst [vmem:[%s4504 + $0x40] sm:$0xff] %v4464
    %4514 = vst [vmem:[%s4504 + $0x48] sm:$0xff] %v4465
    %4515 = vst [vmem:[%s4504 + $0x50] sm:$0xff] %v4466
    %4516 = vst [vmem:[%s4504 + $0x58] sm:$0xff] %v4467
    %4517 = vst [vmem:[%s4504 + $0x60] sm:$0xff] %v4468
    %4518 = vst [vmem:[%s4504 + $0x68] sm:$0xff] %v4469
    %4519 = vst [vmem:[%s4504 + $0x70] sm:$0xff] %v4470
    %4520 = vst [vmem:[%s4504 + $0x78] sm:$0xff] %v4471
    %s4521 = scalar_lea.vmem [#allocation4], 160
    %v4522 = vld [vmem:[%s4521] sm:$0xff]
    %v4523 = vld [vmem:[%s4521 + $0x8] sm:$0xff]
    %v4524 = vld [vmem:[%s4521 + $0x10] sm:$0xff]
    %v4525 = vld [vmem:[%s4521 + $0x18] sm:$0xff]
    %v4530 = vunpack.c.l.b16 %v4522
    %v4531 = vunpack.c.h.b16 %v4522
    %v4532 = vunpack.c.l.b16 %v4523
    %v4533 = vunpack.c.h.b16 %v4523
    %v4534 = vunpack.c.l.b16 %v4524
    %v4535 = vunpack.c.h.b16 %v4524
    %v4536 = vunpack.c.l.b16 %v4525
    %v4537 = vunpack.c.h.b16 %v4525
    %v4538 = vpack.c.b16 %v4534, %v4530
    %v4539 = vpack.c.b16 %v4535, %v4531
    %v4540 = vpack.c.b16 %v4536, %v4532
    %v4541 = vpack.c.b16 %v4537, %v4533
    %4546 = vst [vmem:[#allocation2] sm:$0xff] %v4538
    %4547 = vst [vmem:[#allocation2 + $0x8] sm:$0xff] %v4539
    %4548 = vst [vmem:[#allocation2 + $0x10] sm:$0xff] %v4540
    %4549 = vst [vmem:[#allocation2 + $0x18] sm:$0xff] %v4541
    %v4550 = vld [vmem:[%s1] sm:$0xf]
    %v4551 = vld [vmem:[%s1 + $0x4] sm:$0xf]
    %v4552 = vld [vmem:[%s1 + $0x8] sm:$0xf]
    %v4553 = vld [vmem:[%s1 + $0xc] sm:$0xf]
    %v4554 = vld [vmem:[%s1 + $0x10] sm:$0xf]
    %v4555 = vld [vmem:[%s1 + $0x14] sm:$0xf]
    %v4556 = vld [vmem:[%s1 + $0x18] sm:$0xf]
    %v4557 = vld [vmem:[%s1 + $0x1c] sm:$0xf]
    %v4558 = vld [vmem:[%s1 + $0x20] sm:$0xf]
    %v4559 = vld [vmem:[%s1 + $0x24] sm:$0xf]
    %v4560 = vld [vmem:[%s1 + $0x28] sm:$0xf]
    %v4561 = vld [vmem:[%s1 + $0x2c] sm:$0xf]
    %v4562 = vld [vmem:[%s1 + $0x30] sm:$0xf]
    %v4563 = vld [vmem:[%s1 + $0x34] sm:$0xf]
    %v4564 = vld [vmem:[%s1 + $0x38] sm:$0xf]
    %v4565 = vld [vmem:[%s1 + $0x3c] sm:$0xf]
    %v4566 = vld [vmem:[#allocation2] sm:$0xff]
    %v4567 = vld [vmem:[#allocation2 + $0x8] sm:$0xff]
    %v4568 = vld [vmem:[#allocation2 + $0x10] sm:$0xff]
    %v4569 = vld [vmem:[#allocation2 + $0x18] sm:$0xff]
    %v4570 = vld [vmem:[#allocation2 + $0x20] sm:$0xff]
    %v4571 = vld [vmem:[#allocation2 + $0x28] sm:$0xff]
    %v4572 = vld [vmem:[#allocation2 + $0x30] sm:$0xff]
    %v4573 = vld [vmem:[#allocation2 + $0x38] sm:$0xff]
    %v4574 = vld [vmem:[#allocation2 + $0x40] sm:$0xff]
    %v4575 = vld [vmem:[#allocation2 + $0x48] sm:$0xff]
    %v4576 = vld [vmem:[#allocation2 + $0x50] sm:$0xff]
    %v4577 = vld [vmem:[#allocation2 + $0x58] sm:$0xff]
    %v4578 = vld [vmem:[%s2] sm:$0xff]
    %v4579 = vld [vmem:[%s2 + $0x8] sm:$0xff]
    %v4580 = vld [vmem:[%s2 + $0x10] sm:$0xff]
    %v4581 = vld [vmem:[%s2 + $0x18] sm:$0xff]
    %v4582 = vld [vmem:[%s2 + $0x20] sm:$0xff]
    %v4583 = vld [vmem:[%s2 + $0x28] sm:$0xff]
    %v4584 = vld [vmem:[%s2 + $0x30] sm:$0xff]
    %v4585 = vld [vmem:[%s2 + $0x38] sm:$0xff]
    %v4586 = vld [vmem:[%s2 + $0x40] sm:$0xff]
    %v4587 = vld [vmem:[%s2 + $0x48] sm:$0xff]
    %v4588 = vld [vmem:[%s2 + $0x50] sm:$0xff]
    %v4589 = vld [vmem:[%s2 + $0x58] sm:$0xff]
    %v4590 = vld [vmem:[%s2 + $0x60] sm:$0xff]
    %v4591 = vld [vmem:[%s2 + $0x68] sm:$0xff]
    %v4592 = vld [vmem:[%s2 + $0x70] sm:$0xff]
    %v4593 = vld [vmem:[%s2 + $0x78] sm:$0xff]
    %4595 = vset.pattern.permute.xlu0 0
    %4596 = vperm.xlu0 %4595, %v4578
    %v4597 = vpop.permute.xlu0 %4596
    %4600 = vset.pattern.permute.xlu0 0
    %4601 = vperm.xlu0 %4600, %v4579
    %v4602 = vpop.permute.xlu0 %4601
    %4605 = vset.pattern.permute.xlu0 0
    %4606 = vperm.xlu0 %4605, %v4580
    %v4607 = vpop.permute.xlu0 %4606
    %4610 = vset.pattern.permute.xlu0 0
    %4611 = vperm.xlu0 %4610, %v4581
    %v4612 = vpop.permute.xlu0 %4611
    %4615 = vset.pattern.permute.xlu0 0
    %4616 = vperm.xlu0 %4615, %v4582
    %v4617 = vpop.permute.xlu0 %4616
    %4620 = vset.pattern.permute.xlu0 0
    %4621 = vperm.xlu0 %4620, %v4583
    %v4622 = vpop.permute.xlu0 %4621
    %4625 = vset.pattern.permute.xlu0 0
    %4626 = vperm.xlu0 %4625, %v4584
    %v4627 = vpop.permute.xlu0 %4626
    %4630 = vset.pattern.permute.xlu0 0
    %4631 = vperm.xlu0 %4630, %v4585
    %v4632 = vpop.permute.xlu0 %4631
    %4635 = vset.pattern.permute.xlu0 0
    %4636 = vperm.xlu0 %4635, %v4586
    %v4637 = vpop.permute.xlu0 %4636
    %4640 = vset.pattern.permute.xlu0 0
    %4641 = vperm.xlu0 %4640, %v4587
    %v4642 = vpop.permute.xlu0 %4641
    %4645 = vset.pattern.permute.xlu0 0
    %4646 = vperm.xlu0 %4645, %v4588
    %v4647 = vpop.permute.xlu0 %4646
    %4650 = vset.pattern.permute.xlu0 0
    %4651 = vperm.xlu0 %4650, %v4589
    %v4652 = vpop.permute.xlu0 %4651
    %4655 = vset.pattern.permute.xlu0 0
    %4656 = vperm.xlu0 %4655, %v4590
    %v4657 = vpop.permute.xlu0 %4656
    %4660 = vset.pattern.permute.xlu0 0
    %4661 = vperm.xlu0 %4660, %v4591
    %v4662 = vpop.permute.xlu0 %4661
    %4665 = vset.pattern.permute.xlu0 0
    %4666 = vperm.xlu0 %4665, %v4592
    %v4667 = vpop.permute.xlu0 %4666
    %4670 = vset.pattern.permute.xlu0 0
    %4671 = vperm.xlu0 %4670, %v4593
    %v4672 = vpop.permute.xlu0 %4671
    %v4690 = vunpack.c.l.b16 %v4550
    %v4691 = vunpack.c.l.b16 %v4551
    %v4692 = vunpack.c.l.b16 %v4552
    %v4693 = vunpack.c.l.b16 %v4553
    %v4694 = vunpack.c.l.b16 %v4554
    %v4695 = vunpack.c.l.b16 %v4555
    %v4696 = vunpack.c.l.b16 %v4556
    %v4697 = vunpack.c.l.b16 %v4557
    %v4698 = vunpack.c.l.b16 %v4558
    %v4699 = vunpack.c.l.b16 %v4559
    %v4700 = vunpack.c.l.b16 %v4560
    %v4701 = vunpack.c.l.b16 %v4561
    %v4702 = vunpack.c.l.b16 %v4562
    %v4703 = vunpack.c.l.b16 %v4563
    %v4704 = vunpack.c.l.b16 %v4564
    %v4705 = vunpack.c.l.b16 %v4565
    %v4706 = vpack.c.b16 %v4691, %v4690
    %v4707 = vpack.c.b16 %v4693, %v4692
    %v4708 = vpack.c.b16 %v4695, %v4694
    %v4709 = vpack.c.b16 %v4697, %v4696
    %v4710 = vpack.c.b16 %v4699, %v4698
    %v4711 = vpack.c.b16 %v4701, %v4700
    %v4712 = vpack.c.b16 %v4703, %v4702
    %v4713 = vpack.c.b16 %v4705, %v4704
    %v4715 = vsel %vm254, %v4706, 0
    %v4718 = vsel %vm254, %v4707, 0
    %v4721 = vsel %vm254, %v4708, 0
    %v4724 = vsel %vm254, %v4709, 0
    %v4727 = vsel %vm254, %v4710, 0
    %v4730 = vsel %vm254, %v4711, 0
    %v4733 = vsel %vm254, %v4712, 0
    %v4736 = vsel %vm254, %v4713, 0
    %4738 = vmatprep.subr.bf16.mxu0 %v4567
    %4739 = vmatpush1.bf16.msra.mxu0 %v4566
    %4740 = vmatprep.subr.bf16.mxu0 %v4571
    %4741 = vmatpush1.bf16.msra.mxu0 %v4570
    %4742 = vmatprep.subr.bf16.mxu0 %v4575
    %4743 = vmatpush1.bf16.msra.mxu0 %v4574
    %4744 = vmatprep.subr.bf16.mxu0 0
    %4745 = vmatpush1.bf16.msra.mxu0 0
    %4746 = vmatprep.subr.bf16.mxu0 0
    %4747 = vmatpush1.bf16.msra.mxu0 0
    %4748 = vmatprep.subr.bf16.mxu0 0
    %4749 = vmatpush1.bf16.msra.mxu0 0
    %4750 = vmatprep.subr.bf16.mxu0 0
    %4751 = vmatpush1.bf16.msra.mxu0 0
    %4752 = vmatprep.subr.bf16.mxu0 0
    %4753 = vmatpush1.bf16.msra.mxu0 0
    %4754 = vmatprep.subr.bf16.mxu0 0
    %4755 = vmatpush1.bf16.msra.mxu0 0
    %4756 = vmatprep.subr.bf16.mxu0 0
    %4757 = vmatpush1.bf16.msra.mxu0 0
    %4758 = vmatprep.subr.bf16.mxu0 0
    %4759 = vmatpush1.bf16.msra.mxu0 0
    %4760 = vmatprep.subr.bf16.mxu0 0
    %4761 = vmatpush1.bf16.msra.mxu0 0
    %4762 = vmatprep.subr.bf16.mxu0 0
    %4763 = vmatpush1.bf16.msra.mxu0 0
    %4764 = vmatprep.subr.bf16.mxu0 0
    %4765 = vmatpush1.bf16.msra.mxu0 0
    %4766 = vmatprep.subr.bf16.mxu0 0
    %4767 = vmatpush1.bf16.msra.mxu0 0
    %4768 = vmatprep.subr.bf16.mxu0 0
    %4769 = vmatpush1.bf16.msra.mxu0 0
    %4770 = vmatprep.mubr.bf16.mxu0 0
    %4771 = vmatmul.mubr.bf16.gmra.mrb[0].mxu0 %v4715
    %v4772 = vpop.f32.mrb[0].mxu0
    %v4773 = vadd.f32 %v4597, %v4772
    %v4774 = vpop.f32.mrb[0].mxu0
    %v4775 = vadd.f32 %v4597, %v4774
    %v4776 = vpop.f32.mrb[0].mxu0
    %v4777 = vadd.f32 %v4602, %v4776
    %v4778 = vpop.f32.mrb[0].mxu0
    %v4779 = vadd.f32 %v4602, %v4778
    %4780 = vmatprep.mubr.bf16.mxu0 0
    %4781 = vmatmul.mubr.bf16.gmra.mrb[0].mxu0 %v4718
    %v4782 = vpop.f32.mrb[0].mxu0
    %v4783 = vadd.f32 %v4607, %v4782
    %v4784 = vpop.f32.mrb[0].mxu0
    %v4785 = vadd.f32 %v4607, %v4784
    %v4786 = vpop.f32.mrb[0].mxu0
    %v4787 = vadd.f32 %v4612, %v4786
    %v4788 = vpop.f32.mrb[0].mxu0
    %v4789 = vadd.f32 %v4612, %v4788
    %4790 = vmatprep.mubr.bf16.mxu0 0
    %4791 = vmatmul.mubr.bf16.gmra.mrb[0].mxu0 %v4721
    %v4792 = vpop.f32.mrb[0].mxu0
    %v4793 = vadd.f32 %v4617, %v4792
    %v4794 = vpop.f32.mrb[0].mxu0
    %v4795 = vadd.f32 %v4617, %v4794
    %v4796 = vpop.f32.mrb[0].mxu0
    %v4797 = vadd.f32 %v4622, %v4796
    %v4798 = vpop.f32.mrb[0].mxu0
    %v4799 = vadd.f32 %v4622, %v4798
    %4800 = vmatprep.mubr.bf16.mxu0 0
    %4801 = vmatmul.mubr.bf16.gmra.mrb[0].mxu0 %v4724
    %v4802 = vpop.f32.mrb[0].mxu0
    %v4803 = vadd.f32 %v4627, %v4802
    %v4804 = vpop.f32.mrb[0].mxu0
    %v4805 = vadd.f32 %v4627, %v4804
    %v4806 = vpop.f32.mrb[0].mxu0
    %v4807 = vadd.f32 %v4632, %v4806
    %v4808 = vpop.f32.mrb[0].mxu0
    %v4809 = vadd.f32 %v4632, %v4808
    %4810 = vmatprep.mubr.bf16.mxu0 0
    %4811 = vmatmul.mubr.bf16.gmra.mrb[0].mxu0 %v4727
    %v4812 = vpop.f32.mrb[0].mxu0
    %v4813 = vadd.f32 %v4637, %v4812
    %v4814 = vpop.f32.mrb[0].mxu0
    %v4815 = vadd.f32 %v4637, %v4814
    %v4816 = vpop.f32.mrb[0].mxu0
    %v4817 = vadd.f32 %v4642, %v4816
    %v4818 = vpop.f32.mrb[0].mxu0
    %v4819 = vadd.f32 %v4642, %v4818
    %4820 = vmatprep.mubr.bf16.mxu0 0
    %4821 = vmatmul.mubr.bf16.gmra.mrb[0].mxu0 %v4730
    %v4822 = vpop.f32.mrb[0].mxu0
    %v4823 = vadd.f32 %v4647, %v4822
    %v4824 = vpop.f32.mrb[0].mxu0
    %v4825 = vadd.f32 %v4647, %v4824
    %v4826 = vpop.f32.mrb[0].mxu0
    %v4827 = vadd.f32 %v4652, %v4826
    %v4828 = vpop.f32.mrb[0].mxu0
    %v4829 = vadd.f32 %v4652, %v4828
    %4830 = vmatprep.mubr.bf16.mxu0 0
    %4831 = vmatmul.mubr.bf16.gmra.mrb[0].mxu0 %v4733
    %v4832 = vpop.f32.mrb[0].mxu0
    %v4833 = vadd.f32 %v4657, %v4832
    %v4834 = vpop.f32.mrb[0].mxu0
    %v4835 = vadd.f32 %v4657, %v4834
    %v4836 = vpop.f32.mrb[0].mxu0
    %v4837 = vadd.f32 %v4662, %v4836
    %v4838 = vpop.f32.mrb[0].mxu0
    %v4839 = vadd.f32 %v4662, %v4838
    %4840 = vmatprep.mubr.bf16.mxu0 0
    %4841 = vmatmul.mubr.bf16.gmra.mrb[0].mxu0 %v4736
    %v4842 = vpop.f32.mrb[0].mxu0
    %v4843 = vadd.f32 %v4667, %v4842
    %v4844 = vpop.f32.mrb[0].mxu0
    %v4845 = vadd.f32 %v4667, %v4844
    %v4846 = vpop.f32.mrb[0].mxu0
    %v4847 = vadd.f32 %v4672, %v4846
    %v4848 = vpop.f32.mrb[0].mxu0
    %v4849 = vadd.f32 %v4672, %v4848
    %4850 = vdwg.mxu0
    %4851 = vmatprep.subr.bf16.mxu0 %v4569
    %4852 = vmatpush1.bf16.msra.mxu0 %v4568
    %4853 = vmatprep.subr.bf16.mxu0 %v4573
    %4854 = vmatpush1.bf16.msra.mxu0 %v4572
    %4855 = vmatprep.subr.bf16.mxu0 %v4577
    %4856 = vmatpush1.bf16.msra.mxu0 %v4576
    %4857 = vmatprep.subr.bf16.mxu0 0
    %4858 = vmatpush1.bf16.msra.mxu0 0
    %4859 = vmatprep.subr.bf16.mxu0 0
    %4860 = vmatpush1.bf16.msra.mxu0 0
    %4861 = vmatprep.subr.bf16.mxu0 0
    %4862 = vmatpush1.bf16.msra.mxu0 0
    %4863 = vmatprep.subr.bf16.mxu0 0
    %4864 = vmatpush1.bf16.msra.mxu0 0
    %4865 = vmatprep.subr.bf16.mxu0 0
    %4866 = vmatpush1.bf16.msra.mxu0 0
    %4867 = vmatprep.subr.bf16.mxu0 0
    %4868 = vmatpush1.bf16.msra.mxu0 0
    %4869 = vmatprep.subr.bf16.mxu0 0
    %4870 = vmatpush1.bf16.msra.mxu0 0
    %4871 = vmatprep.subr.bf16.mxu0 0
    %4872 = vmatpush1.bf16.msra.mxu0 0
    %4873 = vmatprep.subr.bf16.mxu0 0
    %4874 = vmatpush1.bf16.msra.mxu0 0
    %4875 = vmatprep.subr.bf16.mxu0 0
    %4876 = vmatpush1.bf16.msra.mxu0 0
    %4877 = vmatprep.subr.bf16.mxu0 0
    %4878 = vmatpush1.bf16.msra.mxu0 0
    %4879 = vmatprep.subr.bf16.mxu0 0
    %4880 = vmatpush1.bf16.msra.mxu0 0
    %4881 = vmatprep.subr.bf16.mxu0 0
    %4882 = vmatpush1.bf16.msra.mxu0 0
    %4883 = vmatprep.mubr.bf16.mxu0 0
    %4884 = vmatmul.mubr.bf16.gmra.mrb[0].mxu0 %v4715
    %v4885 = vpop.f32.mrb[0].mxu0
    %v4886 = vadd.f32 %v4597, %v4885
    %v4887 = vpop.f32.mrb[0].mxu0
    %v4888 = vadd.f32 %v4597, %v4887
    %v4889 = vpop.f32.mrb[0].mxu0
    %v4890 = vadd.f32 %v4602, %v4889
    %v4891 = vpop.f32.mrb[0].mxu0
    %v4892 = vadd.f32 %v4602, %v4891
    %4893 = vmatprep.mubr.bf16.mxu0 0
    %4894 = vmatmul.mubr.bf16.gmra.mrb[0].mxu0 %v4718
    %v4895 = vpop.f32.mrb[0].mxu0
    %v4896 = vadd.f32 %v4607, %v4895
    %v4897 = vpop.f32.mrb[0].mxu0
    %v4898 = vadd.f32 %v4607, %v4897
    %v4899 = vpop.f32.mrb[0].mxu0
    %v4900 = vadd.f32 %v4612, %v4899
    %v4901 = vpop.f32.mrb[0].mxu0
    %v4902 = vadd.f32 %v4612, %v4901
    %4903 = vmatprep.mubr.bf16.mxu0 0
    %4904 = vmatmul.mubr.bf16.gmra.mrb[0].mxu0 %v4721
    %v4905 = vpop.f32.mrb[0].mxu0
    %v4906 = vadd.f32 %v4617, %v4905
    %v4907 = vpop.f32.mrb[0].mxu0
    %v4908 = vadd.f32 %v4617, %v4907
    %v4909 = vpop.f32.mrb[0].mxu0
    %v4910 = vadd.f32 %v4622, %v4909
    %v4911 = vpop.f32.mrb[0].mxu0
    %v4912 = vadd.f32 %v4622, %v4911
    %4913 = vmatprep.mubr.bf16.mxu0 0
    %4914 = vmatmul.mubr.bf16.gmra.mrb[0].mxu0 %v4724
    %v4915 = vpop.f32.mrb[0].mxu0
    %v4916 = vadd.f32 %v4627, %v4915
    %v4917 = vpop.f32.mrb[0].mxu0
    %v4918 = vadd.f32 %v4627, %v4917
    %v4919 = vpop.f32.mrb[0].mxu0
    %v4920 = vadd.f32 %v4632, %v4919
    %v4921 = vpop.f32.mrb[0].mxu0
    %v4922 = vadd.f32 %v4632, %v4921
    %4923 = vmatprep.mubr.bf16.mxu0 0
    %4924 = vmatmul.mubr.bf16.gmra.mrb[0].mxu0 %v4727
    %v4925 = vpop.f32.mrb[0].mxu0
    %v4926 = vadd.f32 %v4637, %v4925
    %v4927 = vpop.f32.mrb[0].mxu0
    %v4928 = vadd.f32 %v4637, %v4927
    %v4929 = vpop.f32.mrb[0].mxu0
    %v4930 = vadd.f32 %v4642, %v4929
    %v4931 = vpop.f32.mrb[0].mxu0
    %v4932 = vadd.f32 %v4642, %v4931
    %4933 = vmatprep.mubr.bf16.mxu0 0
    %4934 = vmatmul.mubr.bf16.gmra.mrb[0].mxu0 %v4730
    %v4935 = vpop.f32.mrb[0].mxu0
    %v4936 = vadd.f32 %v4647, %v4935
    %v4937 = vpop.f32.mrb[0].mxu0
    %v4938 = vadd.f32 %v4647, %v4937
    %v4939 = vpop.f32.mrb[0].mxu0
    %v4940 = vadd.f32 %v4652, %v4939
    %v4941 = vpop.f32.mrb[0].mxu0
    %v4942 = vadd.f32 %v4652, %v4941
    %4943 = vmatprep.mubr.bf16.mxu0 0
    %4944 = vmatmul.mubr.bf16.gmra.mrb[0].mxu0 %v4733
    %v4945 = vpop.f32.mrb[0].mxu0
    %v4946 = vadd.f32 %v4657, %v4945
    %v4947 = vpop.f32.mrb[0].mxu0
    %v4948 = vadd.f32 %v4657, %v4947
    %v4949 = vpop.f32.mrb[0].mxu0
    %v4950 = vadd.f32 %v4662, %v4949
    %v4951 = vpop.f32.mrb[0].mxu0
    %v4952 = vadd.f32 %v4662, %v4951
    %4953 = vmatprep.mubr.bf16.mxu0 0
    %4954 = vmatmul.mubr.bf16.gmra.mrb[0].mxu0 %v4736
    %v4955 = vpop.f32.mrb[0].mxu0
    %v4956 = vadd.f32 %v4667, %v4955
    %v4957 = vpop.f32.mrb[0].mxu0
    %v4958 = vadd.f32 %v4667, %v4957
    %v4959 = vpop.f32.mrb[0].mxu0
    %v4960 = vadd.f32 %v4672, %v4959
    %v4961 = vpop.f32.mrb[0].mxu0
    %v4962 = vadd.f32 %v4672, %v4961
    %4963 = vdwg.mxu0
    %v4964 = vxor.u32 %v4773, 2147483648
    %v4965 = vxor.u32 %v4775, 2147483648
    %v4966 = vxor.u32 %v4886, 2147483648
    %v4967 = vxor.u32 %v4888, 2147483648
    %v4968 = vxor.u32 %v4777, 2147483648
    %v4969 = vxor.u32 %v4779, 2147483648
    %v4970 = vxor.u32 %v4890, 2147483648
    %v4971 = vxor.u32 %v4892, 2147483648
    %v4972 = vxor.u32 %v4783, 2147483648
    %v4973 = vxor.u32 %v4785, 2147483648
    %v4974 = vxor.u32 %v4896, 2147483648
    %v4975 = vxor.u32 %v4898, 2147483648
    %v4976 = vxor.u32 %v4787, 2147483648
    %v4977 = vxor.u32 %v4789, 2147483648
    %v4978 = vxor.u32 %v4900, 2147483648
    %v4979 = vxor.u32 %v4902, 2147483648
    %v4980 = vxor.u32 %v4793, 2147483648
    %v4981 = vxor.u32 %v4795, 2147483648
    %v4982 = vxor.u32 %v4906, 2147483648
    %v4983 = vxor.u32 %v4908, 2147483648
    %v4984 = vxor.u32 %v4797, 2147483648
    %v4985 = vxor.u32 %v4799, 2147483648
    %v4986 = vxor.u32 %v4910, 2147483648
    %v4987 = vxor.u32 %v4912, 2147483648
    %v4988 = vxor.u32 %v4803, 2147483648
    %v4989 = vxor.u32 %v4805, 2147483648
    %v4990 = vxor.u32 %v4916, 2147483648
    %v4991 = vxor.u32 %v4918, 2147483648
    %v4992 = vxor.u32 %v4807, 2147483648
    %v4993 = vxor.u32 %v4809, 2147483648
    %v4994 = vxor.u32 %v4920, 2147483648
    %v4995 = vxor.u32 %v4922, 2147483648
    %v4996 = vxor.u32 %v4813, 2147483648
    %v4997 = vxor.u32 %v4815, 2147483648
    %v4998 = vxor.u32 %v4926, 2147483648
    %v4999 = vxor.u32 %v4928, 2147483648
    %v5000 = vxor.u32 %v4817, 2147483648
    %v5001 = vxor.u32 %v4819, 2147483648
    %v5002 = vxor.u32 %v4930, 2147483648
    %v5003 = vxor.u32 %v4932, 2147483648
    %v5004 = vxor.u32 %v4823, 2147483648
    %v5005 = vxor.u32 %v4825, 2147483648
    %v5006 = vxor.u32 %v4936, 2147483648
    %v5007 = vxor.u32 %v4938, 2147483648
    %v5008 = vxor.u32 %v4827, 2147483648
    %v5009 = vxor.u32 %v4829, 2147483648
    %v5010 = vxor.u32 %v4940, 2147483648
    %v5011 = vxor.u32 %v4942, 2147483648
    %v5012 = vmul.f32 %v4964, 1.442695
    %v5013 = vpow.pop %v5012
    %v5014 = vmul.f32 %v4965, 1.442695
    %v5015 = vpow.pop %v5014
    %v5016 = vmul.f32 %v4966, 1.442695
    %v5017 = vpow.pop %v5016
    %v5018 = vmul.f32 %v4967, 1.442695
    %v5019 = vpow.pop %v5018
    %v5020 = vmul.f32 %v4968, 1.442695
    %v5021 = vpow.pop %v5020
    %v5022 = vmul.f32 %v4969, 1.442695
    %v5023 = vpow.pop %v5022
    %v5024 = vmul.f32 %v4970, 1.442695
    %v5025 = vpow.pop %v5024
    %v5026 = vmul.f32 %v4971, 1.442695
    %v5027 = vpow.pop %v5026
    %v5028 = vmul.f32 %v4972, 1.442695
    %v5029 = vpow.pop %v5028
    %v5030 = vmul.f32 %v4973, 1.442695
    %v5031 = vpow.pop %v5030
    %v5032 = vmul.f32 %v4974, 1.442695
    %v5033 = vpow.pop %v5032
    %v5034 = vmul.f32 %v4975, 1.442695
    %v5035 = vpow.pop %v5034
    %v5036 = vmul.f32 %v4976, 1.442695
    %v5037 = vpow.pop %v5036
    %v5038 = vmul.f32 %v4977, 1.442695
    %v5039 = vpow.pop %v5038
    %v5040 = vmul.f32 %v4978, 1.442695
    %v5041 = vpow.pop %v5040
    %v5042 = vmul.f32 %v4979, 1.442695
    %v5043 = vpow.pop %v5042
    %v5044 = vmul.f32 %v4980, 1.442695
    %v5045 = vpow.pop %v5044
    %v5046 = vmul.f32 %v4981, 1.442695
    %v5047 = vpow.pop %v5046
    %v5048 = vmul.f32 %v4982, 1.442695
    %v5049 = vpow.pop %v5048
    %v5050 = vmul.f32 %v4983, 1.442695
    %v5051 = vpow.pop %v5050
    %v5052 = vmul.f32 %v4984, 1.442695
    %v5053 = vpow.pop %v5052
    %v5054 = vmul.f32 %v4985, 1.442695
    %v5055 = vpow.pop %v5054
    %v5056 = vmul.f32 %v4986, 1.442695
    %v5057 = vpow.pop %v5056
    %v5058 = vmul.f32 %v4987, 1.442695
    %v5059 = vpow.pop %v5058
    %v5060 = vmul.f32 %v4988, 1.442695
    %v5061 = vpow.pop %v5060
    %v5062 = vmul.f32 %v4989, 1.442695
    %v5063 = vpow.pop %v5062
    %v5064 = vmul.f32 %v4990, 1.442695
    %v5065 = vpow.pop %v5064
    %v5066 = vmul.f32 %v4991, 1.442695
    %v5067 = vpow.pop %v5066
    %v5068 = vmul.f32 %v4992, 1.442695
    %v5069 = vpow.pop %v5068
    %v5070 = vmul.f32 %v4993, 1.442695
    %v5071 = vpow.pop %v5070
    %v5072 = vmul.f32 %v4994, 1.442695
    %v5073 = vpow.pop %v5072
    %v5074 = vmul.f32 %v4995, 1.442695
    %v5075 = vpow.pop %v5074
    %v5076 = vmul.f32 %v4996, 1.442695
    %v5077 = vpow.pop %v5076
    %v5078 = vmul.f32 %v4997, 1.442695
    %v5079 = vpow.pop %v5078
    %v5080 = vmul.f32 %v4998, 1.442695
    %v5081 = vpow.pop %v5080
    %v5082 = vmul.f32 %v4999, 1.442695
    %v5083 = vpow.pop %v5082
    %v5084 = vmul.f32 %v5000, 1.442695
    %v5085 = vpow.pop %v5084
    %v5086 = vmul.f32 %v5001, 1.442695
    %v5087 = vpow.pop %v5086
    %v5088 = vmul.f32 %v5002, 1.442695
    %v5089 = vpow.pop %v5088
    %v5090 = vmul.f32 %v5003, 1.442695
    %v5091 = vpow.pop %v5090
    %v5092 = vmul.f32 %v5004, 1.442695
    %v5093 = vpow.pop %v5092
    %v5094 = vmul.f32 %v5005, 1.442695
    %v5095 = vpow.pop %v5094
    %v5096 = vmul.f32 %v5006, 1.442695
    %v5097 = vpow.pop %v5096
    %v5098 = vmul.f32 %v5007, 1.442695
    %v5099 = vpow.pop %v5098
    %v5100 = vmul.f32 %v5008, 1.442695
    %v5101 = vpow.pop %v5100
    %v5102 = vmul.f32 %v5009, 1.442695
    %v5103 = vpow.pop %v5102
    %v5104 = vmul.f32 %v5010, 1.442695
    %v5105 = vpow.pop %v5104
    %v5106 = vmul.f32 %v5011, 1.442695
    %v5107 = vpow.pop %v5106
    %v5108 = vadd.f32 %v5013, 1.0
    %v5109 = vadd.f32 %v5015, 1.0
    %v5110 = vadd.f32 %v5017, 1.0
    %v5111 = vadd.f32 %v5019, 1.0
    %v5112 = vadd.f32 %v5021, 1.0
    %v5113 = vadd.f32 %v5023, 1.0
    %v5114 = vadd.f32 %v5025, 1.0
    %v5115 = vadd.f32 %v5027, 1.0
    %v5116 = vadd.f32 %v5029, 1.0
    %v5117 = vadd.f32 %v5031, 1.0
    %v5118 = vadd.f32 %v5033, 1.0
    %v5119 = vadd.f32 %v5035, 1.0
    %v5120 = vadd.f32 %v5037, 1.0
    %v5121 = vadd.f32 %v5039, 1.0
    %v5122 = vadd.f32 %v5041, 1.0
    %v5123 = vadd.f32 %v5043, 1.0
    %v5124 = vadd.f32 %v5045, 1.0
    %v5125 = vadd.f32 %v5047, 1.0
    %v5126 = vadd.f32 %v5049, 1.0
    %v5127 = vadd.f32 %v5051, 1.0
    %v5128 = vadd.f32 %v5053, 1.0
    %v5129 = vadd.f32 %v5055, 1.0
    %v5130 = vadd.f32 %v5057, 1.0
    %v5131 = vadd.f32 %v5059, 1.0
    %v5132 = vadd.f32 %v5061, 1.0
    %v5133 = vadd.f32 %v5063, 1.0
    %v5134 = vadd.f32 %v5065, 1.0
    %v5135 = vadd.f32 %v5067, 1.0
    %v5136 = vadd.f32 %v5069, 1.0
    %v5137 = vadd.f32 %v5071, 1.0
    %v5138 = vadd.f32 %v5073, 1.0
    %v5139 = vadd.f32 %v5075, 1.0
    %v5140 = vadd.f32 %v5077, 1.0
    %v5141 = vadd.f32 %v5079, 1.0
    %v5142 = vadd.f32 %v5081, 1.0
    %v5143 = vadd.f32 %v5083, 1.0
    %v5144 = vadd.f32 %v5085, 1.0
    %v5145 = vadd.f32 %v5087, 1.0
    %v5146 = vadd.f32 %v5089, 1.0
    %v5147 = vadd.f32 %v5091, 1.0
    %v5148 = vadd.f32 %v5093, 1.0
    %v5149 = vadd.f32 %v5095, 1.0
    %v5150 = vadd.f32 %v5097, 1.0
    %v5151 = vadd.f32 %v5099, 1.0
    %v5152 = vadd.f32 %v5101, 1.0
    %v5153 = vadd.f32 %v5103, 1.0
    %v5154 = vadd.f32 %v5105, 1.0
    %v5155 = vadd.f32 %v5107, 1.0
    %v5156 = vrcp.pop %v5108
    %v5157 = vmul.f32 1.0, %v5156
    %v5158 = vrcp.pop %v5109
    %v5159 = vmul.f32 1.0, %v5158
    %v5160 = vrcp.pop %v5110
    %v5161 = vmul.f32 1.0, %v5160
    %v5162 = vrcp.pop %v5111
    %v5163 = vmul.f32 1.0, %v5162
    %v5164 = vrcp.pop %v5112
    %v5165 = vmul.f32 1.0, %v5164
    %v5166 = vrcp.pop %v5113
    %v5167 = vmul.f32 1.0, %v5166
    %v5168 = vrcp.pop %v5114
    %v5169 = vmul.f32 1.0, %v5168
    %v5170 = vrcp.pop %v5115
    %v5171 = vmul.f32 1.0, %v5170
    %v5172 = vrcp.pop %v5116
    %v5173 = vmul.f32 1.0, %v5172
    %v5174 = vrcp.pop %v5117
    %v5175 = vmul.f32 1.0, %v5174
    %v5176 = vrcp.pop %v5118
    %v5177 = vmul.f32 1.0, %v5176
    %v5178 = vrcp.pop %v5119
    %v5179 = vmul.f32 1.0, %v5178
    %v5180 = vrcp.pop %v5120
    %v5181 = vmul.f32 1.0, %v5180
    %v5182 = vrcp.pop %v5121
    %v5183 = vmul.f32 1.0, %v5182
    %v5184 = vrcp.pop %v5122
    %v5185 = vmul.f32 1.0, %v5184
    %v5186 = vrcp.pop %v5123
    %v5187 = vmul.f32 1.0, %v5186
    %v5188 = vrcp.pop %v5124
    %v5189 = vmul.f32 1.0, %v5188
    %v5190 = vrcp.pop %v5125
    %v5191 = vmul.f32 1.0, %v5190
    %v5192 = vrcp.pop %v5126
    %v5193 = vmul.f32 1.0, %v5192
    %v5194 = vrcp.pop %v5127
    %v5195 = vmul.f32 1.0, %v5194
    %v5196 = vrcp.pop %v5128
    %v5197 = vmul.f32 1.0, %v5196
    %v5198 = vrcp.pop %v5129
    %v5199 = vmul.f32 1.0, %v5198
    %v5200 = vrcp.pop %v5130
    %v5201 = vmul.f32 1.0, %v5200
    %v5202 = vrcp.pop %v5131
    %v5203 = vmul.f32 1.0, %v5202
    %v5204 = vrcp.pop %v5132
    %v5205 = vmul.f32 1.0, %v5204
    %v5206 = vrcp.pop %v5133
    %v5207 = vmul.f32 1.0, %v5206
    %v5208 = vrcp.pop %v5134
    %v5209 = vmul.f32 1.0, %v5208
    %v5210 = vrcp.pop %v5135
    %v5211 = vmul.f32 1.0, %v5210
    %v5212 = vrcp.pop %v5136
    %v5213 = vmul.f32 1.0, %v5212
    %v5214 = vrcp.pop %v5137
    %v5215 = vmul.f32 1.0, %v5214
    %v5216 = vrcp.pop %v5138
    %v5217 = vmul.f32 1.0, %v5216
    %v5218 = vrcp.pop %v5139
    %v5219 = vmul.f32 1.0, %v5218
    %v5220 = vrcp.pop %v5140
    %v5221 = vmul.f32 1.0, %v5220
    %v5222 = vrcp.pop %v5141
    %v5223 = vmul.f32 1.0, %v5222
    %v5224 = vrcp.pop %v5142
    %v5225 = vmul.f32 1.0, %v5224
    %v5226 = vrcp.pop %v5143
    %v5227 = vmul.f32 1.0, %v5226
    %v5228 = vrcp.pop %v5144
    %v5229 = vmul.f32 1.0, %v5228
    %v5230 = vrcp.pop %v5145
    %v5231 = vmul.f32 1.0, %v5230
    %v5232 = vrcp.pop %v5146
    %v5233 = vmul.f32 1.0, %v5232
    %v5234 = vrcp.pop %v5147
    %v5235 = vmul.f32 1.0, %v5234
    %v5236 = vrcp.pop %v5148
    %v5237 = vmul.f32 1.0, %v5236
    %v5238 = vrcp.pop %v5149
    %v5239 = vmul.f32 1.0, %v5238
    %v5240 = vrcp.pop %v5150
    %v5241 = vmul.f32 1.0, %v5240
    %v5242 = vrcp.pop %v5151
    %v5243 = vmul.f32 1.0, %v5242
    %v5244 = vrcp.pop %v5152
    %v5245 = vmul.f32 1.0, %v5244
    %v5246 = vrcp.pop %v5153
    %v5247 = vmul.f32 1.0, %v5246
    %v5248 = vrcp.pop %v5154
    %v5249 = vmul.f32 1.0, %v5248
    %v5250 = vrcp.pop %v5155
    %v5251 = vmul.f32 1.0, %v5250
    %v5252 = vtanh.pop %v4833
    %v5253 = vtanh.pop %v4835
    %v5254 = vtanh.pop %v4946
    %v5255 = vtanh.pop %v4948
    %v5256 = vtanh.pop %v4837
    %v5257 = vtanh.pop %v4839
    %v5258 = vtanh.pop %v4950
    %v5259 = vtanh.pop %v4952
    %v5260 = vtanh.pop %v4843
    %v5261 = vtanh.pop %v4845
    %v5262 = vtanh.pop %v4956
    %v5263 = vtanh.pop %v4958
    %v5264 = vtanh.pop %v4847
    %v5265 = vtanh.pop %v4849
    %v5266 = vtanh.pop %v4960
    %v5267 = vtanh.pop %v4962
    %v5268 = vld [vmem:[#allocation3] sm:$0xff]
    %v5269 = vld [vmem:[#allocation3 + $0x8] sm:$0xff]
    %v5270 = vld [vmem:[#allocation3 + $0x10] sm:$0xff]
    %v5271 = vld [vmem:[#allocation3 + $0x18] sm:$0xff]
    %v5272 = vld [vmem:[#allocation3 + $0x20] sm:$0xff]
    %v5273 = vld [vmem:[#allocation3 + $0x28] sm:$0xff]
    %v5274 = vld [vmem:[#allocation3 + $0x30] sm:$0xff]
    %v5275 = vld [vmem:[#allocation3 + $0x38] sm:$0xff]
    %v5276 = vld [vmem:[#allocation3 + $0x40] sm:$0xff]
    %v5277 = vld [vmem:[#allocation3 + $0x48] sm:$0xff]
    %v5278 = vld [vmem:[#allocation3 + $0x50] sm:$0xff]
    %v5279 = vld [vmem:[#allocation3 + $0x58] sm:$0xff]
    %v5280 = vld [vmem:[#allocation3 + $0x60] sm:$0xff]
    %v5281 = vld [vmem:[#allocation3 + $0x68] sm:$0xff]
    %v5282 = vld [vmem:[#allocation3 + $0x70] sm:$0xff]
    %v5283 = vld [vmem:[#allocation3 + $0x78] sm:$0xff]
    %v5284 = vmul.f32 %v5189, %v5268
    %v5285 = vmul.f32 %v5191, %v5269
    %v5286 = vmul.f32 %v5193, %v5270
    %v5287 = vmul.f32 %v5195, %v5271
    %v5288 = vmul.f32 %v5197, %v5272
    %v5289 = vmul.f32 %v5199, %v5273
    %v5290 = vmul.f32 %v5201, %v5274
    %v5291 = vmul.f32 %v5203, %v5275
    %v5292 = vmul.f32 %v5205, %v5276
    %v5293 = vmul.f32 %v5207, %v5277
    %v5294 = vmul.f32 %v5209, %v5278
    %v5295 = vmul.f32 %v5211, %v5279
    %v5296 = vmul.f32 %v5213, %v5280
    %v5297 = vmul.f32 %v5215, %v5281
    %v5298 = vmul.f32 %v5217, %v5282
    %v5299 = vmul.f32 %v5219, %v5283
    %v5300 = vmul.f32 %v5157, %v5252
    %v5301 = vmul.f32 %v5159, %v5253
    %v5302 = vmul.f32 %v5161, %v5254
    %v5303 = vmul.f32 %v5163, %v5255
    %v5304 = vmul.f32 %v5165, %v5256
    %v5305 = vmul.f32 %v5167, %v5257
    %v5306 = vmul.f32 %v5169, %v5258
    %v5307 = vmul.f32 %v5171, %v5259
    %v5308 = vmul.f32 %v5173, %v5260
    %v5309 = vmul.f32 %v5175, %v5261
    %v5310 = vmul.f32 %v5177, %v5262
    %v5311 = vmul.f32 %v5179, %v5263
    %v5312 = vmul.f32 %v5181, %v5264
    %v5313 = vmul.f32 %v5183, %v5265
    %v5314 = vmul.f32 %v5185, %v5266
    %v5315 = vmul.f32 %v5187, %v5267
    %v5316 = vadd.f32 %v5284, %v5300
    %v5317 = vadd.f32 %v5285, %v5301
    %v5318 = vadd.f32 %v5286, %v5302
    %v5319 = vadd.f32 %v5287, %v5303
    %v5320 = vadd.f32 %v5288, %v5304
    %v5321 = vadd.f32 %v5289, %v5305
    %v5322 = vadd.f32 %v5290, %v5306
    %v5323 = vadd.f32 %v5291, %v5307
    %v5324 = vadd.f32 %v5292, %v5308
    %v5325 = vadd.f32 %v5293, %v5309
    %v5326 = vadd.f32 %v5294, %v5310
    %v5327 = vadd.f32 %v5295, %v5311
    %v5328 = vadd.f32 %v5296, %v5312
    %v5329 = vadd.f32 %v5297, %v5313
    %v5330 = vadd.f32 %v5298, %v5314
    %v5331 = vadd.f32 %v5299, %v5315
    %v5332 = vtanh.pop %v5316
    %v5333 = vtanh.pop %v5317
    %v5334 = vtanh.pop %v5318
    %v5335 = vtanh.pop %v5319
    %v5336 = vtanh.pop %v5320
    %v5337 = vtanh.pop %v5321
    %v5338 = vtanh.pop %v5322
    %v5339 = vtanh.pop %v5323
    %v5340 = vtanh.pop %v5324
    %v5341 = vtanh.pop %v5325
    %v5342 = vtanh.pop %v5326
    %v5343 = vtanh.pop %v5327
    %v5344 = vtanh.pop %v5328
    %v5345 = vtanh.pop %v5329
    %v5346 = vtanh.pop %v5330
    %v5347 = vtanh.pop %v5331
    %v5348 = vmul.f32 %v5221, %v5332
    %v5349 = vmul.f32 %v5223, %v5333
    %v5350 = vmul.f32 %v5225, %v5334
    %v5351 = vmul.f32 %v5227, %v5335
    %v5352 = vmul.f32 %v5229, %v5336
    %v5353 = vmul.f32 %v5231, %v5337
    %v5354 = vmul.f32 %v5233, %v5338
    %v5355 = vmul.f32 %v5235, %v5339
    %v5356 = vmul.f32 %v5237, %v5340
    %v5357 = vmul.f32 %v5239, %v5341
    %v5358 = vmul.f32 %v5241, %v5342
    %v5359 = vmul.f32 %v5243, %v5343
    %v5360 = vmul.f32 %v5245, %v5344
    %v5361 = vmul.f32 %v5247, %v5345
    %v5362 = vmul.f32 %v5249, %v5346
    %v5363 = vmul.f32 %v5251, %v5347
    %5364 = vst [vmem:[#allocation3] sm:$0xff] %v5316
    %5365 = vst [vmem:[#allocation3 + $0x8] sm:$0xff] %v5317
    %5366 = vst [vmem:[#allocation3 + $0x10] sm:$0xff] %v5318
    %5367 = vst [vmem:[#allocation3 + $0x18] sm:$0xff] %v5319
    %5368 = vst [vmem:[#allocation3 + $0x20] sm:$0xff] %v5320
    %5369 = vst [vmem:[#allocation3 + $0x28] sm:$0xff] %v5321
    %5370 = vst [vmem:[#allocation3 + $0x30] sm:$0xff] %v5322
    %5371 = vst [vmem:[#allocation3 + $0x38] sm:$0xff] %v5323
    %5372 = vst [vmem:[#allocation3 + $0x40] sm:$0xff] %v5324
    %5373 = vst [vmem:[#allocation3 + $0x48] sm:$0xff] %v5325
    %5374 = vst [vmem:[#allocation3 + $0x50] sm:$0xff] %v5326
    %5375 = vst [vmem:[#allocation3 + $0x58] sm:$0xff] %v5327
    %5376 = vst [vmem:[#allocation3 + $0x60] sm:$0xff] %v5328
    %5377 = vst [vmem:[#allocation3 + $0x68] sm:$0xff] %v5329
    %5378 = vst [vmem:[#allocation3 + $0x70] sm:$0xff] %v5330
    %5379 = vst [vmem:[#allocation3 + $0x78] sm:$0xff] %v5331
    %v5380 = vpack.c.bf16 %v5352, %v5348
    %v5381 = vpack.c.bf16 %v5353, %v5349
    %v5382 = vpack.c.bf16 %v5354, %v5350
    %v5383 = vpack.c.bf16 %v5355, %v5351
    %v5384 = vpack.c.bf16 %v5360, %v5356
    %v5385 = vpack.c.bf16 %v5361, %v5357
    %v5386 = vpack.c.bf16 %v5362, %v5358
    %v5387 = vpack.c.bf16 %v5363, %v5359
    %5388 = vst [vmem:[#allocation2 + $0x20] sm:$0xff] %v5380
    %5389 = vst [vmem:[#allocation2 + $0x28] sm:$0xff] %v5381
    %5390 = vst [vmem:[#allocation2 + $0x30] sm:$0xff] %v5382
    %5391 = vst [vmem:[#allocation2 + $0x38] sm:$0xff] %v5383
    %5392 = vst [vmem:[#allocation2 + $0x40] sm:$0xff] %v5384
    %5393 = vst [vmem:[#allocation2 + $0x48] sm:$0xff] %v5385
    %5394 = vst [vmem:[#allocation2 + $0x50] sm:$0xff] %v5386
    %5395 = vst [vmem:[#allocation2 + $0x58] sm:$0xff] %v5387
    %s5396 = scalar_lea.vmem [#allocation7], 640
    %5397 = vst [vmem:[%s5396] sm:$0xff] %v5348
    %5398 = vst [vmem:[%s5396 + $0x8] sm:$0xff] %v5349
    %5399 = vst [vmem:[%s5396 + $0x10] sm:$0xff] %v5350
    %5400 = vst [vmem:[%s5396 + $0x18] sm:$0xff] %v5351
    %5401 = vst [vmem:[%s5396 + $0x20] sm:$0xff] %v5352
    %5402 = vst [vmem:[%s5396 + $0x28] sm:$0xff] %v5353
    %5403 = vst [vmem:[%s5396 + $0x30] sm:$0xff] %v5354
    %5404 = vst [vmem:[%s5396 + $0x38] sm:$0xff] %v5355
    %5405 = vst [vmem:[%s5396 + $0x40] sm:$0xff] %v5356
    %5406 = vst [vmem:[%s5396 + $0x48] sm:$0xff] %v5357
    %5407 = vst [vmem:[%s5396 + $0x50] sm:$0xff] %v5358
    %5408 = vst [vmem:[%s5396 + $0x58] sm:$0xff] %v5359
    %5409 = vst [vmem:[%s5396 + $0x60] sm:$0xff] %v5360
    %5410 = vst [vmem:[%s5396 + $0x68] sm:$0xff] %v5361
    %5411 = vst [vmem:[%s5396 + $0x70] sm:$0xff] %v5362
    %5412 = vst [vmem:[%s5396 + $0x78] sm:$0xff] %v5363
    %s5413 = scalar_lea.vmem [#allocation4], 192
    %v5414 = vld [vmem:[%s5413] sm:$0xff]
    %v5415 = vld [vmem:[%s5413 + $0x8] sm:$0xff]
    %v5416 = vld [vmem:[%s5413 + $0x10] sm:$0xff]
    %v5417 = vld [vmem:[%s5413 + $0x18] sm:$0xff]
    %v5422 = vunpack.c.l.b16 %v5414
    %v5423 = vunpack.c.h.b16 %v5414
    %v5424 = vunpack.c.l.b16 %v5415
    %v5425 = vunpack.c.h.b16 %v5415
    %v5426 = vunpack.c.l.b16 %v5416
    %v5427 = vunpack.c.h.b16 %v5416
    %v5428 = vunpack.c.l.b16 %v5417
    %v5429 = vunpack.c.h.b16 %v5417
    %v5430 = vpack.c.b16 %v5426, %v5422
    %v5431 = vpack.c.b16 %v5427, %v5423
    %v5432 = vpack.c.b16 %v5428, %v5424
    %v5433 = vpack.c.b16 %v5429, %v5425
    %5438 = vst [vmem:[#allocation2] sm:$0xff] %v5430
    %5439 = vst [vmem:[#allocation2 + $0x8] sm:$0xff] %v5431
    %5440 = vst [vmem:[#allocation2 + $0x10] sm:$0xff] %v5432
    %5441 = vst [vmem:[#allocation2 + $0x18] sm:$0xff] %v5433
    %v5442 = vld [vmem:[%s1] sm:$0xf]
    %v5443 = vld [vmem:[%s1 + $0x4] sm:$0xf]
    %v5444 = vld [vmem:[%s1 + $0x8] sm:$0xf]
    %v5445 = vld [vmem:[%s1 + $0xc] sm:$0xf]
    %v5446 = vld [vmem:[%s1 + $0x10] sm:$0xf]
    %v5447 = vld [vmem:[%s1 + $0x14] sm:$0xf]
    %v5448 = vld [vmem:[%s1 + $0x18] sm:$0xf]
    %v5449 = vld [vmem:[%s1 + $0x1c] sm:$0xf]
    %v5450 = vld [vmem:[%s1 + $0x20] sm:$0xf]
    %v5451 = vld [vmem:[%s1 + $0x24] sm:$0xf]
    %v5452 = vld [vmem:[%s1 + $0x28] sm:$0xf]
    %v5453 = vld [vmem:[%s1 + $0x2c] sm:$0xf]
    %v5454 = vld [vmem:[%s1 + $0x30] sm:$0xf]
    %v5455 = vld [vmem:[%s1 + $0x34] sm:$0xf]
    %v5456 = vld [vmem:[%s1 + $0x38] sm:$0xf]
    %v5457 = vld [vmem:[%s1 + $0x3c] sm:$0xf]
    %v5458 = vld [vmem:[#allocation2] sm:$0xff]
    %v5459 = vld [vmem:[#allocation2 + $0x8] sm:$0xff]
    %v5460 = vld [vmem:[#allocation2 + $0x10] sm:$0xff]
    %v5461 = vld [vmem:[#allocation2 + $0x18] sm:$0xff]
    %v5462 = vld [vmem:[#allocation2 + $0x20] sm:$0xff]
    %v5463 = vld [vmem:[#allocation2 + $0x28] sm:$0xff]
    %v5464 = vld [vmem:[#allocation2 + $0x30] sm:$0xff]
    %v5465 = vld [vmem:[#allocation2 + $0x38] sm:$0xff]
    %v5466 = vld [vmem:[#allocation2 + $0x40] sm:$0xff]
    %v5467 = vld [vmem:[#allocation2 + $0x48] sm:$0xff]
    %v5468 = vld [vmem:[#allocation2 + $0x50] sm:$0xff]
    %v5469 = vld [vmem:[#allocation2 + $0x58] sm:$0xff]
    %v5470 = vld [vmem:[%s2] sm:$0xff]
    %v5471 = vld [vmem:[%s2 + $0x8] sm:$0xff]
    %v5472 = vld [vmem:[%s2 + $0x10] sm:$0xff]
    %v5473 = vld [vmem:[%s2 + $0x18] sm:$0xff]
    %v5474 = vld [vmem:[%s2 + $0x20] sm:$0xff]
    %v5475 = vld [vmem:[%s2 + $0x28] sm:$0xff]
    %v5476 = vld [vmem:[%s2 + $0x30] sm:$0xff]
    %v5477 = vld [vmem:[%s2 + $0x38] sm:$0xff]
    %v5478 = vld [vmem:[%s2 + $0x40] sm:$0xff]
    %v5479 = vld [vmem:[%s2 + $0x48] sm:$0xff]
    %v5480 = vld [vmem:[%s2 + $0x50] sm:$0xff]
    %v5481 = vld [vmem:[%s2 + $0x58] sm:$0xff]
    %v5482 = vld [vmem:[%s2 + $0x60] sm:$0xff]
    %v5483 = vld [vmem:[%s2 + $0x68] sm:$0xff]
    %v5484 = vld [vmem:[%s2 + $0x70] sm:$0xff]
    %v5485 = vld [vmem:[%s2 + $0x78] sm:$0xff]
    %5487 = vset.pattern.permute.xlu0 0
    %5488 = vperm.xlu0 %5487, %v5470
    %v5489 = vpop.permute.xlu0 %5488
    %5492 = vset.pattern.permute.xlu0 0
    %5493 = vperm.xlu0 %5492, %v5471
    %v5494 = vpop.permute.xlu0 %5493
    %5497 = vset.pattern.permute.xlu0 0
    %5498 = vperm.xlu0 %5497, %v5472
    %v5499 = vpop.permute.xlu0 %5498
    %5502 = vset.pattern.permute.xlu0 0
    %5503 = vperm.xlu0 %5502, %v5473
    %v5504 = vpop.permute.xlu0 %5503
    %5507 = vset.pattern.permute.xlu0 0
    %5508 = vperm.xlu0 %5507, %v5474
    %v5509 = vpop.permute.xlu0 %5508
    %5512 = vset.pattern.permute.xlu0 0
    %5513 = vperm.xlu0 %5512, %v5475
    %v5514 = vpop.permute.xlu0 %5513
    %5517 = vset.pattern.permute.xlu0 0
    %5518 = vperm.xlu0 %5517, %v5476
    %v5519 = vpop.permute.xlu0 %5518
    %5522 = vset.pattern.permute.xlu0 0
    %5523 = vperm.xlu0 %5522, %v5477
    %v5524 = vpop.permute.xlu0 %5523
    %5527 = vset.pattern.permute.xlu0 0
    %5528 = vperm.xlu0 %5527, %v5478
    %v5529 = vpop.permute.xlu0 %5528
    %5532 = vset.pattern.permute.xlu0 0
    %5533 = vperm.xlu0 %5532, %v5479
    %v5534 = vpop.permute.xlu0 %5533
    %5537 = vset.pattern.permute.xlu0 0
    %5538 = vperm.xlu0 %5537, %v5480
    %v5539 = vpop.permute.xlu0 %5538
    %5542 = vset.pattern.permute.xlu0 0
    %5543 = vperm.xlu0 %5542, %v5481
    %v5544 = vpop.permute.xlu0 %5543
    %5547 = vset.pattern.permute.xlu0 0
    %5548 = vperm.xlu0 %5547, %v5482
    %v5549 = vpop.permute.xlu0 %5548
    %5552 = vset.pattern.permute.xlu0 0
    %5553 = vperm.xlu0 %5552, %v5483
    %v5554 = vpop.permute.xlu0 %5553
    %5557 = vset.pattern.permute.xlu0 0
    %5558 = vperm.xlu0 %5557, %v5484
    %v5559 = vpop.permute.xlu0 %5558
    %5562 = vset.pattern.permute.xlu0 0
    %5563 = vperm.xlu0 %5562, %v5485
    %v5564 = vpop.permute.xlu0 %5563
    %v5582 = vunpack.c.l.b16 %v5442
    %v5583 = vunpack.c.l.b16 %v5443
    %v5584 = vunpack.c.l.b16 %v5444
    %v5585 = vunpack.c.l.b16 %v5445
    %v5586 = vunpack.c.l.b16 %v5446
    %v5587 = vunpack.c.l.b16 %v5447
    %v5588 = vunpack.c.l.b16 %v5448
    %v5589 = vunpack.c.l.b16 %v5449
    %v5590 = vunpack.c.l.b16 %v5450
    %v5591 = vunpack.c.l.b16 %v5451
    %v5592 = vunpack.c.l.b16 %v5452
    %v5593 = vunpack.c.l.b16 %v5453
    %v5594 = vunpack.c.l.b16 %v5454
    %v5595 = vunpack.c.l.b16 %v5455
    %v5596 = vunpack.c.l.b16 %v5456
    %v5597 = vunpack.c.l.b16 %v5457
    %v5598 = vpack.c.b16 %v5583, %v5582
    %v5599 = vpack.c.b16 %v5585, %v5584
    %v5600 = vpack.c.b16 %v5587, %v5586
    %v5601 = vpack.c.b16 %v5589, %v5588
    %v5602 = vpack.c.b16 %v5591, %v5590
    %v5603 = vpack.c.b16 %v5593, %v5592
    %v5604 = vpack.c.b16 %v5595, %v5594
    %v5605 = vpack.c.b16 %v5597, %v5596
    %v5607 = vsel %vm254, %v5598, 0
    %v5610 = vsel %vm254, %v5599, 0
    %v5613 = vsel %vm254, %v5600, 0
    %v5616 = vsel %vm254, %v5601, 0
    %v5619 = vsel %vm254, %v5602, 0
    %v5622 = vsel %vm254, %v5603, 0
    %v5625 = vsel %vm254, %v5604, 0
    %v5628 = vsel %vm254, %v5605, 0
    %5630 = vmatprep.subr.bf16.mxu0 %v5459
    %5631 = vmatpush1.bf16.msra.mxu0 %v5458
    %5632 = vmatprep.subr.bf16.mxu0 %v5463
    %5633 = vmatpush1.bf16.msra.mxu0 %v5462
    %5634 = vmatprep.subr.bf16.mxu0 %v5467
    %5635 = vmatpush1.bf16.msra.mxu0 %v5466
    %5636 = vmatprep.subr.bf16.mxu0 0
    %5637 = vmatpush1.bf16.msra.mxu0 0
    %5638 = vmatprep.subr.bf16.mxu0 0
    %5639 = vmatpush1.bf16.msra.mxu0 0
    %5640 = vmatprep.subr.bf16.mxu0 0
    %5641 = vmatpush1.bf16.msra.mxu0 0
    %5642 = vmatprep.subr.bf16.mxu0 0
    %5643 = vmatpush1.bf16.msra.mxu0 0
    %5644 = vmatprep.subr.bf16.mxu0 0
    %5645 = vmatpush1.bf16.msra.mxu0 0
    %5646 = vmatprep.subr.bf16.mxu0 0
    %5647 = vmatpush1.bf16.msra.mxu0 0
    %5648 = vmatprep.subr.bf16.mxu0 0
    %5649 = vmatpush1.bf16.msra.mxu0 0
    %5650 = vmatprep.subr.bf16.mxu0 0
    %5651 = vmatpush1.bf16.msra.mxu0 0
    %5652 = vmatprep.subr.bf16.mxu0 0
    %5653 = vmatpush1.bf16.msra.mxu0 0
    %5654 = vmatprep.subr.bf16.mxu0 0
    %5655 = vmatpush1.bf16.msra.mxu0 0
    %5656 = vmatprep.subr.bf16.mxu0 0
    %5657 = vmatpush1.bf16.msra.mxu0 0
    %5658 = vmatprep.subr.bf16.mxu0 0
    %5659 = vmatpush1.bf16.msra.mxu0 0
    %5660 = vmatprep.subr.bf16.mxu0 0
    %5661 = vmatpush1.bf16.msra.mxu0 0
    %5662 = vmatprep.mubr.bf16.mxu0 0
    %5663 = vmatmul.mubr.bf16.gmra.mrb[0].mxu0 %v5607
    %v5664 = vpop.f32.mrb[0].mxu0
    %v5665 = vadd.f32 %v5489, %v5664
    %v5666 = vpop.f32.mrb[0].mxu0
    %v5667 = vadd.f32 %v5489, %v5666
    %v5668 = vpop.f32.mrb[0].mxu0
    %v5669 = vadd.f32 %v5494, %v5668
    %v5670 = vpop.f32.mrb[0].mxu0
    %v5671 = vadd.f32 %v5494, %v5670
    %5672 = vmatprep.mubr.bf16.mxu0 0
    %5673 = vmatmul.mubr.bf16.gmra.mrb[0].mxu0 %v5610
    %v5674 = vpop.f32.mrb[0].mxu0
    %v5675 = vadd.f32 %v5499, %v5674
    %v5676 = vpop.f32.mrb[0].mxu0
    %v5677 = vadd.f32 %v5499, %v5676
    %v5678 = vpop.f32.mrb[0].mxu0
    %v5679 = vadd.f32 %v5504, %v5678
    %v5680 = vpop.f32.mrb[0].mxu0
    %v5681 = vadd.f32 %v5504, %v5680
    %5682 = vmatprep.mubr.bf16.mxu0 0
    %5683 = vmatmul.mubr.bf16.gmra.mrb[0].mxu0 %v5613
    %v5684 = vpop.f32.mrb[0].mxu0
    %v5685 = vadd.f32 %v5509, %v5684
    %v5686 = vpop.f32.mrb[0].mxu0
    %v5687 = vadd.f32 %v5509, %v5686
    %v5688 = vpop.f32.mrb[0].mxu0
    %v5689 = vadd.f32 %v5514, %v5688
    %v5690 = vpop.f32.mrb[0].mxu0
    %v5691 = vadd.f32 %v5514, %v5690
    %5692 = vmatprep.mubr.bf16.mxu0 0
    %5693 = vmatmul.mubr.bf16.gmra.mrb[0].mxu0 %v5616
    %v5694 = vpop.f32.mrb[0].mxu0
    %v5695 = vadd.f32 %v5519, %v5694
    %v5696 = vpop.f32.mrb[0].mxu0
    %v5697 = vadd.f32 %v5519, %v5696
    %v5698 = vpop.f32.mrb[0].mxu0
    %v5699 = vadd.f32 %v5524, %v5698
    %v5700 = vpop.f32.mrb[0].mxu0
    %v5701 = vadd.f32 %v5524, %v5700
    %5702 = vmatprep.mubr.bf16.mxu0 0
    %5703 = vmatmul.mubr.bf16.gmra.mrb[0].mxu0 %v5619
    %v5704 = vpop.f32.mrb[0].mxu0
    %v5705 = vadd.f32 %v5529, %v5704
    %v5706 = vpop.f32.mrb[0].mxu0
    %v5707 = vadd.f32 %v5529, %v5706
    %v5708 = vpop.f32.mrb[0].mxu0
    %v5709 = vadd.f32 %v5534, %v5708
    %v5710 = vpop.f32.mrb[0].mxu0
    %v5711 = vadd.f32 %v5534, %v5710
    %5712 = vmatprep.mubr.bf16.mxu0 0
    %5713 = vmatmul.mubr.bf16.gmra.mrb[0].mxu0 %v5622
    %v5714 = vpop.f32.mrb[0].mxu0
    %v5715 = vadd.f32 %v5539, %v5714
    %v5716 = vpop.f32.mrb[0].mxu0
    %v5717 = vadd.f32 %v5539, %v5716
    %v5718 = vpop.f32.mrb[0].mxu0
    %v5719 = vadd.f32 %v5544, %v5718
    %v5720 = vpop.f32.mrb[0].mxu0
    %v5721 = vadd.f32 %v5544, %v5720
    %5722 = vmatprep.mubr.bf16.mxu0 0
    %5723 = vmatmul.mubr.bf16.gmra.mrb[0].mxu0 %v5625
    %v5724 = vpop.f32.mrb[0].mxu0
    %v5725 = vadd.f32 %v5549, %v5724
    %v5726 = vpop.f32.mrb[0].mxu0
    %v5727 = vadd.f32 %v5549, %v5726
    %v5728 = vpop.f32.mrb[0].mxu0
    %v5729 = vadd.f32 %v5554, %v5728
    %v5730 = vpop.f32.mrb[0].mxu0
    %v5731 = vadd.f32 %v5554, %v5730
    %5732 = vmatprep.mubr.bf16.mxu0 0
    %5733 = vmatmul.mubr.bf16.gmra.mrb[0].mxu0 %v5628
    %v5734 = vpop.f32.mrb[0].mxu0
    %v5735 = vadd.f32 %v5559, %v5734
    %v5736 = vpop.f32.mrb[0].mxu0
    %v5737 = vadd.f32 %v5559, %v5736
    %v5738 = vpop.f32.mrb[0].mxu0
    %v5739 = vadd.f32 %v5564, %v5738
    %v5740 = vpop.f32.mrb[0].mxu0
    %v5741 = vadd.f32 %v5564, %v5740
    %5742 = vdwg.mxu0
    %5743 = vmatprep.subr.bf16.mxu0 %v5461
    %5744 = vmatpush1.bf16.msra.mxu0 %v5460
    %5745 = vmatprep.subr.bf16.mxu0 %v5465
    %5746 = vmatpush1.bf16.msra.mxu0 %v5464
    %5747 = vmatprep.subr.bf16.mxu0 %v5469
    %5748 = vmatpush1.bf16.msra.mxu0 %v5468
    %5749 = vmatprep.subr.bf16.mxu0 0
    %5750 = vmatpush1.bf16.msra.mxu0 0
    %5751 = vmatprep.subr.bf16.mxu0 0
    %5752 = vmatpush1.bf16.msra.mxu0 0
    %5753 = vmatprep.subr.bf16.mxu0 0
    %5754 = vmatpush1.bf16.msra.mxu0 0
    %5755 = vmatprep.subr.bf16.mxu0 0
    %5756 = vmatpush1.bf16.msra.mxu0 0
    %5757 = vmatprep.subr.bf16.mxu0 0
    %5758 = vmatpush1.bf16.msra.mxu0 0
    %5759 = vmatprep.subr.bf16.mxu0 0
    %5760 = vmatpush1.bf16.msra.mxu0 0
    %5761 = vmatprep.subr.bf16.mxu0 0
    %5762 = vmatpush1.bf16.msra.mxu0 0
    %5763 = vmatprep.subr.bf16.mxu0 0
    %5764 = vmatpush1.bf16.msra.mxu0 0
    %5765 = vmatprep.subr.bf16.mxu0 0
    %5766 = vmatpush1.bf16.msra.mxu0 0
    %5767 = vmatprep.subr.bf16.mxu0 0
    %5768 = vmatpush1.bf16.msra.mxu0 0
    %5769 = vmatprep.subr.bf16.mxu0 0
    %5770 = vmatpush1.bf16.msra.mxu0 0
    %5771 = vmatprep.subr.bf16.mxu0 0
    %5772 = vmatpush1.bf16.msra.mxu0 0
    %5773 = vmatprep.subr.bf16.mxu0 0
    %5774 = vmatpush1.bf16.msra.mxu0 0
    %5775 = vmatprep.mubr.bf16.mxu0 0
    %5776 = vmatmul.mubr.bf16.gmra.mrb[0].mxu0 %v5607
    %v5777 = vpop.f32.mrb[0].mxu0
    %v5778 = vadd.f32 %v5489, %v5777
    %v5779 = vpop.f32.mrb[0].mxu0
    %v5780 = vadd.f32 %v5489, %v5779
    %v5781 = vpop.f32.mrb[0].mxu0
    %v5782 = vadd.f32 %v5494, %v5781
    %v5783 = vpop.f32.mrb[0].mxu0
    %v5784 = vadd.f32 %v5494, %v5783
    %5785 = vmatprep.mubr.bf16.mxu0 0
    %5786 = vmatmul.mubr.bf16.gmra.mrb[0].mxu0 %v5610
    %v5787 = vpop.f32.mrb[0].mxu0
    %v5788 = vadd.f32 %v5499, %v5787
    %v5789 = vpop.f32.mrb[0].mxu0
    %v5790 = vadd.f32 %v5499, %v5789
    %v5791 = vpop.f32.mrb[0].mxu0
    %v5792 = vadd.f32 %v5504, %v5791
    %v5793 = vpop.f32.mrb[0].mxu0
    %v5794 = vadd.f32 %v5504, %v5793
    %5795 = vmatprep.mubr.bf16.mxu0 0
    %5796 = vmatmul.mubr.bf16.gmra.mrb[0].mxu0 %v5613
    %v5797 = vpop.f32.mrb[0].mxu0
    %v5798 = vadd.f32 %v5509, %v5797
    %v5799 = vpop.f32.mrb[0].mxu0
    %v5800 = vadd.f32 %v5509, %v5799
    %v5801 = vpop.f32.mrb[0].mxu0
    %v5802 = vadd.f32 %v5514, %v5801
    %v5803 = vpop.f32.mrb[0].mxu0
    %v5804 = vadd.f32 %v5514, %v5803
    %5805 = vmatprep.mubr.bf16.mxu0 0
    %5806 = vmatmul.mubr.bf16.gmra.mrb[0].mxu0 %v5616
    %v5807 = vpop.f32.mrb[0].mxu0
    %v5808 = vadd.f32 %v5519, %v5807
    %v5809 = vpop.f32.mrb[0].mxu0
    %v5810 = vadd.f32 %v5519, %v5809
    %v5811 = vpop.f32.mrb[0].mxu0
    %v5812 = vadd.f32 %v5524, %v5811
    %v5813 = vpop.f32.mrb[0].mxu0
    %v5814 = vadd.f32 %v5524, %v5813
    %5815 = vmatprep.mubr.bf16.mxu0 0
    %5816 = vmatmul.mubr.bf16.gmra.mrb[0].mxu0 %v5619
    %v5817 = vpop.f32.mrb[0].mxu0
    %v5818 = vadd.f32 %v5529, %v5817
    %v5819 = vpop.f32.mrb[0].mxu0
    %v5820 = vadd.f32 %v5529, %v5819
    %v5821 = vpop.f32.mrb[0].mxu0
    %v5822 = vadd.f32 %v5534, %v5821
    %v5823 = vpop.f32.mrb[0].mxu0
    %v5824 = vadd.f32 %v5534, %v5823
    %5825 = vmatprep.mubr.bf16.mxu0 0
    %5826 = vmatmul.mubr.bf16.gmra.mrb[0].mxu0 %v5622
    %v5827 = vpop.f32.mrb[0].mxu0
    %v5828 = vadd.f32 %v5539, %v5827
    %v5829 = vpop.f32.mrb[0].mxu0
    %v5830 = vadd.f32 %v5539, %v5829
    %v5831 = vpop.f32.mrb[0].mxu0
    %v5832 = vadd.f32 %v5544, %v5831
    %v5833 = vpop.f32.mrb[0].mxu0
    %v5834 = vadd.f32 %v5544, %v5833
    %5835 = vmatprep.mubr.bf16.mxu0 0
    %5836 = vmatmul.mubr.bf16.gmra.mrb[0].mxu0 %v5625
    %v5837 = vpop.f32.mrb[0].mxu0
    %v5838 = vadd.f32 %v5549, %v5837
    %v5839 = vpop.f32.mrb[0].mxu0
    %v5840 = vadd.f32 %v5549, %v5839
    %v5841 = vpop.f32.mrb[0].mxu0
    %v5842 = vadd.f32 %v5554, %v5841
    %v5843 = vpop.f32.mrb[0].mxu0
    %v5844 = vadd.f32 %v5554, %v5843
    %5845 = vmatprep.mubr.bf16.mxu0 0
    %5846 = vmatmul.mubr.bf16.gmra.mrb[0].mxu0 %v5628
    %v5847 = vpop.f32.mrb[0].mxu0
    %v5848 = vadd.f32 %v5559, %v5847
    %v5849 = vpop.f32.mrb[0].mxu0
    %v5850 = vadd.f32 %v5559, %v5849
    %v5851 = vpop.f32.mrb[0].mxu0
    %v5852 = vadd.f32 %v5564, %v5851
    %v5853 = vpop.f32.mrb[0].mxu0
    %v5854 = vadd.f32 %v5564, %v5853
    %5855 = vdwg.mxu0
    %v5856 = vxor.u32 %v5665, 2147483648
    %v5857 = vxor.u32 %v5667, 2147483648
    %v5858 = vxor.u32 %v5778, 2147483648
    %v5859 = vxor.u32 %v5780, 2147483648
    %v5860 = vxor.u32 %v5669, 2147483648
    %v5861 = vxor.u32 %v5671, 2147483648
    %v5862 = vxor.u32 %v5782, 2147483648
    %v5863 = vxor.u32 %v5784, 2147483648
    %v5864 = vxor.u32 %v5675, 2147483648
    %v5865 = vxor.u32 %v5677, 2147483648
    %v5866 = vxor.u32 %v5788, 2147483648
    %v5867 = vxor.u32 %v5790, 2147483648
    %v5868 = vxor.u32 %v5679, 2147483648
    %v5869 = vxor.u32 %v5681, 2147483648
    %v5870 = vxor.u32 %v5792, 2147483648
    %v5871 = vxor.u32 %v5794, 2147483648
    %v5872 = vxor.u32 %v5685, 2147483648
    %v5873 = vxor.u32 %v5687, 2147483648
    %v5874 = vxor.u32 %v5798, 2147483648
    %v5875 = vxor.u32 %v5800, 2147483648
    %v5876 = vxor.u32 %v5689, 2147483648
    %v5877 = vxor.u32 %v5691, 2147483648
    %v5878 = vxor.u32 %v5802, 2147483648
    %v5879 = vxor.u32 %v5804, 2147483648
    %v5880 = vxor.u32 %v5695, 2147483648
    %v5881 = vxor.u32 %v5697, 2147483648
    %v5882 = vxor.u32 %v5808, 2147483648
    %v5883 = vxor.u32 %v5810, 2147483648
    %v5884 = vxor.u32 %v5699, 2147483648
    %v5885 = vxor.u32 %v5701, 2147483648
    %v5886 = vxor.u32 %v5812, 2147483648
    %v5887 = vxor.u32 %v5814, 2147483648
    %v5888 = vxor.u32 %v5705, 2147483648
    %v5889 = vxor.u32 %v5707, 2147483648
    %v5890 = vxor.u32 %v5818, 2147483648
    %v5891 = vxor.u32 %v5820, 2147483648
    %v5892 = vxor.u32 %v5709, 2147483648
    %v5893 = vxor.u32 %v5711, 2147483648
    %v5894 = vxor.u32 %v5822, 2147483648
    %v5895 = vxor.u32 %v5824, 2147483648
    %v5896 = vxor.u32 %v5715, 2147483648
    %v5897 = vxor.u32 %v5717, 2147483648
    %v5898 = vxor.u32 %v5828, 2147483648
    %v5899 = vxor.u32 %v5830, 2147483648
    %v5900 = vxor.u32 %v5719, 2147483648
    %v5901 = vxor.u32 %v5721, 2147483648
    %v5902 = vxor.u32 %v5832, 2147483648
    %v5903 = vxor.u32 %v5834, 2147483648
    %v5904 = vmul.f32 %v5856, 1.442695
    %v5905 = vpow.pop %v5904
    %v5906 = vmul.f32 %v5857, 1.442695
    %v5907 = vpow.pop %v5906
    %v5908 = vmul.f32 %v5858, 1.442695
    %v5909 = vpow.pop %v5908
    %v5910 = vmul.f32 %v5859, 1.442695
    %v5911 = vpow.pop %v5910
    %v5912 = vmul.f32 %v5860, 1.442695
    %v5913 = vpow.pop %v5912
    %v5914 = vmul.f32 %v5861, 1.442695
    %v5915 = vpow.pop %v5914
    %v5916 = vmul.f32 %v5862, 1.442695
    %v5917 = vpow.pop %v5916
    %v5918 = vmul.f32 %v5863, 1.442695
    %v5919 = vpow.pop %v5918
    %v5920 = vmul.f32 %v5864, 1.442695
    %v5921 = vpow.pop %v5920
    %v5922 = vmul.f32 %v5865, 1.442695
    %v5923 = vpow.pop %v5922
    %v5924 = vmul.f32 %v5866, 1.442695
    %v5925 = vpow.pop %v5924
    %v5926 = vmul.f32 %v5867, 1.442695
    %v5927 = vpow.pop %v5926
    %v5928 = vmul.f32 %v5868, 1.442695
    %v5929 = vpow.pop %v5928
    %v5930 = vmul.f32 %v5869, 1.442695
    %v5931 = vpow.pop %v5930
    %v5932 = vmul.f32 %v5870, 1.442695
    %v5933 = vpow.pop %v5932
    %v5934 = vmul.f32 %v5871, 1.442695
    %v5935 = vpow.pop %v5934
    %v5936 = vmul.f32 %v5872, 1.442695
    %v5937 = vpow.pop %v5936
    %v5938 = vmul.f32 %v5873, 1.442695
    %v5939 = vpow.pop %v5938
    %v5940 = vmul.f32 %v5874, 1.442695
    %v5941 = vpow.pop %v5940
    %v5942 = vmul.f32 %v5875, 1.442695
    %v5943 = vpow.pop %v5942
    %v5944 = vmul.f32 %v5876, 1.442695
    %v5945 = vpow.pop %v5944
    %v5946 = vmul.f32 %v5877, 1.442695
    %v5947 = vpow.pop %v5946
    %v5948 = vmul.f32 %v5878, 1.442695
    %v5949 = vpow.pop %v5948
    %v5950 = vmul.f32 %v5879, 1.442695
    %v5951 = vpow.pop %v5950
    %v5952 = vmul.f32 %v5880, 1.442695
    %v5953 = vpow.pop %v5952
    %v5954 = vmul.f32 %v5881, 1.442695
    %v5955 = vpow.pop %v5954
    %v5956 = vmul.f32 %v5882, 1.442695
    %v5957 = vpow.pop %v5956
    %v5958 = vmul.f32 %v5883, 1.442695
    %v5959 = vpow.pop %v5958
    %v5960 = vmul.f32 %v5884, 1.442695
    %v5961 = vpow.pop %v5960
    %v5962 = vmul.f32 %v5885, 1.442695
    %v5963 = vpow.pop %v5962
    %v5964 = vmul.f32 %v5886, 1.442695
    %v5965 = vpow.pop %v5964
    %v5966 = vmul.f32 %v5887, 1.442695
    %v5967 = vpow.pop %v5966
    %v5968 = vmul.f32 %v5888, 1.442695
    %v5969 = vpow.pop %v5968
    %v5970 = vmul.f32 %v5889, 1.442695
    %v5971 = vpow.pop %v5970
    %v5972 = vmul.f32 %v5890, 1.442695
    %v5973 = vpow.pop %v5972
    %v5974 = vmul.f32 %v5891, 1.442695
    %v5975 = vpow.pop %v5974
    %v5976 = vmul.f32 %v5892, 1.442695
    %v5977 = vpow.pop %v5976
    %v5978 = vmul.f32 %v5893, 1.442695
    %v5979 = vpow.pop %v5978
    %v5980 = vmul.f32 %v5894, 1.442695
    %v5981 = vpow.pop %v5980
    %v5982 = vmul.f32 %v5895, 1.442695
    %v5983 = vpow.pop %v5982
    %v5984 = vmul.f32 %v5896, 1.442695
    %v5985 = vpow.pop %v5984
    %v5986 = vmul.f32 %v5897, 1.442695
    %v5987 = vpow.pop %v5986
    %v5988 = vmul.f32 %v5898, 1.442695
    %v5989 = vpow.pop %v5988
    %v5990 = vmul.f32 %v5899, 1.442695
    %v5991 = vpow.pop %v5990
    %v5992 = vmul.f32 %v5900, 1.442695
    %v5993 = vpow.pop %v5992
    %v5994 = vmul.f32 %v5901, 1.442695
    %v5995 = vpow.pop %v5994
    %v5996 = vmul.f32 %v5902, 1.442695
    %v5997 = vpow.pop %v5996
    %v5998 = vmul.f32 %v5903, 1.442695
    %v5999 = vpow.pop %v5998
    %v6000 = vadd.f32 %v5905, 1.0
    %v6001 = vadd.f32 %v5907, 1.0
    %v6002 = vadd.f32 %v5909, 1.0
    %v6003 = vadd.f32 %v5911, 1.0
    %v6004 = vadd.f32 %v5913, 1.0
    %v6005 = vadd.f32 %v5915, 1.0
    %v6006 = vadd.f32 %v5917, 1.0
    %v6007 = vadd.f32 %v5919, 1.0
    %v6008 = vadd.f32 %v5921, 1.0
    %v6009 = vadd.f32 %v5923, 1.0
    %v6010 = vadd.f32 %v5925, 1.0
    %v6011 = vadd.f32 %v5927, 1.0
    %v6012 = vadd.f32 %v5929, 1.0
    %v6013 = vadd.f32 %v5931, 1.0
    %v6014 = vadd.f32 %v5933, 1.0
    %v6015 = vadd.f32 %v5935, 1.0
    %v6016 = vadd.f32 %v5937, 1.0
    %v6017 = vadd.f32 %v5939, 1.0
    %v6018 = vadd.f32 %v5941, 1.0
    %v6019 = vadd.f32 %v5943, 1.0
    %v6020 = vadd.f32 %v5945, 1.0
    %v6021 = vadd.f32 %v5947, 1.0
    %v6022 = vadd.f32 %v5949, 1.0
    %v6023 = vadd.f32 %v5951, 1.0
    %v6024 = vadd.f32 %v5953, 1.0
    %v6025 = vadd.f32 %v5955, 1.0
    %v6026 = vadd.f32 %v5957, 1.0
    %v6027 = vadd.f32 %v5959, 1.0
    %v6028 = vadd.f32 %v5961, 1.0
    %v6029 = vadd.f32 %v5963, 1.0
    %v6030 = vadd.f32 %v5965, 1.0
    %v6031 = vadd.f32 %v5967, 1.0
    %v6032 = vadd.f32 %v5969, 1.0
    %v6033 = vadd.f32 %v5971, 1.0
    %v6034 = vadd.f32 %v5973, 1.0
    %v6035 = vadd.f32 %v5975, 1.0
    %v6036 = vadd.f32 %v5977, 1.0
    %v6037 = vadd.f32 %v5979, 1.0
    %v6038 = vadd.f32 %v5981, 1.0
    %v6039 = vadd.f32 %v5983, 1.0
    %v6040 = vadd.f32 %v5985, 1.0
    %v6041 = vadd.f32 %v5987, 1.0
    %v6042 = vadd.f32 %v5989, 1.0
    %v6043 = vadd.f32 %v5991, 1.0
    %v6044 = vadd.f32 %v5993, 1.0
    %v6045 = vadd.f32 %v5995, 1.0
    %v6046 = vadd.f32 %v5997, 1.0
    %v6047 = vadd.f32 %v5999, 1.0
    %v6048 = vrcp.pop %v6000
    %v6049 = vmul.f32 1.0, %v6048
    %v6050 = vrcp.pop %v6001
    %v6051 = vmul.f32 1.0, %v6050
    %v6052 = vrcp.pop %v6002
    %v6053 = vmul.f32 1.0, %v6052
    %v6054 = vrcp.pop %v6003
    %v6055 = vmul.f32 1.0, %v6054
    %v6056 = vrcp.pop %v6004
    %v6057 = vmul.f32 1.0, %v6056
    %v6058 = vrcp.pop %v6005
    %v6059 = vmul.f32 1.0, %v6058
    %v6060 = vrcp.pop %v6006
    %v6061 = vmul.f32 1.0, %v6060
    %v6062 = vrcp.pop %v6007
    %v6063 = vmul.f32 1.0, %v6062
    %v6064 = vrcp.pop %v6008
    %v6065 = vmul.f32 1.0, %v6064
    %v6066 = vrcp.pop %v6009
    %v6067 = vmul.f32 1.0, %v6066
    %v6068 = vrcp.pop %v6010
    %v6069 = vmul.f32 1.0, %v6068
    %v6070 = vrcp.pop %v6011
    %v6071 = vmul.f32 1.0, %v6070
    %v6072 = vrcp.pop %v6012
    %v6073 = vmul.f32 1.0, %v6072
    %v6074 = vrcp.pop %v6013
    %v6075 = vmul.f32 1.0, %v6074
    %v6076 = vrcp.pop %v6014
    %v6077 = vmul.f32 1.0, %v6076
    %v6078 = vrcp.pop %v6015
    %v6079 = vmul.f32 1.0, %v6078
    %v6080 = vrcp.pop %v6016
    %v6081 = vmul.f32 1.0, %v6080
    %v6082 = vrcp.pop %v6017
    %v6083 = vmul.f32 1.0, %v6082
    %v6084 = vrcp.pop %v6018
    %v6085 = vmul.f32 1.0, %v6084
    %v6086 = vrcp.pop %v6019
    %v6087 = vmul.f32 1.0, %v6086
    %v6088 = vrcp.pop %v6020
    %v6089 = vmul.f32 1.0, %v6088
    %v6090 = vrcp.pop %v6021
    %v6091 = vmul.f32 1.0, %v6090
    %v6092 = vrcp.pop %v6022
    %v6093 = vmul.f32 1.0, %v6092
    %v6094 = vrcp.pop %v6023
    %v6095 = vmul.f32 1.0, %v6094
    %v6096 = vrcp.pop %v6024
    %v6097 = vmul.f32 1.0, %v6096
    %v6098 = vrcp.pop %v6025
    %v6099 = vmul.f32 1.0, %v6098
    %v6100 = vrcp.pop %v6026
    %v6101 = vmul.f32 1.0, %v6100
    %v6102 = vrcp.pop %v6027
    %v6103 = vmul.f32 1.0, %v6102
    %v6104 = vrcp.pop %v6028
    %v6105 = vmul.f32 1.0, %v6104
    %v6106 = vrcp.pop %v6029
    %v6107 = vmul.f32 1.0, %v6106
    %v6108 = vrcp.pop %v6030
    %v6109 = vmul.f32 1.0, %v6108
    %v6110 = vrcp.pop %v6031
    %v6111 = vmul.f32 1.0, %v6110
    %v6112 = vrcp.pop %v6032
    %v6113 = vmul.f32 1.0, %v6112
    %v6114 = vrcp.pop %v6033
    %v6115 = vmul.f32 1.0, %v6114
    %v6116 = vrcp.pop %v6034
    %v6117 = vmul.f32 1.0, %v6116
    %v6118 = vrcp.pop %v6035
    %v6119 = vmul.f32 1.0, %v6118
    %v6120 = vrcp.pop %v6036
    %v6121 = vmul.f32 1.0, %v6120
    %v6122 = vrcp.pop %v6037
    %v6123 = vmul.f32 1.0, %v6122
    %v6124 = vrcp.pop %v6038
    %v6125 = vmul.f32 1.0, %v6124
    %v6126 = vrcp.pop %v6039
    %v6127 = vmul.f32 1.0, %v6126
    %v6128 = vrcp.pop %v6040
    %v6129 = vmul.f32 1.0, %v6128
    %v6130 = vrcp.pop %v6041
    %v6131 = vmul.f32 1.0, %v6130
    %v6132 = vrcp.pop %v6042
    %v6133 = vmul.f32 1.0, %v6132
    %v6134 = vrcp.pop %v6043
    %v6135 = vmul.f32 1.0, %v6134
    %v6136 = vrcp.pop %v6044
    %v6137 = vmul.f32 1.0, %v6136
    %v6138 = vrcp.pop %v6045
    %v6139 = vmul.f32 1.0, %v6138
    %v6140 = vrcp.pop %v6046
    %v6141 = vmul.f32 1.0, %v6140
    %v6142 = vrcp.pop %v6047
    %v6143 = vmul.f32 1.0, %v6142
    %v6144 = vtanh.pop %v5725
    %v6145 = vtanh.pop %v5727
    %v6146 = vtanh.pop %v5838
    %v6147 = vtanh.pop %v5840
    %v6148 = vtanh.pop %v5729
    %v6149 = vtanh.pop %v5731
    %v6150 = vtanh.pop %v5842
    %v6151 = vtanh.pop %v5844
    %v6152 = vtanh.pop %v5735
    %v6153 = vtanh.pop %v5737
    %v6154 = vtanh.pop %v5848
    %v6155 = vtanh.pop %v5850
    %v6156 = vtanh.pop %v5739
    %v6157 = vtanh.pop %v5741
    %v6158 = vtanh.pop %v5852
    %v6159 = vtanh.pop %v5854
    %v6160 = vld [vmem:[#allocation3] sm:$0xff]
    %v6161 = vld [vmem:[#allocation3 + $0x8] sm:$0xff]
    %v6162 = vld [vmem:[#allocation3 + $0x10] sm:$0xff]
    %v6163 = vld [vmem:[#allocation3 + $0x18] sm:$0xff]
    %v6164 = vld [vmem:[#allocation3 + $0x20] sm:$0xff]
    %v6165 = vld [vmem:[#allocation3 + $0x28] sm:$0xff]
    %v6166 = vld [vmem:[#allocation3 + $0x30] sm:$0xff]
    %v6167 = vld [vmem:[#allocation3 + $0x38] sm:$0xff]
    %v6168 = vld [vmem:[#allocation3 + $0x40] sm:$0xff]
    %v6169 = vld [vmem:[#allocation3 + $0x48] sm:$0xff]
    %v6170 = vld [vmem:[#allocation3 + $0x50] sm:$0xff]
    %v6171 = vld [vmem:[#allocation3 + $0x58] sm:$0xff]
    %v6172 = vld [vmem:[#allocation3 + $0x60] sm:$0xff]
    %v6173 = vld [vmem:[#allocation3 + $0x68] sm:$0xff]
    %v6174 = vld [vmem:[#allocation3 + $0x70] sm:$0xff]
    %v6175 = vld [vmem:[#allocation3 + $0x78] sm:$0xff]
    %v6176 = vmul.f32 %v6081, %v6160
    %v6177 = vmul.f32 %v6083, %v6161
    %v6178 = vmul.f32 %v6085, %v6162
    %v6179 = vmul.f32 %v6087, %v6163
    %v6180 = vmul.f32 %v6089, %v6164
    %v6181 = vmul.f32 %v6091, %v6165
    %v6182 = vmul.f32 %v6093, %v6166
    %v6183 = vmul.f32 %v6095, %v6167
    %v6184 = vmul.f32 %v6097, %v6168
    %v6185 = vmul.f32 %v6099, %v6169
    %v6186 = vmul.f32 %v6101, %v6170
    %v6187 = vmul.f32 %v6103, %v6171
    %v6188 = vmul.f32 %v6105, %v6172
    %v6189 = vmul.f32 %v6107, %v6173
    %v6190 = vmul.f32 %v6109, %v6174
    %v6191 = vmul.f32 %v6111, %v6175
    %v6192 = vmul.f32 %v6049, %v6144
    %v6193 = vmul.f32 %v6051, %v6145
    %v6194 = vmul.f32 %v6053, %v6146
    %v6195 = vmul.f32 %v6055, %v6147
    %v6196 = vmul.f32 %v6057, %v6148
    %v6197 = vmul.f32 %v6059, %v6149
    %v6198 = vmul.f32 %v6061, %v6150
    %v6199 = vmul.f32 %v6063, %v6151
    %v6200 = vmul.f32 %v6065, %v6152
    %v6201 = vmul.f32 %v6067, %v6153
    %v6202 = vmul.f32 %v6069, %v6154
    %v6203 = vmul.f32 %v6071, %v6155
    %v6204 = vmul.f32 %v6073, %v6156
    %v6205 = vmul.f32 %v6075, %v6157
    %v6206 = vmul.f32 %v6077, %v6158
    %v6207 = vmul.f32 %v6079, %v6159
    %v6208 = vadd.f32 %v6176, %v6192
    %v6209 = vadd.f32 %v6177, %v6193
    %v6210 = vadd.f32 %v6178, %v6194
    %v6211 = vadd.f32 %v6179, %v6195
    %v6212 = vadd.f32 %v6180, %v6196
    %v6213 = vadd.f32 %v6181, %v6197
    %v6214 = vadd.f32 %v6182, %v6198
    %v6215 = vadd.f32 %v6183, %v6199
    %v6216 = vadd.f32 %v6184, %v6200
    %v6217 = vadd.f32 %v6185, %v6201
    %v6218 = vadd.f32 %v6186, %v6202
    %v6219 = vadd.f32 %v6187, %v6203
    %v6220 = vadd.f32 %v6188, %v6204
    %v6221 = vadd.f32 %v6189, %v6205
    %v6222 = vadd.f32 %v6190, %v6206
    %v6223 = vadd.f32 %v6191, %v6207
    %v6224 = vtanh.pop %v6208
    %v6225 = vtanh.pop %v6209
    %v6226 = vtanh.pop %v6210
    %v6227 = vtanh.pop %v6211
    %v6228 = vtanh.pop %v6212
    %v6229 = vtanh.pop %v6213
    %v6230 = vtanh.pop %v6214
    %v6231 = vtanh.pop %v6215
    %v6232 = vtanh.pop %v6216
    %v6233 = vtanh.pop %v6217
    %v6234 = vtanh.pop %v6218
    %v6235 = vtanh.pop %v6219
    %v6236 = vtanh.pop %v6220
    %v6237 = vtanh.pop %v6221
    %v6238 = vtanh.pop %v6222
    %v6239 = vtanh.pop %v6223
    %v6240 = vmul.f32 %v6113, %v6224
    %v6241 = vmul.f32 %v6115, %v6225
    %v6242 = vmul.f32 %v6117, %v6226
    %v6243 = vmul.f32 %v6119, %v6227
    %v6244 = vmul.f32 %v6121, %v6228
    %v6245 = vmul.f32 %v6123, %v6229
    %v6246 = vmul.f32 %v6125, %v6230
    %v6247 = vmul.f32 %v6127, %v6231
    %v6248 = vmul.f32 %v6129, %v6232
    %v6249 = vmul.f32 %v6131, %v6233
    %v6250 = vmul.f32 %v6133, %v6234
    %v6251 = vmul.f32 %v6135, %v6235
    %v6252 = vmul.f32 %v6137, %v6236
    %v6253 = vmul.f32 %v6139, %v6237
    %v6254 = vmul.f32 %v6141, %v6238
    %v6255 = vmul.f32 %v6143, %v6239
    %6256 = vst [vmem:[#allocation3] sm:$0xff] %v6208
    %6257 = vst [vmem:[#allocation3 + $0x8] sm:$0xff] %v6209
    %6258 = vst [vmem:[#allocation3 + $0x10] sm:$0xff] %v6210
    %6259 = vst [vmem:[#allocation3 + $0x18] sm:$0xff] %v6211
    %6260 = vst [vmem:[#allocation3 + $0x20] sm:$0xff] %v6212
    %6261 = vst [vmem:[#allocation3 + $0x28] sm:$0xff] %v6213
    %6262 = vst [vmem:[#allocation3 + $0x30] sm:$0xff] %v6214
    %6263 = vst [vmem:[#allocation3 + $0x38] sm:$0xff] %v6215
    %6264 = vst [vmem:[#allocation3 + $0x40] sm:$0xff] %v6216
    %6265 = vst [vmem:[#allocation3 + $0x48] sm:$0xff] %v6217
    %6266 = vst [vmem:[#allocation3 + $0x50] sm:$0xff] %v6218
    %6267 = vst [vmem:[#allocation3 + $0x58] sm:$0xff] %v6219
    %6268 = vst [vmem:[#allocation3 + $0x60] sm:$0xff] %v6220
    %6269 = vst [vmem:[#allocation3 + $0x68] sm:$0xff] %v6221
    %6270 = vst [vmem:[#allocation3 + $0x70] sm:$0xff] %v6222
    %6271 = vst [vmem:[#allocation3 + $0x78] sm:$0xff] %v6223
    %v6272 = vpack.c.bf16 %v6244, %v6240
    %v6273 = vpack.c.bf16 %v6245, %v6241
    %v6274 = vpack.c.bf16 %v6246, %v6242
    %v6275 = vpack.c.bf16 %v6247, %v6243
    %v6276 = vpack.c.bf16 %v6252, %v6248
    %v6277 = vpack.c.bf16 %v6253, %v6249
    %v6278 = vpack.c.bf16 %v6254, %v6250
    %v6279 = vpack.c.bf16 %v6255, %v6251
    %6280 = vst [vmem:[#allocation2 + $0x20] sm:$0xff] %v6272
    %6281 = vst [vmem:[#allocation2 + $0x28] sm:$0xff] %v6273
    %6282 = vst [vmem:[#allocation2 + $0x30] sm:$0xff] %v6274
    %6283 = vst [vmem:[#allocation2 + $0x38] sm:$0xff] %v6275
    %6284 = vst [vmem:[#allocation2 + $0x40] sm:$0xff] %v6276
    %6285 = vst [vmem:[#allocation2 + $0x48] sm:$0xff] %v6277
    %6286 = vst [vmem:[#allocation2 + $0x50] sm:$0xff] %v6278
    %6287 = vst [vmem:[#allocation2 + $0x58] sm:$0xff] %v6279
    %s6288 = scalar_lea.vmem [#allocation7], 768
    %6289 = vst [vmem:[%s6288] sm:$0xff] %v6240
    %6290 = vst [vmem:[%s6288 + $0x8] sm:$0xff] %v6241
    %6291 = vst [vmem:[%s6288 + $0x10] sm:$0xff] %v6242
    %6292 = vst [vmem:[%s6288 + $0x18] sm:$0xff] %v6243
    %6293 = vst [vmem:[%s6288 + $0x20] sm:$0xff] %v6244
    %6294 = vst [vmem:[%s6288 + $0x28] sm:$0xff] %v6245
    %6295 = vst [vmem:[%s6288 + $0x30] sm:$0xff] %v6246
    %6296 = vst [vmem:[%s6288 + $0x38] sm:$0xff] %v6247
    %6297 = vst [vmem:[%s6288 + $0x40] sm:$0xff] %v6248
    %6298 = vst [vmem:[%s6288 + $0x48] sm:$0xff] %v6249
    %6299 = vst [vmem:[%s6288 + $0x50] sm:$0xff] %v6250
    %6300 = vst [vmem:[%s6288 + $0x58] sm:$0xff] %v6251
    %6301 = vst [vmem:[%s6288 + $0x60] sm:$0xff] %v6252
    %6302 = vst [vmem:[%s6288 + $0x68] sm:$0xff] %v6253
    %6303 = vst [vmem:[%s6288 + $0x70] sm:$0xff] %v6254
    %6304 = vst [vmem:[%s6288 + $0x78] sm:$0xff] %v6255
    %s6305 = scalar_lea.vmem [#allocation4], 224
    %v6306 = vld [vmem:[%s6305] sm:$0xff]
    %v6307 = vld [vmem:[%s6305 + $0x8] sm:$0xff]
    %v6308 = vld [vmem:[%s6305 + $0x10] sm:$0xff]
    %v6309 = vld [vmem:[%s6305 + $0x18] sm:$0xff]
    %v6314 = vunpack.c.l.b16 %v6306
    %v6315 = vunpack.c.h.b16 %v6306
    %v6316 = vunpack.c.l.b16 %v6307
    %v6317 = vunpack.c.h.b16 %v6307
    %v6318 = vunpack.c.l.b16 %v6308
    %v6319 = vunpack.c.h.b16 %v6308
    %v6320 = vunpack.c.l.b16 %v6309
    %v6321 = vunpack.c.h.b16 %v6309
    %v6322 = vpack.c.b16 %v6318, %v6314
    %v6323 = vpack.c.b16 %v6319, %v6315
    %v6324 = vpack.c.b16 %v6320, %v6316
    %v6325 = vpack.c.b16 %v6321, %v6317
    %6330 = vst [vmem:[#allocation2] sm:$0xff] %v6322
    %6331 = vst [vmem:[#allocation2 + $0x8] sm:$0xff] %v6323
    %6332 = vst [vmem:[#allocation2 + $0x10] sm:$0xff] %v6324
    %6333 = vst [vmem:[#allocation2 + $0x18] sm:$0xff] %v6325
    %v6334 = vld [vmem:[%s1] sm:$0xf]
    %v6335 = vld [vmem:[%s1 + $0x4] sm:$0xf]
    %v6336 = vld [vmem:[%s1 + $0x8] sm:$0xf]
    %v6337 = vld [vmem:[%s1 + $0xc] sm:$0xf]
    %v6338 = vld [vmem:[%s1 + $0x10] sm:$0xf]
    %v6339 = vld [vmem:[%s1 + $0x14] sm:$0xf]
    %v6340 = vld [vmem:[%s1 + $0x18] sm:$0xf]
    %v6341 = vld [vmem:[%s1 + $0x1c] sm:$0xf]
    %v6342 = vld [vmem:[%s1 + $0x20] sm:$0xf]
    %v6343 = vld [vmem:[%s1 + $0x24] sm:$0xf]
    %v6344 = vld [vmem:[%s1 + $0x28] sm:$0xf]
    %v6345 = vld [vmem:[%s1 + $0x2c] sm:$0xf]
    %v6346 = vld [vmem:[%s1 + $0x30] sm:$0xf]
    %v6347 = vld [vmem:[%s1 + $0x34] sm:$0xf]
    %v6348 = vld [vmem:[%s1 + $0x38] sm:$0xf]
    %v6349 = vld [vmem:[%s1 + $0x3c] sm:$0xf]
    %v6350 = vld [vmem:[#allocation2] sm:$0xff]
    %v6351 = vld [vmem:[#allocation2 + $0x8] sm:$0xff]
    %v6352 = vld [vmem:[#allocation2 + $0x10] sm:$0xff]
    %v6353 = vld [vmem:[#allocation2 + $0x18] sm:$0xff]
    %v6354 = vld [vmem:[#allocation2 + $0x20] sm:$0xff]
    %v6355 = vld [vmem:[#allocation2 + $0x28] sm:$0xff]
    %v6356 = vld [vmem:[#allocation2 + $0x30] sm:$0xff]
    %v6357 = vld [vmem:[#allocation2 + $0x38] sm:$0xff]
    %v6358 = vld [vmem:[#allocation2 + $0x40] sm:$0xff]
    %v6359 = vld [vmem:[#allocation2 + $0x48] sm:$0xff]
    %v6360 = vld [vmem:[#allocation2 + $0x50] sm:$0xff]
    %v6361 = vld [vmem:[#allocation2 + $0x58] sm:$0xff]
    %v6362 = vld [vmem:[%s2] sm:$0xff]
    %v6363 = vld [vmem:[%s2 + $0x8] sm:$0xff]
    %v6364 = vld [vmem:[%s2 + $0x10] sm:$0xff]
    %v6365 = vld [vmem:[%s2 + $0x18] sm:$0xff]
    %v6366 = vld [vmem:[%s2 + $0x20] sm:$0xff]
    %v6367 = vld [vmem:[%s2 + $0x28] sm:$0xff]
    %v6368 = vld [vmem:[%s2 + $0x30] sm:$0xff]
    %v6369 = vld [vmem:[%s2 + $0x38] sm:$0xff]
    %v6370 = vld [vmem:[%s2 + $0x40] sm:$0xff]
    %v6371 = vld [vmem:[%s2 + $0x48] sm:$0xff]
    %v6372 = vld [vmem:[%s2 + $0x50] sm:$0xff]
    %v6373 = vld [vmem:[%s2 + $0x58] sm:$0xff]
    %v6374 = vld [vmem:[%s2 + $0x60] sm:$0xff]
    %v6375 = vld [vmem:[%s2 + $0x68] sm:$0xff]
    %v6376 = vld [vmem:[%s2 + $0x70] sm:$0xff]
    %v6377 = vld [vmem:[%s2 + $0x78] sm:$0xff]
    %6379 = vset.pattern.permute.xlu0 0
    %6380 = vperm.xlu0 %6379, %v6362
    %v6381 = vpop.permute.xlu0 %6380
    %6384 = vset.pattern.permute.xlu0 0
    %6385 = vperm.xlu0 %6384, %v6363
    %v6386 = vpop.permute.xlu0 %6385
    %6389 = vset.pattern.permute.xlu0 0
    %6390 = vperm.xlu0 %6389, %v6364
    %v6391 = vpop.permute.xlu0 %6390
    %6394 = vset.pattern.permute.xlu0 0
    %6395 = vperm.xlu0 %6394, %v6365
    %v6396 = vpop.permute.xlu0 %6395
    %6399 = vset.pattern.permute.xlu0 0
    %6400 = vperm.xlu0 %6399, %v6366
    %v6401 = vpop.permute.xlu0 %6400
    %6404 = vset.pattern.permute.xlu0 0
    %6405 = vperm.xlu0 %6404, %v6367
    %v6406 = vpop.permute.xlu0 %6405
    %6409 = vset.pattern.permute.xlu0 0
    %6410 = vperm.xlu0 %6409, %v6368
    %v6411 = vpop.permute.xlu0 %6410
    %6414 = vset.pattern.permute.xlu0 0
    %6415 = vperm.xlu0 %6414, %v6369
    %v6416 = vpop.permute.xlu0 %6415
    %6419 = vset.pattern.permute.xlu0 0
    %6420 = vperm.xlu0 %6419, %v6370
    %v6421 = vpop.permute.xlu0 %6420
    %6424 = vset.pattern.permute.xlu0 0
    %6425 = vperm.xlu0 %6424, %v6371
    %v6426 = vpop.permute.xlu0 %6425
    %6429 = vset.pattern.permute.xlu0 0
    %6430 = vperm.xlu0 %6429, %v6372
    %v6431 = vpop.permute.xlu0 %6430
    %6434 = vset.pattern.permute.xlu0 0
    %6435 = vperm.xlu0 %6434, %v6373
    %v6436 = vpop.permute.xlu0 %6435
    %6439 = vset.pattern.permute.xlu0 0
    %6440 = vperm.xlu0 %6439, %v6374
    %v6441 = vpop.permute.xlu0 %6440
    %6444 = vset.pattern.permute.xlu0 0
    %6445 = vperm.xlu0 %6444, %v6375
    %v6446 = vpop.permute.xlu0 %6445
    %6449 = vset.pattern.permute.xlu0 0
    %6450 = vperm.xlu0 %6449, %v6376
    %v6451 = vpop.permute.xlu0 %6450
    %6454 = vset.pattern.permute.xlu0 0
    %6455 = vperm.xlu0 %6454, %v6377
    %v6456 = vpop.permute.xlu0 %6455
    %v6474 = vunpack.c.l.b16 %v6334
    %v6475 = vunpack.c.l.b16 %v6335
    %v6476 = vunpack.c.l.b16 %v6336
    %v6477 = vunpack.c.l.b16 %v6337
    %v6478 = vunpack.c.l.b16 %v6338
    %v6479 = vunpack.c.l.b16 %v6339
    %v6480 = vunpack.c.l.b16 %v6340
    %v6481 = vunpack.c.l.b16 %v6341
    %v6482 = vunpack.c.l.b16 %v6342
    %v6483 = vunpack.c.l.b16 %v6343
    %v6484 = vunpack.c.l.b16 %v6344
    %v6485 = vunpack.c.l.b16 %v6345
    %v6486 = vunpack.c.l.b16 %v6346
    %v6487 = vunpack.c.l.b16 %v6347
    %v6488 = vunpack.c.l.b16 %v6348
    %v6489 = vunpack.c.l.b16 %v6349
    %v6490 = vpack.c.b16 %v6475, %v6474
    %v6491 = vpack.c.b16 %v6477, %v6476
    %v6492 = vpack.c.b16 %v6479, %v6478
    %v6493 = vpack.c.b16 %v6481, %v6480
    %v6494 = vpack.c.b16 %v6483, %v6482
    %v6495 = vpack.c.b16 %v6485, %v6484
    %v6496 = vpack.c.b16 %v6487, %v6486
    %v6497 = vpack.c.b16 %v6489, %v6488
    %v6499 = vsel %vm254, %v6490, 0
    %v6502 = vsel %vm254, %v6491, 0
    %v6505 = vsel %vm254, %v6492, 0
    %v6508 = vsel %vm254, %v6493, 0
    %v6511 = vsel %vm254, %v6494, 0
    %v6514 = vsel %vm254, %v6495, 0
    %v6517 = vsel %vm254, %v6496, 0
    %v6520 = vsel %vm254, %v6497, 0
    %6522 = vmatprep.subr.bf16.mxu0 %v6351
    %6523 = vmatpush1.bf16.msra.mxu0 %v6350
    %6524 = vmatprep.subr.bf16.mxu0 %v6355
    %6525 = vmatpush1.bf16.msra.mxu0 %v6354
    %6526 = vmatprep.subr.bf16.mxu0 %v6359
    %6527 = vmatpush1.bf16.msra.mxu0 %v6358
    %6528 = vmatprep.subr.bf16.mxu0 0
    %6529 = vmatpush1.bf16.msra.mxu0 0
    %6530 = vmatprep.subr.bf16.mxu0 0
    %6531 = vmatpush1.bf16.msra.mxu0 0
    %6532 = vmatprep.subr.bf16.mxu0 0
    %6533 = vmatpush1.bf16.msra.mxu0 0
    %6534 = vmatprep.subr.bf16.mxu0 0
    %6535 = vmatpush1.bf16.msra.mxu0 0
    %6536 = vmatprep.subr.bf16.mxu0 0
    %6537 = vmatpush1.bf16.msra.mxu0 0
    %6538 = vmatprep.subr.bf16.mxu0 0
    %6539 = vmatpush1.bf16.msra.mxu0 0
    %6540 = vmatprep.subr.bf16.mxu0 0
    %6541 = vmatpush1.bf16.msra.mxu0 0
    %6542 = vmatprep.subr.bf16.mxu0 0
    %6543 = vmatpush1.bf16.msra.mxu0 0
    %6544 = vmatprep.subr.bf16.mxu0 0
    %6545 = vmatpush1.bf16.msra.mxu0 0
    %6546 = vmatprep.subr.bf16.mxu0 0
    %6547 = vmatpush1.bf16.msra.mxu0 0
    %6548 = vmatprep.subr.bf16.mxu0 0
    %6549 = vmatpush1.bf16.msra.mxu0 0
    %6550 = vmatprep.subr.bf16.mxu0 0
    %6551 = vmatpush1.bf16.msra.mxu0 0
    %6552 = vmatprep.subr.bf16.mxu0 0
    %6553 = vmatpush1.bf16.msra.mxu0 0
    %6554 = vmatprep.mubr.bf16.mxu0 0
    %6555 = vmatmul.mubr.bf16.gmra.mrb[0].mxu0 %v6499
    %v6556 = vpop.f32.mrb[0].mxu0
    %v6557 = vadd.f32 %v6381, %v6556
    %v6558 = vpop.f32.mrb[0].mxu0
    %v6559 = vadd.f32 %v6381, %v6558
    %v6560 = vpop.f32.mrb[0].mxu0
    %v6561 = vadd.f32 %v6386, %v6560
    %v6562 = vpop.f32.mrb[0].mxu0
    %v6563 = vadd.f32 %v6386, %v6562
    %6564 = vmatprep.mubr.bf16.mxu0 0
    %6565 = vmatmul.mubr.bf16.gmra.mrb[0].mxu0 %v6502
    %v6566 = vpop.f32.mrb[0].mxu0
    %v6567 = vadd.f32 %v6391, %v6566
    %v6568 = vpop.f32.mrb[0].mxu0
    %v6569 = vadd.f32 %v6391, %v6568
    %v6570 = vpop.f32.mrb[0].mxu0
    %v6571 = vadd.f32 %v6396, %v6570
    %v6572 = vpop.f32.mrb[0].mxu0
    %v6573 = vadd.f32 %v6396, %v6572
    %6574 = vmatprep.mubr.bf16.mxu0 0
    %6575 = vmatmul.mubr.bf16.gmra.mrb[0].mxu0 %v6505
    %v6576 = vpop.f32.mrb[0].mxu0
    %v6577 = vadd.f32 %v6401, %v6576
    %v6578 = vpop.f32.mrb[0].mxu0
    %v6579 = vadd.f32 %v6401, %v6578
    %v6580 = vpop.f32.mrb[0].mxu0
    %v6581 = vadd.f32 %v6406, %v6580
    %v6582 = vpop.f32.mrb[0].mxu0
    %v6583 = vadd.f32 %v6406, %v6582
    %6584 = vmatprep.mubr.bf16.mxu0 0
    %6585 = vmatmul.mubr.bf16.gmra.mrb[0].mxu0 %v6508
    %v6586 = vpop.f32.mrb[0].mxu0
    %v6587 = vadd.f32 %v6411, %v6586
    %v6588 = vpop.f32.mrb[0].mxu0
    %v6589 = vadd.f32 %v6411, %v6588
    %v6590 = vpop.f32.mrb[0].mxu0
    %v6591 = vadd.f32 %v6416, %v6590
    %v6592 = vpop.f32.mrb[0].mxu0
    %v6593 = vadd.f32 %v6416, %v6592
    %6594 = vmatprep.mubr.bf16.mxu0 0
    %6595 = vmatmul.mubr.bf16.gmra.mrb[0].mxu0 %v6511
    %v6596 = vpop.f32.mrb[0].mxu0
    %v6597 = vadd.f32 %v6421, %v6596
    %v6598 = vpop.f32.mrb[0].mxu0
    %v6599 = vadd.f32 %v6421, %v6598
    %v6600 = vpop.f32.mrb[0].mxu0
    %v6601 = vadd.f32 %v6426, %v6600
    %v6602 = vpop.f32.mrb[0].mxu0
    %v6603 = vadd.f32 %v6426, %v6602
    %6604 = vmatprep.mubr.bf16.mxu0 0
    %6605 = vmatmul.mubr.bf16.gmra.mrb[0].mxu0 %v6514
    %v6606 = vpop.f32.mrb[0].mxu0
    %v6607 = vadd.f32 %v6431, %v6606
    %v6608 = vpop.f32.mrb[0].mxu0
    %v6609 = vadd.f32 %v6431, %v6608
    %v6610 = vpop.f32.mrb[0].mxu0
    %v6611 = vadd.f32 %v6436, %v6610
    %v6612 = vpop.f32.mrb[0].mxu0
    %v6613 = vadd.f32 %v6436, %v6612
    %6614 = vmatprep.mubr.bf16.mxu0 0
    %6615 = vmatmul.mubr.bf16.gmra.mrb[0].mxu0 %v6517
    %v6616 = vpop.f32.mrb[0].mxu0
    %v6617 = vadd.f32 %v6441, %v6616
    %v6618 = vpop.f32.mrb[0].mxu0
    %v6619 = vadd.f32 %v6441, %v6618
    %v6620 = vpop.f32.mrb[0].mxu0
    %v6621 = vadd.f32 %v6446, %v6620
    %v6622 = vpop.f32.mrb[0].mxu0
    %v6623 = vadd.f32 %v6446, %v6622
    %6624 = vmatprep.mubr.bf16.mxu0 0
    %6625 = vmatmul.mubr.bf16.gmra.mrb[0].mxu0 %v6520
    %v6626 = vpop.f32.mrb[0].mxu0
    %v6627 = vadd.f32 %v6451, %v6626
    %v6628 = vpop.f32.mrb[0].mxu0
    %v6629 = vadd.f32 %v6451, %v6628
    %v6630 = vpop.f32.mrb[0].mxu0
    %v6631 = vadd.f32 %v6456, %v6630
    %v6632 = vpop.f32.mrb[0].mxu0
    %v6633 = vadd.f32 %v6456, %v6632
    %6634 = vdwg.mxu0
    %6635 = vmatprep.subr.bf16.mxu0 %v6353
    %6636 = vmatpush1.bf16.msra.mxu0 %v6352
    %6637 = vmatprep.subr.bf16.mxu0 %v6357
    %6638 = vmatpush1.bf16.msra.mxu0 %v6356
    %6639 = vmatprep.subr.bf16.mxu0 %v6361
    %6640 = vmatpush1.bf16.msra.mxu0 %v6360
    %6641 = vmatprep.subr.bf16.mxu0 0
    %6642 = vmatpush1.bf16.msra.mxu0 0
    %6643 = vmatprep.subr.bf16.mxu0 0
    %6644 = vmatpush1.bf16.msra.mxu0 0
    %6645 = vmatprep.subr.bf16.mxu0 0
    %6646 = vmatpush1.bf16.msra.mxu0 0
    %6647 = vmatprep.subr.bf16.mxu0 0
    %6648 = vmatpush1.bf16.msra.mxu0 0
    %6649 = vmatprep.subr.bf16.mxu0 0
    %6650 = vmatpush1.bf16.msra.mxu0 0
    %6651 = vmatprep.subr.bf16.mxu0 0
    %6652 = vmatpush1.bf16.msra.mxu0 0
    %6653 = vmatprep.subr.bf16.mxu0 0
    %6654 = vmatpush1.bf16.msra.mxu0 0
    %6655 = vmatprep.subr.bf16.mxu0 0
    %6656 = vmatpush1.bf16.msra.mxu0 0
    %6657 = vmatprep.subr.bf16.mxu0 0
    %6658 = vmatpush1.bf16.msra.mxu0 0
    %6659 = vmatprep.subr.bf16.mxu0 0
    %6660 = vmatpush1.bf16.msra.mxu0 0
    %6661 = vmatprep.subr.bf16.mxu0 0
    %6662 = vmatpush1.bf16.msra.mxu0 0
    %6663 = vmatprep.subr.bf16.mxu0 0
    %6664 = vmatpush1.bf16.msra.mxu0 0
    %6665 = vmatprep.subr.bf16.mxu0 0
    %6666 = vmatpush1.bf16.msra.mxu0 0
    %6667 = vmatprep.mubr.bf16.mxu0 0
    %6668 = vmatmul.mubr.bf16.gmra.mrb[0].mxu0 %v6499
    %v6669 = vpop.f32.mrb[0].mxu0
    %v6670 = vadd.f32 %v6381, %v6669
    %v6671 = vpop.f32.mrb[0].mxu0
    %v6672 = vadd.f32 %v6381, %v6671
    %v6673 = vpop.f32.mrb[0].mxu0
    %v6674 = vadd.f32 %v6386, %v6673
    %v6675 = vpop.f32.mrb[0].mxu0
    %v6676 = vadd.f32 %v6386, %v6675
    %6677 = vmatprep.mubr.bf16.mxu0 0
    %6678 = vmatmul.mubr.bf16.gmra.mrb[0].mxu0 %v6502
    %v6679 = vpop.f32.mrb[0].mxu0
    %v6680 = vadd.f32 %v6391, %v6679
    %v6681 = vpop.f32.mrb[0].mxu0
    %v6682 = vadd.f32 %v6391, %v6681
    %v6683 = vpop.f32.mrb[0].mxu0
    %v6684 = vadd.f32 %v6396, %v6683
    %v6685 = vpop.f32.mrb[0].mxu0
    %v6686 = vadd.f32 %v6396, %v6685
    %6687 = vmatprep.mubr.bf16.mxu0 0
    %6688 = vmatmul.mubr.bf16.gmra.mrb[0].mxu0 %v6505
    %v6689 = vpop.f32.mrb[0].mxu0
    %v6690 = vadd.f32 %v6401, %v6689
    %v6691 = vpop.f32.mrb[0].mxu0
    %v6692 = vadd.f32 %v6401, %v6691
    %v6693 = vpop.f32.mrb[0].mxu0
    %v6694 = vadd.f32 %v6406, %v6693
    %v6695 = vpop.f32.mrb[0].mxu0
    %v6696 = vadd.f32 %v6406, %v6695
    %6697 = vmatprep.mubr.bf16.mxu0 0
    %6698 = vmatmul.mubr.bf16.gmra.mrb[0].mxu0 %v6508
    %v6699 = vpop.f32.mrb[0].mxu0
    %v6700 = vadd.f32 %v6411, %v6699
    %v6701 = vpop.f32.mrb[0].mxu0
    %v6702 = vadd.f32 %v6411, %v6701
    %v6703 = vpop.f32.mrb[0].mxu0
    %v6704 = vadd.f32 %v6416, %v6703
    %v6705 = vpop.f32.mrb[0].mxu0
    %v6706 = vadd.f32 %v6416, %v6705
    %6707 = vmatprep.mubr.bf16.mxu0 0
    %6708 = vmatmul.mubr.bf16.gmra.mrb[0].mxu0 %v6511
    %v6709 = vpop.f32.mrb[0].mxu0
    %v6710 = vadd.f32 %v6421, %v6709
    %v6711 = vpop.f32.mrb[0].mxu0
    %v6712 = vadd.f32 %v6421, %v6711
    %v6713 = vpop.f32.mrb[0].mxu0
    %v6714 = vadd.f32 %v6426, %v6713
    %v6715 = vpop.f32.mrb[0].mxu0
    %v6716 = vadd.f32 %v6426, %v6715
    %6717 = vmatprep.mubr.bf16.mxu0 0
    %6718 = vmatmul.mubr.bf16.gmra.mrb[0].mxu0 %v6514
    %v6719 = vpop.f32.mrb[0].mxu0
    %v6720 = vadd.f32 %v6431, %v6719
    %v6721 = vpop.f32.mrb[0].mxu0
    %v6722 = vadd.f32 %v6431, %v6721
    %v6723 = vpop.f32.mrb[0].mxu0
    %v6724 = vadd.f32 %v6436, %v6723
    %v6725 = vpop.f32.mrb[0].mxu0
    %v6726 = vadd.f32 %v6436, %v6725
    %6727 = vmatprep.mubr.bf16.mxu0 0
    %6728 = vmatmul.mubr.bf16.gmra.mrb[0].mxu0 %v6517
    %v6729 = vpop.f32.mrb[0].mxu0
    %v6730 = vadd.f32 %v6441, %v6729
    %v6731 = vpop.f32.mrb[0].mxu0
    %v6732 = vadd.f32 %v6441, %v6731
    %v6733 = vpop.f32.mrb[0].mxu0
    %v6734 = vadd.f32 %v6446, %v6733
    %v6735 = vpop.f32.mrb[0].mxu0
    %v6736 = vadd.f32 %v6446, %v6735
    %6737 = vmatprep.mubr.bf16.mxu0 0
    %6738 = vmatmul.mubr.bf16.gmra.mrb[0].mxu0 %v6520
    %v6739 = vpop.f32.mrb[0].mxu0
    %v6740 = vadd.f32 %v6451, %v6739
    %v6741 = vpop.f32.mrb[0].mxu0
    %v6742 = vadd.f32 %v6451, %v6741
    %v6743 = vpop.f32.mrb[0].mxu0
    %v6744 = vadd.f32 %v6456, %v6743
    %v6745 = vpop.f32.mrb[0].mxu0
    %v6746 = vadd.f32 %v6456, %v6745
    %6747 = vdwg.mxu0
    %v6748 = vxor.u32 %v6557, 2147483648
    %v6749 = vxor.u32 %v6559, 2147483648
    %v6750 = vxor.u32 %v6670, 2147483648
    %v6751 = vxor.u32 %v6672, 2147483648
    %v6752 = vxor.u32 %v6561, 2147483648
    %v6753 = vxor.u32 %v6563, 2147483648
    %v6754 = vxor.u32 %v6674, 2147483648
    %v6755 = vxor.u32 %v6676, 2147483648
    %v6756 = vxor.u32 %v6567, 2147483648
    %v6757 = vxor.u32 %v6569, 2147483648
    %v6758 = vxor.u32 %v6680, 2147483648
    %v6759 = vxor.u32 %v6682, 2147483648
    %v6760 = vxor.u32 %v6571, 2147483648
    %v6761 = vxor.u32 %v6573, 2147483648
    %v6762 = vxor.u32 %v6684, 2147483648
    %v6763 = vxor.u32 %v6686, 2147483648
    %v6764 = vxor.u32 %v6577, 2147483648
    %v6765 = vxor.u32 %v6579, 2147483648
    %v6766 = vxor.u32 %v6690, 2147483648
    %v6767 = vxor.u32 %v6692, 2147483648
    %v6768 = vxor.u32 %v6581, 2147483648
    %v6769 = vxor.u32 %v6583, 2147483648
    %v6770 = vxor.u32 %v6694, 2147483648
    %v6771 = vxor.u32 %v6696, 2147483648
    %v6772 = vxor.u32 %v6587, 2147483648
    %v6773 = vxor.u32 %v6589, 2147483648
    %v6774 = vxor.u32 %v6700, 2147483648
    %v6775 = vxor.u32 %v6702, 2147483648
    %v6776 = vxor.u32 %v6591, 2147483648
    %v6777 = vxor.u32 %v6593, 2147483648
    %v6778 = vxor.u32 %v6704, 2147483648
    %v6779 = vxor.u32 %v6706, 2147483648
    %v6780 = vxor.u32 %v6597, 2147483648
    %v6781 = vxor.u32 %v6599, 2147483648
    %v6782 = vxor.u32 %v6710, 2147483648
    %v6783 = vxor.u32 %v6712, 2147483648
    %v6784 = vxor.u32 %v6601, 2147483648
    %v6785 = vxor.u32 %v6603, 2147483648
    %v6786 = vxor.u32 %v6714, 2147483648
    %v6787 = vxor.u32 %v6716, 2147483648
    %v6788 = vxor.u32 %v6607, 2147483648
    %v6789 = vxor.u32 %v6609, 2147483648
    %v6790 = vxor.u32 %v6720, 2147483648
    %v6791 = vxor.u32 %v6722, 2147483648
    %v6792 = vxor.u32 %v6611, 2147483648
    %v6793 = vxor.u32 %v6613, 2147483648
    %v6794 = vxor.u32 %v6724, 2147483648
    %v6795 = vxor.u32 %v6726, 2147483648
    %v6796 = vmul.f32 %v6748, 1.442695
    %v6797 = vpow.pop %v6796
    %v6798 = vmul.f32 %v6749, 1.442695
    %v6799 = vpow.pop %v6798
    %v6800 = vmul.f32 %v6750, 1.442695
    %v6801 = vpow.pop %v6800
    %v6802 = vmul.f32 %v6751, 1.442695
    %v6803 = vpow.pop %v6802
    %v6804 = vmul.f32 %v6752, 1.442695
    %v6805 = vpow.pop %v6804
    %v6806 = vmul.f32 %v6753, 1.442695
    %v6807 = vpow.pop %v6806
    %v6808 = vmul.f32 %v6754, 1.442695
    %v6809 = vpow.pop %v6808
    %v6810 = vmul.f32 %v6755, 1.442695
    %v6811 = vpow.pop %v6810
    %v6812 = vmul.f32 %v6756, 1.442695
    %v6813 = vpow.pop %v6812
    %v6814 = vmul.f32 %v6757, 1.442695
    %v6815 = vpow.pop %v6814
    %v6816 = vmul.f32 %v6758, 1.442695
    %v6817 = vpow.pop %v6816
    %v6818 = vmul.f32 %v6759, 1.442695
    %v6819 = vpow.pop %v6818
    %v6820 = vmul.f32 %v6760, 1.442695
    %v6821 = vpow.pop %v6820
    %v6822 = vmul.f32 %v6761, 1.442695
    %v6823 = vpow.pop %v6822
    %v6824 = vmul.f32 %v6762, 1.442695
    %v6825 = vpow.pop %v6824
    %v6826 = vmul.f32 %v6763, 1.442695
    %v6827 = vpow.pop %v6826
    %v6828 = vmul.f32 %v6764, 1.442695
    %v6829 = vpow.pop %v6828
    %v6830 = vmul.f32 %v6765, 1.442695
    %v6831 = vpow.pop %v6830
    %v6832 = vmul.f32 %v6766, 1.442695
    %v6833 = vpow.pop %v6832
    %v6834 = vmul.f32 %v6767, 1.442695
    %v6835 = vpow.pop %v6834
    %v6836 = vmul.f32 %v6768, 1.442695
    %v6837 = vpow.pop %v6836
    %v6838 = vmul.f32 %v6769, 1.442695
    %v6839 = vpow.pop %v6838
    %v6840 = vmul.f32 %v6770, 1.442695
    %v6841 = vpow.pop %v6840
    %v6842 = vmul.f32 %v6771, 1.442695
    %v6843 = vpow.pop %v6842
    %v6844 = vmul.f32 %v6772, 1.442695
    %v6845 = vpow.pop %v6844
    %v6846 = vmul.f32 %v6773, 1.442695
    %v6847 = vpow.pop %v6846
    %v6848 = vmul.f32 %v6774, 1.442695
    %v6849 = vpow.pop %v6848
    %v6850 = vmul.f32 %v6775, 1.442695
    %v6851 = vpow.pop %v6850
    %v6852 = vmul.f32 %v6776, 1.442695
    %v6853 = vpow.pop %v6852
    %v6854 = vmul.f32 %v6777, 1.442695
    %v6855 = vpow.pop %v6854
    %v6856 = vmul.f32 %v6778, 1.442695
    %v6857 = vpow.pop %v6856
    %v6858 = vmul.f32 %v6779, 1.442695
    %v6859 = vpow.pop %v6858
    %v6860 = vmul.f32 %v6780, 1.442695
    %v6861 = vpow.pop %v6860
    %v6862 = vmul.f32 %v6781, 1.442695
    %v6863 = vpow.pop %v6862
    %v6864 = vmul.f32 %v6782, 1.442695
    %v6865 = vpow.pop %v6864
    %v6866 = vmul.f32 %v6783, 1.442695
    %v6867 = vpow.pop %v6866
    %v6868 = vmul.f32 %v6784, 1.442695
    %v6869 = vpow.pop %v6868
    %v6870 = vmul.f32 %v6785, 1.442695
    %v6871 = vpow.pop %v6870
    %v6872 = vmul.f32 %v6786, 1.442695
    %v6873 = vpow.pop %v6872
    %v6874 = vmul.f32 %v6787, 1.442695
    %v6875 = vpow.pop %v6874
    %v6876 = vmul.f32 %v6788, 1.442695
    %v6877 = vpow.pop %v6876
    %v6878 = vmul.f32 %v6789, 1.442695
    %v6879 = vpow.pop %v6878
    %v6880 = vmul.f32 %v6790, 1.442695
    %v6881 = vpow.pop %v6880
    %v6882 = vmul.f32 %v6791, 1.442695
    %v6883 = vpow.pop %v6882
    %v6884 = vmul.f32 %v6792, 1.442695
    %v6885 = vpow.pop %v6884
    %v6886 = vmul.f32 %v6793, 1.442695
    %v6887 = vpow.pop %v6886
    %v6888 = vmul.f32 %v6794, 1.442695
    %v6889 = vpow.pop %v6888
    %v6890 = vmul.f32 %v6795, 1.442695
    %v6891 = vpow.pop %v6890
    %v6892 = vadd.f32 %v6797, 1.0
    %v6893 = vadd.f32 %v6799, 1.0
    %v6894 = vadd.f32 %v6801, 1.0
    %v6895 = vadd.f32 %v6803, 1.0
    %v6896 = vadd.f32 %v6805, 1.0
    %v6897 = vadd.f32 %v6807, 1.0
    %v6898 = vadd.f32 %v6809, 1.0
    %v6899 = vadd.f32 %v6811, 1.0
    %v6900 = vadd.f32 %v6813, 1.0
    %v6901 = vadd.f32 %v6815, 1.0
    %v6902 = vadd.f32 %v6817, 1.0
    %v6903 = vadd.f32 %v6819, 1.0
    %v6904 = vadd.f32 %v6821, 1.0
    %v6905 = vadd.f32 %v6823, 1.0
    %v6906 = vadd.f32 %v6825, 1.0
    %v6907 = vadd.f32 %v6827, 1.0
    %v6908 = vadd.f32 %v6829, 1.0
    %v6909 = vadd.f32 %v6831, 1.0
    %v6910 = vadd.f32 %v6833, 1.0
    %v6911 = vadd.f32 %v6835, 1.0
    %v6912 = vadd.f32 %v6837, 1.0
    %v6913 = vadd.f32 %v6839, 1.0
    %v6914 = vadd.f32 %v6841, 1.0
    %v6915 = vadd.f32 %v6843, 1.0
    %v6916 = vadd.f32 %v6845, 1.0
    %v6917 = vadd.f32 %v6847, 1.0
    %v6918 = vadd.f32 %v6849, 1.0
    %v6919 = vadd.f32 %v6851, 1.0
    %v6920 = vadd.f32 %v6853, 1.0
    %v6921 = vadd.f32 %v6855, 1.0
    %v6922 = vadd.f32 %v6857, 1.0
    %v6923 = vadd.f32 %v6859, 1.0
    %v6924 = vadd.f32 %v6861, 1.0
    %v6925 = vadd.f32 %v6863, 1.0
    %v6926 = vadd.f32 %v6865, 1.0
    %v6927 = vadd.f32 %v6867, 1.0
    %v6928 = vadd.f32 %v6869, 1.0
    %v6929 = vadd.f32 %v6871, 1.0
    %v6930 = vadd.f32 %v6873, 1.0
    %v6931 = vadd.f32 %v6875, 1.0
    %v6932 = vadd.f32 %v6877, 1.0
    %v6933 = vadd.f32 %v6879, 1.0
    %v6934 = vadd.f32 %v6881, 1.0
    %v6935 = vadd.f32 %v6883, 1.0
    %v6936 = vadd.f32 %v6885, 1.0
    %v6937 = vadd.f32 %v6887, 1.0
    %v6938 = vadd.f32 %v6889, 1.0
    %v6939 = vadd.f32 %v6891, 1.0
    %v6940 = vrcp.pop %v6892
    %v6941 = vmul.f32 1.0, %v6940
    %v6942 = vrcp.pop %v6893
    %v6943 = vmul.f32 1.0, %v6942
    %v6944 = vrcp.pop %v6894
    %v6945 = vmul.f32 1.0, %v6944
    %v6946 = vrcp.pop %v6895
    %v6947 = vmul.f32 1.0, %v6946
    %v6948 = vrcp.pop %v6896
    %v6949 = vmul.f32 1.0, %v6948
    %v6950 = vrcp.pop %v6897
    %v6951 = vmul.f32 1.0, %v6950
    %v6952 = vrcp.pop %v6898
    %v6953 = vmul.f32 1.0, %v6952
    %v6954 = vrcp.pop %v6899
    %v6955 = vmul.f32 1.0, %v6954
    %v6956 = vrcp.pop %v6900
    %v6957 = vmul.f32 1.0, %v6956
    %v6958 = vrcp.pop %v6901
    %v6959 = vmul.f32 1.0, %v6958
    %v6960 = vrcp.pop %v6902
    %v6961 = vmul.f32 1.0, %v6960
    %v6962 = vrcp.pop %v6903
    %v6963 = vmul.f32 1.0, %v6962
    %v6964 = vrcp.pop %v6904
    %v6965 = vmul.f32 1.0, %v6964
    %v6966 = vrcp.pop %v6905
    %v6967 = vmul.f32 1.0, %v6966
    %v6968 = vrcp.pop %v6906
    %v6969 = vmul.f32 1.0, %v6968
    %v6970 = vrcp.pop %v6907
    %v6971 = vmul.f32 1.0, %v6970
    %v6972 = vrcp.pop %v6908
    %v6973 = vmul.f32 1.0, %v6972
    %v6974 = vrcp.pop %v6909
    %v6975 = vmul.f32 1.0, %v6974
    %v6976 = vrcp.pop %v6910
    %v6977 = vmul.f32 1.0, %v6976
    %v6978 = vrcp.pop %v6911
    %v6979 = vmul.f32 1.0, %v6978
    %v6980 = vrcp.pop %v6912
    %v6981 = vmul.f32 1.0, %v6980
    %v6982 = vrcp.pop %v6913
    %v6983 = vmul.f32 1.0, %v6982
    %v6984 = vrcp.pop %v6914
    %v6985 = vmul.f32 1.0, %v6984
    %v6986 = vrcp.pop %v6915
    %v6987 = vmul.f32 1.0, %v6986
    %v6988 = vrcp.pop %v6916
    %v6989 = vmul.f32 1.0, %v6988
    %v6990 = vrcp.pop %v6917
    %v6991 = vmul.f32 1.0, %v6990
    %v6992 = vrcp.pop %v6918
    %v6993 = vmul.f32 1.0, %v6992
    %v6994 = vrcp.pop %v6919
    %v6995 = vmul.f32 1.0, %v6994
    %v6996 = vrcp.pop %v6920
    %v6997 = vmul.f32 1.0, %v6996
    %v6998 = vrcp.pop %v6921
    %v6999 = vmul.f32 1.0, %v6998
    %v7000 = vrcp.pop %v6922
    %v7001 = vmul.f32 1.0, %v7000
    %v7002 = vrcp.pop %v6923
    %v7003 = vmul.f32 1.0, %v7002
    %v7004 = vrcp.pop %v6924
    %v7005 = vmul.f32 1.0, %v7004
    %v7006 = vrcp.pop %v6925
    %v7007 = vmul.f32 1.0, %v7006
    %v7008 = vrcp.pop %v6926
    %v7009 = vmul.f32 1.0, %v7008
    %v7010 = vrcp.pop %v6927
    %v7011 = vmul.f32 1.0, %v7010
    %v7012 = vrcp.pop %v6928
    %v7013 = vmul.f32 1.0, %v7012
    %v7014 = vrcp.pop %v6929
    %v7015 = vmul.f32 1.0, %v7014
    %v7016 = vrcp.pop %v6930
    %v7017 = vmul.f32 1.0, %v7016
    %v7018 = vrcp.pop %v6931
    %v7019 = vmul.f32 1.0, %v7018
    %v7020 = vrcp.pop %v6932
    %v7021 = vmul.f32 1.0, %v7020
    %v7022 = vrcp.pop %v6933
    %v7023 = vmul.f32 1.0, %v7022
    %v7024 = vrcp.pop %v6934
    %v7025 = vmul.f32 1.0, %v7024
    %v7026 = vrcp.pop %v6935
    %v7027 = vmul.f32 1.0, %v7026
    %v7028 = vrcp.pop %v6936
    %v7029 = vmul.f32 1.0, %v7028
    %v7030 = vrcp.pop %v6937
    %v7031 = vmul.f32 1.0, %v7030
    %v7032 = vrcp.pop %v6938
    %v7033 = vmul.f32 1.0, %v7032
    %v7034 = vrcp.pop %v6939
    %v7035 = vmul.f32 1.0, %v7034
    %v7036 = vtanh.pop %v6617
    %v7037 = vtanh.pop %v6619
    %v7038 = vtanh.pop %v6730
    %v7039 = vtanh.pop %v6732
    %v7040 = vtanh.pop %v6621
    %v7041 = vtanh.pop %v6623
    %v7042 = vtanh.pop %v6734
    %v7043 = vtanh.pop %v6736
    %v7044 = vtanh.pop %v6627
    %v7045 = vtanh.pop %v6629
    %v7046 = vtanh.pop %v6740
    %v7047 = vtanh.pop %v6742
    %v7048 = vtanh.pop %v6631
    %v7049 = vtanh.pop %v6633
    %v7050 = vtanh.pop %v6744
    %v7051 = vtanh.pop %v6746
    %v7052 = vld [vmem:[#allocation3] sm:$0xff]
    %v7053 = vld [vmem:[#allocation3 + $0x8] sm:$0xff]
    %v7054 = vld [vmem:[#allocation3 + $0x10] sm:$0xff]
    %v7055 = vld [vmem:[#allocation3 + $0x18] sm:$0xff]
    %v7056 = vld [vmem:[#allocation3 + $0x20] sm:$0xff]
    %v7057 = vld [vmem:[#allocation3 + $0x28] sm:$0xff]
    %v7058 = vld [vmem:[#allocation3 + $0x30] sm:$0xff]
    %v7059 = vld [vmem:[#allocation3 + $0x38] sm:$0xff]
    %v7060 = vld [vmem:[#allocation3 + $0x40] sm:$0xff]
    %v7061 = vld [vmem:[#allocation3 + $0x48] sm:$0xff]
    %v7062 = vld [vmem:[#allocation3 + $0x50] sm:$0xff]
    %v7063 = vld [vmem:[#allocation3 + $0x58] sm:$0xff]
    %v7064 = vld [vmem:[#allocation3 + $0x60] sm:$0xff]
    %v7065 = vld [vmem:[#allocation3 + $0x68] sm:$0xff]
    %v7066 = vld [vmem:[#allocation3 + $0x70] sm:$0xff]
    %v7067 = vld [vmem:[#allocation3 + $0x78] sm:$0xff]
    %v7068 = vmul.f32 %v6973, %v7052
    %v7069 = vmul.f32 %v6975, %v7053
    %v7070 = vmul.f32 %v6977, %v7054
    %v7071 = vmul.f32 %v6979, %v7055
    %v7072 = vmul.f32 %v6981, %v7056
    %v7073 = vmul.f32 %v6983, %v7057
    %v7074 = vmul.f32 %v6985, %v7058
    %v7075 = vmul.f32 %v6987, %v7059
    %v7076 = vmul.f32 %v6989, %v7060
    %v7077 = vmul.f32 %v6991, %v7061
    %v7078 = vmul.f32 %v6993, %v7062
    %v7079 = vmul.f32 %v6995, %v7063
    %v7080 = vmul.f32 %v6997, %v7064
    %v7081 = vmul.f32 %v6999, %v7065
    %v7082 = vmul.f32 %v7001, %v7066
    %v7083 = vmul.f32 %v7003, %v7067
    %v7084 = vmul.f32 %v6941, %v7036
    %v7085 = vmul.f32 %v6943, %v7037
    %v7086 = vmul.f32 %v6945, %v7038
    %v7087 = vmul.f32 %v6947, %v7039
    %v7088 = vmul.f32 %v6949, %v7040
    %v7089 = vmul.f32 %v6951, %v7041
    %v7090 = vmul.f32 %v6953, %v7042
    %v7091 = vmul.f32 %v6955, %v7043
    %v7092 = vmul.f32 %v6957, %v7044
    %v7093 = vmul.f32 %v6959, %v7045
    %v7094 = vmul.f32 %v6961, %v7046
    %v7095 = vmul.f32 %v6963, %v7047
    %v7096 = vmul.f32 %v6965, %v7048
    %v7097 = vmul.f32 %v6967, %v7049
    %v7098 = vmul.f32 %v6969, %v7050
    %v7099 = vmul.f32 %v6971, %v7051
    %v7100 = vadd.f32 %v7068, %v7084
    %v7101 = vadd.f32 %v7069, %v7085
    %v7102 = vadd.f32 %v7070, %v7086
    %v7103 = vadd.f32 %v7071, %v7087
    %v7104 = vadd.f32 %v7072, %v7088
    %v7105 = vadd.f32 %v7073, %v7089
    %v7106 = vadd.f32 %v7074, %v7090
    %v7107 = vadd.f32 %v7075, %v7091
    %v7108 = vadd.f32 %v7076, %v7092
    %v7109 = vadd.f32 %v7077, %v7093
    %v7110 = vadd.f32 %v7078, %v7094
    %v7111 = vadd.f32 %v7079, %v7095
    %v7112 = vadd.f32 %v7080, %v7096
    %v7113 = vadd.f32 %v7081, %v7097
    %v7114 = vadd.f32 %v7082, %v7098
    %v7115 = vadd.f32 %v7083, %v7099
    %v7116 = vtanh.pop %v7100
    %v7117 = vtanh.pop %v7101
    %v7118 = vtanh.pop %v7102
    %v7119 = vtanh.pop %v7103
    %v7120 = vtanh.pop %v7104
    %v7121 = vtanh.pop %v7105
    %v7122 = vtanh.pop %v7106
    %v7123 = vtanh.pop %v7107
    %v7124 = vtanh.pop %v7108
    %v7125 = vtanh.pop %v7109
    %v7126 = vtanh.pop %v7110
    %v7127 = vtanh.pop %v7111
    %v7128 = vtanh.pop %v7112
    %v7129 = vtanh.pop %v7113
    %v7130 = vtanh.pop %v7114
    %v7131 = vtanh.pop %v7115
    %v7132 = vmul.f32 %v7005, %v7116
    %v7133 = vmul.f32 %v7007, %v7117
    %v7134 = vmul.f32 %v7009, %v7118
    %v7135 = vmul.f32 %v7011, %v7119
    %v7136 = vmul.f32 %v7013, %v7120
    %v7137 = vmul.f32 %v7015, %v7121
    %v7138 = vmul.f32 %v7017, %v7122
    %v7139 = vmul.f32 %v7019, %v7123
    %v7140 = vmul.f32 %v7021, %v7124
    %v7141 = vmul.f32 %v7023, %v7125
    %v7142 = vmul.f32 %v7025, %v7126
    %v7143 = vmul.f32 %v7027, %v7127
    %v7144 = vmul.f32 %v7029, %v7128
    %v7145 = vmul.f32 %v7031, %v7129
    %v7146 = vmul.f32 %v7033, %v7130
    %v7147 = vmul.f32 %v7035, %v7131
    %7148 = vst [vmem:[#allocation3] sm:$0xff] %v7100
    %7149 = vst [vmem:[#allocation3 + $0x8] sm:$0xff] %v7101
    %7150 = vst [vmem:[#allocation3 + $0x10] sm:$0xff] %v7102
    %7151 = vst [vmem:[#allocation3 + $0x18] sm:$0xff] %v7103
    %7152 = vst [vmem:[#allocation3 + $0x20] sm:$0xff] %v7104
    %7153 = vst [vmem:[#allocation3 + $0x28] sm:$0xff] %v7105
    %7154 = vst [vmem:[#allocation3 + $0x30] sm:$0xff] %v7106
    %7155 = vst [vmem:[#allocation3 + $0x38] sm:$0xff] %v7107
    %7156 = vst [vmem:[#allocation3 + $0x40] sm:$0xff] %v7108
    %7157 = vst [vmem:[#allocation3 + $0x48] sm:$0xff] %v7109
    %7158 = vst [vmem:[#allocation3 + $0x50] sm:$0xff] %v7110
    %7159 = vst [vmem:[#allocation3 + $0x58] sm:$0xff] %v7111
    %7160 = vst [vmem:[#allocation3 + $0x60] sm:$0xff] %v7112
    %7161 = vst [vmem:[#allocation3 + $0x68] sm:$0xff] %v7113
    %7162 = vst [vmem:[#allocation3 + $0x70] sm:$0xff] %v7114
    %7163 = vst [vmem:[#allocation3 + $0x78] sm:$0xff] %v7115
    %v7164 = vpack.c.bf16 %v7136, %v7132
    %v7165 = vpack.c.bf16 %v7137, %v7133
    %v7166 = vpack.c.bf16 %v7138, %v7134
    %v7167 = vpack.c.bf16 %v7139, %v7135
    %v7168 = vpack.c.bf16 %v7144, %v7140
    %v7169 = vpack.c.bf16 %v7145, %v7141
    %v7170 = vpack.c.bf16 %v7146, %v7142
    %v7171 = vpack.c.bf16 %v7147, %v7143
    %7172 = vst [vmem:[#allocation2 + $0x20] sm:$0xff] %v7164
    %7173 = vst [vmem:[#allocation2 + $0x28] sm:$0xff] %v7165
    %7174 = vst [vmem:[#allocation2 + $0x30] sm:$0xff] %v7166
    %7175 = vst [vmem:[#allocation2 + $0x38] sm:$0xff] %v7167
    %7176 = vst [vmem:[#allocation2 + $0x40] sm:$0xff] %v7168
    %7177 = vst [vmem:[#allocation2 + $0x48] sm:$0xff] %v7169
    %7178 = vst [vmem:[#allocation2 + $0x50] sm:$0xff] %v7170
    %7179 = vst [vmem:[#allocation2 + $0x58] sm:$0xff] %v7171
    %s7180 = scalar_lea.vmem [#allocation7], 896
    %7181 = vst [vmem:[%s7180] sm:$0xff] %v7132
    %7182 = vst [vmem:[%s7180 + $0x8] sm:$0xff] %v7133
    %7183 = vst [vmem:[%s7180 + $0x10] sm:$0xff] %v7134
    %7184 = vst [vmem:[%s7180 + $0x18] sm:$0xff] %v7135
    %7185 = vst [vmem:[%s7180 + $0x20] sm:$0xff] %v7136
    %7186 = vst [vmem:[%s7180 + $0x28] sm:$0xff] %v7137
    %7187 = vst [vmem:[%s7180 + $0x30] sm:$0xff] %v7138
    %7188 = vst [vmem:[%s7180 + $0x38] sm:$0xff] %v7139
    %7189 = vst [vmem:[%s7180 + $0x40] sm:$0xff] %v7140
    %7190 = vst [vmem:[%s7180 + $0x48] sm:$0xff] %v7141
    %7191 = vst [vmem:[%s7180 + $0x50] sm:$0xff] %v7142
    %7192 = vst [vmem:[%s7180 + $0x58] sm:$0xff] %v7143
    %7193 = vst [vmem:[%s7180 + $0x60] sm:$0xff] %v7144
    %7194 = vst [vmem:[%s7180 + $0x68] sm:$0xff] %v7145
    %7195 = vst [vmem:[%s7180 + $0x70] sm:$0xff] %v7146
    %7196 = vst [vmem:[%s7180 + $0x78] sm:$0xff] %v7147
    // Predicated region
    $region22: #{tpu_custom_call.1} parent=1 // pred_check
      _
    $region23: #{tpu_custom_call.1} parent=1 // pred_check_branch
      %7198 = sbr.rel (0) target = $region25
    $region24: #{tpu_custom_call.1} parent=1 // pred_region
      %s7200 = ssub.s32 16384, 16384
      %7201 = vsyncadd [#allocation6], %s7200
      %s7202 = sshll.u32 [#allocation7], 4
      %s7203 = int_to_ptr.vmem [resolvable:$true] %s7202
      %7208 = dma.vmem_to_hbm [thread:$0]  %s7203, 16384, %s3, [#allocation6], 512, 512, 32
    $region25: #{tpu_custom_call.1} parent=1 // pred_fallthru
      _
    // Predicated region
    $region26: #{tpu_custom_call.1} parent=1 // pred_check
      _
    $region27: #{tpu_custom_call.1} parent=1 // pred_check_branch
      %7210 = sbr.rel (0) target = $region29
    $region28: #{tpu_custom_call.1} parent=1 // pred_region
      %7211 = dma.done [#allocation6], 16384
    $region29: #{tpu_custom_call.1} parent=1 // pred_fallthru
      _
    %7212 = vsyncpa [#allocation5], 1
    %7213 = vsyncpa [#allocation6], 1

</llo_original>
